<compile_context>
chip_gen: v7x
topology: tpu7x:2x2x1
jax: 0.10.0
libtpu: 0.0.40
codegen_flags: <defaults>
</compile_context>

<pallas_src>
import functools
import math

import jax
import jax.numpy as jnp
from jax.experimental import pallas as pl
from jax.experimental.pallas import tpu as pltpu

NUM_GROUPS = 8
EPS = 1e-6
LANES = 128


def _round_up(v, m):
    return (v + m - 1) // m * m


# --------------------------------- kernel ----------------------------------

def attn_block_kernel(x_ref, g_ref, be_ref, ga_ref,
                      wq_ref, bq_ref, wk_ref, bk_ref, wv_ref, bv_ref,
                      wp_ref, bp_ref, o_ref,
                      q_scr, kt_scr, v_scr, *, tq):
    """Grid = (batch tiles, query tiles).

    x_ref : (B, HW, Cp) f32   channels-last input (resident across the qi axis)
    g_ref, be_ref : (1, Cp)   GroupNorm gamma / beta (zero on padded channels)
    ga_ref: (Cp, Cp) f32      group-averaging matrix (1/group_size within group)
    w*_ref: (Cp, Cp) bf16     1x1-conv weights laid out (Cin, Cout); wq/bq carry
                              the 1/sqrt(C) attention scale
    b*_ref: (1, Cp) f32       biases (zero on padded channels)
    o_ref : (B, TQ, Cp) f32   output query tile (x + attention branch)
    q_scr : (B, HW, Cp) bf16  scaled q, computed at qi == 0
    kt_scr: (B, Cp, HW) bf16  K^T, computed at qi == 0
    v_scr : (B, HW, Cp) bf16  V, computed at qi == 0
    """
    b_tile, hw, cp = x_ref.shape
    qi = pl.program_id(1)

    # ---------------- once per image (batch tile): norm + q/k/v -------------
    @pl.when(qi == 0)
    def _prep():
        x = x_ref[...]                                     # (B, HW, Cp) f32

        # GroupNorm stats in one data pass: per-channel mean & mean-of-squares,
        # then one stacked matmul with the group-averaging matrix.
        mu_c = jnp.mean(x, axis=1)                         # (B, Cp)
        ex2_c = jnp.mean(x * x, axis=1)                    # (B, Cp)
        stats = jnp.concatenate([mu_c, ex2_c], axis=0)     # (2B, Cp)
        stats_g = jnp.dot(stats, ga_ref[...],
                          preferred_element_type=jnp.float32)
        mu_g = stats_g[:b_tile]                            # (B, Cp)
        var_g = jnp.maximum(stats_g[b_tile:] - mu_g * mu_g, 0.0)
        rstd = jax.lax.rsqrt(var_g + EPS)

        # Fold normalization + affine into a single x*sc + sh pass.
        sc = rstd * g_ref[...]                             # (B, Cp)
        sh = be_ref[...] - mu_g * sc                       # (B, Cp)
        hn = x * sc[:, None, :] + sh[:, None, :]
        hb = hn.astype(jnp.bfloat16).reshape(b_tile * hw, cp)

        # q / k / v projections: one big (B*HW, Cp) x (Cp, Cp) matmul each,
        # f32 accumulation; only the bf16 results stay live (VMEM scratch).
        q = (jnp.dot(hb, wq_ref[...], preferred_element_type=jnp.float32)
             + bq_ref[...]).astype(jnp.bfloat16)           # scale already folded in
        q_scr[...] = q.reshape(b_tile, hw, cp)

        k = (jnp.dot(hb, wk_ref[...], preferred_element_type=jnp.float32)
             + bk_ref[...]).astype(jnp.bfloat16).reshape(b_tile, hw, cp)
        for b in range(b_tile):                            # pre-transpose K once per image
            kt_scr[b] = k[b].T

        v = (jnp.dot(hb, wv_ref[...], preferred_element_type=jnp.float32)
             + bv_ref[...]).astype(jnp.bfloat16)
        v_scr[...] = v.reshape(b_tile, hw, cp)

    # ---------------- every query tile ----------------
    row0 = pl.multiple_of(qi * tq, tq)
    q_t = q_scr[:, pl.ds(row0, tq), :]                     # (B, TQ, Cp) bf16

    s = jnp.einsum('bqc,bck->bqk', q_t, kt_scr[...],
                   preferred_element_type=jnp.float32)     # (B, TQ, HW) f32
    m = jnp.max(s, axis=-1, keepdims=True)
    p = jnp.exp(s - m)
    l = jnp.sum(p, axis=-1, keepdims=True)                 # (B, TQ, 1) f32

    # Deferred softmax normalization: (TQ, Cp) multiply instead of (TQ, HW).
    attn = jnp.einsum('bqk,bkc->bqc', p.astype(jnp.bfloat16), v_scr[...],
                      preferred_element_type=jnp.float32)  # (B, TQ, Cp)
    attn = attn * pl.reciprocal(l, approx=True)

    out = (jnp.dot(attn.astype(jnp.bfloat16).reshape(b_tile * tq, cp),
                   wp_ref[...], preferred_element_type=jnp.float32)
           + bp_ref[...]).reshape(b_tile, tq, cp)

    # Residual: re-read the (already resident) input block instead of keeping
    # the full x value live across the body.
    x_t = x_ref[:, pl.ds(row0, tq), :]
    o_ref[...] = (x_t + out).astype(o_ref.dtype)


# -------------------------------- wrapper -----------------------------------

def attn_block_forward(x_nchw, params, *, num_groups=NUM_GROUPS):
    N, C, H, W = x_nchw.shape
    HW = H * W
    Cp = max(LANES, _round_up(C, LANES))        # lane-dense slabs & unmasked stores
    cg = C // num_groups
    pad = Cp - C
    scale = float(C) ** -0.5                    # int(c) ** (-0.5) from the module

    # Query tile: at small HW use one tile; at production HW use 256-row tiles
    # so the live score block is TQ*HW*4 bytes (fits v7x's 64 MiB VMEM).
    if HW <= 512:
        TQ = HW
    elif HW % 256 == 0:
        TQ = 256
    else:
        TQ = HW   # TODO(synk): generic divisor search for non-power-of-2 HW
    NQ = HW // TQ

    # Images per grid step: amortize per-step overhead at small shapes, capped
    # by a VMEM budget for the per-image resident slabs (x f32 double-buffered
    # + q/kT/v bf16 scratch).  Note: with very small N this trades away grid
    # depth for the v7x second TensorCore — per-step batching dominates here.
    per_img = HW * Cp * (4 * 2 + 2 * 3)
    B_TILE = max(1, min(N, 8, (8 << 20) // max(per_img, 1)))
    while N % B_TILE:
        B_TILE -= 1
    NB = N // B_TILE

    # NCHW -> (N, HW, Cp) channels-last, zero-padded channels (boundary glue).
    x3 = jnp.transpose(x_nchw, (0, 2, 3, 1)).reshape(N, HW, C).astype(jnp.float32)
    xp = jnp.pad(x3, ((0, 0), (0, 0), (0, pad)))

    def vec(p, s=1.0):   # (C,) -> (1, Cp) f32, zero padded (optionally scaled)
        return jnp.pad((p.astype(jnp.float32) * s).reshape(1, C), ((0, 0), (0, pad)))

    def mat(w_oi11, s=1.0):  # PyTorch (Cout, Cin, 1, 1) -> (Cp_in, Cp_out) bf16
        w = jnp.transpose(w_oi11[:, :, 0, 0], (1, 0)).astype(jnp.float32) * s
        return jnp.pad(w, ((0, pad), (0, pad))).astype(jnp.bfloat16)

    # Group-averaging matrix: A[i, j] = 1/cg iff channels i, j are real and in
    # the same group; padded channels stay exactly zero end to end.
    ii = jnp.arange(Cp)
    same = ((ii[:, None] // cg == ii[None, :] // cg)
            & (ii[:, None] < C) & (ii[None, :] < C))
    ga = same.astype(jnp.float32) / float(cg)

    args = (xp, vec(params["norm_g"]), vec(params["norm_b"]), ga,
            mat(params["q_w"], scale), vec(params["q_b"], scale),   # scale folded into q
            mat(params["k_w"]), vec(params["k_b"]),
            mat(params["v_w"]), vec(params["v_b"]),
            mat(params["proj_w"]), vec(params["proj_b"]))

    def build(single_buffer_consts):
        def const_spec(shape):
            idx = lambda b, qi, _n=len(shape): (0,) * _n
            if single_buffer_consts and hasattr(pl, "Buffered"):
                # Grid-invariant operands: no double-buffering -> VMEM headroom.
                return pl.BlockSpec(shape, idx, pipeline_mode=pl.Buffered(1))
            return pl.BlockSpec(shape, idx)

        grid_spec = pltpu.PrefetchScalarGridSpec(
            num_scalar_prefetch=0,
            grid=(NB, NQ),
            in_specs=[
                pl.BlockSpec((B_TILE, HW, Cp), lambda b, qi: (b, 0, 0)),  # x (resident over qi)
                const_spec((1, Cp)), const_spec((1, Cp)),                 # gamma / beta
                const_spec((Cp, Cp)),                                     # group-avg matrix
                const_spec((Cp, Cp)), const_spec((1, Cp)),                # q (scaled)
                const_spec((Cp, Cp)), const_spec((1, Cp)),                # k
                const_spec((Cp, Cp)), const_spec((1, Cp)),                # v
                const_spec((Cp, Cp)), const_spec((1, Cp)),                # proj_out
            ],
            out_specs=pl.BlockSpec((B_TILE, TQ, Cp), lambda b, qi: (b, qi, 0)),
            scratch_shapes=[
                pltpu.VMEM((B_TILE, HW, Cp), jnp.bfloat16),   # scaled q
                pltpu.VMEM((B_TILE, Cp, HW), jnp.bfloat16),   # K^T
                pltpu.VMEM((B_TILE, HW, Cp), jnp.bfloat16),   # V
            ],
        )

        # Rough resident-VMEM estimate; only raise the scoped limit when we
        # might exceed v5e's 16 MiB default (i.e. production spatial sizes).
        resident = (B_TILE * HW * Cp * 4 * 2          # x, double-buffered f32
                    + B_TILE * TQ * Cp * 4 * 2        # out, double-buffered f32
                    + 3 * B_TILE * HW * Cp * 2        # q / K^T / V scratch bf16
                    + B_TILE * TQ * HW * 4 * 2        # score + exp temporaries f32
                    + 5 * Cp * Cp * 4 + 10 * Cp * 4)  # weights, ga, biases
        cp_kwargs = {}
        if resident > (12 << 20):
            cp_kwargs["vmem_limit_bytes"] = int(min(resident * 3 // 2, 96 << 20))

        return pl.pallas_call(
            functools.partial(attn_block_kernel, tq=TQ),
            out_shape=jax.ShapeDtypeStruct((N, HW, Cp), jnp.float32),
            grid_spec=grid_spec,
            compiler_params=pltpu.CompilerParams(
                dimension_semantics=("parallel", "arbitrary"), **cp_kwargs),
        )

    try:
        out = build(True)(*args)
    except Exception:
        # Fallback if pipeline_mode=pl.Buffered(1) is rejected by this jax/libtpu.
        out = build(False)(*args)

    out = out[:, :, :C].reshape(N, H, W, C)
    return jnp.transpose(out, (0, 3, 1, 2))               # back to NCHW


# ---------------------- deterministic parameter init ------------------------

def init_params(key, in_ch):
    ks = jax.random.split(key, 6)

    def conv1x1_init(k, c):
        bound = 1.0 / math.sqrt(c)
        kw, kb = jax.random.split(k)
        w = jax.random.uniform(kw, (c, c, 1, 1), jnp.float32, -bound, bound)
        b = jax.random.uniform(kb, (c,), jnp.float32, -bound, bound)
        return w, b

    p = {}
    p["norm_g"] = 1.0 + 0.1 * jax.random.normal(ks[0], (in_ch,), jnp.float32)
    p["norm_b"] = 0.1 * jax.random.normal(ks[1], (in_ch,), jnp.float32)
    p["q_w"], p["q_b"] = conv1x1_init(ks[2], in_ch)
    p["k_w"], p["k_b"] = conv1x1_init(ks[3], in_ch)
    p["v_w"], p["v_b"] = conv1x1_init(ks[4], in_ch)
    p["proj_w"], p["proj_b"] = conv1x1_init(ks[5], in_ch)
    return p


# ------------------------------ JAX reference --------------------------------

def attn_block_ref(x, p, num_groups=NUM_GROUPS):
    N, C, H, W = x.shape
    HW = H * W

    def gn(h):
        hg = h.reshape(N, num_groups, C // num_groups, H, W)
        mean = hg.mean(axis=(2, 3, 4), keepdims=True)
        var = ((hg - mean) ** 2).mean(axis=(2, 3, 4), keepdims=True)
        hn = ((hg - mean) / jnp.sqrt(var + EPS)).reshape(N, C, H, W)
        return hn * p["norm_g"].reshape(1, C, 1, 1) + p["norm_b"].reshape(1, C, 1, 1)

    def conv1x1(h, w, b):
        return jnp.einsum('nchw,oc->nohw', h, w[:, :, 0, 0]) + b.reshape(1, C, 1, 1)

    h = gn(x)
    q = conv1x1(h, p["q_w"], p["q_b"]).reshape(N, C, HW)
    k = conv1x1(h, p["k_w"], p["k_b"]).reshape(N, C, HW)
    v = conv1x1(h, p["v_w"], p["v_b"]).reshape(N, C, HW)

    w_ = jnp.einsum('ncq,nck->nqk', q, k) * (float(C) ** -0.5)   # q^T k, scaled
    w_ = jax.nn.softmax(w_, axis=2)
    h_ = jnp.einsum('nck,nqk->ncq', v, w_).reshape(N, C, H, W)   # v @ w_^T
    h_ = conv1x1(h_, p["proj_w"], p["proj_b"])
    return x + h_


# ---------------------------------- main -------------------------------------

if __name__ == "__main__":
    key = jax.random.PRNGKey(0)
    kx, kp = jax.random.split(key)

    N, C, H, W = 2, 32, 16, 16
    x = jax.random.normal(kx, (N, C, H, W), jnp.float32)     # NCHW (PyTorch conv.)
    params = init_params(kp, C)

    out = jax.block_until_ready(attn_block_forward(x, params))
    ref = jax.block_until_ready(attn_block_ref(x, params))

    assert out.shape == (N, C, H, W)
    max_err = float(jnp.max(jnp.abs(out - ref)))
    # bf16 MXU operands (f32 accumulation) + approx EUP reciprocal -> relaxed tol.
    assert jnp.allclose(out, ref, rtol=2e-2, atol=2e-2), max_err

    print("KERNEL_OK")
</pallas_src>

<mosaic_0001>
module attributes {stable_mosaic.version = 11 : i64} {
  func.func @attn_block_kernel(%arg0: i32, %arg1: i32, %arg2: memref<2x256x128xf32, #tpu.memory_space<vmem>>, %arg3: memref<1x128xf32, #tpu.memory_space<vmem>>, %arg4: memref<1x128xf32, #tpu.memory_space<vmem>>, %arg5: memref<128x128xf32, #tpu.memory_space<vmem>>, %arg6: memref<128x128xbf16, #tpu.memory_space<vmem>>, %arg7: memref<1x128xf32, #tpu.memory_space<vmem>>, %arg8: memref<128x128xbf16, #tpu.memory_space<vmem>>, %arg9: memref<1x128xf32, #tpu.memory_space<vmem>>, %arg10: memref<128x128xbf16, #tpu.memory_space<vmem>>, %arg11: memref<1x128xf32, #tpu.memory_space<vmem>>, %arg12: memref<128x128xbf16, #tpu.memory_space<vmem>>, %arg13: memref<1x128xf32, #tpu.memory_space<vmem>>, %arg14: memref<2x256x128xf32, #tpu.memory_space<vmem>>, %arg15: memref<2x256x128xbf16, #tpu.memory_space<vmem>>, %arg16: memref<2x128x256xbf16, #tpu.memory_space<vmem>>, %arg17: memref<2x256x128xbf16, #tpu.memory_space<vmem>>) attributes {dimension_semantics = [#tpu.dimension_semantics<parallel>, #tpu.dimension_semantics<arbitrary>], iteration_bounds = array<i64: 1, 1>, scalar_prefetch = 0 : i64, scratch_operands = 3 : i64, tpu.core_type = #tpu.core_type<tc>, window_params = [{transform_indices = @transform_0, window_bounds = array<i64: 2, 256, 128>}, {pipeline_mode = #tpu.pipeline_mode<synchronous>, transform_indices = @transform_1, window_bounds = array<i64: 1, 128>}, {pipeline_mode = #tpu.pipeline_mode<synchronous>, transform_indices = @transform_2, window_bounds = array<i64: 1, 128>}, {pipeline_mode = #tpu.pipeline_mode<synchronous>, transform_indices = @transform_3, window_bounds = array<i64: 128, 128>}, {pipeline_mode = #tpu.pipeline_mode<synchronous>, transform_indices = @transform_4, window_bounds = array<i64: 128, 128>}, {pipeline_mode = #tpu.pipeline_mode<synchronous>, transform_indices = @transform_5, window_bounds = array<i64: 1, 128>}, {pipeline_mode = #tpu.pipeline_mode<synchronous>, transform_indices = @transform_6, window_bounds = array<i64: 128, 128>}, {pipeline_mode = #tpu.pipeline_mode<synchronous>, transform_indices = @transform_7, window_bounds = array<i64: 1, 128>}, {pipeline_mode = #tpu.pipeline_mode<synchronous>, transform_indices = @transform_8, window_bounds = array<i64: 128, 128>}, {pipeline_mode = #tpu.pipeline_mode<synchronous>, transform_indices = @transform_9, window_bounds = array<i64: 1, 128>}, {pipeline_mode = #tpu.pipeline_mode<synchronous>, transform_indices = @transform_10, window_bounds = array<i64: 128, 128>}, {pipeline_mode = #tpu.pipeline_mode<synchronous>, transform_indices = @transform_11, window_bounds = array<i64: 1, 128>}, {transform_indices = @transform_12, window_bounds = array<i64: 2, 256, 128>}]} {
    %c0_i32 = arith.constant 0 : i32
    %0 = arith.cmpi eq, %arg1, %c0_i32 : i32
    %1 = arith.extui %0 : i1 to i32
    %c0_i32_0 = arith.constant 0 : i32
    %2 = arith.cmpi ne, %1, %c0_i32_0 : i32
    scf.if %2 {
      %c0_21 = arith.constant 0 : index
      %c0_22 = arith.constant 0 : index
      %c0_23 = arith.constant 0 : index
      %34 = vector.load %arg2[%c0_21, %c0_22, %c0_23] : memref<2x256x128xf32, #tpu.memory_space<vmem>>, vector<2x256x128xf32>
      %cst_24 = arith.constant dense<0.000000e+00> : vector<2x128xf32>
      %35 = vector.multi_reduction <add>, %34, %cst_24 [1] : vector<2x256x128xf32> to vector<2x128xf32>
      %cst_25 = arith.constant 2.560000e+02 : f32
      %36 = vector.broadcast %cst_25 : f32 to vector<2x128xf32>
      %37 = arith.divf %35, %36 : vector<2x128xf32>
      %38 = arith.mulf %34, %34 : vector<2x256x128xf32>
      %cst_26 = arith.constant dense<0.000000e+00> : vector<2x128xf32>
      %39 = vector.multi_reduction <add>, %38, %cst_26 [1] : vector<2x256x128xf32> to vector<2x128xf32>
      %cst_27 = arith.constant 2.560000e+02 : f32
      %40 = vector.broadcast %cst_27 : f32 to vector<2x128xf32>
      %41 = arith.divf %39, %40 : vector<2x128xf32>
      %42 = tpu.concatenate %37, %41 in 0 : vector<2x128xf32>, vector<2x128xf32> -> vector<4x128xf32>
      %c0_28 = arith.constant 0 : index
      %c0_29 = arith.constant 0 : index
      %43 = vector.load %arg5[%c0_28, %c0_29] : memref<128x128xf32, #tpu.memory_space<vmem>>, vector<128x128xf32>
      %cst_30 = arith.constant dense<0.000000e+00> : vector<4x128xf32>
      %44 = tpu.matmul %42, %43, %cst_30 {dimension_numbers = #tpu.dot_dimension_numbers<[1], [0], [0], [1], [0, 0, 1, 1], [], []>} : vector<4x128xf32>, vector<128x128xf32>, vector<4x128xf32> -> vector<4x128xf32>
      %45 = vector.extract_strided_slice %44 {offsets = [0, 0], sizes = [2, 128], strides = [1, 1]} : vector<4x128xf32> to vector<2x128xf32>
      %46 = vector.extract_strided_slice %44 {offsets = [2, 0], sizes = [2, 128], strides = [1, 1]} : vector<4x128xf32> to vector<2x128xf32>
      %47 = arith.mulf %45, %45 : vector<2x128xf32>
      %48 = arith.subf %46, %47 : vector<2x128xf32>
      %cst_31 = arith.constant 0.000000e+00 : f32
      %49 = vector.broadcast %cst_31 : f32 to vector<2x128xf32>
      %50 = arith.maximumf %48, %49 : vector<2x128xf32>
      %cst_32 = arith.constant 9.99999997E-7 : f32
      %51 = vector.broadcast %cst_32 : f32 to vector<2x128xf32>
      %52 = arith.addf %50, %51 : vector<2x128xf32>
      %53 = math.rsqrt %52 : vector<2x128xf32>
      %c0_33 = arith.constant 0 : index
      %c0_34 = arith.constant 0 : index
      %54 = vector.load %arg3[%c0_33, %c0_34] : memref<1x128xf32, #tpu.memory_space<vmem>>, vector<1x128xf32>
      %55 = vector.broadcast %54 : vector<1x128xf32> to vector<2x128xf32>
      %56 = arith.mulf %53, %55 : vector<2x128xf32>
      %c0_35 = arith.constant 0 : index
      %c0_36 = arith.constant 0 : index
      %57 = vector.load %arg4[%c0_35, %c0_36] : memref<1x128xf32, #tpu.memory_space<vmem>>, vector<1x128xf32>
      %58 = arith.mulf %45, %56 : vector<2x128xf32>
      %59 = vector.broadcast %57 : vector<1x128xf32> to vector<2x128xf32>
      %60 = arith.subf %59, %58 : vector<2x128xf32>
      %61 = vector.shape_cast %56 : vector<2x128xf32> to vector<2x1x128xf32>
      %62 = vector.broadcast %61 : vector<2x1x128xf32> to vector<2x256x128xf32>
      %63 = arith.mulf %34, %62 : vector<2x256x128xf32>
      %64 = vector.shape_cast %60 : vector<2x128xf32> to vector<2x1x128xf32>
      %65 = vector.broadcast %64 : vector<2x1x128xf32> to vector<2x256x128xf32>
      %66 = arith.addf %63, %65 : vector<2x256x128xf32>
      %67 = arith.truncf %66 : vector<2x256x128xf32> to vector<2x256x128xbf16>
      %68 = vector.shape_cast %67 : vector<2x256x128xbf16> to vector<512x128xbf16>
      %c0_37 = arith.constant 0 : index
      %c0_38 = arith.constant 0 : index
      %69 = vector.load %arg6[%c0_37, %c0_38] : memref<128x128xbf16, #tpu.memory_space<vmem>>, vector<128x128xbf16>
      %cst_39 = arith.constant dense<0.000000e+00> : vector<512x128xf32>
      %70 = tpu.matmul %68, %69, %cst_39 {dimension_numbers = #tpu.dot_dimension_numbers<[1], [0], [0], [1], [0, 0, 1, 1], [], []>} : vector<512x128xbf16>, vector<128x128xbf16>, vector<512x128xf32> -> vector<512x128xf32>
      %c0_40 = arith.constant 0 : index
      %c0_41 = arith.constant 0 : index
      %71 = vector.load %arg7[%c0_40, %c0_41] : memref<1x128xf32, #tpu.memory_space<vmem>>, vector<1x128xf32>
      %72 = vector.broadcast %71 : vector<1x128xf32> to vector<512x128xf32>
      %73 = arith.addf %70, %72 : vector<512x128xf32>
      %74 = arith.truncf %73 : vector<512x128xf32> to vector<512x128xbf16>
      %75 = vector.shape_cast %74 : vector<512x128xbf16> to vector<2x256x128xbf16>
      %c0_42 = arith.constant 0 : index
      %c0_43 = arith.constant 0 : index
      %c0_44 = arith.constant 0 : index
      %76 = vector.load %arg15[%c0_42, %c0_43, %c0_44] : memref<2x256x128xbf16, #tpu.memory_space<vmem>>, vector<2x256x128xbf16>
      tpu.vector_store %arg15[%c0_42, %c0_43, %c0_44], %75 {strides = array<i32>} : memref<2x256x128xbf16, #tpu.memory_space<vmem>>, vector<2x256x128xbf16>,
      %c0_45 = arith.constant 0 : index
      %c0_46 = arith.constant 0 : index
      %77 = vector.load %arg8[%c0_45, %c0_46] : memref<128x128xbf16, #tpu.memory_space<vmem>>, vector<128x128xbf16>
      %cst_47 = arith.constant dense<0.000000e+00> : vector<512x128xf32>
      %78 = tpu.matmul %68, %77, %cst_47 {dimension_numbers = #tpu.dot_dimension_numbers<[1], [0], [0], [1], [0, 0, 1, 1], [], []>} : vector<512x128xbf16>, vector<128x128xbf16>, vector<512x128xf32> -> vector<512x128xf32>
      %c0_48 = arith.constant 0 : index
      %c0_49 = arith.constant 0 : index
      %79 = vector.load %arg9[%c0_48, %c0_49] : memref<1x128xf32, #tpu.memory_space<vmem>>, vector<1x128xf32>
      %80 = vector.broadcast %79 : vector<1x128xf32> to vector<512x128xf32>
      %81 = arith.addf %78, %80 : vector<512x128xf32>
      %82 = arith.truncf %81 : vector<512x128xf32> to vector<512x128xbf16>
      %83 = vector.shape_cast %82 : vector<512x128xbf16> to vector<2x256x128xbf16>
      %84 = vector.extract_strided_slice %83 {offsets = [0, 0, 0], sizes = [1, 256, 128], strides = [1, 1, 1]} : vector<2x256x128xbf16> to vector<1x256x128xbf16>
      %85 = vector.shape_cast %84 : vector<1x256x128xbf16> to vector<256x128xbf16>
      %86 = tpu.transpose %85, [1, 0] : vector<256x128xbf16> -> vector<128x256xbf16>
      %c0_50 = arith.constant 0 : index
      %c0_51 = arith.constant 0 : index
      %c0_52 = arith.constant 0 : index
      %87 = vector.load %arg16[%c0_50, %c0_51, %c0_52] : memref<2x128x256xbf16, #tpu.memory_space<vmem>>, vector<1x128x256xbf16>
      %88 = vector.shape_cast %87 : vector<1x128x256xbf16> to vector<128x256xbf16>
      %89 = vector.shape_cast %86 : vector<128x256xbf16> to vector<1x128x256xbf16>
      tpu.vector_store %arg16[%c0_50, %c0_51, %c0_52], %89 {strides = array<i32>} : memref<2x128x256xbf16, #tpu.memory_space<vmem>>, vector<1x128x256xbf16>,
      %90 = vector.extract_strided_slice %83 {offsets = [1, 0, 0], sizes = [1, 256, 128], strides = [1, 1, 1]} : vector<2x256x128xbf16> to vector<1x256x128xbf16>
      %91 = vector.shape_cast %90 : vector<1x256x128xbf16> to vector<256x128xbf16>
      %92 = tpu.transpose %91, [1, 0] : vector<256x128xbf16> -> vector<128x256xbf16>
      %c1 = arith.constant 1 : index
      %c0_53 = arith.constant 0 : index
      %c0_54 = arith.constant 0 : index
      %93 = vector.load %arg16[%c1, %c0_53, %c0_54] : memref<2x128x256xbf16, #tpu.memory_space<vmem>>, vector<1x128x256xbf16>
      %94 = vector.shape_cast %93 : vector<1x128x256xbf16> to vector<128x256xbf16>
      %95 = vector.shape_cast %92 : vector<128x256xbf16> to vector<1x128x256xbf16>
      tpu.vector_store %arg16[%c1, %c0_53, %c0_54], %95 {strides = array<i32>} : memref<2x128x256xbf16, #tpu.memory_space<vmem>>, vector<1x128x256xbf16>,
      %c0_55 = arith.constant 0 : index
      %c0_56 = arith.constant 0 : index
      %96 = vector.load %arg10[%c0_55, %c0_56] : memref<128x128xbf16, #tpu.memory_space<vmem>>, vector<128x128xbf16>
      %cst_57 = arith.constant dense<0.000000e+00> : vector<512x128xf32>
      %97 = tpu.matmul %68, %96, %cst_57 {dimension_numbers = #tpu.dot_dimension_numbers<[1], [0], [0], [1], [0, 0, 1, 1], [], []>} : vector<512x128xbf16>, vector<128x128xbf16>, vector<512x128xf32> -> vector<512x128xf32>
      %c0_58 = arith.constant 0 : index
      %c0_59 = arith.constant 0 : index
      %98 = vector.load %arg11[%c0_58, %c0_59] : memref<1x128xf32, #tpu.memory_space<vmem>>, vector<1x128xf32>
      %99 = vector.broadcast %98 : vector<1x128xf32> to vector<512x128xf32>
      %100 = arith.addf %97, %99 : vector<512x128xf32>
      %101 = arith.truncf %100 : vector<512x128xf32> to vector<512x128xbf16>
      %102 = vector.shape_cast %101 : vector<512x128xbf16> to vector<2x256x128xbf16>
      %c0_60 = arith.constant 0 : index
      %c0_61 = arith.constant 0 : index
      %c0_62 = arith.constant 0 : index
      %103 = vector.load %arg17[%c0_60, %c0_61, %c0_62] : memref<2x256x128xbf16, #tpu.memory_space<vmem>>, vector<2x256x128xbf16>
      tpu.vector_store %arg17[%c0_60, %c0_61, %c0_62], %102 {strides = array<i32>} : memref<2x256x128xbf16, #tpu.memory_space<vmem>>, vector<2x256x128xbf16>,
    } else {
    }
    %c256_i32 = arith.constant 256 : i32
    %3 = arith.muli %arg1, %c256_i32 : i32
    %4 = tpu.assume_multiple %3, 256 : i32
    %c0 = arith.constant 0 : index
    %5 = arith.index_cast %4 : i32 to index
    %c0_1 = arith.constant 0 : index
    %6 = vector.load %arg15[%c0, %5, %c0_1] : memref<2x256x128xbf16, #tpu.memory_space<vmem>>, vector<2x256x128xbf16>
    %c0_2 = arith.constant 0 : index
    %c0_3 = arith.constant 0 : index
    %c0_4 = arith.constant 0 : index
    %7 = vector.load %arg16[%c0_2, %c0_3, %c0_4] : memref<2x128x256xbf16, #tpu.memory_space<vmem>>, vector<2x128x256xbf16>
    "tpu.trace_start"() <{level = 10 : i32, message = "bqc,bck->bqk"}> : () -> ()
    %cst = arith.constant dense<0.000000e+00> : vector<2x256x256xf32>
    %8 = tpu.matmul %6, %7, %cst {dimension_numbers = #tpu.dot_dimension_numbers<[2], [1], [1], [2], [0, 0, 0, 1, 1, 2], [0], [0]>} : vector<2x256x128xbf16>, vector<2x128x256xbf16>, vector<2x256x256xf32> -> vector<2x256x256xf32>
    "tpu.trace_stop"() : () -> ()
    %cst_5 = arith.constant dense<0xFF800000> : vector<2x256xf32>
    %9 = vector.multi_reduction <maximumf>, %8, %cst_5 [2] : vector<2x256x256xf32> to vector<2x256xf32>
    %10 = vector.shape_cast %9 : vector<2x256xf32> to vector<2x256x1xf32>
    %11 = vector.broadcast %10 : vector<2x256x1xf32> to vector<2x256x256xf32>
    %12 = arith.subf %8, %11 : vector<2x256x256xf32>
    %13 = math.exp %12 : vector<2x256x256xf32>
    %cst_6 = arith.constant dense<0.000000e+00> : vector<2x256xf32>
    %14 = vector.multi_reduction <add>, %13, %cst_6 [2] : vector<2x256x256xf32> to vector<2x256xf32>
    %15 = vector.shape_cast %14 : vector<2x256xf32> to vector<2x256x1xf32>
    %16 = arith.truncf %13 : vector<2x256x256xf32> to vector<2x256x256xbf16>
    %c0_7 = arith.constant 0 : index
    %c0_8 = arith.constant 0 : index
    %c0_9 = arith.constant 0 : index
    %17 = vector.load %arg17[%c0_7, %c0_8, %c0_9] : memref<2x256x128xbf16, #tpu.memory_space<vmem>>, vector<2x256x128xbf16>
    "tpu.trace_start"() <{level = 10 : i32, message = "bqk,bkc->bqc"}> : () -> ()
    %cst_10 = arith.constant dense<0.000000e+00> : vector<2x256x128xf32>
    %18 = tpu.matmul %16, %17, %cst_10 {dimension_numbers = #tpu.dot_dimension_numbers<[2], [1], [1], [2], [0, 0, 0, 1, 1, 2], [0], [0]>} : vector<2x256x256xbf16>, vector<2x256x128xbf16>, vector<2x256x128xf32> -> vector<2x256x128xf32>
    "tpu.trace_stop"() : () -> ()
    %19 = tpu.reciprocal %15 {approx = true} : vector<2x256x1xf32> -> vector<2x256x1xf32>
    %20 = vector.broadcast %19 : vector<2x256x1xf32> to vector<2x256x128xf32>
    %21 = arith.mulf %18, %20 : vector<2x256x128xf32>
    %22 = arith.truncf %21 : vector<2x256x128xf32> to vector<2x256x128xbf16>
    %23 = vector.shape_cast %22 : vector<2x256x128xbf16> to vector<512x128xbf16>
    %c0_11 = arith.constant 0 : index
    %c0_12 = arith.constant 0 : index
    %24 = vector.load %arg12[%c0_11, %c0_12] : memref<128x128xbf16, #tpu.memory_space<vmem>>, vector<128x128xbf16>
    %cst_13 = arith.constant dense<0.000000e+00> : vector<512x128xf32>
    %25 = tpu.matmul %23, %24, %cst_13 {dimension_numbers = #tpu.dot_dimension_numbers<[1], [0], [0], [1], [0, 0, 1, 1], [], []>} : vector<512x128xbf16>, vector<128x128xbf16>, vector<512x128xf32> -> vector<512x128xf32>
    %c0_14 = arith.constant 0 : index
    %c0_15 = arith.constant 0 : index
    %26 = vector.load %arg13[%c0_14, %c0_15] : memref<1x128xf32, #tpu.memory_space<vmem>>, vector<1x128xf32>
    %27 = vector.broadcast %26 : vector<1x128xf32> to vector<512x128xf32>
    %28 = arith.addf %25, %27 : vector<512x128xf32>
    %29 = vector.shape_cast %28 : vector<512x128xf32> to vector<2x256x128xf32>
    %c0_16 = arith.constant 0 : index
    %30 = arith.index_cast %4 : i32 to index
    %c0_17 = arith.constant 0 : index
    %31 = vector.load %arg2[%c0_16, %30, %c0_17] : memref<2x256x128xf32, #tpu.memory_space<vmem>>, vector<2x256x128xf32>
    %32 = arith.addf %31, %29 : vector<2x256x128xf32>
    %c0_18 = arith.constant 0 : index
    %c0_19 = arith.constant 0 : index
    %c0_20 = arith.constant 0 : index
    %33 = vector.load %arg14[%c0_18, %c0_19, %c0_20] : memref<2x256x128xf32, #tpu.memory_space<vmem>>, vector<2x256x128xf32>
    tpu.vector_store %arg14[%c0_18, %c0_19, %c0_20], %32 {strides = array<i32>} : memref<2x256x128xf32, #tpu.memory_space<vmem>>, vector<2x256x128xf32>,
    return
  }
  func.func @transform_0(%arg0: i32, %arg1: i32) -> (i32, i32, i32) {
    %c0_i32 = arith.constant 0 : i32
    %c0_i32_0 = arith.constant 0 : i32
    %c0_i32_1 = arith.constant 0 : i32
    return %arg0, %c0_i32, %c0_i32_0 : i32, i32, i32
  }
  func.func @transform_1(%arg0: i32, %arg1: i32) -> (i32, i32) {
    %c0_i32 = arith.constant 0 : i32
    %c0_i32_0 = arith.constant 0 : i32
    %c0_i32_1 = arith.constant 0 : i32
    return %c0_i32, %c0_i32_0 : i32, i32
  }
  func.func @transform_2(%arg0: i32, %arg1: i32) -> (i32, i32) {
    %c0_i32 = arith.constant 0 : i32
    %c0_i32_0 = arith.constant 0 : i32
    %c0_i32_1 = arith.constant 0 : i32
    return %c0_i32, %c0_i32_0 : i32, i32
  }
  func.func @transform_3(%arg0: i32, %arg1: i32) -> (i32, i32) {
    %c0_i32 = arith.constant 0 : i32
    %c0_i32_0 = arith.constant 0 : i32
    %c0_i32_1 = arith.constant 0 : i32
    return %c0_i32, %c0_i32_0 : i32, i32
  }
  func.func @transform_4(%arg0: i32, %arg1: i32) -> (i32, i32) {
    %c0_i32 = arith.constant 0 : i32
    %c0_i32_0 = arith.constant 0 : i32
    %c0_i32_1 = arith.constant 0 : i32
    return %c0_i32, %c0_i32_0 : i32, i32
  }
  func.func @transform_5(%arg0: i32, %arg1: i32) -> (i32, i32) {
    %c0_i32 = arith.constant 0 : i32
    %c0_i32_0 = arith.constant 0 : i32
    %c0_i32_1 = arith.constant 0 : i32
    return %c0_i32, %c0_i32_0 : i32, i32
  }
  func.func @transform_6(%arg0: i32, %arg1: i32) -> (i32, i32) {
    %c0_i32 = arith.constant 0 : i32
    %c0_i32_0 = arith.constant 0 : i32
    %c0_i32_1 = arith.constant 0 : i32
    return %c0_i32, %c0_i32_0 : i32, i32
  }
  func.func @transform_7(%arg0: i32, %arg1: i32) -> (i32, i32) {
    %c0_i32 = arith.constant 0 : i32
    %c0_i32_0 = arith.constant 0 : i32
    %c0_i32_1 = arith.constant 0 : i32
    return %c0_i32, %c0_i32_0 : i32, i32
  }
  func.func @transform_8(%arg0: i32, %arg1: i32) -> (i32, i32) {
    %c0_i32 = arith.constant 0 : i32
    %c0_i32_0 = arith.constant 0 : i32
    %c0_i32_1 = arith.constant 0 : i32
    return %c0_i32, %c0_i32_0 : i32, i32
  }
  func.func @transform_9(%arg0: i32, %arg1: i32) -> (i32, i32) {
    %c0_i32 = arith.constant 0 : i32
    %c0_i32_0 = arith.constant 0 : i32
    %c0_i32_1 = arith.constant 0 : i32
    return %c0_i32, %c0_i32_0 : i32, i32
  }
  func.func @transform_10(%arg0: i32, %arg1: i32) -> (i32, i32) {
    %c0_i32 = arith.constant 0 : i32
    %c0_i32_0 = arith.constant 0 : i32
    %c0_i32_1 = arith.constant 0 : i32
    return %c0_i32, %c0_i32_0 : i32, i32
  }
  func.func @transform_11(%arg0: i32, %arg1: i32) -> (i32, i32) {
    %c0_i32 = arith.constant 0 : i32
    %c0_i32_0 = arith.constant 0 : i32
    %c0_i32_1 = arith.constant 0 : i32
    return %c0_i32, %c0_i32_0 : i32, i32
  }
  func.func @transform_12(%arg0: i32, %arg1: i32) -> (i32, i32, i32) {
    %c0_i32 = arith.constant 0 : i32
    %c0_i32_0 = arith.constant 0 : i32
    return %arg0, %arg1, %c0_i32 : i32, i32, i32
  }
}

module attributes {stable_mosaic.version = 11 : i64} {
  func.func @attn_block_kernel(%arg0: i32, %arg1: i32, %arg2: memref<2x256x128xf32, #tpu.memory_space<vmem>>, %arg3: memref<1x128xf32, #tpu.memory_space<vmem>>, %arg4: memref<1x128xf32, #tpu.memory_space<vmem>>, %arg5: memref<128x128xf32, #tpu.memory_space<vmem>>, %arg6: memref<128x128xbf16, #tpu.memory_space<vmem>>, %arg7: memref<1x128xf32, #tpu.memory_space<vmem>>, %arg8: memref<128x128xbf16, #tpu.memory_space<vmem>>, %arg9: memref<1x128xf32, #tpu.memory_space<vmem>>, %arg10: memref<128x128xbf16, #tpu.memory_space<vmem>>, %arg11: memref<1x128xf32, #tpu.memory_space<vmem>>, %arg12: memref<128x128xbf16, #tpu.memory_space<vmem>>, %arg13: memref<1x128xf32, #tpu.memory_space<vmem>>, %arg14: memref<2x256x128xf32, #tpu.memory_space<vmem>>, %arg15: memref<2x256x128xbf16, #tpu.memory_space<vmem>>, %arg16: memref<2x128x256xbf16, #tpu.memory_space<vmem>>, %arg17: memref<2x256x128xbf16, #tpu.memory_space<vmem>>) attributes {dimension_semantics = [#tpu.dimension_semantics<parallel>, #tpu.dimension_semantics<arbitrary>], iteration_bounds = array<i64: 1, 1>, scalar_prefetch = 0 : i64, scratch_operands = 3 : i64, tpu.core_type = #tpu.core_type<tc>, window_params = [{transform_indices = @transform_0, window_bounds = array<i64: 2, 256, 128>}, {pipeline_mode = #tpu.pipeline_mode<synchronous>, transform_indices = @transform_1, window_bounds = array<i64: 1, 128>}, {pipeline_mode = #tpu.pipeline_mode<synchronous>, transform_indices = @transform_2, window_bounds = array<i64: 1, 128>}, {pipeline_mode = #tpu.pipeline_mode<synchronous>, transform_indices = @transform_3, window_bounds = array<i64: 128, 128>}, {pipeline_mode = #tpu.pipeline_mode<synchronous>, transform_indices = @transform_4, window_bounds = array<i64: 128, 128>}, {pipeline_mode = #tpu.pipeline_mode<synchronous>, transform_indices = @transform_5, window_bounds = array<i64: 1, 128>}, {pipeline_mode = #tpu.pipeline_mode<synchronous>, transform_indices = @transform_6, window_bounds = array<i64: 128, 128>}, {pipeline_mode = #tpu.pipeline_mode<synchronous>, transform_indices = @transform_7, window_bounds = array<i64: 1, 128>}, {pipeline_mode = #tpu.pipeline_mode<synchronous>, transform_indices = @transform_8, window_bounds = array<i64: 128, 128>}, {pipeline_mode = #tpu.pipeline_mode<synchronous>, transform_indices = @transform_9, window_bounds = array<i64: 1, 128>}, {pipeline_mode = #tpu.pipeline_mode<synchronous>, transform_indices = @transform_10, window_bounds = array<i64: 128, 128>}, {pipeline_mode = #tpu.pipeline_mode<synchronous>, transform_indices = @transform_11, window_bounds = array<i64: 1, 128>}, {transform_indices = @transform_12, window_bounds = array<i64: 2, 256, 128>}]} {
    %c0_i32 = arith.constant 0 : i32
    %0 = arith.cmpi eq, %arg1, %c0_i32 : i32
    %1 = arith.extui %0 : i1 to i32
    %c0_i32_0 = arith.constant 0 : i32
    %2 = arith.cmpi ne, %1, %c0_i32_0 : i32
    scf.if %2 {
      %c0_21 = arith.constant 0 : index
      %c0_22 = arith.constant 0 : index
      %c0_23 = arith.constant 0 : index
      %34 = vector.load %arg2[%c0_21, %c0_22, %c0_23] : memref<2x256x128xf32, #tpu.memory_space<vmem>>, vector<2x256x128xf32>
      %cst_24 = arith.constant dense<0.000000e+00> : vector<2x128xf32>
      %35 = vector.multi_reduction <add>, %34, %cst_24 [1] : vector<2x256x128xf32> to vector<2x128xf32>
      %cst_25 = arith.constant 2.560000e+02 : f32
      %36 = vector.broadcast %cst_25 : f32 to vector<2x128xf32>
      %37 = arith.divf %35, %36 : vector<2x128xf32>
      %38 = arith.mulf %34, %34 : vector<2x256x128xf32>
      %cst_26 = arith.constant dense<0.000000e+00> : vector<2x128xf32>
      %39 = vector.multi_reduction <add>, %38, %cst_26 [1] : vector<2x256x128xf32> to vector<2x128xf32>
      %cst_27 = arith.constant 2.560000e+02 : f32
      %40 = vector.broadcast %cst_27 : f32 to vector<2x128xf32>
      %41 = arith.divf %39, %40 : vector<2x128xf32>
      %42 = tpu.concatenate %37, %41 in 0 : vector<2x128xf32>, vector<2x128xf32> -> vector<4x128xf32>
      %c0_28 = arith.constant 0 : index
      %c0_29 = arith.constant 0 : index
      %43 = vector.load %arg5[%c0_28, %c0_29] : memref<128x128xf32, #tpu.memory_space<vmem>>, vector<128x128xf32>
      %cst_30 = arith.constant dense<0.000000e+00> : vector<4x128xf32>
      %44 = tpu.matmul %42, %43, %cst_30 {dimension_numbers = #tpu.dot_dimension_numbers<[1], [0], [0], [1], [0, 0, 1, 1], [], []>} : vector<4x128xf32>, vector<128x128xf32>, vector<4x128xf32> -> vector<4x128xf32>
      %45 = vector.extract_strided_slice %44 {offsets = [0, 0], sizes = [2, 128], strides = [1, 1]} : vector<4x128xf32> to vector<2x128xf32>
      %46 = vector.extract_strided_slice %44 {offsets = [2, 0], sizes = [2, 128], strides = [1, 1]} : vector<4x128xf32> to vector<2x128xf32>
      %47 = arith.mulf %45, %45 : vector<2x128xf32>
      %48 = arith.subf %46, %47 : vector<2x128xf32>
      %cst_31 = arith.constant 0.000000e+00 : f32
      %49 = vector.broadcast %cst_31 : f32 to vector<2x128xf32>
      %50 = arith.maximumf %48, %49 : vector<2x128xf32>
      %cst_32 = arith.constant 9.99999997E-7 : f32
      %51 = vector.broadcast %cst_32 : f32 to vector<2x128xf32>
      %52 = arith.addf %50, %51 : vector<2x128xf32>
      %53 = math.rsqrt %52 : vector<2x128xf32>
      %c0_33 = arith.constant 0 : index
      %c0_34 = arith.constant 0 : index
      %54 = vector.load %arg3[%c0_33, %c0_34] : memref<1x128xf32, #tpu.memory_space<vmem>>, vector<1x128xf32>
      %55 = vector.broadcast %54 : vector<1x128xf32> to vector<2x128xf32>
      %56 = arith.mulf %53, %55 : vector<2x128xf32>
      %c0_35 = arith.constant 0 : index
      %c0_36 = arith.constant 0 : index
      %57 = vector.load %arg4[%c0_35, %c0_36] : memref<1x128xf32, #tpu.memory_space<vmem>>, vector<1x128xf32>
      %58 = arith.mulf %45, %56 : vector<2x128xf32>
      %59 = vector.broadcast %57 : vector<1x128xf32> to vector<2x128xf32>
      %60 = arith.subf %59, %58 : vector<2x128xf32>
      %61 = vector.shape_cast %56 : vector<2x128xf32> to vector<2x1x128xf32>
      %62 = vector.broadcast %61 : vector<2x1x128xf32> to vector<2x256x128xf32>
      %63 = arith.mulf %34, %62 : vector<2x256x128xf32>
      %64 = vector.shape_cast %60 : vector<2x128xf32> to vector<2x1x128xf32>
      %65 = vector.broadcast %64 : vector<2x1x128xf32> to vector<2x256x128xf32>
      %66 = arith.addf %63, %65 : vector<2x256x128xf32>
      %67 = arith.truncf %66 : vector<2x256x128xf32> to vector<2x256x128xbf16>
      %68 = vector.shape_cast %67 : vector<2x256x128xbf16> to vector<512x128xbf16>
      %c0_37 = arith.constant 0 : index
      %c0_38 = arith.constant 0 : index
      %69 = vector.load %arg6[%c0_37, %c0_38] : memref<128x128xbf16, #tpu.memory_space<vmem>>, vector<128x128xbf16>
      %cst_39 = arith.constant dense<0.000000e+00> : vector<512x128xf32>
      %70 = tpu.matmul %68, %69, %cst_39 {dimension_numbers = #tpu.dot_dimension_numbers<[1], [0], [0], [1], [0, 0, 1, 1], [], []>} : vector<512x128xbf16>, vector<128x128xbf16>, vector<512x128xf32> -> vector<512x128xf32>
      %c0_40 = arith.constant 0 : index
      %c0_41 = arith.constant 0 : index
      %71 = vector.load %arg7[%c0_40, %c0_41] : memref<1x128xf32, #tpu.memory_space<vmem>>, vector<1x128xf32>
      %72 = vector.broadcast %71 : vector<1x128xf32> to vector<512x128xf32>
      %73 = arith.addf %70, %72 : vector<512x128xf32>
      %74 = arith.truncf %73 : vector<512x128xf32> to vector<512x128xbf16>
      %75 = vector.shape_cast %74 : vector<512x128xbf16> to vector<2x256x128xbf16>
      %c0_42 = arith.constant 0 : index
      %c0_43 = arith.constant 0 : index
      %c0_44 = arith.constant 0 : index
      %76 = vector.load %arg15[%c0_42, %c0_43, %c0_44] : memref<2x256x128xbf16, #tpu.memory_space<vmem>>, vector<2x256x128xbf16>
      tpu.vector_store %arg15[%c0_42, %c0_43, %c0_44], %75 {strides = array<i32>} : memref<2x256x128xbf16, #tpu.memory_space<vmem>>, vector<2x256x128xbf16>,
      %c0_45 = arith.constant 0 : index
      %c0_46 = arith.constant 0 : index
      %77 = vector.load %arg8[%c0_45, %c0_46] : memref<128x128xbf16, #tpu.memory_space<vmem>>, vector<128x128xbf16>
      %cst_47 = arith.constant dense<0.000000e+00> : vector<512x128xf32>
      %78 = tpu.matmul %68, %77, %cst_47 {dimension_numbers = #tpu.dot_dimension_numbers<[1], [0], [0], [1], [0, 0, 1, 1], [], []>} : vector<512x128xbf16>, vector<128x128xbf16>, vector<512x128xf32> -> vector<512x128xf32>
      %c0_48 = arith.constant 0 : index
      %c0_49 = arith.constant 0 : index
      %79 = vector.load %arg9[%c0_48, %c0_49] : memref<1x128xf32, #tpu.memory_space<vmem>>, vector<1x128xf32>
      %80 = vector.broadcast %79 : vector<1x128xf32> to vector<512x128xf32>
      %81 = arith.addf %78, %80 : vector<512x128xf32>
      %82 = arith.truncf %81 : vector<512x128xf32> to vector<512x128xbf16>
      %83 = vector.shape_cast %82 : vector<512x128xbf16> to vector<2x256x128xbf16>
      %84 = vector.extract_strided_slice %83 {offsets = [0, 0, 0], sizes = [1, 256, 128], strides = [1, 1, 1]} : vector<2x256x128xbf16> to vector<1x256x128xbf16>
      %85 = vector.shape_cast %84 : vector<1x256x128xbf16> to vector<256x128xbf16>
      %86 = tpu.transpose %85, [1, 0] : vector<256x128xbf16> -> vector<128x256xbf16>
      %c0_50 = arith.constant 0 : index
      %c0_51 = arith.constant 0 : index
      %c0_52 = arith.constant 0 : index
      %87 = vector.load %arg16[%c0_50, %c0_51, %c0_52] : memref<2x128x256xbf16, #tpu.memory_space<vmem>>, vector<1x128x256xbf16>
      %88 = vector.shape_cast %87 : vector<1x128x256xbf16> to vector<128x256xbf16>
      %89 = vector.shape_cast %86 : vector<128x256xbf16> to vector<1x128x256xbf16>
      tpu.vector_store %arg16[%c0_50, %c0_51, %c0_52], %89 {strides = array<i32>} : memref<2x128x256xbf16, #tpu.memory_space<vmem>>, vector<1x128x256xbf16>,
      %90 = vector.extract_strided_slice %83 {offsets = [1, 0, 0], sizes = [1, 256, 128], strides = [1, 1, 1]} : vector<2x256x128xbf16> to vector<1x256x128xbf16>
      %91 = vector.shape_cast %90 : vector<1x256x128xbf16> to vector<256x128xbf16>
      %92 = tpu.transpose %91, [1, 0] : vector<256x128xbf16> -> vector<128x256xbf16>
      %c1 = arith.constant 1 : index
      %c0_53 = arith.constant 0 : index
      %c0_54 = arith.constant 0 : index
      %93 = vector.load %arg16[%c1, %c0_53, %c0_54] : memref<2x128x256xbf16, #tpu.memory_space<vmem>>, vector<1x128x256xbf16>
      %94 = vector.shape_cast %93 : vector<1x128x256xbf16> to vector<128x256xbf16>
      %95 = vector.shape_cast %92 : vector<128x256xbf16> to vector<1x128x256xbf16>
      tpu.vector_store %arg16[%c1, %c0_53, %c0_54], %95 {strides = array<i32>} : memref<2x128x256xbf16, #tpu.memory_space<vmem>>, vector<1x128x256xbf16>,
      %c0_55 = arith.constant 0 : index
      %c0_56 = arith.constant 0 : index
      %96 = vector.load %arg10[%c0_55, %c0_56] : memref<128x128xbf16, #tpu.memory_space<vmem>>, vector<128x128xbf16>
      %cst_57 = arith.constant dense<0.000000e+00> : vector<512x128xf32>
      %97 = tpu.matmul %68, %96, %cst_57 {dimension_numbers = #tpu.dot_dimension_numbers<[1], [0], [0], [1], [0, 0, 1, 1], [], []>} : vector<512x128xbf16>, vector<128x128xbf16>, vector<512x128xf32> -> vector<512x128xf32>
      %c0_58 = arith.constant 0 : index
      %c0_59 = arith.constant 0 : index
      %98 = vector.load %arg11[%c0_58, %c0_59] : memref<1x128xf32, #tpu.memory_space<vmem>>, vector<1x128xf32>
      %99 = vector.broadcast %98 : vector<1x128xf32> to vector<512x128xf32>
      %100 = arith.addf %97, %99 : vector<512x128xf32>
      %101 = arith.truncf %100 : vector<512x128xf32> to vector<512x128xbf16>
      %102 = vector.shape_cast %101 : vector<512x128xbf16> to vector<2x256x128xbf16>
      %c0_60 = arith.constant 0 : index
      %c0_61 = arith.constant 0 : index
      %c0_62 = arith.constant 0 : index
      %103 = vector.load %arg17[%c0_60, %c0_61, %c0_62] : memref<2x256x128xbf16, #tpu.memory_space<vmem>>, vector<2x256x128xbf16>
      tpu.vector_store %arg17[%c0_60, %c0_61, %c0_62], %102 {strides = array<i32>} : memref<2x256x128xbf16, #tpu.memory_space<vmem>>, vector<2x256x128xbf16>,
    } else {
    }
    %c256_i32 = arith.constant 256 : i32
    %3 = arith.muli %arg1, %c256_i32 : i32
    %4 = tpu.assume_multiple %3, 256 : i32
    %c0 = arith.constant 0 : index
    %5 = arith.index_cast %4 : i32 to index
    %c0_1 = arith.constant 0 : index
    %6 = vector.load %arg15[%c0, %5, %c0_1] : memref<2x256x128xbf16, #tpu.memory_space<vmem>>, vector<2x256x128xbf16>
    %c0_2 = arith.constant 0 : index
    %c0_3 = arith.constant 0 : index
    %c0_4 = arith.constant 0 : index
    %7 = vector.load %arg16[%c0_2, %c0_3, %c0_4] : memref<2x128x256xbf16, #tpu.memory_space<vmem>>, vector<2x128x256xbf16>
    "tpu.trace_start"() <{level = 10 : i32, message = "bqc,bck->bqk"}> : () -> ()
    %cst = arith.constant dense<0.000000e+00> : vector<2x256x256xf32>
    %8 = tpu.matmul %6, %7, %cst {dimension_numbers = #tpu.dot_dimension_numbers<[2], [1], [1], [2], [0, 0, 0, 1, 1, 2], [0], [0]>} : vector<2x256x128xbf16>, vector<2x128x256xbf16>, vector<2x256x256xf32> -> vector<2x256x256xf32>
    "tpu.trace_stop"() : () -> ()
    %cst_5 = arith.constant dense<0xFF800000> : vector<2x256xf32>
    %9 = vector.multi_reduction <maximumf>, %8, %cst_5 [2] : vector<2x256x256xf32> to vector<2x256xf32>
    %10 = vector.shape_cast %9 : vector<2x256xf32> to vector<2x256x1xf32>
    %11 = vector.broadcast %10 : vector<2x256x1xf32> to vector<2x256x256xf32>
    %12 = arith.subf %8, %11 : vector<2x256x256xf32>
    %13 = math.exp %12 : vector<2x256x256xf32>
    %cst_6 = arith.constant dense<0.000000e+00> : vector<2x256xf32>
    %14 = vector.multi_reduction <add>, %13, %cst_6 [2] : vector<2x256x256xf32> to vector<2x256xf32>
    %15 = vector.shape_cast %14 : vector<2x256xf32> to vector<2x256x1xf32>
    %16 = arith.truncf %13 : vector<2x256x256xf32> to vector<2x256x256xbf16>
    %c0_7 = arith.constant 0 : index
    %c0_8 = arith.constant 0 : index
    %c0_9 = arith.constant 0 : index
    %17 = vector.load %arg17[%c0_7, %c0_8, %c0_9] : memref<2x256x128xbf16, #tpu.memory_space<vmem>>, vector<2x256x128xbf16>
    "tpu.trace_start"() <{level = 10 : i32, message = "bqk,bkc->bqc"}> : () -> ()
    %cst_10 = arith.constant dense<0.000000e+00> : vector<2x256x128xf32>
    %18 = tpu.matmul %16, %17, %cst_10 {dimension_numbers = #tpu.dot_dimension_numbers<[2], [1], [1], [2], [0, 0, 0, 1, 1, 2], [0], [0]>} : vector<2x256x256xbf16>, vector<2x256x128xbf16>, vector<2x256x128xf32> -> vector<2x256x128xf32>
    "tpu.trace_stop"() : () -> ()
    %19 = tpu.reciprocal %15 {approx = true} : vector<2x256x1xf32> -> vector<2x256x1xf32>
    %20 = vector.broadcast %19 : vector<2x256x1xf32> to vector<2x256x128xf32>
    %21 = arith.mulf %18, %20 : vector<2x256x128xf32>
    %22 = arith.truncf %21 : vector<2x256x128xf32> to vector<2x256x128xbf16>
    %23 = vector.shape_cast %22 : vector<2x256x128xbf16> to vector<512x128xbf16>
    %c0_11 = arith.constant 0 : index
    %c0_12 = arith.constant 0 : index
    %24 = vector.load %arg12[%c0_11, %c0_12] : memref<128x128xbf16, #tpu.memory_space<vmem>>, vector<128x128xbf16>
    %cst_13 = arith.constant dense<0.000000e+00> : vector<512x128xf32>
    %25 = tpu.matmul %23, %24, %cst_13 {dimension_numbers = #tpu.dot_dimension_numbers<[1], [0], [0], [1], [0, 0, 1, 1], [], []>} : vector<512x128xbf16>, vector<128x128xbf16>, vector<512x128xf32> -> vector<512x128xf32>
    %c0_14 = arith.constant 0 : index
    %c0_15 = arith.constant 0 : index
    %26 = vector.load %arg13[%c0_14, %c0_15] : memref<1x128xf32, #tpu.memory_space<vmem>>, vector<1x128xf32>
    %27 = vector.broadcast %26 : vector<1x128xf32> to vector<512x128xf32>
    %28 = arith.addf %25, %27 : vector<512x128xf32>
    %29 = vector.shape_cast %28 : vector<512x128xf32> to vector<2x256x128xf32>
    %c0_16 = arith.constant 0 : index
    %30 = arith.index_cast %4 : i32 to index
    %c0_17 = arith.constant 0 : index
    %31 = vector.load %arg2[%c0_16, %30, %c0_17] : memref<2x256x128xf32, #tpu.memory_space<vmem>>, vector<2x256x128xf32>
    %32 = arith.addf %31, %29 : vector<2x256x128xf32>
    %c0_18 = arith.constant 0 : index
    %c0_19 = arith.constant 0 : index
    %c0_20 = arith.constant 0 : index
    %33 = vector.load %arg14[%c0_18, %c0_19, %c0_20] : memref<2x256x128xf32, #tpu.memory_space<vmem>>, vector<2x256x128xf32>
    tpu.vector_store %arg14[%c0_18, %c0_19, %c0_20], %32 {strides = array<i32>} : memref<2x256x128xf32, #tpu.memory_space<vmem>>, vector<2x256x128xf32>,
    return
  }
  func.func @transform_0(%arg0: i32, %arg1: i32) -> (i32, i32, i32) {
    %c0_i32 = arith.constant 0 : i32
    %c0_i32_0 = arith.constant 0 : i32
    %c0_i32_1 = arith.constant 0 : i32
    return %arg0, %c0_i32, %c0_i32_0 : i32, i32, i32
  }
  func.func @transform_1(%arg0: i32, %arg1: i32) -> (i32, i32) {
    %c0_i32 = arith.constant 0 : i32
    %c0_i32_0 = arith.constant 0 : i32
    %c0_i32_1 = arith.constant 0 : i32
    return %c0_i32, %c0_i32_0 : i32, i32
  }
  func.func @transform_2(%arg0: i32, %arg1: i32) -> (i32, i32) {
    %c0_i32 = arith.constant 0 : i32
    %c0_i32_0 = arith.constant 0 : i32
    %c0_i32_1 = arith.constant 0 : i32
    return %c0_i32, %c0_i32_0 : i32, i32
  }
  func.func @transform_3(%arg0: i32, %arg1: i32) -> (i32, i32) {
    %c0_i32 = arith.constant 0 : i32
    %c0_i32_0 = arith.constant 0 : i32
    %c0_i32_1 = arith.constant 0 : i32
    return %c0_i32, %c0_i32_0 : i32, i32
  }
  func.func @transform_4(%arg0: i32, %arg1: i32) -> (i32, i32) {
    %c0_i32 = arith.constant 0 : i32
    %c0_i32_0 = arith.constant 0 : i32
    %c0_i32_1 = arith.constant 0 : i32
    return %c0_i32, %c0_i32_0 : i32, i32
  }
  func.func @transform_5(%arg0: i32, %arg1: i32) -> (i32, i32) {
    %c0_i32 = arith.constant 0 : i32
    %c0_i32_0 = arith.constant 0 : i32
    %c0_i32_1 = arith.constant 0 : i32
    return %c0_i32, %c0_i32_0 : i32, i32
  }
  func.func @transform_6(%arg0: i32, %arg1: i32) -> (i32, i32) {
    %c0_i32 = arith.constant 0 : i32
    %c0_i32_0 = arith.constant 0 : i32
    %c0_i32_1 = arith.constant 0 : i32
    return %c0_i32, %c0_i32_0 : i32, i32
  }
  func.func @transform_7(%arg0: i32, %arg1: i32) -> (i32, i32) {
    %c0_i32 = arith.constant 0 : i32
    %c0_i32_0 = arith.constant 0 : i32
    %c0_i32_1 = arith.constant 0 : i32
    return %c0_i32, %c0_i32_0 : i32, i32
  }
  func.func @transform_8(%arg0: i32, %arg1: i32) -> (i32, i32) {
    %c0_i32 = arith.constant 0 : i32
    %c0_i32_0 = arith.constant 0 : i32
    %c0_i32_1 = arith.constant 0 : i32
    return %c0_i32, %c0_i32_0 : i32, i32
  }
  func.func @transform_9(%arg0: i32, %arg1: i32) -> (i32, i32) {
    %c0_i32 = arith.constant 0 : i32
    %c0_i32_0 = arith.constant 0 : i32
    %c0_i32_1 = arith.constant 0 : i32
    return %c0_i32, %c0_i32_0 : i32, i32
  }
  func.func @transform_10(%arg0: i32, %arg1: i32) -> (i32, i32) {
    %c0_i32 = arith.constant 0 : i32
    %c0_i32_0 = arith.constant 0 : i32
    %c0_i32_1 = arith.constant 0 : i32
    return %c0_i32, %c0_i32_0 : i32, i32
  }
  func.func @transform_11(%arg0: i32, %arg1: i32) -> (i32, i32) {
    %c0_i32 = arith.constant 0 : i32
    %c0_i32_0 = arith.constant 0 : i32
    %c0_i32_1 = arith.constant 0 : i32
    return %c0_i32, %c0_i32_0 : i32, i32
  }
  func.func @transform_12(%arg0: i32, %arg1: i32) -> (i32, i32, i32) {
    %c0_i32 = arith.constant 0 : i32
    %c0_i32_0 = arith.constant 0 : i32
    return %arg0, %arg1, %c0_i32 : i32, i32, i32
  }
}

</mosaic_0001>

<llo_original>
// kernel: tpu_custom_call.1
$region0: #{tpu_custom_call.1}
  #allocation0 [shape = 'u32[]', space=smem, size = 0x4, offset = 0x4, fixed_abs, tag = 'smem constant byte address 0x4 - core index']
  #allocation1 [shape = 'u32[144,128]{1,0:T(1,128)}', space=vmem, size = 0x12000, scoped, tag = 'internal scratch']
  #allocation2 [shape = 'bf16[2,256,128]{2,1,0:T(16,128)(2,1)}', space=vmem, size = 0x20000, scoped, tag = 'scratch operand']
  #allocation3 [shape = 'bf16[2,128,256]{2,1,0:T(16,128)(2,1)}', space=vmem, size = 0x20000, scoped, tag = 'scratch operand']
  #allocation4 [shape = 'bf16[2,256,128]{2,1,0:T(16,128)(2,1)}', space=vmem, size = 0x20000, scoped, tag = 'scratch operand']
  %s0 = inlined_call_operand.hbm [shape: f32[2,256,128], index: 0, kind: input, shape index: {}]
  %s1 = inlined_call_operand.vmem [shape: f32[1,128], index: 1, kind: input, shape index: {}]
  %s2 = inlined_call_operand.vmem [shape: f32[1,128], index: 2, kind: input, shape index: {}]
  %s3 = inlined_call_operand.hbm [shape: f32[128,128], index: 3, kind: input, shape index: {}]
  %s4 = inlined_call_operand.hbm [shape: bf16[128,128], index: 4, kind: input, shape index: {}]
  %s5 = inlined_call_operand.vmem [shape: f32[1,128], index: 5, kind: input, shape index: {}]
  %s6 = inlined_call_operand.hbm [shape: bf16[128,128], index: 6, kind: input, shape index: {}]
  %s7 = inlined_call_operand.vmem [shape: f32[1,128], index: 7, kind: input, shape index: {}]
  %s8 = inlined_call_operand.hbm [shape: bf16[128,128], index: 8, kind: input, shape index: {}]
  %s9 = inlined_call_operand.vmem [shape: f32[1,128], index: 9, kind: input, shape index: {}]
  %s10 = inlined_call_operand.hbm [shape: bf16[128,128], index: 10, kind: input, shape index: {}]
  %s11 = inlined_call_operand.vmem [shape: f32[1,128], index: 11, kind: input, shape index: {}]
  %s12 = inlined_call_operand.hbm [shape: f32[2,256,128], index: 12, kind: output, shape index: {}]
  %s13 = sld [smem:[#allocation0]]
  $region86: #{tpu_custom_call.1} parent=0
    _
  %s15 = ssub.s32 1, %s13
  %s16 = scalar_select 0, %s15, %s13
  $region1: #{tpu_custom_call.1} parent=0
    #allocation5 [shape = 'u8[262144]{0}', space=vmem, size = 0x40000, scoped, tag = 'input window, operand 0, single buffered']
    #allocation6 [shape = 's32[1]{0}', space=sflag, size = 0x4, scoped, tag = 'scoped memory for tpu_custom_call.1']
    #allocation7 [shape = 's32[1]{0}', space=sflag, size = 0x4, scoped, tag = 'scoped memory for tpu_custom_call.1']
    #allocation8 [shape = 'u8[65536]{0}', space=vmem, size = 0x10000, scoped, tag = 'input window, operand 3, single buffered']
    #allocation9 [shape = 's32[1]{0}', space=sflag, size = 0x4, scoped, tag = 'scoped memory for tpu_custom_call.1']
    #allocation10 [shape = 'u8[32768]{0}', space=vmem, size = 0x8000, scoped, tag = 'input window, operand 4, single buffered']
    #allocation11 [shape = 'u8[32768]{0}', space=vmem, size = 0x8000, scoped, tag = 'input window, operand 6, single buffered']
    #allocation12 [shape = 's32[1]{0}', space=sflag, size = 0x4, scoped, tag = 'scoped memory for tpu_custom_call.1']
    #allocation13 [shape = 'u8[32768]{0}', space=vmem, size = 0x8000, scoped, tag = 'input window, operand 8, single buffered']
    #allocation14 [shape = 'u8[32768]{0}', space=vmem, size = 0x8000, scoped, tag = 'input window, operand 10, single buffered']
    #allocation15 [shape = 's32[1]{0}', space=sflag, size = 0x4, scoped, tag = 'scoped memory for tpu_custom_call.1']
    #allocation16 [shape = 'u8[262144]{0}', space=vmem, size = 0x40000, scoped, tag = 'output window, operand 0, single buffered']
    %17 = vsyncpa [#allocation6], 0
    %18 = vsyncpa [#allocation9], 0
    %19 = vsyncpa [#allocation12], 0
    %20 = vsyncpa [#allocation15], 0
    %21 = vsyncpa [#allocation7], 0
    // Predicated region
    $region2: #{tpu_custom_call.1} parent=1 // pred_check
      _
    $region3: #{tpu_custom_call.1} parent=1 // pred_check_branch
      %23 = sbr.rel (0) target = $region5
    $region4: #{tpu_custom_call.1} parent=1 // pred_region
      %s25 = ssub.s32 8192, 8192
      %26 = vsyncadd [#allocation6], %s25
      %s27 = sshll.u32 [#allocation5], 4
      %s28 = int_to_ptr.vmem [resolvable:$true] %s27
      %33 = dma.hbm_to_vmem [thread:$0]  %s0, 8192, %s28, [#allocation6], 128, 128, 8
    $region5: #{tpu_custom_call.1} parent=1 // pred_fallthru
      _
    // Predicated region
    $region6: #{tpu_custom_call.1} parent=1 // pred_check
      _
    $region7: #{tpu_custom_call.1} parent=1 // pred_check_branch
      %35 = sbr.rel (0) target = $region9
    $region8: #{tpu_custom_call.1} parent=1 // pred_region
      _
    $region9: #{tpu_custom_call.1} parent=1 // pred_fallthru
      _
    // Predicated region
    $region10: #{tpu_custom_call.1} parent=1 // pred_check
      _
    $region11: #{tpu_custom_call.1} parent=1 // pred_check_branch
      %37 = sbr.rel (0) target = $region13
    $region12: #{tpu_custom_call.1} parent=1 // pred_region
      _
    $region13: #{tpu_custom_call.1} parent=1 // pred_fallthru
      _
    // Predicated region
    $region14: #{tpu_custom_call.1} parent=1 // pred_check
      _
    $region15: #{tpu_custom_call.1} parent=1 // pred_check_branch
      %39 = sbr.rel (0) target = $region17
    $region16: #{tpu_custom_call.1} parent=1 // pred_region
      %s41 = ssub.s32 2048, 2048
      %42 = vsyncadd [#allocation9], %s41
      %s43 = sshll.u32 [#allocation8], 4
      %s44 = int_to_ptr.vmem [resolvable:$true] %s43
      %49 = dma.hbm_to_vmem [thread:$0]  %s3, 2048, %s44, [#allocation9], 128, 128, 8
    $region17: #{tpu_custom_call.1} parent=1 // pred_fallthru
      _
    // Predicated region
    $region18: #{tpu_custom_call.1} parent=1 // pred_check
      _
    $region19: #{tpu_custom_call.1} parent=1 // pred_check_branch
      %51 = sbr.rel (0) target = $region21
    $region20: #{tpu_custom_call.1} parent=1 // pred_region
      %s53 = ssub.s32 1024, 1024
      %54 = vsyncadd [#allocation9], %s53
      %s55 = sshll.u32 [#allocation10], 4
      %s56 = int_to_ptr.vmem [resolvable:$true] %s55
      %61 = dma.hbm_to_vmem [thread:$0]  %s4, 1024, %s56, [#allocation9], 64, 64, 4
    $region21: #{tpu_custom_call.1} parent=1 // pred_fallthru
      _
    // Predicated region
    $region22: #{tpu_custom_call.1} parent=1 // pred_check
      _
    $region23: #{tpu_custom_call.1} parent=1 // pred_check_branch
      %63 = sbr.rel (0) target = $region25
    $region24: #{tpu_custom_call.1} parent=1 // pred_region
      _
    $region25: #{tpu_custom_call.1} parent=1 // pred_fallthru
      _
    // Predicated region
    $region26: #{tpu_custom_call.1} parent=1 // pred_check
      _
    $region27: #{tpu_custom_call.1} parent=1 // pred_check_branch
      %65 = sbr.rel (0) target = $region29
    $region28: #{tpu_custom_call.1} parent=1 // pred_region
      %s67 = ssub.s32 1024, 1024
      %68 = vsyncadd [#allocation12], %s67
      %s69 = sshll.u32 [#allocation11], 4
      %s70 = int_to_ptr.vmem [resolvable:$true] %s69
      %75 = dma.hbm_to_vmem [thread:$0]  %s6, 1024, %s70, [#allocation12], 64, 64, 4
    $region29: #{tpu_custom_call.1} parent=1 // pred_fallthru
      _
    // Predicated region
    $region30: #{tpu_custom_call.1} parent=1 // pred_check
      _
    $region31: #{tpu_custom_call.1} parent=1 // pred_check_branch
      %77 = sbr.rel (0) target = $region33
    $region32: #{tpu_custom_call.1} parent=1 // pred_region
      _
    $region33: #{tpu_custom_call.1} parent=1 // pred_fallthru
      _
    // Predicated region
    $region34: #{tpu_custom_call.1} parent=1 // pred_check
      _
    $region35: #{tpu_custom_call.1} parent=1 // pred_check_branch
      %79 = sbr.rel (0) target = $region37
    $region36: #{tpu_custom_call.1} parent=1 // pred_region
      %s81 = ssub.s32 1024, 1024
      %82 = vsyncadd [#allocation12], %s81
      %s83 = sshll.u32 [#allocation13], 4
      %s84 = int_to_ptr.vmem [resolvable:$true] %s83
      %89 = dma.hbm_to_vmem [thread:$0]  %s8, 1024, %s84, [#allocation12], 64, 64, 4
    $region37: #{tpu_custom_call.1} parent=1 // pred_fallthru
      _
    // Predicated region
    $region38: #{tpu_custom_call.1} parent=1 // pred_check
      _
    $region39: #{tpu_custom_call.1} parent=1 // pred_check_branch
      %91 = sbr.rel (0) target = $region41
    $region40: #{tpu_custom_call.1} parent=1 // pred_region
      _
    $region41: #{tpu_custom_call.1} parent=1 // pred_fallthru
      _
    // Predicated region
    $region42: #{tpu_custom_call.1} parent=1 // pred_check
      _
    $region43: #{tpu_custom_call.1} parent=1 // pred_check_branch
      %93 = sbr.rel (0) target = $region45
    $region44: #{tpu_custom_call.1} parent=1 // pred_region
      %s95 = ssub.s32 1024, 1024
      %96 = vsyncadd [#allocation15], %s95
      %s97 = sshll.u32 [#allocation14], 4
      %s98 = int_to_ptr.vmem [resolvable:$true] %s97
      %103 = dma.hbm_to_vmem [thread:$0]  %s10, 1024, %s98, [#allocation15], 64, 64, 4
    $region45: #{tpu_custom_call.1} parent=1 // pred_fallthru
      _
    // Predicated region
    $region46: #{tpu_custom_call.1} parent=1 // pred_check
      _
    $region47: #{tpu_custom_call.1} parent=1 // pred_check_branch
      %105 = sbr.rel (0) target = $region49
    $region48: #{tpu_custom_call.1} parent=1 // pred_region
      _
    $region49: #{tpu_custom_call.1} parent=1 // pred_fallthru
      _
    // Predicated region
    $region50: #{tpu_custom_call.1} parent=1 // pred_check
      _
    $region51: #{tpu_custom_call.1} parent=1 // pred_check_branch
      %107 = sbr.rel (0) target = $region53
    $region52: #{tpu_custom_call.1} parent=1 // pred_region
      %108 = dma.done [#allocation6], 8192
    $region53: #{tpu_custom_call.1} parent=1 // pred_fallthru
      _
    // Predicated region
    $region54: #{tpu_custom_call.1} parent=1 // pred_check
      _
    $region55: #{tpu_custom_call.1} parent=1 // pred_check_branch
      %110 = sbr.rel (0) target = $region57
    $region56: #{tpu_custom_call.1} parent=1 // pred_region
      %111 = dma.done [#allocation9], 2048
    $region57: #{tpu_custom_call.1} parent=1 // pred_fallthru
      _
    // Predicated region
    $region58: #{tpu_custom_call.1} parent=1 // pred_check
      _
    $region59: #{tpu_custom_call.1} parent=1 // pred_check_branch
      %113 = sbr.rel (0) target = $region61
    $region60: #{tpu_custom_call.1} parent=1 // pred_region
      %114 = dma.done [#allocation9], 1024
    $region61: #{tpu_custom_call.1} parent=1 // pred_fallthru
      _
    // Predicated region
    $region62: #{tpu_custom_call.1} parent=1 // pred_check
      _
    $region63: #{tpu_custom_call.1} parent=1 // pred_check_branch
      %116 = sbr.rel (0) target = $region65
    $region64: #{tpu_custom_call.1} parent=1 // pred_region
      %117 = dma.done [#allocation12], 1024
    $region65: #{tpu_custom_call.1} parent=1 // pred_fallthru
      _
    // Predicated region
    $region66: #{tpu_custom_call.1} parent=1 // pred_check
      _
    $region67: #{tpu_custom_call.1} parent=1 // pred_check_branch
      %119 = sbr.rel (0) target = $region69
    $region68: #{tpu_custom_call.1} parent=1 // pred_region
      %120 = dma.done [#allocation12], 1024
    $region69: #{tpu_custom_call.1} parent=1 // pred_fallthru
      _
    // Predicated region
    $region70: #{tpu_custom_call.1} parent=1 // pred_check
      _
    $region71: #{tpu_custom_call.1} parent=1 // pred_check_branch
      %122 = sbr.rel (0) target = $region73
    $region72: #{tpu_custom_call.1} parent=1 // pred_region
      %123 = dma.done [#allocation15], 1024
    $region73: #{tpu_custom_call.1} parent=1 // pred_fallthru
      _
    %p125 = scmp.eq.s32.totalorder 0, 0
    // Predicated region
    $region74: #{tpu_custom_call.1} parent=1 // pred_check
      %p126 = pneg %p125
    $region75: #{tpu_custom_call.1} parent=1 // pred_check_branch
      %128 = sbr.rel (%p126) target = $region77
    $region76: #{tpu_custom_call.1} parent=1 // pred_region
      %v129 = vld [vmem:[#allocation5] sm:$0xff]
      %v130 = vld [vmem:[#allocation5 + $0x8] sm:$0xff]
      %v131 = vld [vmem:[#allocation5 + $0x10] sm:$0xff]
      %v132 = vld [vmem:[#allocation5 + $0x18] sm:$0xff]
      %v133 = vld [vmem:[#allocation5 + $0x20] sm:$0xff]
      %v134 = vld [vmem:[#allocation5 + $0x28] sm:$0xff]
      %v135 = vld [vmem:[#allocation5 + $0x30] sm:$0xff]
      %v136 = vld [vmem:[#allocation5 + $0x38] sm:$0xff]
      %v137 = vld [vmem:[#allocation5 + $0x40] sm:$0xff]
      %v138 = vld [vmem:[#allocation5 + $0x48] sm:$0xff]
      %v139 = vld [vmem:[#allocation5 + $0x50] sm:$0xff]
      %v140 = vld [vmem:[#allocation5 + $0x58] sm:$0xff]
      %v141 = vld [vmem:[#allocation5 + $0x60] sm:$0xff]
      %v142 = vld [vmem:[#allocation5 + $0x68] sm:$0xff]
      %v143 = vld [vmem:[#allocation5 + $0x70] sm:$0xff]
      %v144 = vld [vmem:[#allocation5 + $0x78] sm:$0xff]
      %v145 = vld [vmem:[#allocation5 + $0x80] sm:$0xff]
      %v146 = vld [vmem:[#allocation5 + $0x88] sm:$0xff]
      %v147 = vld [vmem:[#allocation5 + $0x90] sm:$0xff]
      %v148 = vld [vmem:[#allocation5 + $0x98] sm:$0xff]
      %v149 = vld [vmem:[#allocation5 + $0xa0] sm:$0xff]
      %v150 = vld [vmem:[#allocation5 + $0xa8] sm:$0xff]
      %v151 = vld [vmem:[#allocation5 + $0xb0] sm:$0xff]
      %v152 = vld [vmem:[#allocation5 + $0xb8] sm:$0xff]
      %v153 = vld [vmem:[#allocation5 + $0xc0] sm:$0xff]
      %v154 = vld [vmem:[#allocation5 + $0xc8] sm:$0xff]
      %v155 = vld [vmem:[#allocation5 + $0xd0] sm:$0xff]
      %v156 = vld [vmem:[#allocation5 + $0xd8] sm:$0xff]
      %v157 = vld [vmem:[#allocation5 + $0xe0] sm:$0xff]
      %v158 = vld [vmem:[#allocation5 + $0xe8] sm:$0xff]
      %v159 = vld [vmem:[#allocation5 + $0xf0] sm:$0xff]
      %v160 = vld [vmem:[#allocation5 + $0xf8] sm:$0xff]
      %v161 = vld [vmem:[#allocation5 + $0x100] sm:$0xff]
      %v162 = vld [vmem:[#allocation5 + $0x108] sm:$0xff]
      %v163 = vld [vmem:[#allocation5 + $0x110] sm:$0xff]
      %v164 = vld [vmem:[#allocation5 + $0x118] sm:$0xff]
      %v165 = vld [vmem:[#allocation5 + $0x120] sm:$0xff]
      %v166 = vld [vmem:[#allocation5 + $0x128] sm:$0xff]
      %v167 = vld [vmem:[#allocation5 + $0x130] sm:$0xff]
      %v168 = vld [vmem:[#allocation5 + $0x138] sm:$0xff]
      %v169 = vld [vmem:[#allocation5 + $0x140] sm:$0xff]
      %v170 = vld [vmem:[#allocation5 + $0x148] sm:$0xff]
      %v171 = vld [vmem:[#allocation5 + $0x150] sm:$0xff]
      %v172 = vld [vmem:[#allocation5 + $0x158] sm:$0xff]
      %v173 = vld [vmem:[#allocation5 + $0x160] sm:$0xff]
      %v174 = vld [vmem:[#allocation5 + $0x168] sm:$0xff]
      %v175 = vld [vmem:[#allocation5 + $0x170] sm:$0xff]
      %v176 = vld [vmem:[#allocation5 + $0x178] sm:$0xff]
      %v177 = vld [vmem:[#allocation5 + $0x180] sm:$0xff]
      %v178 = vld [vmem:[#allocation5 + $0x188] sm:$0xff]
      %v179 = vld [vmem:[#allocation5 + $0x190] sm:$0xff]
      %v180 = vld [vmem:[#allocation5 + $0x198] sm:$0xff]
      %v181 = vld [vmem:[#allocation5 + $0x1a0] sm:$0xff]
      %v182 = vld [vmem:[#allocation5 + $0x1a8] sm:$0xff]
      %v183 = vld [vmem:[#allocation5 + $0x1b0] sm:$0xff]
      %v184 = vld [vmem:[#allocation5 + $0x1b8] sm:$0xff]
      %v185 = vld [vmem:[#allocation5 + $0x1c0] sm:$0xff]
      %v186 = vld [vmem:[#allocation5 + $0x1c8] sm:$0xff]
      %v187 = vld [vmem:[#allocation5 + $0x1d0] sm:$0xff]
      %v188 = vld [vmem:[#allocation5 + $0x1d8] sm:$0xff]
      %v189 = vld [vmem:[#allocation5 + $0x1e0] sm:$0xff]
      %v190 = vld [vmem:[#allocation5 + $0x1e8] sm:$0xff]
      %v191 = vld [vmem:[#allocation5 + $0x1f0] sm:$0xff]
      %v192 = vld [vmem:[#allocation5 + $0x1f8] sm:$0xff]
      %v193 = vadd.f32 %v129, %v130
      %v194 = vadd.f32 %v193, %v131
      %v195 = vadd.f32 %v194, %v132
      %v196 = vadd.f32 %v195, %v133
      %v197 = vadd.f32 %v196, %v134
      %v198 = vadd.f32 %v197, %v135
      %v199 = vadd.f32 %v198, %v136
      %v200 = vadd.f32 %v199, %v137
      %v201 = vadd.f32 %v200, %v138
      %v202 = vadd.f32 %v201, %v139
      %v203 = vadd.f32 %v202, %v140
      %v204 = vadd.f32 %v203, %v141
      %v205 = vadd.f32 %v204, %v142
      %v206 = vadd.f32 %v205, %v143
      %v207 = vadd.f32 %v206, %v144
      %v208 = vadd.f32 %v207, %v145
      %v209 = vadd.f32 %v208, %v146
      %v210 = vadd.f32 %v209, %v147
      %v211 = vadd.f32 %v210, %v148
      %v212 = vadd.f32 %v211, %v149
      %v213 = vadd.f32 %v212, %v150
      %v214 = vadd.f32 %v213, %v151
      %v215 = vadd.f32 %v214, %v152
      %v216 = vadd.f32 %v215, %v153
      %v217 = vadd.f32 %v216, %v154
      %v218 = vadd.f32 %v217, %v155
      %v219 = vadd.f32 %v218, %v156
      %v220 = vadd.f32 %v219, %v157
      %v221 = vadd.f32 %v220, %v158
      %v222 = vadd.f32 %v221, %v159
      %v223 = vadd.f32 %v222, %v160
      %v224 = vrot.slane %v223, 4
      %v225 = vadd.f32 %v223, %v224
      %v226 = vrot.slane %v225, 2
      %v227 = vadd.f32 %v225, %v226
      %v228 = vrot.slane %v227, 1
      %v229 = vadd.f32 %v227, %v228
      %v230 = vadd.f32 %v161, %v162
      %v231 = vadd.f32 %v230, %v163
      %v232 = vadd.f32 %v231, %v164
      %v233 = vadd.f32 %v232, %v165
      %v234 = vadd.f32 %v233, %v166
      %v235 = vadd.f32 %v234, %v167
      %v236 = vadd.f32 %v235, %v168
      %v237 = vadd.f32 %v236, %v169
      %v238 = vadd.f32 %v237, %v170
      %v239 = vadd.f32 %v238, %v171
      %v240 = vadd.f32 %v239, %v172
      %v241 = vadd.f32 %v240, %v173
      %v242 = vadd.f32 %v241, %v174
      %v243 = vadd.f32 %v242, %v175
      %v244 = vadd.f32 %v243, %v176
      %v245 = vadd.f32 %v244, %v177
      %v246 = vadd.f32 %v245, %v178
      %v247 = vadd.f32 %v246, %v179
      %v248 = vadd.f32 %v247, %v180
      %v249 = vadd.f32 %v248, %v181
      %v250 = vadd.f32 %v249, %v182
      %v251 = vadd.f32 %v250, %v183
      %v252 = vadd.f32 %v251, %v184
      %v253 = vadd.f32 %v252, %v185
      %v254 = vadd.f32 %v253, %v186
      %v255 = vadd.f32 %v254, %v187
      %v256 = vadd.f32 %v255, %v188
      %v257 = vadd.f32 %v256, %v189
      %v258 = vadd.f32 %v257, %v190
      %v259 = vadd.f32 %v258, %v191
      %v260 = vadd.f32 %v259, %v192
      %v261 = vrot.slane %v260, 4
      %v262 = vadd.f32 %v260, %v261
      %v263 = vrot.slane %v262, 2
      %v264 = vadd.f32 %v262, %v263
      %v265 = vrot.slane %v264, 1
      %v266 = vadd.f32 %v264, %v265
      %v267 = vrcp.pop 256.0
      %v268 = vmul.f32 %v229, %v267
      %v269 = vmul.f32 %v266, %v267
      %v270 = vmul.f32 %v129, %v129
      %v271 = vmul.f32 %v130, %v130
      %v272 = vmul.f32 %v131, %v131
      %v273 = vmul.f32 %v132, %v132
      %v274 = vmul.f32 %v133, %v133
      %v275 = vmul.f32 %v134, %v134
      %v276 = vmul.f32 %v135, %v135
      %v277 = vmul.f32 %v136, %v136
      %v278 = vmul.f32 %v137, %v137
      %v279 = vmul.f32 %v138, %v138
      %v280 = vmul.f32 %v139, %v139
      %v281 = vmul.f32 %v140, %v140
      %v282 = vmul.f32 %v141, %v141
      %v283 = vmul.f32 %v142, %v142
      %v284 = vmul.f32 %v143, %v143
      %v285 = vmul.f32 %v144, %v144
      %v286 = vmul.f32 %v145, %v145
      %v287 = vmul.f32 %v146, %v146
      %v288 = vmul.f32 %v147, %v147
      %v289 = vmul.f32 %v148, %v148
      %v290 = vmul.f32 %v149, %v149
      %v291 = vmul.f32 %v150, %v150
      %v292 = vmul.f32 %v151, %v151
      %v293 = vmul.f32 %v152, %v152
      %v294 = vmul.f32 %v153, %v153
      %v295 = vmul.f32 %v154, %v154
      %v296 = vmul.f32 %v155, %v155
      %v297 = vmul.f32 %v156, %v156
      %v298 = vmul.f32 %v157, %v157
      %v299 = vmul.f32 %v158, %v158
      %v300 = vmul.f32 %v159, %v159
      %v301 = vmul.f32 %v160, %v160
      %v302 = vmul.f32 %v161, %v161
      %v303 = vmul.f32 %v162, %v162
      %v304 = vmul.f32 %v163, %v163
      %v305 = vmul.f32 %v164, %v164
      %v306 = vmul.f32 %v165, %v165
      %v307 = vmul.f32 %v166, %v166
      %v308 = vmul.f32 %v167, %v167
      %v309 = vmul.f32 %v168, %v168
      %v310 = vmul.f32 %v169, %v169
      %v311 = vmul.f32 %v170, %v170
      %v312 = vmul.f32 %v171, %v171
      %v313 = vmul.f32 %v172, %v172
      %v314 = vmul.f32 %v173, %v173
      %v315 = vmul.f32 %v174, %v174
      %v316 = vmul.f32 %v175, %v175
      %v317 = vmul.f32 %v176, %v176
      %v318 = vmul.f32 %v177, %v177
      %v319 = vmul.f32 %v178, %v178
      %v320 = vmul.f32 %v179, %v179
      %v321 = vmul.f32 %v180, %v180
      %v322 = vmul.f32 %v181, %v181
      %v323 = vmul.f32 %v182, %v182
      %v324 = vmul.f32 %v183, %v183
      %v325 = vmul.f32 %v184, %v184
      %v326 = vmul.f32 %v185, %v185
      %v327 = vmul.f32 %v186, %v186
      %v328 = vmul.f32 %v187, %v187
      %v329 = vmul.f32 %v188, %v188
      %v330 = vmul.f32 %v189, %v189
      %v331 = vmul.f32 %v190, %v190
      %v332 = vmul.f32 %v191, %v191
      %v333 = vmul.f32 %v192, %v192
      %v334 = vadd.f32 %v270, %v271
      %v335 = vadd.f32 %v334, %v272
      %v336 = vadd.f32 %v335, %v273
      %v337 = vadd.f32 %v336, %v274
      %v338 = vadd.f32 %v337, %v275
      %v339 = vadd.f32 %v338, %v276
      %v340 = vadd.f32 %v339, %v277
      %v341 = vadd.f32 %v340, %v278
      %v342 = vadd.f32 %v341, %v279
      %v343 = vadd.f32 %v342, %v280
      %v344 = vadd.f32 %v343, %v281
      %v345 = vadd.f32 %v344, %v282
      %v346 = vadd.f32 %v345, %v283
      %v347 = vadd.f32 %v346, %v284
      %v348 = vadd.f32 %v347, %v285
      %v349 = vadd.f32 %v348, %v286
      %v350 = vadd.f32 %v349, %v287
      %v351 = vadd.f32 %v350, %v288
      %v352 = vadd.f32 %v351, %v289
      %v353 = vadd.f32 %v352, %v290
      %v354 = vadd.f32 %v353, %v291
      %v355 = vadd.f32 %v354, %v292
      %v356 = vadd.f32 %v355, %v293
      %v357 = vadd.f32 %v356, %v294
      %v358 = vadd.f32 %v357, %v295
      %v359 = vadd.f32 %v358, %v296
      %v360 = vadd.f32 %v359, %v297
      %v361 = vadd.f32 %v360, %v298
      %v362 = vadd.f32 %v361, %v299
      %v363 = vadd.f32 %v362, %v300
      %v364 = vadd.f32 %v363, %v301
      %v365 = vrot.slane %v364, 4
      %v366 = vadd.f32 %v364, %v365
      %v367 = vrot.slane %v366, 2
      %v368 = vadd.f32 %v366, %v367
      %v369 = vrot.slane %v368, 1
      %v370 = vadd.f32 %v368, %v369
      %v371 = vadd.f32 %v302, %v303
      %v372 = vadd.f32 %v371, %v304
      %v373 = vadd.f32 %v372, %v305
      %v374 = vadd.f32 %v373, %v306
      %v375 = vadd.f32 %v374, %v307
      %v376 = vadd.f32 %v375, %v308
      %v377 = vadd.f32 %v376, %v309
      %v378 = vadd.f32 %v377, %v310
      %v379 = vadd.f32 %v378, %v311
      %v380 = vadd.f32 %v379, %v312
      %v381 = vadd.f32 %v380, %v313
      %v382 = vadd.f32 %v381, %v314
      %v383 = vadd.f32 %v382, %v315
      %v384 = vadd.f32 %v383, %v316
      %v385 = vadd.f32 %v384, %v317
      %v386 = vadd.f32 %v385, %v318
      %v387 = vadd.f32 %v386, %v319
      %v388 = vadd.f32 %v387, %v320
      %v389 = vadd.f32 %v388, %v321
      %v390 = vadd.f32 %v389, %v322
      %v391 = vadd.f32 %v390, %v323
      %v392 = vadd.f32 %v391, %v324
      %v393 = vadd.f32 %v392, %v325
      %v394 = vadd.f32 %v393, %v326
      %v395 = vadd.f32 %v394, %v327
      %v396 = vadd.f32 %v395, %v328
      %v397 = vadd.f32 %v396, %v329
      %v398 = vadd.f32 %v397, %v330
      %v399 = vadd.f32 %v398, %v331
      %v400 = vadd.f32 %v399, %v332
      %v401 = vadd.f32 %v400, %v333
      %v402 = vrot.slane %v401, 4
      %v403 = vadd.f32 %v401, %v402
      %v404 = vrot.slane %v403, 2
      %v405 = vadd.f32 %v403, %v404
      %v406 = vrot.slane %v405, 1
      %v407 = vadd.f32 %v405, %v406
      %v408 = vmul.f32 %v370, %v267
      %v409 = vmul.f32 %v407, %v267
      %vm412 = vcmask 1041409
      %v413 = vsel %vm412, %v269, %v268
      %vm417 = vcmask 1043459
      %v418 = vsel %vm417, %v409, %v408
      %vm420 = vcmask 1041408
      %v421 = vsel %vm420, %v413, %v418
      %v422 = vld [vmem:[#allocation8] sm:$0xff]
      %v423 = vld [vmem:[#allocation8 + $0x8] sm:$0xff]
      %v424 = vld [vmem:[#allocation8 + $0x10] sm:$0xff]
      %v425 = vld [vmem:[#allocation8 + $0x18] sm:$0xff]
      %v426 = vld [vmem:[#allocation8 + $0x20] sm:$0xff]
      %v427 = vld [vmem:[#allocation8 + $0x28] sm:$0xff]
      %v428 = vld [vmem:[#allocation8 + $0x30] sm:$0xff]
      %v429 = vld [vmem:[#allocation8 + $0x38] sm:$0xff]
      %v430 = vld [vmem:[#allocation8 + $0x40] sm:$0xff]
      %v431 = vld [vmem:[#allocation8 + $0x48] sm:$0xff]
      %v432 = vld [vmem:[#allocation8 + $0x50] sm:$0xff]
      %v433 = vld [vmem:[#allocation8 + $0x58] sm:$0xff]
      %v434 = vld [vmem:[#allocation8 + $0x60] sm:$0xff]
      %v435 = vld [vmem:[#allocation8 + $0x68] sm:$0xff]
      %v436 = vld [vmem:[#allocation8 + $0x70] sm:$0xff]
      %v437 = vld [vmem:[#allocation8 + $0x78] sm:$0xff]
      %438 = vmatprep.subr.mxu0 0.0
      %439 = vmatpush1.msra.mxu0 %v422
      %440 = vmatprep.subr.mxu0 0.0
      %441 = vmatpush1.msra.mxu0 %v423
      %442 = vmatprep.subr.mxu0 0.0
      %443 = vmatpush1.msra.mxu0 %v424
      %444 = vmatprep.subr.mxu0 0.0
      %445 = vmatpush1.msra.mxu0 %v425
      %446 = vmatprep.subr.mxu0 0.0
      %447 = vmatpush1.msra.mxu0 %v426
      %448 = vmatprep.subr.mxu0 0.0
      %449 = vmatpush1.msra.mxu0 %v427
      %450 = vmatprep.subr.mxu0 0.0
      %451 = vmatpush1.msra.mxu0 %v428
      %452 = vmatprep.subr.mxu0 0.0
      %453 = vmatpush1.msra.mxu0 %v429
      %454 = vmatprep.subr.mxu0 0.0
      %455 = vmatpush1.msra.mxu0 %v430
      %456 = vmatprep.subr.mxu0 0.0
      %457 = vmatpush1.msra.mxu0 %v431
      %458 = vmatprep.subr.mxu0 0.0
      %459 = vmatpush1.msra.mxu0 %v432
      %460 = vmatprep.subr.mxu0 0.0
      %461 = vmatpush1.msra.mxu0 %v433
      %462 = vmatprep.subr.mxu0 0.0
      %463 = vmatpush1.msra.mxu0 %v434
      %464 = vmatprep.subr.mxu0 0.0
      %465 = vmatpush1.msra.mxu0 %v435
      %466 = vmatprep.subr.mxu0 0.0
      %467 = vmatpush1.msra.mxu0 %v436
      %468 = vmatprep.subr.mxu0 0.0
      %469 = vmatpush1.msra.mxu0 %v437
      %470 = vmatprep.subr.mxu0 0.0
      %471 = vmatpush1.msra.mxu0 0.0
      %472 = vmatprep.subr.mxu0 0.0
      %473 = vmatpush1.msra.mxu0 0.0
      %474 = vmatprep.subr.mxu0 0.0
      %475 = vmatpush1.msra.mxu0 0.0
      %476 = vmatprep.subr.mxu0 0.0
      %477 = vmatpush1.msra.mxu0 0.0
      %478 = vmatprep.subr.mxu0 0.0
      %479 = vmatpush1.msra.mxu0 0.0
      %480 = vmatprep.subr.mxu0 0.0
      %481 = vmatpush1.msra.mxu0 0.0
      %482 = vmatprep.subr.mxu0 0.0
      %483 = vmatpush1.msra.mxu0 0.0
      %484 = vmatprep.subr.mxu0 0.0
      %485 = vmatpush1.msra.mxu0 0.0
      %486 = vmatprep.subr.mxu0 0.0
      %487 = vmatpush1.msra.mxu0 0.0
      %488 = vmatprep.subr.mxu0 0.0
      %489 = vmatpush1.msra.mxu0 0.0
      %490 = vmatprep.subr.mxu0 0.0
      %491 = vmatpush1.msra.mxu0 0.0
      %492 = vmatprep.subr.mxu0 0.0
      %493 = vmatpush1.msra.mxu0 0.0
      %494 = vmatprep.subr.mxu0 0.0
      %495 = vmatpush1.msra.mxu0 0.0
      %496 = vmatprep.subr.mxu0 0.0
      %497 = vmatpush1.msra.mxu0 0.0
      %498 = vmatprep.subr.mxu0 0.0
      %499 = vmatpush1.msra.mxu0 0.0
      %500 = vmatprep.subr.mxu0 0.0
      %501 = vmatpush1.msra.mxu0 0.0
      %502 = vmatprep.mubr.f32.mxu0 0.0
      %503 = vmatmul.mubr.f32.gmra.mrb[0].mxu0 %v421
      %v504 = vpop.f32.mrb[0].mxu0
      %v505 = vadd.f32 0.0, %v504
      %v506 = vpop.f32.mrb[0].mxu0
      %507 = vdwg.mxu0
      %v508 = vmul.f32 %v505, %v505
      %v510 = vrot.slane %v508, 6
      %v512 = vsub.f32 %v505, %v510
      %v513 = vmax.f32 %v512, 0.0
      %v514 = vadd.f32 %v513, 1e-06
      %v515 = vrsqrt.pop %v514
      %v516 = vld [vmem:[%s1] sm:$0x1]
      %v518 = vlaneseq
      %v519 = vshrl.u32 %v518, 7
      %v520 = vsub.s32 0, %v519
      %v521 = vrot.slane %v516, %v520
      %v523 = vmul.f32 %v515, %v521
      %v524 = vld [vmem:[%s2] sm:$0x1]
      %v526 = vrot.slane %v523, 2
      %v528 = vmul.f32 %v505, %v526
      %v530 = vlaneseq
      %v531 = vshrl.u32 %v530, 7
      %v532 = vsub.s32 0, %v531
      %v533 = vrot.slane %v524, %v532
      %v535 = vsub.f32 %v533, %v528
      %v537 = vunpack.c.l.s4 1966171168
      %v538 = vunpack.c.0.s8 %v537
      %v539 = vlaneseq
      %v540 = vshrl.u32 %v539, 7
      %v541 = vsub.s32 %v538, %v540
      %v542 = vrot.slane %v523, %v541
      %v543 = vcombine.high %v542, %v542
      %v545 = vunpack.c.l.s4 1966171168
      %v546 = vunpack.c.0.s8 %v545
      %v547 = vlaneseq
      %v548 = vshrl.u32 %v547, 7
      %v549 = vsub.s32 %v546, %v548
      %v550 = vrot.slane %v542, %v549
      %v552 = vunpack.c.l.s4 1966171168
      %v553 = vunpack.c.0.s8 %v552
      %v554 = vlaneseq
      %v555 = vshrl.u32 %v554, 7
      %v556 = vsub.s32 %v553, %v555
      %v557 = vrot.slane %v543, %v556
      %v558 = vcombine.high %v550, %v550
      %v559 = vcombine.high %v557, %v557
      %v560 = vlaneseq
      %v561 = vshrl.u32 %v560, 7
      %v562 = vsub.s32 0, %v561
      %v563 = vrot.slane %v558, %v562
      %v564 = vlaneseq
      %v565 = vshrl.u32 %v564, 7
      %v566 = vsub.s32 0, %v565
      %v567 = vrot.slane %v559, %v566
      %v570 = vmul.f32 %v129, %v563
      %v571 = vmul.f32 %v130, %v563
      %v572 = vmul.f32 %v131, %v563
      %v573 = vmul.f32 %v132, %v563
      %v574 = vmul.f32 %v133, %v563
      %v575 = vmul.f32 %v134, %v563
      %v576 = vmul.f32 %v135, %v563
      %v577 = vmul.f32 %v136, %v563
      %v578 = vmul.f32 %v137, %v563
      %v579 = vmul.f32 %v138, %v563
      %v580 = vmul.f32 %v139, %v563
      %v581 = vmul.f32 %v140, %v563
      %v582 = vmul.f32 %v141, %v563
      %v583 = vmul.f32 %v142, %v563
      %v584 = vmul.f32 %v143, %v563
      %v585 = vmul.f32 %v144, %v563
      %v586 = vmul.f32 %v145, %v563
      %v587 = vmul.f32 %v146, %v563
      %v588 = vmul.f32 %v147, %v563
      %v589 = vmul.f32 %v148, %v563
      %v590 = vmul.f32 %v149, %v563
      %v591 = vmul.f32 %v150, %v563
      %v592 = vmul.f32 %v151, %v563
      %v593 = vmul.f32 %v152, %v563
      %v594 = vmul.f32 %v153, %v563
      %v595 = vmul.f32 %v154, %v563
      %v596 = vmul.f32 %v155, %v563
      %v597 = vmul.f32 %v156, %v563
      %v598 = vmul.f32 %v157, %v563
      %v599 = vmul.f32 %v158, %v563
      %v600 = vmul.f32 %v159, %v563
      %v601 = vmul.f32 %v160, %v563
      %v602 = vmul.f32 %v161, %v567
      %v603 = vmul.f32 %v162, %v567
      %v604 = vmul.f32 %v163, %v567
      %v605 = vmul.f32 %v164, %v567
      %v606 = vmul.f32 %v165, %v567
      %v607 = vmul.f32 %v166, %v567
      %v608 = vmul.f32 %v167, %v567
      %v609 = vmul.f32 %v168, %v567
      %v610 = vmul.f32 %v169, %v567
      %v611 = vmul.f32 %v170, %v567
      %v612 = vmul.f32 %v171, %v567
      %v613 = vmul.f32 %v172, %v567
      %v614 = vmul.f32 %v173, %v567
      %v615 = vmul.f32 %v174, %v567
      %v616 = vmul.f32 %v175, %v567
      %v617 = vmul.f32 %v176, %v567
      %v618 = vmul.f32 %v177, %v567
      %v619 = vmul.f32 %v178, %v567
      %v620 = vmul.f32 %v179, %v567
      %v621 = vmul.f32 %v180, %v567
      %v622 = vmul.f32 %v181, %v567
      %v623 = vmul.f32 %v182, %v567
      %v624 = vmul.f32 %v183, %v567
      %v625 = vmul.f32 %v184, %v567
      %v626 = vmul.f32 %v185, %v567
      %v627 = vmul.f32 %v186, %v567
      %v628 = vmul.f32 %v187, %v567
      %v629 = vmul.f32 %v188, %v567
      %v630 = vmul.f32 %v189, %v567
      %v631 = vmul.f32 %v190, %v567
      %v632 = vmul.f32 %v191, %v567
      %v633 = vmul.f32 %v192, %v567
      %v636 = vunpack.c.l.s4 1966171168
      %v637 = vunpack.c.0.s8 %v636
      %v638 = vlaneseq
      %v639 = vshrl.u32 %v638, 7
      %v640 = vsub.s32 %v637, %v639
      %v641 = vrot.slane %v535, %v640
      %v642 = vcombine.high %v641, %v641
      %v644 = vunpack.c.l.s4 1966171168
      %v645 = vunpack.c.0.s8 %v644
      %v646 = vlaneseq
      %v647 = vshrl.u32 %v646, 7
      %v648 = vsub.s32 %v645, %v647
      %v649 = vrot.slane %v641, %v648
      %v651 = vunpack.c.l.s4 1966171168
      %v652 = vunpack.c.0.s8 %v651
      %v653 = vlaneseq
      %v654 = vshrl.u32 %v653, 7
      %v655 = vsub.s32 %v652, %v654
      %v656 = vrot.slane %v642, %v655
      %v657 = vlaneseq
      %v658 = vshrl.u32 %v657, 7
      %v659 = vsub.s32 0, %v658
      %v660 = vrot.slane %v649, %v659
      %v661 = vlaneseq
      %v662 = vshrl.u32 %v661, 7
      %v663 = vsub.s32 0, %v662
      %v664 = vrot.slane %v656, %v663
      %v667 = vadd.f32 %v570, %v660
      %v668 = vadd.f32 %v571, %v660
      %v669 = vadd.f32 %v572, %v660
      %v670 = vadd.f32 %v573, %v660
      %v671 = vadd.f32 %v574, %v660
      %v672 = vadd.f32 %v575, %v660
      %v673 = vadd.f32 %v576, %v660
      %v674 = vadd.f32 %v577, %v660
      %v675 = vadd.f32 %v578, %v660
      %v676 = vadd.f32 %v579, %v660
      %v677 = vadd.f32 %v580, %v660
      %v678 = vadd.f32 %v581, %v660
      %v679 = vadd.f32 %v582, %v660
      %v680 = vadd.f32 %v583, %v660
      %v681 = vadd.f32 %v584, %v660
      %v682 = vadd.f32 %v585, %v660
      %v683 = vadd.f32 %v586, %v660
      %v684 = vadd.f32 %v587, %v660
      %v685 = vadd.f32 %v588, %v660
      %v686 = vadd.f32 %v589, %v660
      %v687 = vadd.f32 %v590, %v660
      %v688 = vadd.f32 %v591, %v660
      %v689 = vadd.f32 %v592, %v660
      %v690 = vadd.f32 %v593, %v660
      %v691 = vadd.f32 %v594, %v660
      %v692 = vadd.f32 %v595, %v660
      %v693 = vadd.f32 %v596, %v660
      %v694 = vadd.f32 %v597, %v660
      %v695 = vadd.f32 %v598, %v660
      %v696 = vadd.f32 %v599, %v660
      %v697 = vadd.f32 %v600, %v660
      %v698 = vadd.f32 %v601, %v660
      %v699 = vadd.f32 %v602, %v664
      %v700 = vadd.f32 %v603, %v664
      %v701 = vadd.f32 %v604, %v664
      %v702 = vadd.f32 %v605, %v664
      %v703 = vadd.f32 %v606, %v664
      %v704 = vadd.f32 %v607, %v664
      %v705 = vadd.f32 %v608, %v664
      %v706 = vadd.f32 %v609, %v664
      %v707 = vadd.f32 %v610, %v664
      %v708 = vadd.f32 %v611, %v664
      %v709 = vadd.f32 %v612, %v664
      %v710 = vadd.f32 %v613, %v664
      %v711 = vadd.f32 %v614, %v664
      %v712 = vadd.f32 %v615, %v664
      %v713 = vadd.f32 %v616, %v664
      %v714 = vadd.f32 %v617, %v664
      %v715 = vadd.f32 %v618, %v664
      %v716 = vadd.f32 %v619, %v664
      %v717 = vadd.f32 %v620, %v664
      %v718 = vadd.f32 %v621, %v664
      %v719 = vadd.f32 %v622, %v664
      %v720 = vadd.f32 %v623, %v664
      %v721 = vadd.f32 %v624, %v664
      %v722 = vadd.f32 %v625, %v664
      %v723 = vadd.f32 %v626, %v664
      %v724 = vadd.f32 %v627, %v664
      %v725 = vadd.f32 %v628, %v664
      %v726 = vadd.f32 %v629, %v664
      %v727 = vadd.f32 %v630, %v664
      %v728 = vadd.f32 %v631, %v664
      %v729 = vadd.f32 %v632, %v664
      %v730 = vadd.f32 %v633, %v664
      %v731 = vpack.c.bf16 %v668, %v667
      %v732 = vpack.c.bf16 %v670, %v669
      %v733 = vpack.c.bf16 %v672, %v671
      %v734 = vpack.c.bf16 %v674, %v673
      %v735 = vpack.c.bf16 %v676, %v675
      %v736 = vpack.c.bf16 %v678, %v677
      %v737 = vpack.c.bf16 %v680, %v679
      %v738 = vpack.c.bf16 %v682, %v681
      %v739 = vpack.c.bf16 %v684, %v683
      %v740 = vpack.c.bf16 %v686, %v685
      %v741 = vpack.c.bf16 %v688, %v687
      %v742 = vpack.c.bf16 %v690, %v689
      %v743 = vpack.c.bf16 %v692, %v691
      %v744 = vpack.c.bf16 %v694, %v693
      %v745 = vpack.c.bf16 %v696, %v695
      %v746 = vpack.c.bf16 %v698, %v697
      %v747 = vpack.c.bf16 %v700, %v699
      %v748 = vpack.c.bf16 %v702, %v701
      %v749 = vpack.c.bf16 %v704, %v703
      %v750 = vpack.c.bf16 %v706, %v705
      %v751 = vpack.c.bf16 %v708, %v707
      %v752 = vpack.c.bf16 %v710, %v709
      %v753 = vpack.c.bf16 %v712, %v711
      %v754 = vpack.c.bf16 %v714, %v713
      %v755 = vpack.c.bf16 %v716, %v715
      %v756 = vpack.c.bf16 %v718, %v717
      %v757 = vpack.c.bf16 %v720, %v719
      %v758 = vpack.c.bf16 %v722, %v721
      %v759 = vpack.c.bf16 %v724, %v723
      %v760 = vpack.c.bf16 %v726, %v725
      %v761 = vpack.c.bf16 %v728, %v727
      %v762 = vpack.c.bf16 %v730, %v729
      %v763 = vld [vmem:[#allocation10] sm:$0xf]
      %v764 = vld [vmem:[#allocation10 + $0x4] sm:$0xf]
      %v765 = vld [vmem:[#allocation10 + $0x8] sm:$0xf]
      %v766 = vld [vmem:[#allocation10 + $0xc] sm:$0xf]
      %v767 = vld [vmem:[#allocation10 + $0x10] sm:$0xf]
      %v768 = vld [vmem:[#allocation10 + $0x14] sm:$0xf]
      %v769 = vld [vmem:[#allocation10 + $0x18] sm:$0xf]
      %v770 = vld [vmem:[#allocation10 + $0x1c] sm:$0xf]
      %v771 = vld [vmem:[#allocation10 + $0x20] sm:$0xf]
      %v772 = vld [vmem:[#allocation10 + $0x24] sm:$0xf]
      %v773 = vld [vmem:[#allocation10 + $0x28] sm:$0xf]
      %v774 = vld [vmem:[#allocation10 + $0x2c] sm:$0xf]
      %v775 = vld [vmem:[#allocation10 + $0x30] sm:$0xf]
      %v776 = vld [vmem:[#allocation10 + $0x34] sm:$0xf]
      %v777 = vld [vmem:[#allocation10 + $0x38] sm:$0xf]
      %v778 = vld [vmem:[#allocation10 + $0x3c] sm:$0xf]
      %v779 = vld [vmem:[%s5] sm:$0x1]
      %v781 = vlaneseq
      %v782 = vshrl.u32 %v781, 7
      %v783 = vsub.s32 0, %v782
      %v784 = vrot.slane %v779, %v783
      %v802 = vunpack.c.l.b16 %v763
      %v803 = vunpack.c.l.b16 %v764
      %v804 = vunpack.c.l.b16 %v765
      %v805 = vunpack.c.l.b16 %v766
      %v806 = vunpack.c.l.b16 %v767
      %v807 = vunpack.c.l.b16 %v768
      %v808 = vunpack.c.l.b16 %v769
      %v809 = vunpack.c.l.b16 %v770
      %v810 = vunpack.c.l.b16 %v771
      %v811 = vunpack.c.l.b16 %v772
      %v812 = vunpack.c.l.b16 %v773
      %v813 = vunpack.c.l.b16 %v774
      %v814 = vunpack.c.l.b16 %v775
      %v815 = vunpack.c.l.b16 %v776
      %v816 = vunpack.c.l.b16 %v777
      %v817 = vunpack.c.l.b16 %v778
      %v818 = vpack.c.b16 %v803, %v802
      %v819 = vpack.c.b16 %v805, %v804
      %v820 = vpack.c.b16 %v807, %v806
      %v821 = vpack.c.b16 %v809, %v808
      %v822 = vpack.c.b16 %v811, %v810
      %v823 = vpack.c.b16 %v813, %v812
      %v824 = vpack.c.b16 %v815, %v814
      %v825 = vpack.c.b16 %v817, %v816
      %834 = vmatprep.subr.bf16.mxu0 0
      %835 = vmatpush1.bf16.msra.mxu0 %v818
      %836 = vmatprep.subr.bf16.mxu0 0
      %837 = vmatpush1.bf16.msra.mxu0 %v819
      %838 = vmatprep.subr.bf16.mxu0 0
      %839 = vmatpush1.bf16.msra.mxu0 %v820
      %840 = vmatprep.subr.bf16.mxu0 0
      %841 = vmatpush1.bf16.msra.mxu0 %v821
      %842 = vmatprep.subr.bf16.mxu0 0
      %843 = vmatpush1.bf16.msra.mxu0 %v822
      %844 = vmatprep.subr.bf16.mxu0 0
      %845 = vmatpush1.bf16.msra.mxu0 %v823
      %846 = vmatprep.subr.bf16.mxu0 0
      %847 = vmatpush1.bf16.msra.mxu0 %v824
      %848 = vmatprep.subr.bf16.mxu0 0
      %849 = vmatpush1.bf16.msra.mxu0 %v825
      %850 = vmatprep.subr.bf16.mxu0 0
      %851 = vmatpush1.bf16.msra.mxu0 0
      %852 = vmatprep.subr.bf16.mxu0 0
      %853 = vmatpush1.bf16.msra.mxu0 0
      %854 = vmatprep.subr.bf16.mxu0 0
      %855 = vmatpush1.bf16.msra.mxu0 0
      %856 = vmatprep.subr.bf16.mxu0 0
      %857 = vmatpush1.bf16.msra.mxu0 0
      %858 = vmatprep.subr.bf16.mxu0 0
      %859 = vmatpush1.bf16.msra.mxu0 0
      %860 = vmatprep.subr.bf16.mxu0 0
      %861 = vmatpush1.bf16.msra.mxu0 0
      %862 = vmatprep.subr.bf16.mxu0 0
      %863 = vmatpush1.bf16.msra.mxu0 0
      %864 = vmatprep.subr.bf16.mxu0 0
      %865 = vmatpush1.bf16.msra.mxu0 0
      %866 = vmatprep.mubr.bf16.mxu0 0
      %867 = vmatmul.mubr.bf16.gmra.mrb[0].mxu0 %v731
      %v868 = vpop.f32.mrb[0].mxu0
      %v869 = vadd.f32 %v784, %v868
      %v870 = vpop.f32.mrb[0].mxu0
      %v871 = vpop.f32.mrb[0].mxu0
      %v872 = vadd.f32 %v784, %v871
      %v873 = vpop.f32.mrb[0].mxu0
      %874 = vmatprep.mubr.bf16.mxu0 0
      %875 = vmatmul.mubr.bf16.gmra.mrb[0].mxu0 %v732
      %v876 = vpop.f32.mrb[0].mxu0
      %v877 = vadd.f32 %v784, %v876
      %v878 = vpop.f32.mrb[0].mxu0
      %v879 = vpop.f32.mrb[0].mxu0
      %v880 = vadd.f32 %v784, %v879
      %v881 = vpop.f32.mrb[0].mxu0
      %882 = vmatprep.mubr.bf16.mxu0 0
      %883 = vmatmul.mubr.bf16.gmra.mrb[0].mxu0 %v733
      %v884 = vpop.f32.mrb[0].mxu0
      %v885 = vadd.f32 %v784, %v884
      %v886 = vpop.f32.mrb[0].mxu0
      %v887 = vpop.f32.mrb[0].mxu0
      %v888 = vadd.f32 %v784, %v887
      %v889 = vpop.f32.mrb[0].mxu0
      %890 = vmatprep.mubr.bf16.mxu0 0
      %891 = vmatmul.mubr.bf16.gmra.mrb[0].mxu0 %v734
      %v892 = vpop.f32.mrb[0].mxu0
      %v893 = vadd.f32 %v784, %v892
      %v894 = vpop.f32.mrb[0].mxu0
      %v895 = vpop.f32.mrb[0].mxu0
      %v896 = vadd.f32 %v784, %v895
      %v897 = vpop.f32.mrb[0].mxu0
      %898 = vmatprep.mubr.bf16.mxu0 0
      %899 = vmatmul.mubr.bf16.gmra.mrb[0].mxu0 %v735
      %v900 = vpop.f32.mrb[0].mxu0
      %v901 = vadd.f32 %v784, %v900
      %v902 = vpop.f32.mrb[0].mxu0
      %v903 = vpop.f32.mrb[0].mxu0
      %v904 = vadd.f32 %v784, %v903
      %v905 = vpop.f32.mrb[0].mxu0
      %906 = vmatprep.mubr.bf16.mxu0 0
      %907 = vmatmul.mubr.bf16.gmra.mrb[0].mxu0 %v736
      %v908 = vpop.f32.mrb[0].mxu0
      %v909 = vadd.f32 %v784, %v908
      %v910 = vpop.f32.mrb[0].mxu0
      %v911 = vpop.f32.mrb[0].mxu0
      %v912 = vadd.f32 %v784, %v911
      %v913 = vpop.f32.mrb[0].mxu0
      %914 = vmatprep.mubr.bf16.mxu0 0
      %915 = vmatmul.mubr.bf16.gmra.mrb[0].mxu0 %v737
      %v916 = vpop.f32.mrb[0].mxu0
      %v917 = vadd.f32 %v784, %v916
      %v918 = vpop.f32.mrb[0].mxu0
      %v919 = vpop.f32.mrb[0].mxu0
      %v920 = vadd.f32 %v784, %v919
      %v921 = vpop.f32.mrb[0].mxu0
      %922 = vmatprep.mubr.bf16.mxu0 0
      %923 = vmatmul.mubr.bf16.gmra.mrb[0].mxu0 %v738
      %v924 = vpop.f32.mrb[0].mxu0
      %v925 = vadd.f32 %v784, %v924
      %v926 = vpop.f32.mrb[0].mxu0
      %v927 = vpop.f32.mrb[0].mxu0
      %v928 = vadd.f32 %v784, %v927
      %v929 = vpop.f32.mrb[0].mxu0
      %930 = vmatprep.mubr.bf16.mxu0 0
      %931 = vmatmul.mubr.bf16.gmra.mrb[0].mxu0 %v739
      %v932 = vpop.f32.mrb[0].mxu0
      %v933 = vadd.f32 %v784, %v932
      %v934 = vpop.f32.mrb[0].mxu0
      %v935 = vpop.f32.mrb[0].mxu0
      %v936 = vadd.f32 %v784, %v935
      %v937 = vpop.f32.mrb[0].mxu0
      %938 = vmatprep.mubr.bf16.mxu0 0
      %939 = vmatmul.mubr.bf16.gmra.mrb[0].mxu0 %v740
      %v940 = vpop.f32.mrb[0].mxu0
      %v941 = vadd.f32 %v784, %v940
      %v942 = vpop.f32.mrb[0].mxu0
      %v943 = vpop.f32.mrb[0].mxu0
      %v944 = vadd.f32 %v784, %v943
      %v945 = vpop.f32.mrb[0].mxu0
      %946 = vmatprep.mubr.bf16.mxu0 0
      %947 = vmatmul.mubr.bf16.gmra.mrb[0].mxu0 %v741
      %v948 = vpop.f32.mrb[0].mxu0
      %v949 = vadd.f32 %v784, %v948
      %v950 = vpop.f32.mrb[0].mxu0
      %v951 = vpop.f32.mrb[0].mxu0
      %v952 = vadd.f32 %v784, %v951
      %v953 = vpop.f32.mrb[0].mxu0
      %954 = vmatprep.mubr.bf16.mxu0 0
      %955 = vmatmul.mubr.bf16.gmra.mrb[0].mxu0 %v742
      %v956 = vpop.f32.mrb[0].mxu0
      %v957 = vadd.f32 %v784, %v956
      %v958 = vpop.f32.mrb[0].mxu0
      %v959 = vpop.f32.mrb[0].mxu0
      %v960 = vadd.f32 %v784, %v959
      %v961 = vpop.f32.mrb[0].mxu0
      %962 = vmatprep.mubr.bf16.mxu0 0
      %963 = vmatmul.mubr.bf16.gmra.mrb[0].mxu0 %v743
      %v964 = vpop.f32.mrb[0].mxu0
      %v965 = vadd.f32 %v784, %v964
      %v966 = vpop.f32.mrb[0].mxu0
      %v967 = vpop.f32.mrb[0].mxu0
      %v968 = vadd.f32 %v784, %v967
      %v969 = vpop.f32.mrb[0].mxu0
      %970 = vmatprep.mubr.bf16.mxu0 0
      %971 = vmatmul.mubr.bf16.gmra.mrb[0].mxu0 %v744
      %v972 = vpop.f32.mrb[0].mxu0
      %v973 = vadd.f32 %v784, %v972
      %v974 = vpop.f32.mrb[0].mxu0
      %v975 = vpop.f32.mrb[0].mxu0
      %v976 = vadd.f32 %v784, %v975
      %v977 = vpop.f32.mrb[0].mxu0
      %978 = vmatprep.mubr.bf16.mxu0 0
      %979 = vmatmul.mubr.bf16.gmra.mrb[0].mxu0 %v745
      %v980 = vpop.f32.mrb[0].mxu0
      %v981 = vadd.f32 %v784, %v980
      %v982 = vpop.f32.mrb[0].mxu0
      %v983 = vpop.f32.mrb[0].mxu0
      %v984 = vadd.f32 %v784, %v983
      %v985 = vpop.f32.mrb[0].mxu0
      %986 = vmatprep.mubr.bf16.mxu0 0
      %987 = vmatmul.mubr.bf16.gmra.mrb[0].mxu0 %v746
      %v988 = vpop.f32.mrb[0].mxu0
      %v989 = vadd.f32 %v784, %v988
      %v990 = vpop.f32.mrb[0].mxu0
      %v991 = vpop.f32.mrb[0].mxu0
      %v992 = vadd.f32 %v784, %v991
      %v993 = vpop.f32.mrb[0].mxu0
      %994 = vmatprep.mubr.bf16.mxu0 0
      %995 = vmatmul.mubr.bf16.gmra.mrb[0].mxu0 %v747
      %v996 = vpop.f32.mrb[0].mxu0
      %v997 = vadd.f32 %v784, %v996
      %v998 = vpop.f32.mrb[0].mxu0
      %v999 = vpop.f32.mrb[0].mxu0
      %v1000 = vadd.f32 %v784, %v999
      %v1001 = vpop.f32.mrb[0].mxu0
      %1002 = vmatprep.mubr.bf16.mxu0 0
      %1003 = vmatmul.mubr.bf16.gmra.mrb[0].mxu0 %v748
      %v1004 = vpop.f32.mrb[0].mxu0
      %v1005 = vadd.f32 %v784, %v1004
      %v1006 = vpop.f32.mrb[0].mxu0
      %v1007 = vpop.f32.mrb[0].mxu0
      %v1008 = vadd.f32 %v784, %v1007
      %v1009 = vpop.f32.mrb[0].mxu0
      %1010 = vmatprep.mubr.bf16.mxu0 0
      %1011 = vmatmul.mubr.bf16.gmra.mrb[0].mxu0 %v749
      %v1012 = vpop.f32.mrb[0].mxu0
      %v1013 = vadd.f32 %v784, %v1012
      %v1014 = vpop.f32.mrb[0].mxu0
      %v1015 = vpop.f32.mrb[0].mxu0
      %v1016 = vadd.f32 %v784, %v1015
      %v1017 = vpop.f32.mrb[0].mxu0
      %1018 = vmatprep.mubr.bf16.mxu0 0
      %1019 = vmatmul.mubr.bf16.gmra.mrb[0].mxu0 %v750
      %v1020 = vpop.f32.mrb[0].mxu0
      %v1021 = vadd.f32 %v784, %v1020
      %v1022 = vpop.f32.mrb[0].mxu0
      %v1023 = vpop.f32.mrb[0].mxu0
      %v1024 = vadd.f32 %v784, %v1023
      %v1025 = vpop.f32.mrb[0].mxu0
      %1026 = vmatprep.mubr.bf16.mxu0 0
      %1027 = vmatmul.mubr.bf16.gmra.mrb[0].mxu0 %v751
      %v1028 = vpop.f32.mrb[0].mxu0
      %v1029 = vadd.f32 %v784, %v1028
      %v1030 = vpop.f32.mrb[0].mxu0
      %v1031 = vpop.f32.mrb[0].mxu0
      %v1032 = vadd.f32 %v784, %v1031
      %v1033 = vpop.f32.mrb[0].mxu0
      %1034 = vmatprep.mubr.bf16.mxu0 0
      %1035 = vmatmul.mubr.bf16.gmra.mrb[0].mxu0 %v752
      %v1036 = vpop.f32.mrb[0].mxu0
      %v1037 = vadd.f32 %v784, %v1036
      %v1038 = vpop.f32.mrb[0].mxu0
      %v1039 = vpop.f32.mrb[0].mxu0
      %v1040 = vadd.f32 %v784, %v1039
      %v1041 = vpop.f32.mrb[0].mxu0
      %1042 = vmatprep.mubr.bf16.mxu0 0
      %1043 = vmatmul.mubr.bf16.gmra.mrb[0].mxu0 %v753
      %v1044 = vpop.f32.mrb[0].mxu0
      %v1045 = vadd.f32 %v784, %v1044
      %v1046 = vpop.f32.mrb[0].mxu0
      %v1047 = vpop.f32.mrb[0].mxu0
      %v1048 = vadd.f32 %v784, %v1047
      %v1049 = vpop.f32.mrb[0].mxu0
      %1050 = vmatprep.mubr.bf16.mxu0 0
      %1051 = vmatmul.mubr.bf16.gmra.mrb[0].mxu0 %v754
      %v1052 = vpop.f32.mrb[0].mxu0
      %v1053 = vadd.f32 %v784, %v1052
      %v1054 = vpop.f32.mrb[0].mxu0
      %v1055 = vpop.f32.mrb[0].mxu0
      %v1056 = vadd.f32 %v784, %v1055
      %v1057 = vpop.f32.mrb[0].mxu0
      %1058 = vmatprep.mubr.bf16.mxu0 0
      %1059 = vmatmul.mubr.bf16.gmra.mrb[0].mxu0 %v755
      %v1060 = vpop.f32.mrb[0].mxu0
      %v1061 = vadd.f32 %v784, %v1060
      %v1062 = vpop.f32.mrb[0].mxu0
      %v1063 = vpop.f32.mrb[0].mxu0
      %v1064 = vadd.f32 %v784, %v1063
      %v1065 = vpop.f32.mrb[0].mxu0
      %1066 = vmatprep.mubr.bf16.mxu0 0
      %1067 = vmatmul.mubr.bf16.gmra.mrb[0].mxu0 %v756
      %v1068 = vpop.f32.mrb[0].mxu0
      %v1069 = vadd.f32 %v784, %v1068
      %v1070 = vpop.f32.mrb[0].mxu0
      %v1071 = vpop.f32.mrb[0].mxu0
      %v1072 = vadd.f32 %v784, %v1071
      %v1073 = vpop.f32.mrb[0].mxu0
      %1074 = vmatprep.mubr.bf16.mxu0 0
      %1075 = vmatmul.mubr.bf16.gmra.mrb[0].mxu0 %v757
      %v1076 = vpop.f32.mrb[0].mxu0
      %v1077 = vadd.f32 %v784, %v1076
      %v1078 = vpop.f32.mrb[0].mxu0
      %v1079 = vpop.f32.mrb[0].mxu0
      %v1080 = vadd.f32 %v784, %v1079
      %v1081 = vpop.f32.mrb[0].mxu0
      %1082 = vmatprep.mubr.bf16.mxu0 0
      %1083 = vmatmul.mubr.bf16.gmra.mrb[0].mxu0 %v758
      %v1084 = vpop.f32.mrb[0].mxu0
      %v1085 = vadd.f32 %v784, %v1084
      %v1086 = vpop.f32.mrb[0].mxu0
      %v1087 = vpop.f32.mrb[0].mxu0
      %v1088 = vadd.f32 %v784, %v1087
      %v1089 = vpop.f32.mrb[0].mxu0
      %1090 = vmatprep.mubr.bf16.mxu0 0
      %1091 = vmatmul.mubr.bf16.gmra.mrb[0].mxu0 %v759
      %v1092 = vpop.f32.mrb[0].mxu0
      %v1093 = vadd.f32 %v784, %v1092
      %v1094 = vpop.f32.mrb[0].mxu0
      %v1095 = vpop.f32.mrb[0].mxu0
      %v1096 = vadd.f32 %v784, %v1095
      %v1097 = vpop.f32.mrb[0].mxu0
      %1098 = vmatprep.mubr.bf16.mxu0 0
      %1099 = vmatmul.mubr.bf16.gmra.mrb[0].mxu0 %v760
      %v1100 = vpop.f32.mrb[0].mxu0
      %v1101 = vadd.f32 %v784, %v1100
      %v1102 = vpop.f32.mrb[0].mxu0
      %v1103 = vpop.f32.mrb[0].mxu0
      %v1104 = vadd.f32 %v784, %v1103
      %v1105 = vpop.f32.mrb[0].mxu0
      %1106 = vmatprep.mubr.bf16.mxu0 0
      %1107 = vmatmul.mubr.bf16.gmra.mrb[0].mxu0 %v761
      %v1108 = vpop.f32.mrb[0].mxu0
      %v1109 = vadd.f32 %v784, %v1108
      %v1110 = vpop.f32.mrb[0].mxu0
      %v1111 = vpop.f32.mrb[0].mxu0
      %v1112 = vadd.f32 %v784, %v1111
      %v1113 = vpop.f32.mrb[0].mxu0
      %1114 = vmatprep.mubr.bf16.mxu0 0
      %1115 = vmatmul.mubr.bf16.gmra.mrb[0].mxu0 %v762
      %v1116 = vpop.f32.mrb[0].mxu0
      %v1117 = vadd.f32 %v784, %v1116
      %v1118 = vpop.f32.mrb[0].mxu0
      %v1119 = vpop.f32.mrb[0].mxu0
      %v1120 = vadd.f32 %v784, %v1119
      %v1121 = vpop.f32.mrb[0].mxu0
      %1122 = vdwg.mxu0
      %v1123 = vpack.c.bf16 %v872, %v869
      %v1124 = vpack.c.bf16 %v880, %v877
      %v1125 = vpack.c.bf16 %v888, %v885
      %v1126 = vpack.c.bf16 %v896, %v893
      %v1127 = vpack.c.bf16 %v904, %v901
      %v1128 = vpack.c.bf16 %v912, %v909
      %v1129 = vpack.c.bf16 %v920, %v917
      %v1130 = vpack.c.bf16 %v928, %v925
      %v1131 = vpack.c.bf16 %v936, %v933
      %v1132 = vpack.c.bf16 %v944, %v941
      %v1133 = vpack.c.bf16 %v952, %v949
      %v1134 = vpack.c.bf16 %v960, %v957
      %v1135 = vpack.c.bf16 %v968, %v965
      %v1136 = vpack.c.bf16 %v976, %v973
      %v1137 = vpack.c.bf16 %v984, %v981
      %v1138 = vpack.c.bf16 %v992, %v989
      %v1139 = vpack.c.bf16 %v1000, %v997
      %v1140 = vpack.c.bf16 %v1008, %v1005
      %v1141 = vpack.c.bf16 %v1016, %v1013
      %v1142 = vpack.c.bf16 %v1024, %v1021
      %v1143 = vpack.c.bf16 %v1032, %v1029
      %v1144 = vpack.c.bf16 %v1040, %v1037
      %v1145 = vpack.c.bf16 %v1048, %v1045
      %v1146 = vpack.c.bf16 %v1056, %v1053
      %v1147 = vpack.c.bf16 %v1064, %v1061
      %v1148 = vpack.c.bf16 %v1072, %v1069
      %v1149 = vpack.c.bf16 %v1080, %v1077
      %v1150 = vpack.c.bf16 %v1088, %v1085
      %v1151 = vpack.c.bf16 %v1096, %v1093
      %v1152 = vpack.c.bf16 %v1104, %v1101
      %v1153 = vpack.c.bf16 %v1112, %v1109
      %v1154 = vpack.c.bf16 %v1120, %v1117
      %1155 = vst [vmem:[#allocation2] sm:$0xff] %v1123
      %1156 = vst [vmem:[#allocation2 + $0x8] sm:$0xff] %v1124
      %1157 = vst [vmem:[#allocation2 + $0x10] sm:$0xff] %v1125
      %1158 = vst [vmem:[#allocation2 + $0x18] sm:$0xff] %v1126
      %1159 = vst [vmem:[#allocation2 + $0x20] sm:$0xff] %v1127
      %1160 = vst [vmem:[#allocation2 + $0x28] sm:$0xff] %v1128
      %1161 = vst [vmem:[#allocation2 + $0x30] sm:$0xff] %v1129
      %1162 = vst [vmem:[#allocation2 + $0x38] sm:$0xff] %v1130
      %1163 = vst [vmem:[#allocation2 + $0x40] sm:$0xff] %v1131
      %1164 = vst [vmem:[#allocation2 + $0x48] sm:$0xff] %v1132
      %1165 = vst [vmem:[#allocation2 + $0x50] sm:$0xff] %v1133
      %1166 = vst [vmem:[#allocation2 + $0x58] sm:$0xff] %v1134
      %1167 = vst [vmem:[#allocation2 + $0x60] sm:$0xff] %v1135
      %1168 = vst [vmem:[#allocation2 + $0x68] sm:$0xff] %v1136
      %1169 = vst [vmem:[#allocation2 + $0x70] sm:$0xff] %v1137
      %1170 = vst [vmem:[#allocation2 + $0x78] sm:$0xff] %v1138
      %1171 = vst [vmem:[#allocation2 + $0x80] sm:$0xff] %v1139
      %1172 = vst [vmem:[#allocation2 + $0x88] sm:$0xff] %v1140
      %1173 = vst [vmem:[#allocation2 + $0x90] sm:$0xff] %v1141
      %1174 = vst [vmem:[#allocation2 + $0x98] sm:$0xff] %v1142
      %1175 = vst [vmem:[#allocation2 + $0xa0] sm:$0xff] %v1143
      %1176 = vst [vmem:[#allocation2 + $0xa8] sm:$0xff] %v1144
      %1177 = vst [vmem:[#allocation2 + $0xb0] sm:$0xff] %v1145
      %1178 = vst [vmem:[#allocation2 + $0xb8] sm:$0xff] %v1146
      %1179 = vst [vmem:[#allocation2 + $0xc0] sm:$0xff] %v1147
      %1180 = vst [vmem:[#allocation2 + $0xc8] sm:$0xff] %v1148
      %1181 = vst [vmem:[#allocation2 + $0xd0] sm:$0xff] %v1149
      %1182 = vst [vmem:[#allocation2 + $0xd8] sm:$0xff] %v1150
      %1183 = vst [vmem:[#allocation2 + $0xe0] sm:$0xff] %v1151
      %1184 = vst [vmem:[#allocation2 + $0xe8] sm:$0xff] %v1152
      %1185 = vst [vmem:[#allocation2 + $0xf0] sm:$0xff] %v1153
      %1186 = vst [vmem:[#allocation2 + $0xf8] sm:$0xff] %v1154
      %v1187 = vld [vmem:[#allocation11] sm:$0xf]
      %v1188 = vld [vmem:[#allocation11 + $0x4] sm:$0xf]
      %v1189 = vld [vmem:[#allocation11 + $0x8] sm:$0xf]
      %v1190 = vld [vmem:[#allocation11 + $0xc] sm:$0xf]
      %v1191 = vld [vmem:[#allocation11 + $0x10] sm:$0xf]
      %v1192 = vld [vmem:[#allocation11 + $0x14] sm:$0xf]
      %v1193 = vld [vmem:[#allocation11 + $0x18] sm:$0xf]
      %v1194 = vld [vmem:[#allocation11 + $0x1c] sm:$0xf]
      %v1195 = vld [vmem:[#allocation11 + $0x20] sm:$0xf]
      %v1196 = vld [vmem:[#allocation11 + $0x24] sm:$0xf]
      %v1197 = vld [vmem:[#allocation11 + $0x28] sm:$0xf]
      %v1198 = vld [vmem:[#allocation11 + $0x2c] sm:$0xf]
      %v1199 = vld [vmem:[#allocation11 + $0x30] sm:$0xf]
      %v1200 = vld [vmem:[#allocation11 + $0x34] sm:$0xf]
      %v1201 = vld [vmem:[#allocation11 + $0x38] sm:$0xf]
      %v1202 = vld [vmem:[#allocation11 + $0x3c] sm:$0xf]
      %v1203 = vld [vmem:[%s7] sm:$0x1]
      %v1205 = vlaneseq
      %v1206 = vshrl.u32 %v1205, 7
      %v1207 = vsub.s32 0, %v1206
      %v1208 = vrot.slane %v1203, %v1207
      %v1226 = vunpack.c.l.b16 %v1187
      %v1227 = vunpack.c.l.b16 %v1188
      %v1228 = vunpack.c.l.b16 %v1189
      %v1229 = vunpack.c.l.b16 %v1190
      %v1230 = vunpack.c.l.b16 %v1191
      %v1231 = vunpack.c.l.b16 %v1192
      %v1232 = vunpack.c.l.b16 %v1193
      %v1233 = vunpack.c.l.b16 %v1194
      %v1234 = vunpack.c.l.b16 %v1195
      %v1235 = vunpack.c.l.b16 %v1196
      %v1236 = vunpack.c.l.b16 %v1197
      %v1237 = vunpack.c.l.b16 %v1198
      %v1238 = vunpack.c.l.b16 %v1199
      %v1239 = vunpack.c.l.b16 %v1200
      %v1240 = vunpack.c.l.b16 %v1201
      %v1241 = vunpack.c.l.b16 %v1202
      %v1242 = vpack.c.b16 %v1227, %v1226
      %v1243 = vpack.c.b16 %v1229, %v1228
      %v1244 = vpack.c.b16 %v1231, %v1230
      %v1245 = vpack.c.b16 %v1233, %v1232
      %v1246 = vpack.c.b16 %v1235, %v1234
      %v1247 = vpack.c.b16 %v1237, %v1236
      %v1248 = vpack.c.b16 %v1239, %v1238
      %v1249 = vpack.c.b16 %v1241, %v1240
      %1258 = vmatprep.subr.bf16.mxu0 0
      %1259 = vmatpush1.bf16.msra.mxu0 %v1242
      %1260 = vmatprep.subr.bf16.mxu0 0
      %1261 = vmatpush1.bf16.msra.mxu0 %v1243
      %1262 = vmatprep.subr.bf16.mxu0 0
      %1263 = vmatpush1.bf16.msra.mxu0 %v1244
      %1264 = vmatprep.subr.bf16.mxu0 0
      %1265 = vmatpush1.bf16.msra.mxu0 %v1245
      %1266 = vmatprep.subr.bf16.mxu0 0
      %1267 = vmatpush1.bf16.msra.mxu0 %v1246
      %1268 = vmatprep.subr.bf16.mxu0 0
      %1269 = vmatpush1.bf16.msra.mxu0 %v1247
      %1270 = vmatprep.subr.bf16.mxu0 0
      %1271 = vmatpush1.bf16.msra.mxu0 %v1248
      %1272 = vmatprep.subr.bf16.mxu0 0
      %1273 = vmatpush1.bf16.msra.mxu0 %v1249
      %1274 = vmatprep.subr.bf16.mxu0 0
      %1275 = vmatpush1.bf16.msra.mxu0 0
      %1276 = vmatprep.subr.bf16.mxu0 0
      %1277 = vmatpush1.bf16.msra.mxu0 0
      %1278 = vmatprep.subr.bf16.mxu0 0
      %1279 = vmatpush1.bf16.msra.mxu0 0
      %1280 = vmatprep.subr.bf16.mxu0 0
      %1281 = vmatpush1.bf16.msra.mxu0 0
      %1282 = vmatprep.subr.bf16.mxu0 0
      %1283 = vmatpush1.bf16.msra.mxu0 0
      %1284 = vmatprep.subr.bf16.mxu0 0
      %1285 = vmatpush1.bf16.msra.mxu0 0
      %1286 = vmatprep.subr.bf16.mxu0 0
      %1287 = vmatpush1.bf16.msra.mxu0 0
      %1288 = vmatprep.subr.bf16.mxu0 0
      %1289 = vmatpush1.bf16.msra.mxu0 0
      %1290 = vmatprep.mubr.bf16.mxu0 0
      %1291 = vmatmul.mubr.bf16.gmra.mrb[0].mxu0 %v731
      %v1292 = vpop.f32.mrb[0].mxu0
      %v1293 = vadd.f32 %v1208, %v1292
      %v1294 = vpop.f32.mrb[0].mxu0
      %v1295 = vpop.f32.mrb[0].mxu0
      %v1296 = vadd.f32 %v1208, %v1295
      %v1297 = vpop.f32.mrb[0].mxu0
      %1298 = vmatprep.mubr.bf16.mxu0 0
      %1299 = vmatmul.mubr.bf16.gmra.mrb[0].mxu0 %v732
      %v1300 = vpop.f32.mrb[0].mxu0
      %v1301 = vadd.f32 %v1208, %v1300
      %v1302 = vpop.f32.mrb[0].mxu0
      %v1303 = vpop.f32.mrb[0].mxu0
      %v1304 = vadd.f32 %v1208, %v1303
      %v1305 = vpop.f32.mrb[0].mxu0
      %1306 = vmatprep.mubr.bf16.mxu0 0
      %1307 = vmatmul.mubr.bf16.gmra.mrb[0].mxu0 %v733
      %v1308 = vpop.f32.mrb[0].mxu0
      %v1309 = vadd.f32 %v1208, %v1308
      %v1310 = vpop.f32.mrb[0].mxu0
      %v1311 = vpop.f32.mrb[0].mxu0
      %v1312 = vadd.f32 %v1208, %v1311
      %v1313 = vpop.f32.mrb[0].mxu0
      %1314 = vmatprep.mubr.bf16.mxu0 0
      %1315 = vmatmul.mubr.bf16.gmra.mrb[0].mxu0 %v734
      %v1316 = vpop.f32.mrb[0].mxu0
      %v1317 = vadd.f32 %v1208, %v1316
      %v1318 = vpop.f32.mrb[0].mxu0
      %v1319 = vpop.f32.mrb[0].mxu0
      %v1320 = vadd.f32 %v1208, %v1319
      %v1321 = vpop.f32.mrb[0].mxu0
      %1322 = vmatprep.mubr.bf16.mxu0 0
      %1323 = vmatmul.mubr.bf16.gmra.mrb[0].mxu0 %v735
      %v1324 = vpop.f32.mrb[0].mxu0
      %v1325 = vadd.f32 %v1208, %v1324
      %v1326 = vpop.f32.mrb[0].mxu0
      %v1327 = vpop.f32.mrb[0].mxu0
      %v1328 = vadd.f32 %v1208, %v1327
      %v1329 = vpop.f32.mrb[0].mxu0
      %1330 = vmatprep.mubr.bf16.mxu0 0
      %1331 = vmatmul.mubr.bf16.gmra.mrb[0].mxu0 %v736
      %v1332 = vpop.f32.mrb[0].mxu0
      %v1333 = vadd.f32 %v1208, %v1332
      %v1334 = vpop.f32.mrb[0].mxu0
      %v1335 = vpop.f32.mrb[0].mxu0
      %v1336 = vadd.f32 %v1208, %v1335
      %v1337 = vpop.f32.mrb[0].mxu0
      %1338 = vmatprep.mubr.bf16.mxu0 0
      %1339 = vmatmul.mubr.bf16.gmra.mrb[0].mxu0 %v737
      %v1340 = vpop.f32.mrb[0].mxu0
      %v1341 = vadd.f32 %v1208, %v1340
      %v1342 = vpop.f32.mrb[0].mxu0
      %v1343 = vpop.f32.mrb[0].mxu0
      %v1344 = vadd.f32 %v1208, %v1343
      %v1345 = vpop.f32.mrb[0].mxu0
      %1346 = vmatprep.mubr.bf16.mxu0 0
      %1347 = vmatmul.mubr.bf16.gmra.mrb[0].mxu0 %v738
      %v1348 = vpop.f32.mrb[0].mxu0
      %v1349 = vadd.f32 %v1208, %v1348
      %v1350 = vpop.f32.mrb[0].mxu0
      %v1351 = vpop.f32.mrb[0].mxu0
      %v1352 = vadd.f32 %v1208, %v1351
      %v1353 = vpop.f32.mrb[0].mxu0
      %1354 = vmatprep.mubr.bf16.mxu0 0
      %1355 = vmatmul.mubr.bf16.gmra.mrb[0].mxu0 %v739
      %v1356 = vpop.f32.mrb[0].mxu0
      %v1357 = vadd.f32 %v1208, %v1356
      %v1358 = vpop.f32.mrb[0].mxu0
      %v1359 = vpop.f32.mrb[0].mxu0
      %v1360 = vadd.f32 %v1208, %v1359
      %v1361 = vpop.f32.mrb[0].mxu0
      %1362 = vmatprep.mubr.bf16.mxu0 0
      %1363 = vmatmul.mubr.bf16.gmra.mrb[0].mxu0 %v740
      %v1364 = vpop.f32.mrb[0].mxu0
      %v1365 = vadd.f32 %v1208, %v1364
      %v1366 = vpop.f32.mrb[0].mxu0
      %v1367 = vpop.f32.mrb[0].mxu0
      %v1368 = vadd.f32 %v1208, %v1367
      %v1369 = vpop.f32.mrb[0].mxu0
      %1370 = vmatprep.mubr.bf16.mxu0 0
      %1371 = vmatmul.mubr.bf16.gmra.mrb[0].mxu0 %v741
      %v1372 = vpop.f32.mrb[0].mxu0
      %v1373 = vadd.f32 %v1208, %v1372
      %v1374 = vpop.f32.mrb[0].mxu0
      %v1375 = vpop.f32.mrb[0].mxu0
      %v1376 = vadd.f32 %v1208, %v1375
      %v1377 = vpop.f32.mrb[0].mxu0
      %1378 = vmatprep.mubr.bf16.mxu0 0
      %1379 = vmatmul.mubr.bf16.gmra.mrb[0].mxu0 %v742
      %v1380 = vpop.f32.mrb[0].mxu0
      %v1381 = vadd.f32 %v1208, %v1380
      %v1382 = vpop.f32.mrb[0].mxu0
      %v1383 = vpop.f32.mrb[0].mxu0
      %v1384 = vadd.f32 %v1208, %v1383
      %v1385 = vpop.f32.mrb[0].mxu0
      %1386 = vmatprep.mubr.bf16.mxu0 0
      %1387 = vmatmul.mubr.bf16.gmra.mrb[0].mxu0 %v743
      %v1388 = vpop.f32.mrb[0].mxu0
      %v1389 = vadd.f32 %v1208, %v1388
      %v1390 = vpop.f32.mrb[0].mxu0
      %v1391 = vpop.f32.mrb[0].mxu0
      %v1392 = vadd.f32 %v1208, %v1391
      %v1393 = vpop.f32.mrb[0].mxu0
      %1394 = vmatprep.mubr.bf16.mxu0 0
      %1395 = vmatmul.mubr.bf16.gmra.mrb[0].mxu0 %v744
      %v1396 = vpop.f32.mrb[0].mxu0
      %v1397 = vadd.f32 %v1208, %v1396
      %v1398 = vpop.f32.mrb[0].mxu0
      %v1399 = vpop.f32.mrb[0].mxu0
      %v1400 = vadd.f32 %v1208, %v1399
      %v1401 = vpop.f32.mrb[0].mxu0
      %1402 = vmatprep.mubr.bf16.mxu0 0
      %1403 = vmatmul.mubr.bf16.gmra.mrb[0].mxu0 %v745
      %v1404 = vpop.f32.mrb[0].mxu0
      %v1405 = vadd.f32 %v1208, %v1404
      %v1406 = vpop.f32.mrb[0].mxu0
      %v1407 = vpop.f32.mrb[0].mxu0
      %v1408 = vadd.f32 %v1208, %v1407
      %v1409 = vpop.f32.mrb[0].mxu0
      %1410 = vmatprep.mubr.bf16.mxu0 0
      %1411 = vmatmul.mubr.bf16.gmra.mrb[0].mxu0 %v746
      %v1412 = vpop.f32.mrb[0].mxu0
      %v1413 = vadd.f32 %v1208, %v1412
      %v1414 = vpop.f32.mrb[0].mxu0
      %v1415 = vpop.f32.mrb[0].mxu0
      %v1416 = vadd.f32 %v1208, %v1415
      %v1417 = vpop.f32.mrb[0].mxu0
      %1418 = vmatprep.mubr.bf16.mxu0 0
      %1419 = vmatmul.mubr.bf16.gmra.mrb[0].mxu0 %v747
      %v1420 = vpop.f32.mrb[0].mxu0
      %v1421 = vadd.f32 %v1208, %v1420
      %v1422 = vpop.f32.mrb[0].mxu0
      %v1423 = vpop.f32.mrb[0].mxu0
      %v1424 = vadd.f32 %v1208, %v1423
      %v1425 = vpop.f32.mrb[0].mxu0
      %1426 = vmatprep.mubr.bf16.mxu0 0
      %1427 = vmatmul.mubr.bf16.gmra.mrb[0].mxu0 %v748
      %v1428 = vpop.f32.mrb[0].mxu0
      %v1429 = vadd.f32 %v1208, %v1428
      %v1430 = vpop.f32.mrb[0].mxu0
      %v1431 = vpop.f32.mrb[0].mxu0
      %v1432 = vadd.f32 %v1208, %v1431
      %v1433 = vpop.f32.mrb[0].mxu0
      %1434 = vmatprep.mubr.bf16.mxu0 0
      %1435 = vmatmul.mubr.bf16.gmra.mrb[0].mxu0 %v749
      %v1436 = vpop.f32.mrb[0].mxu0
      %v1437 = vadd.f32 %v1208, %v1436
      %v1438 = vpop.f32.mrb[0].mxu0
      %v1439 = vpop.f32.mrb[0].mxu0
      %v1440 = vadd.f32 %v1208, %v1439
      %v1441 = vpop.f32.mrb[0].mxu0
      %1442 = vmatprep.mubr.bf16.mxu0 0
      %1443 = vmatmul.mubr.bf16.gmra.mrb[0].mxu0 %v750
      %v1444 = vpop.f32.mrb[0].mxu0
      %v1445 = vadd.f32 %v1208, %v1444
      %v1446 = vpop.f32.mrb[0].mxu0
      %v1447 = vpop.f32.mrb[0].mxu0
      %v1448 = vadd.f32 %v1208, %v1447
      %v1449 = vpop.f32.mrb[0].mxu0
      %1450 = vmatprep.mubr.bf16.mxu0 0
      %1451 = vmatmul.mubr.bf16.gmra.mrb[0].mxu0 %v751
      %v1452 = vpop.f32.mrb[0].mxu0
      %v1453 = vadd.f32 %v1208, %v1452
      %v1454 = vpop.f32.mrb[0].mxu0
      %v1455 = vpop.f32.mrb[0].mxu0
      %v1456 = vadd.f32 %v1208, %v1455
      %v1457 = vpop.f32.mrb[0].mxu0
      %1458 = vmatprep.mubr.bf16.mxu0 0
      %1459 = vmatmul.mubr.bf16.gmra.mrb[0].mxu0 %v752
      %v1460 = vpop.f32.mrb[0].mxu0
      %v1461 = vadd.f32 %v1208, %v1460
      %v1462 = vpop.f32.mrb[0].mxu0
      %v1463 = vpop.f32.mrb[0].mxu0
      %v1464 = vadd.f32 %v1208, %v1463
      %v1465 = vpop.f32.mrb[0].mxu0
      %1466 = vmatprep.mubr.bf16.mxu0 0
      %1467 = vmatmul.mubr.bf16.gmra.mrb[0].mxu0 %v753
      %v1468 = vpop.f32.mrb[0].mxu0
      %v1469 = vadd.f32 %v1208, %v1468
      %v1470 = vpop.f32.mrb[0].mxu0
      %v1471 = vpop.f32.mrb[0].mxu0
      %v1472 = vadd.f32 %v1208, %v1471
      %v1473 = vpop.f32.mrb[0].mxu0
      %1474 = vmatprep.mubr.bf16.mxu0 0
      %1475 = vmatmul.mubr.bf16.gmra.mrb[0].mxu0 %v754
      %v1476 = vpop.f32.mrb[0].mxu0
      %v1477 = vadd.f32 %v1208, %v1476
      %v1478 = vpop.f32.mrb[0].mxu0
      %v1479 = vpop.f32.mrb[0].mxu0
      %v1480 = vadd.f32 %v1208, %v1479
      %v1481 = vpop.f32.mrb[0].mxu0
      %1482 = vmatprep.mubr.bf16.mxu0 0
      %1483 = vmatmul.mubr.bf16.gmra.mrb[0].mxu0 %v755
      %v1484 = vpop.f32.mrb[0].mxu0
      %v1485 = vadd.f32 %v1208, %v1484
      %v1486 = vpop.f32.mrb[0].mxu0
      %v1487 = vpop.f32.mrb[0].mxu0
      %v1488 = vadd.f32 %v1208, %v1487
      %v1489 = vpop.f32.mrb[0].mxu0
      %1490 = vmatprep.mubr.bf16.mxu0 0
      %1491 = vmatmul.mubr.bf16.gmra.mrb[0].mxu0 %v756
      %v1492 = vpop.f32.mrb[0].mxu0
      %v1493 = vadd.f32 %v1208, %v1492
      %v1494 = vpop.f32.mrb[0].mxu0
      %v1495 = vpop.f32.mrb[0].mxu0
      %v1496 = vadd.f32 %v1208, %v1495
      %v1497 = vpop.f32.mrb[0].mxu0
      %1498 = vmatprep.mubr.bf16.mxu0 0
      %1499 = vmatmul.mubr.bf16.gmra.mrb[0].mxu0 %v757
      %v1500 = vpop.f32.mrb[0].mxu0
      %v1501 = vadd.f32 %v1208, %v1500
      %v1502 = vpop.f32.mrb[0].mxu0
      %v1503 = vpop.f32.mrb[0].mxu0
      %v1504 = vadd.f32 %v1208, %v1503
      %v1505 = vpop.f32.mrb[0].mxu0
      %1506 = vmatprep.mubr.bf16.mxu0 0
      %1507 = vmatmul.mubr.bf16.gmra.mrb[0].mxu0 %v758
      %v1508 = vpop.f32.mrb[0].mxu0
      %v1509 = vadd.f32 %v1208, %v1508
      %v1510 = vpop.f32.mrb[0].mxu0
      %v1511 = vpop.f32.mrb[0].mxu0
      %v1512 = vadd.f32 %v1208, %v1511
      %v1513 = vpop.f32.mrb[0].mxu0
      %1514 = vmatprep.mubr.bf16.mxu0 0
      %1515 = vmatmul.mubr.bf16.gmra.mrb[0].mxu0 %v759
      %v1516 = vpop.f32.mrb[0].mxu0
      %v1517 = vadd.f32 %v1208, %v1516
      %v1518 = vpop.f32.mrb[0].mxu0
      %v1519 = vpop.f32.mrb[0].mxu0
      %v1520 = vadd.f32 %v1208, %v1519
      %v1521 = vpop.f32.mrb[0].mxu0
      %1522 = vmatprep.mubr.bf16.mxu0 0
      %1523 = vmatmul.mubr.bf16.gmra.mrb[0].mxu0 %v760
      %v1524 = vpop.f32.mrb[0].mxu0
      %v1525 = vadd.f32 %v1208, %v1524
      %v1526 = vpop.f32.mrb[0].mxu0
      %v1527 = vpop.f32.mrb[0].mxu0
      %v1528 = vadd.f32 %v1208, %v1527
      %v1529 = vpop.f32.mrb[0].mxu0
      %1530 = vmatprep.mubr.bf16.mxu0 0
      %1531 = vmatmul.mubr.bf16.gmra.mrb[0].mxu0 %v761
      %v1532 = vpop.f32.mrb[0].mxu0
      %v1533 = vadd.f32 %v1208, %v1532
      %v1534 = vpop.f32.mrb[0].mxu0
      %v1535 = vpop.f32.mrb[0].mxu0
      %v1536 = vadd.f32 %v1208, %v1535
      %v1537 = vpop.f32.mrb[0].mxu0
      %1538 = vmatprep.mubr.bf16.mxu0 0
      %1539 = vmatmul.mubr.bf16.gmra.mrb[0].mxu0 %v762
      %v1540 = vpop.f32.mrb[0].mxu0
      %v1541 = vadd.f32 %v1208, %v1540
      %v1542 = vpop.f32.mrb[0].mxu0
      %v1543 = vpop.f32.mrb[0].mxu0
      %v1544 = vadd.f32 %v1208, %v1543
      %v1545 = vpop.f32.mrb[0].mxu0
      %1546 = vdwg.mxu0
      %v1547 = vpack.c.bf16 %v1296, %v1293
      %v1548 = vpack.c.bf16 %v1304, %v1301
      %v1549 = vpack.c.bf16 %v1312, %v1309
      %v1550 = vpack.c.bf16 %v1320, %v1317
      %v1551 = vpack.c.bf16 %v1328, %v1325
      %v1552 = vpack.c.bf16 %v1336, %v1333
      %v1553 = vpack.c.bf16 %v1344, %v1341
      %v1554 = vpack.c.bf16 %v1352, %v1349
      %v1555 = vpack.c.bf16 %v1360, %v1357
      %v1556 = vpack.c.bf16 %v1368, %v1365
      %v1557 = vpack.c.bf16 %v1376, %v1373
      %v1558 = vpack.c.bf16 %v1384, %v1381
      %v1559 = vpack.c.bf16 %v1392, %v1389
      %v1560 = vpack.c.bf16 %v1400, %v1397
      %v1561 = vpack.c.bf16 %v1408, %v1405
      %v1562 = vpack.c.bf16 %v1416, %v1413
      %v1563 = vpack.c.bf16 %v1424, %v1421
      %v1564 = vpack.c.bf16 %v1432, %v1429
      %v1565 = vpack.c.bf16 %v1440, %v1437
      %v1566 = vpack.c.bf16 %v1448, %v1445
      %v1567 = vpack.c.bf16 %v1456, %v1453
      %v1568 = vpack.c.bf16 %v1464, %v1461
      %v1569 = vpack.c.bf16 %v1472, %v1469
      %v1570 = vpack.c.bf16 %v1480, %v1477
      %v1571 = vpack.c.bf16 %v1488, %v1485
      %v1572 = vpack.c.bf16 %v1496, %v1493
      %v1573 = vpack.c.bf16 %v1504, %v1501
      %v1574 = vpack.c.bf16 %v1512, %v1509
      %v1575 = vpack.c.bf16 %v1520, %v1517
      %v1576 = vpack.c.bf16 %v1528, %v1525
      %v1577 = vpack.c.bf16 %v1536, %v1533
      %v1578 = vpack.c.bf16 %v1544, %v1541
      %1579 = vxpose.xlu0.c.b16.start [1/8] %v1547, 128
      %1580 = vxpose.xlu0.c.b16.cont [2/8] %v1548, 128
      %1581 = vxpose.xlu0.c.b16.cont [3/8] %v1549, 128
      %1582 = vxpose.xlu0.c.b16.cont [4/8] %v1550, 128
      %1583 = vxpose.xlu0.c.b16.cont [5/8] %v1551, 128
      %1584 = vxpose.xlu0.c.b16.cont [6/8] %v1552, 128
      %1585 = vxpose.xlu0.c.b16.cont [7/8] %v1553, 128
      %1586 = vxpose.xlu0.c.b16.end [8/8] %v1554, 128
      %v1587 = vpop.trf.xlu0
      %v1588 = vpop.trf.xlu0
      %v1589 = vpop.trf.xlu0
      %v1590 = vpop.trf.xlu0
      %v1591 = vpop.trf.xlu0
      %v1592 = vpop.trf.xlu0
      %v1593 = vpop.trf.xlu0
      %v1594 = vpop.trf.xlu0
      %1595 = vxpose.xlu0.c.b16.start [1/8] %v1555, 128
      %1596 = vxpose.xlu0.c.b16.cont [2/8] %v1556, 128
      %1597 = vxpose.xlu0.c.b16.cont [3/8] %v1557, 128
      %1598 = vxpose.xlu0.c.b16.cont [4/8] %v1558, 128
      %1599 = vxpose.xlu0.c.b16.cont [5/8] %v1559, 128
      %1600 = vxpose.xlu0.c.b16.cont [6/8] %v1560, 128
      %1601 = vxpose.xlu0.c.b16.cont [7/8] %v1561, 128
      %1602 = vxpose.xlu0.c.b16.end [8/8] %v1562, 128
      %v1603 = vpop.trf.xlu0
      %v1604 = vpop.trf.xlu0
      %v1605 = vpop.trf.xlu0
      %v1606 = vpop.trf.xlu0
      %v1607 = vpop.trf.xlu0
      %v1608 = vpop.trf.xlu0
      %v1609 = vpop.trf.xlu0
      %v1610 = vpop.trf.xlu0
      %1611 = vst [vmem:[#allocation3] sm:$0xff] %v1587
      %1612 = vst [vmem:[#allocation3 + $0x8] sm:$0xff] %v1603
      %1613 = vst [vmem:[#allocation3 + $0x10] sm:$0xff] %v1588
      %1614 = vst [vmem:[#allocation3 + $0x18] sm:$0xff] %v1604
      %1615 = vst [vmem:[#allocation3 + $0x20] sm:$0xff] %v1589
      %1616 = vst [vmem:[#allocation3 + $0x28] sm:$0xff] %v1605
      %1617 = vst [vmem:[#allocation3 + $0x30] sm:$0xff] %v1590
      %1618 = vst [vmem:[#allocation3 + $0x38] sm:$0xff] %v1606
      %1619 = vst [vmem:[#allocation3 + $0x40] sm:$0xff] %v1591
      %1620 = vst [vmem:[#allocation3 + $0x48] sm:$0xff] %v1607
      %1621 = vst [vmem:[#allocation3 + $0x50] sm:$0xff] %v1592
      %1622 = vst [vmem:[#allocation3 + $0x58] sm:$0xff] %v1608
      %1623 = vst [vmem:[#allocation3 + $0x60] sm:$0xff] %v1593
      %1624 = vst [vmem:[#allocation3 + $0x68] sm:$0xff] %v1609
      %1625 = vst [vmem:[#allocation3 + $0x70] sm:$0xff] %v1594
      %1626 = vst [vmem:[#allocation3 + $0x78] sm:$0xff] %v1610
      %1627 = vxpose.xlu0.c.b16.start [1/8] %v1563, 128
      %1628 = vxpose.xlu0.c.b16.cont [2/8] %v1564, 128
      %1629 = vxpose.xlu0.c.b16.cont [3/8] %v1565, 128
      %1630 = vxpose.xlu0.c.b16.cont [4/8] %v1566, 128
      %1631 = vxpose.xlu0.c.b16.cont [5/8] %v1567, 128
      %1632 = vxpose.xlu0.c.b16.cont [6/8] %v1568, 128
      %1633 = vxpose.xlu0.c.b16.cont [7/8] %v1569, 128
      %1634 = vxpose.xlu0.c.b16.end [8/8] %v1570, 128
      %v1635 = vpop.trf.xlu0
      %v1636 = vpop.trf.xlu0
      %v1637 = vpop.trf.xlu0
      %v1638 = vpop.trf.xlu0
      %v1639 = vpop.trf.xlu0
      %v1640 = vpop.trf.xlu0
      %v1641 = vpop.trf.xlu0
      %v1642 = vpop.trf.xlu0
      %1643 = vxpose.xlu0.c.b16.start [1/8] %v1571, 128
      %1644 = vxpose.xlu0.c.b16.cont [2/8] %v1572, 128
      %1645 = vxpose.xlu0.c.b16.cont [3/8] %v1573, 128
      %1646 = vxpose.xlu0.c.b16.cont [4/8] %v1574, 128
      %1647 = vxpose.xlu0.c.b16.cont [5/8] %v1575, 128
      %1648 = vxpose.xlu0.c.b16.cont [6/8] %v1576, 128
      %1649 = vxpose.xlu0.c.b16.cont [7/8] %v1577, 128
      %1650 = vxpose.xlu0.c.b16.end [8/8] %v1578, 128
      %v1651 = vpop.trf.xlu0
      %v1652 = vpop.trf.xlu0
      %v1653 = vpop.trf.xlu0
      %v1654 = vpop.trf.xlu0
      %v1655 = vpop.trf.xlu0
      %v1656 = vpop.trf.xlu0
      %v1657 = vpop.trf.xlu0
      %v1658 = vpop.trf.xlu0
      %s1659 = scalar_lea.vmem [#allocation3], 128
      %1660 = vst [vmem:[%s1659] sm:$0xff] %v1635
      %1661 = vst [vmem:[%s1659 + $0x8] sm:$0xff] %v1651
      %1662 = vst [vmem:[%s1659 + $0x10] sm:$0xff] %v1636
      %1663 = vst [vmem:[%s1659 + $0x18] sm:$0xff] %v1652
      %1664 = vst [vmem:[%s1659 + $0x20] sm:$0xff] %v1637
      %1665 = vst [vmem:[%s1659 + $0x28] sm:$0xff] %v1653
      %1666 = vst [vmem:[%s1659 + $0x30] sm:$0xff] %v1638
      %1667 = vst [vmem:[%s1659 + $0x38] sm:$0xff] %v1654
      %1668 = vst [vmem:[%s1659 + $0x40] sm:$0xff] %v1639
      %1669 = vst [vmem:[%s1659 + $0x48] sm:$0xff] %v1655
      %1670 = vst [vmem:[%s1659 + $0x50] sm:$0xff] %v1640
      %1671 = vst [vmem:[%s1659 + $0x58] sm:$0xff] %v1656
      %1672 = vst [vmem:[%s1659 + $0x60] sm:$0xff] %v1641
      %1673 = vst [vmem:[%s1659 + $0x68] sm:$0xff] %v1657
      %1674 = vst [vmem:[%s1659 + $0x70] sm:$0xff] %v1642
      %1675 = vst [vmem:[%s1659 + $0x78] sm:$0xff] %v1658
      %v1676 = vld [vmem:[#allocation13] sm:$0xf]
      %v1677 = vld [vmem:[#allocation13 + $0x4] sm:$0xf]
      %v1678 = vld [vmem:[#allocation13 + $0x8] sm:$0xf]
      %v1679 = vld [vmem:[#allocation13 + $0xc] sm:$0xf]
      %v1680 = vld [vmem:[#allocation13 + $0x10] sm:$0xf]
      %v1681 = vld [vmem:[#allocation13 + $0x14] sm:$0xf]
      %v1682 = vld [vmem:[#allocation13 + $0x18] sm:$0xf]
      %v1683 = vld [vmem:[#allocation13 + $0x1c] sm:$0xf]
      %v1684 = vld [vmem:[#allocation13 + $0x20] sm:$0xf]
      %v1685 = vld [vmem:[#allocation13 + $0x24] sm:$0xf]
      %v1686 = vld [vmem:[#allocation13 + $0x28] sm:$0xf]
      %v1687 = vld [vmem:[#allocation13 + $0x2c] sm:$0xf]
      %v1688 = vld [vmem:[#allocation13 + $0x30] sm:$0xf]
      %v1689 = vld [vmem:[#allocation13 + $0x34] sm:$0xf]
      %v1690 = vld [vmem:[#allocation13 + $0x38] sm:$0xf]
      %v1691 = vld [vmem:[#allocation13 + $0x3c] sm:$0xf]
      %v1692 = vld [vmem:[%s9] sm:$0x1]
      %v1694 = vlaneseq
      %v1695 = vshrl.u32 %v1694, 7
      %v1696 = vsub.s32 0, %v1695
      %v1697 = vrot.slane %v1692, %v1696
      %v1715 = vunpack.c.l.b16 %v1676
      %v1716 = vunpack.c.l.b16 %v1677
      %v1717 = vunpack.c.l.b16 %v1678
      %v1718 = vunpack.c.l.b16 %v1679
      %v1719 = vunpack.c.l.b16 %v1680
      %v1720 = vunpack.c.l.b16 %v1681
      %v1721 = vunpack.c.l.b16 %v1682
      %v1722 = vunpack.c.l.b16 %v1683
      %v1723 = vunpack.c.l.b16 %v1684
      %v1724 = vunpack.c.l.b16 %v1685
      %v1725 = vunpack.c.l.b16 %v1686
      %v1726 = vunpack.c.l.b16 %v1687
      %v1727 = vunpack.c.l.b16 %v1688
      %v1728 = vunpack.c.l.b16 %v1689
      %v1729 = vunpack.c.l.b16 %v1690
      %v1730 = vunpack.c.l.b16 %v1691
      %v1731 = vpack.c.b16 %v1716, %v1715
      %v1732 = vpack.c.b16 %v1718, %v1717
      %v1733 = vpack.c.b16 %v1720, %v1719
      %v1734 = vpack.c.b16 %v1722, %v1721
      %v1735 = vpack.c.b16 %v1724, %v1723
      %v1736 = vpack.c.b16 %v1726, %v1725
      %v1737 = vpack.c.b16 %v1728, %v1727
      %v1738 = vpack.c.b16 %v1730, %v1729
      %1747 = vmatprep.subr.bf16.mxu0 0
      %1748 = vmatpush1.bf16.msra.mxu0 %v1731
      %1749 = vmatprep.subr.bf16.mxu0 0
      %1750 = vmatpush1.bf16.msra.mxu0 %v1732
      %1751 = vmatprep.subr.bf16.mxu0 0
      %1752 = vmatpush1.bf16.msra.mxu0 %v1733
      %1753 = vmatprep.subr.bf16.mxu0 0
      %1754 = vmatpush1.bf16.msra.mxu0 %v1734
      %1755 = vmatprep.subr.bf16.mxu0 0
      %1756 = vmatpush1.bf16.msra.mxu0 %v1735
      %1757 = vmatprep.subr.bf16.mxu0 0
      %1758 = vmatpush1.bf16.msra.mxu0 %v1736
      %1759 = vmatprep.subr.bf16.mxu0 0
      %1760 = vmatpush1.bf16.msra.mxu0 %v1737
      %1761 = vmatprep.subr.bf16.mxu0 0
      %1762 = vmatpush1.bf16.msra.mxu0 %v1738
      %1763 = vmatprep.subr.bf16.mxu0 0
      %1764 = vmatpush1.bf16.msra.mxu0 0
      %1765 = vmatprep.subr.bf16.mxu0 0
      %1766 = vmatpush1.bf16.msra.mxu0 0
      %1767 = vmatprep.subr.bf16.mxu0 0
      %1768 = vmatpush1.bf16.msra.mxu0 0
      %1769 = vmatprep.subr.bf16.mxu0 0
      %1770 = vmatpush1.bf16.msra.mxu0 0
      %1771 = vmatprep.subr.bf16.mxu0 0
      %1772 = vmatpush1.bf16.msra.mxu0 0
      %1773 = vmatprep.subr.bf16.mxu0 0
      %1774 = vmatpush1.bf16.msra.mxu0 0
      %1775 = vmatprep.subr.bf16.mxu0 0
      %1776 = vmatpush1.bf16.msra.mxu0 0
      %1777 = vmatprep.subr.bf16.mxu0 0
      %1778 = vmatpush1.bf16.msra.mxu0 0
      %1779 = vmatprep.mubr.bf16.mxu0 0
      %1780 = vmatmul.mubr.bf16.gmra.mrb[0].mxu0 %v731
      %v1781 = vpop.f32.mrb[0].mxu0
      %v1782 = vadd.f32 %v1697, %v1781
      %v1783 = vpop.f32.mrb[0].mxu0
      %v1784 = vpop.f32.mrb[0].mxu0
      %v1785 = vadd.f32 %v1697, %v1784
      %v1786 = vpop.f32.mrb[0].mxu0
      %1787 = vmatprep.mubr.bf16.mxu0 0
      %1788 = vmatmul.mubr.bf16.gmra.mrb[0].mxu0 %v732
      %v1789 = vpop.f32.mrb[0].mxu0
      %v1790 = vadd.f32 %v1697, %v1789
      %v1791 = vpop.f32.mrb[0].mxu0
      %v1792 = vpop.f32.mrb[0].mxu0
      %v1793 = vadd.f32 %v1697, %v1792
      %v1794 = vpop.f32.mrb[0].mxu0
      %1795 = vmatprep.mubr.bf16.mxu0 0
      %1796 = vmatmul.mubr.bf16.gmra.mrb[0].mxu0 %v733
      %v1797 = vpop.f32.mrb[0].mxu0
      %v1798 = vadd.f32 %v1697, %v1797
      %v1799 = vpop.f32.mrb[0].mxu0
      %v1800 = vpop.f32.mrb[0].mxu0
      %v1801 = vadd.f32 %v1697, %v1800
      %v1802 = vpop.f32.mrb[0].mxu0
      %1803 = vmatprep.mubr.bf16.mxu0 0
      %1804 = vmatmul.mubr.bf16.gmra.mrb[0].mxu0 %v734
      %v1805 = vpop.f32.mrb[0].mxu0
      %v1806 = vadd.f32 %v1697, %v1805
      %v1807 = vpop.f32.mrb[0].mxu0
      %v1808 = vpop.f32.mrb[0].mxu0
      %v1809 = vadd.f32 %v1697, %v1808
      %v1810 = vpop.f32.mrb[0].mxu0
      %1811 = vmatprep.mubr.bf16.mxu0 0
      %1812 = vmatmul.mubr.bf16.gmra.mrb[0].mxu0 %v735
      %v1813 = vpop.f32.mrb[0].mxu0
      %v1814 = vadd.f32 %v1697, %v1813
      %v1815 = vpop.f32.mrb[0].mxu0
      %v1816 = vpop.f32.mrb[0].mxu0
      %v1817 = vadd.f32 %v1697, %v1816
      %v1818 = vpop.f32.mrb[0].mxu0
      %1819 = vmatprep.mubr.bf16.mxu0 0
      %1820 = vmatmul.mubr.bf16.gmra.mrb[0].mxu0 %v736
      %v1821 = vpop.f32.mrb[0].mxu0
      %v1822 = vadd.f32 %v1697, %v1821
      %v1823 = vpop.f32.mrb[0].mxu0
      %v1824 = vpop.f32.mrb[0].mxu0
      %v1825 = vadd.f32 %v1697, %v1824
      %v1826 = vpop.f32.mrb[0].mxu0
      %1827 = vmatprep.mubr.bf16.mxu0 0
      %1828 = vmatmul.mubr.bf16.gmra.mrb[0].mxu0 %v737
      %v1829 = vpop.f32.mrb[0].mxu0
      %v1830 = vadd.f32 %v1697, %v1829
      %v1831 = vpop.f32.mrb[0].mxu0
      %v1832 = vpop.f32.mrb[0].mxu0
      %v1833 = vadd.f32 %v1697, %v1832
      %v1834 = vpop.f32.mrb[0].mxu0
      %1835 = vmatprep.mubr.bf16.mxu0 0
      %1836 = vmatmul.mubr.bf16.gmra.mrb[0].mxu0 %v738
      %v1837 = vpop.f32.mrb[0].mxu0
      %v1838 = vadd.f32 %v1697, %v1837
      %v1839 = vpop.f32.mrb[0].mxu0
      %v1840 = vpop.f32.mrb[0].mxu0
      %v1841 = vadd.f32 %v1697, %v1840
      %v1842 = vpop.f32.mrb[0].mxu0
      %1843 = vmatprep.mubr.bf16.mxu0 0
      %1844 = vmatmul.mubr.bf16.gmra.mrb[0].mxu0 %v739
      %v1845 = vpop.f32.mrb[0].mxu0
      %v1846 = vadd.f32 %v1697, %v1845
      %v1847 = vpop.f32.mrb[0].mxu0
      %v1848 = vpop.f32.mrb[0].mxu0
      %v1849 = vadd.f32 %v1697, %v1848
      %v1850 = vpop.f32.mrb[0].mxu0
      %1851 = vmatprep.mubr.bf16.mxu0 0
      %1852 = vmatmul.mubr.bf16.gmra.mrb[0].mxu0 %v740
      %v1853 = vpop.f32.mrb[0].mxu0
      %v1854 = vadd.f32 %v1697, %v1853
      %v1855 = vpop.f32.mrb[0].mxu0
      %v1856 = vpop.f32.mrb[0].mxu0
      %v1857 = vadd.f32 %v1697, %v1856
      %v1858 = vpop.f32.mrb[0].mxu0
      %1859 = vmatprep.mubr.bf16.mxu0 0
      %1860 = vmatmul.mubr.bf16.gmra.mrb[0].mxu0 %v741
      %v1861 = vpop.f32.mrb[0].mxu0
      %v1862 = vadd.f32 %v1697, %v1861
      %v1863 = vpop.f32.mrb[0].mxu0
      %v1864 = vpop.f32.mrb[0].mxu0
      %v1865 = vadd.f32 %v1697, %v1864
      %v1866 = vpop.f32.mrb[0].mxu0
      %1867 = vmatprep.mubr.bf16.mxu0 0
      %1868 = vmatmul.mubr.bf16.gmra.mrb[0].mxu0 %v742
      %v1869 = vpop.f32.mrb[0].mxu0
      %v1870 = vadd.f32 %v1697, %v1869
      %v1871 = vpop.f32.mrb[0].mxu0
      %v1872 = vpop.f32.mrb[0].mxu0
      %v1873 = vadd.f32 %v1697, %v1872
      %v1874 = vpop.f32.mrb[0].mxu0
      %1875 = vmatprep.mubr.bf16.mxu0 0
      %1876 = vmatmul.mubr.bf16.gmra.mrb[0].mxu0 %v743
      %v1877 = vpop.f32.mrb[0].mxu0
      %v1878 = vadd.f32 %v1697, %v1877
      %v1879 = vpop.f32.mrb[0].mxu0
      %v1880 = vpop.f32.mrb[0].mxu0
      %v1881 = vadd.f32 %v1697, %v1880
      %v1882 = vpop.f32.mrb[0].mxu0
      %1883 = vmatprep.mubr.bf16.mxu0 0
      %1884 = vmatmul.mubr.bf16.gmra.mrb[0].mxu0 %v744
      %v1885 = vpop.f32.mrb[0].mxu0
      %v1886 = vadd.f32 %v1697, %v1885
      %v1887 = vpop.f32.mrb[0].mxu0
      %v1888 = vpop.f32.mrb[0].mxu0
      %v1889 = vadd.f32 %v1697, %v1888
      %v1890 = vpop.f32.mrb[0].mxu0
      %1891 = vmatprep.mubr.bf16.mxu0 0
      %1892 = vmatmul.mubr.bf16.gmra.mrb[0].mxu0 %v745
      %v1893 = vpop.f32.mrb[0].mxu0
      %v1894 = vadd.f32 %v1697, %v1893
      %v1895 = vpop.f32.mrb[0].mxu0
      %v1896 = vpop.f32.mrb[0].mxu0
      %v1897 = vadd.f32 %v1697, %v1896
      %v1898 = vpop.f32.mrb[0].mxu0
      %1899 = vmatprep.mubr.bf16.mxu0 0
      %1900 = vmatmul.mubr.bf16.gmra.mrb[0].mxu0 %v746
      %v1901 = vpop.f32.mrb[0].mxu0
      %v1902 = vadd.f32 %v1697, %v1901
      %v1903 = vpop.f32.mrb[0].mxu0
      %v1904 = vpop.f32.mrb[0].mxu0
      %v1905 = vadd.f32 %v1697, %v1904
      %v1906 = vpop.f32.mrb[0].mxu0
      %1907 = vmatprep.mubr.bf16.mxu0 0
      %1908 = vmatmul.mubr.bf16.gmra.mrb[0].mxu0 %v747
      %v1909 = vpop.f32.mrb[0].mxu0
      %v1910 = vadd.f32 %v1697, %v1909
      %v1911 = vpop.f32.mrb[0].mxu0
      %v1912 = vpop.f32.mrb[0].mxu0
      %v1913 = vadd.f32 %v1697, %v1912
      %v1914 = vpop.f32.mrb[0].mxu0
      %1915 = vmatprep.mubr.bf16.mxu0 0
      %1916 = vmatmul.mubr.bf16.gmra.mrb[0].mxu0 %v748
      %v1917 = vpop.f32.mrb[0].mxu0
      %v1918 = vadd.f32 %v1697, %v1917
      %v1919 = vpop.f32.mrb[0].mxu0
      %v1920 = vpop.f32.mrb[0].mxu0
      %v1921 = vadd.f32 %v1697, %v1920
      %v1922 = vpop.f32.mrb[0].mxu0
      %1923 = vmatprep.mubr.bf16.mxu0 0
      %1924 = vmatmul.mubr.bf16.gmra.mrb[0].mxu0 %v749
      %v1925 = vpop.f32.mrb[0].mxu0
      %v1926 = vadd.f32 %v1697, %v1925
      %v1927 = vpop.f32.mrb[0].mxu0
      %v1928 = vpop.f32.mrb[0].mxu0
      %v1929 = vadd.f32 %v1697, %v1928
      %v1930 = vpop.f32.mrb[0].mxu0
      %1931 = vmatprep.mubr.bf16.mxu0 0
      %1932 = vmatmul.mubr.bf16.gmra.mrb[0].mxu0 %v750
      %v1933 = vpop.f32.mrb[0].mxu0
      %v1934 = vadd.f32 %v1697, %v1933
      %v1935 = vpop.f32.mrb[0].mxu0
      %v1936 = vpop.f32.mrb[0].mxu0
      %v1937 = vadd.f32 %v1697, %v1936
      %v1938 = vpop.f32.mrb[0].mxu0
      %1939 = vmatprep.mubr.bf16.mxu0 0
      %1940 = vmatmul.mubr.bf16.gmra.mrb[0].mxu0 %v751
      %v1941 = vpop.f32.mrb[0].mxu0
      %v1942 = vadd.f32 %v1697, %v1941
      %v1943 = vpop.f32.mrb[0].mxu0
      %v1944 = vpop.f32.mrb[0].mxu0
      %v1945 = vadd.f32 %v1697, %v1944
      %v1946 = vpop.f32.mrb[0].mxu0
      %1947 = vmatprep.mubr.bf16.mxu0 0
      %1948 = vmatmul.mubr.bf16.gmra.mrb[0].mxu0 %v752
      %v1949 = vpop.f32.mrb[0].mxu0
      %v1950 = vadd.f32 %v1697, %v1949
      %v1951 = vpop.f32.mrb[0].mxu0
      %v1952 = vpop.f32.mrb[0].mxu0
      %v1953 = vadd.f32 %v1697, %v1952
      %v1954 = vpop.f32.mrb[0].mxu0
      %1955 = vmatprep.mubr.bf16.mxu0 0
      %1956 = vmatmul.mubr.bf16.gmra.mrb[0].mxu0 %v753
      %v1957 = vpop.f32.mrb[0].mxu0
      %v1958 = vadd.f32 %v1697, %v1957
      %v1959 = vpop.f32.mrb[0].mxu0
      %v1960 = vpop.f32.mrb[0].mxu0
      %v1961 = vadd.f32 %v1697, %v1960
      %v1962 = vpop.f32.mrb[0].mxu0
      %1963 = vmatprep.mubr.bf16.mxu0 0
      %1964 = vmatmul.mubr.bf16.gmra.mrb[0].mxu0 %v754
      %v1965 = vpop.f32.mrb[0].mxu0
      %v1966 = vadd.f32 %v1697, %v1965
      %v1967 = vpop.f32.mrb[0].mxu0
      %v1968 = vpop.f32.mrb[0].mxu0
      %v1969 = vadd.f32 %v1697, %v1968
      %v1970 = vpop.f32.mrb[0].mxu0
      %1971 = vmatprep.mubr.bf16.mxu0 0
      %1972 = vmatmul.mubr.bf16.gmra.mrb[0].mxu0 %v755
      %v1973 = vpop.f32.mrb[0].mxu0
      %v1974 = vadd.f32 %v1697, %v1973
      %v1975 = vpop.f32.mrb[0].mxu0
      %v1976 = vpop.f32.mrb[0].mxu0
      %v1977 = vadd.f32 %v1697, %v1976
      %v1978 = vpop.f32.mrb[0].mxu0
      %1979 = vmatprep.mubr.bf16.mxu0 0
      %1980 = vmatmul.mubr.bf16.gmra.mrb[0].mxu0 %v756
      %v1981 = vpop.f32.mrb[0].mxu0
      %v1982 = vadd.f32 %v1697, %v1981
      %v1983 = vpop.f32.mrb[0].mxu0
      %v1984 = vpop.f32.mrb[0].mxu0
      %v1985 = vadd.f32 %v1697, %v1984
      %v1986 = vpop.f32.mrb[0].mxu0
      %1987 = vmatprep.mubr.bf16.mxu0 0
      %1988 = vmatmul.mubr.bf16.gmra.mrb[0].mxu0 %v757
      %v1989 = vpop.f32.mrb[0].mxu0
      %v1990 = vadd.f32 %v1697, %v1989
      %v1991 = vpop.f32.mrb[0].mxu0
      %v1992 = vpop.f32.mrb[0].mxu0
      %v1993 = vadd.f32 %v1697, %v1992
      %v1994 = vpop.f32.mrb[0].mxu0
      %1995 = vmatprep.mubr.bf16.mxu0 0
      %1996 = vmatmul.mubr.bf16.gmra.mrb[0].mxu0 %v758
      %v1997 = vpop.f32.mrb[0].mxu0
      %v1998 = vadd.f32 %v1697, %v1997
      %v1999 = vpop.f32.mrb[0].mxu0
      %v2000 = vpop.f32.mrb[0].mxu0
      %v2001 = vadd.f32 %v1697, %v2000
      %v2002 = vpop.f32.mrb[0].mxu0
      %2003 = vmatprep.mubr.bf16.mxu0 0
      %2004 = vmatmul.mubr.bf16.gmra.mrb[0].mxu0 %v759
      %v2005 = vpop.f32.mrb[0].mxu0
      %v2006 = vadd.f32 %v1697, %v2005
      %v2007 = vpop.f32.mrb[0].mxu0
      %v2008 = vpop.f32.mrb[0].mxu0
      %v2009 = vadd.f32 %v1697, %v2008
      %v2010 = vpop.f32.mrb[0].mxu0
      %2011 = vmatprep.mubr.bf16.mxu0 0
      %2012 = vmatmul.mubr.bf16.gmra.mrb[0].mxu0 %v760
      %v2013 = vpop.f32.mrb[0].mxu0
      %v2014 = vadd.f32 %v1697, %v2013
      %v2015 = vpop.f32.mrb[0].mxu0
      %v2016 = vpop.f32.mrb[0].mxu0
      %v2017 = vadd.f32 %v1697, %v2016
      %v2018 = vpop.f32.mrb[0].mxu0
      %2019 = vmatprep.mubr.bf16.mxu0 0
      %2020 = vmatmul.mubr.bf16.gmra.mrb[0].mxu0 %v761
      %v2021 = vpop.f32.mrb[0].mxu0
      %v2022 = vadd.f32 %v1697, %v2021
      %v2023 = vpop.f32.mrb[0].mxu0
      %v2024 = vpop.f32.mrb[0].mxu0
      %v2025 = vadd.f32 %v1697, %v2024
      %v2026 = vpop.f32.mrb[0].mxu0
      %2027 = vmatprep.mubr.bf16.mxu0 0
      %2028 = vmatmul.mubr.bf16.gmra.mrb[0].mxu0 %v762
      %v2029 = vpop.f32.mrb[0].mxu0
      %v2030 = vadd.f32 %v1697, %v2029
      %v2031 = vpop.f32.mrb[0].mxu0
      %v2032 = vpop.f32.mrb[0].mxu0
      %v2033 = vadd.f32 %v1697, %v2032
      %v2034 = vpop.f32.mrb[0].mxu0
      %2035 = vdwg.mxu0
      %v2036 = vpack.c.bf16 %v1785, %v1782
      %v2037 = vpack.c.bf16 %v1793, %v1790
      %v2038 = vpack.c.bf16 %v1801, %v1798
      %v2039 = vpack.c.bf16 %v1809, %v1806
      %v2040 = vpack.c.bf16 %v1817, %v1814
      %v2041 = vpack.c.bf16 %v1825, %v1822
      %v2042 = vpack.c.bf16 %v1833, %v1830
      %v2043 = vpack.c.bf16 %v1841, %v1838
      %v2044 = vpack.c.bf16 %v1849, %v1846
      %v2045 = vpack.c.bf16 %v1857, %v1854
      %v2046 = vpack.c.bf16 %v1865, %v1862
      %v2047 = vpack.c.bf16 %v1873, %v1870
      %v2048 = vpack.c.bf16 %v1881, %v1878
      %v2049 = vpack.c.bf16 %v1889, %v1886
      %v2050 = vpack.c.bf16 %v1897, %v1894
      %v2051 = vpack.c.bf16 %v1905, %v1902
      %v2052 = vpack.c.bf16 %v1913, %v1910
      %v2053 = vpack.c.bf16 %v1921, %v1918
      %v2054 = vpack.c.bf16 %v1929, %v1926
      %v2055 = vpack.c.bf16 %v1937, %v1934
      %v2056 = vpack.c.bf16 %v1945, %v1942
      %v2057 = vpack.c.bf16 %v1953, %v1950
      %v2058 = vpack.c.bf16 %v1961, %v1958
      %v2059 = vpack.c.bf16 %v1969, %v1966
      %v2060 = vpack.c.bf16 %v1977, %v1974
      %v2061 = vpack.c.bf16 %v1985, %v1982
      %v2062 = vpack.c.bf16 %v1993, %v1990
      %v2063 = vpack.c.bf16 %v2001, %v1998
      %v2064 = vpack.c.bf16 %v2009, %v2006
      %v2065 = vpack.c.bf16 %v2017, %v2014
      %v2066 = vpack.c.bf16 %v2025, %v2022
      %v2067 = vpack.c.bf16 %v2033, %v2030
      %2068 = vst [vmem:[#allocation4] sm:$0xff] %v2036
      %2069 = vst [vmem:[#allocation4 + $0x8] sm:$0xff] %v2037
      %2070 = vst [vmem:[#allocation4 + $0x10] sm:$0xff] %v2038
      %2071 = vst [vmem:[#allocation4 + $0x18] sm:$0xff] %v2039
      %2072 = vst [vmem:[#allocation4 + $0x20] sm:$0xff] %v2040
      %2073 = vst [vmem:[#allocation4 + $0x28] sm:$0xff] %v2041
      %2074 = vst [vmem:[#allocation4 + $0x30] sm:$0xff] %v2042
      %2075 = vst [vmem:[#allocation4 + $0x38] sm:$0xff] %v2043
      %2076 = vst [vmem:[#allocation4 + $0x40] sm:$0xff] %v2044
      %2077 = vst [vmem:[#allocation4 + $0x48] sm:$0xff] %v2045
      %2078 = vst [vmem:[#allocation4 + $0x50] sm:$0xff] %v2046
      %2079 = vst [vmem:[#allocation4 + $0x58] sm:$0xff] %v2047
      %2080 = vst [vmem:[#allocation4 + $0x60] sm:$0xff] %v2048
      %2081 = vst [vmem:[#allocation4 + $0x68] sm:$0xff] %v2049
      %2082 = vst [vmem:[#allocation4 + $0x70] sm:$0xff] %v2050
      %2083 = vst [vmem:[#allocation4 + $0x78] sm:$0xff] %v2051
      %2084 = vst [vmem:[#allocation4 + $0x80] sm:$0xff] %v2052
      %2085 = vst [vmem:[#allocation4 + $0x88] sm:$0xff] %v2053
      %2086 = vst [vmem:[#allocation4 + $0x90] sm:$0xff] %v2054
      %2087 = vst [vmem:[#allocation4 + $0x98] sm:$0xff] %v2055
      %2088 = vst [vmem:[#allocation4 + $0xa0] sm:$0xff] %v2056
      %2089 = vst [vmem:[#allocation4 + $0xa8] sm:$0xff] %v2057
      %2090 = vst [vmem:[#allocation4 + $0xb0] sm:$0xff] %v2058
      %2091 = vst [vmem:[#allocation4 + $0xb8] sm:$0xff] %v2059
      %2092 = vst [vmem:[#allocation4 + $0xc0] sm:$0xff] %v2060
      %2093 = vst [vmem:[#allocation4 + $0xc8] sm:$0xff] %v2061
      %2094 = vst [vmem:[#allocation4 + $0xd0] sm:$0xff] %v2062
      %2095 = vst [vmem:[#allocation4 + $0xd8] sm:$0xff] %v2063
      %2096 = vst [vmem:[#allocation4 + $0xe0] sm:$0xff] %v2064
      %2097 = vst [vmem:[#allocation4 + $0xe8] sm:$0xff] %v2065
      %2098 = vst [vmem:[#allocation4 + $0xf0] sm:$0xff] %v2066
      %2099 = vst [vmem:[#allocation4 + $0xf8] sm:$0xff] %v2067
    $region77: #{tpu_custom_call.1} parent=1 // pred_fallthru
      _
    %s2100 = smul.u32 0, 256
    %s2101 = sshra.s32 %s2100, 4
    %s2102 = sand.u32 %s2100, 15
    %s2103 = smul.addr %s2101, 8
    %s2104 = scalar_lea.vmem [#allocation2], %s2103
    %v2105 = vld [vmem:[%s2104] sm:$0xff]
    %v2106 = vld [vmem:[%s2104 + $0x8] sm:$0xff]
    %v2107 = vld [vmem:[%s2104 + $0x10] sm:$0xff]
    %v2108 = vld [vmem:[%s2104 + $0x18] sm:$0xff]
    %v2109 = vld [vmem:[%s2104 + $0x20] sm:$0xff]
    %v2110 = vld [vmem:[%s2104 + $0x28] sm:$0xff]
    %v2111 = vld [vmem:[%s2104 + $0x30] sm:$0xff]
    %v2112 = vld [vmem:[%s2104 + $0x38] sm:$0xff]
    %v2113 = vld [vmem:[%s2104 + $0x40] sm:$0xff]
    %v2114 = vld [vmem:[%s2104 + $0x48] sm:$0xff]
    %v2115 = vld [vmem:[%s2104 + $0x50] sm:$0xff]
    %v2116 = vld [vmem:[%s2104 + $0x58] sm:$0xff]
    %v2117 = vld [vmem:[%s2104 + $0x60] sm:$0xff]
    %v2118 = vld [vmem:[%s2104 + $0x68] sm:$0xff]
    %v2119 = vld [vmem:[%s2104 + $0x70] sm:$0xff]
    %v2120 = vld [vmem:[%s2104 + $0x78] sm:$0xff]
    %v2121 = vld [vmem:[%s2104 + $0x80] sm:$0xff]
    %v2122 = vld [vmem:[%s2104 + $0x88] sm:$0xff]
    %v2123 = vld [vmem:[%s2104 + $0x90] sm:$0xff]
    %v2124 = vld [vmem:[%s2104 + $0x98] sm:$0xff]
    %v2125 = vld [vmem:[%s2104 + $0xa0] sm:$0xff]
    %v2126 = vld [vmem:[%s2104 + $0xa8] sm:$0xff]
    %v2127 = vld [vmem:[%s2104 + $0xb0] sm:$0xff]
    %v2128 = vld [vmem:[%s2104 + $0xb8] sm:$0xff]
    %v2129 = vld [vmem:[%s2104 + $0xc0] sm:$0xff]
    %v2130 = vld [vmem:[%s2104 + $0xc8] sm:$0xff]
    %v2131 = vld [vmem:[%s2104 + $0xd0] sm:$0xff]
    %v2132 = vld [vmem:[%s2104 + $0xd8] sm:$0xff]
    %v2133 = vld [vmem:[%s2104 + $0xe0] sm:$0xff]
    %v2134 = vld [vmem:[%s2104 + $0xe8] sm:$0xff]
    %v2135 = vld [vmem:[%s2104 + $0xf0] sm:$0xff]
    %v2136 = vld [vmem:[%s2104 + $0xf8] sm:$0xff]
    %v2137 = vld [vmem:[#allocation3] sm:$0xff]
    %v2138 = vld [vmem:[#allocation3 + $0x8] sm:$0xff]
    %v2139 = vld [vmem:[#allocation3 + $0x10] sm:$0xff]
    %v2140 = vld [vmem:[#allocation3 + $0x18] sm:$0xff]
    %v2141 = vld [vmem:[#allocation3 + $0x20] sm:$0xff]
    %v2142 = vld [vmem:[#allocation3 + $0x28] sm:$0xff]
    %v2143 = vld [vmem:[#allocation3 + $0x30] sm:$0xff]
    %v2144 = vld [vmem:[#allocation3 + $0x38] sm:$0xff]
    %v2145 = vld [vmem:[#allocation3 + $0x40] sm:$0xff]
    %v2146 = vld [vmem:[#allocation3 + $0x48] sm:$0xff]
    %v2147 = vld [vmem:[#allocation3 + $0x50] sm:$0xff]
    %v2148 = vld [vmem:[#allocation3 + $0x58] sm:$0xff]
    %v2149 = vld [vmem:[#allocation3 + $0x60] sm:$0xff]
    %v2150 = vld [vmem:[#allocation3 + $0x68] sm:$0xff]
    %v2151 = vld [vmem:[#allocation3 + $0x70] sm:$0xff]
    %v2152 = vld [vmem:[#allocation3 + $0x78] sm:$0xff]
    %v2153 = vld [vmem:[#allocation3 + $0x80] sm:$0xff]
    %v2154 = vld [vmem:[#allocation3 + $0x88] sm:$0xff]
    %v2155 = vld [vmem:[#allocation3 + $0x90] sm:$0xff]
    %v2156 = vld [vmem:[#allocation3 + $0x98] sm:$0xff]
    %v2157 = vld [vmem:[#allocation3 + $0xa0] sm:$0xff]
    %v2158 = vld [vmem:[#allocation3 + $0xa8] sm:$0xff]
    %v2159 = vld [vmem:[#allocation3 + $0xb0] sm:$0xff]
    %v2160 = vld [vmem:[#allocation3 + $0xb8] sm:$0xff]
    %v2161 = vld [vmem:[#allocation3 + $0xc0] sm:$0xff]
    %v2162 = vld [vmem:[#allocation3 + $0xc8] sm:$0xff]
    %v2163 = vld [vmem:[#allocation3 + $0xd0] sm:$0xff]
    %v2164 = vld [vmem:[#allocation3 + $0xd8] sm:$0xff]
    %v2165 = vld [vmem:[#allocation3 + $0xe0] sm:$0xff]
    %v2166 = vld [vmem:[#allocation3 + $0xe8] sm:$0xff]
    %v2167 = vld [vmem:[#allocation3 + $0xf0] sm:$0xff]
    %v2168 = vld [vmem:[#allocation3 + $0xf8] sm:$0xff]
    %2169 = vmatprep.subr.bf16.mxu0 %v2138
    %2170 = vmatpush1.bf16.msra.mxu0 %v2137
    %2171 = vmatprep.subr.bf16.mxu0 %v2140
    %2172 = vmatpush1.bf16.msra.mxu0 %v2139
    %2173 = vmatprep.subr.bf16.mxu0 %v2142
    %2174 = vmatpush1.bf16.msra.mxu0 %v2141
    %2175 = vmatprep.subr.bf16.mxu0 %v2144
    %2176 = vmatpush1.bf16.msra.mxu0 %v2143
    %2177 = vmatprep.subr.bf16.mxu0 %v2146
    %2178 = vmatpush1.bf16.msra.mxu0 %v2145
    %2179 = vmatprep.subr.bf16.mxu0 %v2148
    %2180 = vmatpush1.bf16.msra.mxu0 %v2147
    %2181 = vmatprep.subr.bf16.mxu0 %v2150
    %2182 = vmatpush1.bf16.msra.mxu0 %v2149
    %2183 = vmatprep.subr.bf16.mxu0 %v2152
    %2184 = vmatpush1.bf16.msra.mxu0 %v2151
    %2185 = vmatprep.subr.bf16.mxu0 0
    %2186 = vmatpush1.bf16.msra.mxu0 0
    %2187 = vmatprep.subr.bf16.mxu0 0
    %2188 = vmatpush1.bf16.msra.mxu0 0
    %2189 = vmatprep.subr.bf16.mxu0 0
    %2190 = vmatpush1.bf16.msra.mxu0 0
    %2191 = vmatprep.subr.bf16.mxu0 0
    %2192 = vmatpush1.bf16.msra.mxu0 0
    %2193 = vmatprep.subr.bf16.mxu0 0
    %2194 = vmatpush1.bf16.msra.mxu0 0
    %2195 = vmatprep.subr.bf16.mxu0 0
    %2196 = vmatpush1.bf16.msra.mxu0 0
    %2197 = vmatprep.subr.bf16.mxu0 0
    %2198 = vmatpush1.bf16.msra.mxu0 0
    %2199 = vmatprep.subr.bf16.mxu0 0
    %2200 = vmatpush1.bf16.msra.mxu0 0
    %2201 = vmatprep.mubr.bf16.mxu0 0
    %2202 = vmatmul.mubr.bf16.gmra.mrb[0].mxu0 %v2105
    %v2203 = vpop.f32.mrb[0].mxu0
    %v2204 = vadd.f32 0.0, %v2203
    %v2205 = vpop.f32.mrb[0].mxu0
    %v2206 = vadd.f32 0.0, %v2205
    %v2207 = vpop.f32.mrb[0].mxu0
    %v2208 = vadd.f32 0.0, %v2207
    %v2209 = vpop.f32.mrb[0].mxu0
    %v2210 = vadd.f32 0.0, %v2209
    %2211 = vmatprep.mubr.bf16.mxu0 0
    %2212 = vmatmul.mubr.bf16.gmra.mrb[0].mxu0 %v2106
    %v2213 = vpop.f32.mrb[0].mxu0
    %v2214 = vadd.f32 0.0, %v2213
    %v2215 = vpop.f32.mrb[0].mxu0
    %v2216 = vadd.f32 0.0, %v2215
    %v2217 = vpop.f32.mrb[0].mxu0
    %v2218 = vadd.f32 0.0, %v2217
    %v2219 = vpop.f32.mrb[0].mxu0
    %v2220 = vadd.f32 0.0, %v2219
    %2221 = vmatprep.mubr.bf16.mxu0 0
    %2222 = vmatmul.mubr.bf16.gmra.mrb[0].mxu0 %v2107
    %v2223 = vpop.f32.mrb[0].mxu0
    %v2224 = vadd.f32 0.0, %v2223
    %v2225 = vpop.f32.mrb[0].mxu0
    %v2226 = vadd.f32 0.0, %v2225
    %v2227 = vpop.f32.mrb[0].mxu0
    %v2228 = vadd.f32 0.0, %v2227
    %v2229 = vpop.f32.mrb[0].mxu0
    %v2230 = vadd.f32 0.0, %v2229
    %2231 = vmatprep.mubr.bf16.mxu0 0
    %2232 = vmatmul.mubr.bf16.gmra.mrb[0].mxu0 %v2108
    %v2233 = vpop.f32.mrb[0].mxu0
    %v2234 = vadd.f32 0.0, %v2233
    %v2235 = vpop.f32.mrb[0].mxu0
    %v2236 = vadd.f32 0.0, %v2235
    %v2237 = vpop.f32.mrb[0].mxu0
    %v2238 = vadd.f32 0.0, %v2237
    %v2239 = vpop.f32.mrb[0].mxu0
    %v2240 = vadd.f32 0.0, %v2239
    %2241 = vmatprep.mubr.bf16.mxu0 0
    %2242 = vmatmul.mubr.bf16.gmra.mrb[0].mxu0 %v2109
    %v2243 = vpop.f32.mrb[0].mxu0
    %v2244 = vadd.f32 0.0, %v2243
    %v2245 = vpop.f32.mrb[0].mxu0
    %v2246 = vadd.f32 0.0, %v2245
    %v2247 = vpop.f32.mrb[0].mxu0
    %v2248 = vadd.f32 0.0, %v2247
    %v2249 = vpop.f32.mrb[0].mxu0
    %v2250 = vadd.f32 0.0, %v2249
    %2251 = vmatprep.mubr.bf16.mxu0 0
    %2252 = vmatmul.mubr.bf16.gmra.mrb[0].mxu0 %v2110
    %v2253 = vpop.f32.mrb[0].mxu0
    %v2254 = vadd.f32 0.0, %v2253
    %v2255 = vpop.f32.mrb[0].mxu0
    %v2256 = vadd.f32 0.0, %v2255
    %v2257 = vpop.f32.mrb[0].mxu0
    %v2258 = vadd.f32 0.0, %v2257
    %v2259 = vpop.f32.mrb[0].mxu0
    %v2260 = vadd.f32 0.0, %v2259
    %2261 = vmatprep.mubr.bf16.mxu0 0
    %2262 = vmatmul.mubr.bf16.gmra.mrb[0].mxu0 %v2111
    %v2263 = vpop.f32.mrb[0].mxu0
    %v2264 = vadd.f32 0.0, %v2263
    %v2265 = vpop.f32.mrb[0].mxu0
    %v2266 = vadd.f32 0.0, %v2265
    %v2267 = vpop.f32.mrb[0].mxu0
    %v2268 = vadd.f32 0.0, %v2267
    %v2269 = vpop.f32.mrb[0].mxu0
    %v2270 = vadd.f32 0.0, %v2269
    %2271 = vmatprep.mubr.bf16.mxu0 0
    %2272 = vmatmul.mubr.bf16.gmra.mrb[0].mxu0 %v2112
    %v2273 = vpop.f32.mrb[0].mxu0
    %v2274 = vadd.f32 0.0, %v2273
    %v2275 = vpop.f32.mrb[0].mxu0
    %v2276 = vadd.f32 0.0, %v2275
    %v2277 = vpop.f32.mrb[0].mxu0
    %v2278 = vadd.f32 0.0, %v2277
    %v2279 = vpop.f32.mrb[0].mxu0
    %v2280 = vadd.f32 0.0, %v2279
    %2281 = vmatprep.mubr.bf16.mxu0 0
    %2282 = vmatmul.mubr.bf16.gmra.mrb[0].mxu0 %v2113
    %v2283 = vpop.f32.mrb[0].mxu0
    %v2284 = vadd.f32 0.0, %v2283
    %v2285 = vpop.f32.mrb[0].mxu0
    %v2286 = vadd.f32 0.0, %v2285
    %v2287 = vpop.f32.mrb[0].mxu0
    %v2288 = vadd.f32 0.0, %v2287
    %v2289 = vpop.f32.mrb[0].mxu0
    %v2290 = vadd.f32 0.0, %v2289
    %2291 = vmatprep.mubr.bf16.mxu0 0
    %2292 = vmatmul.mubr.bf16.gmra.mrb[0].mxu0 %v2114
    %v2293 = vpop.f32.mrb[0].mxu0
    %v2294 = vadd.f32 0.0, %v2293
    %v2295 = vpop.f32.mrb[0].mxu0
    %v2296 = vadd.f32 0.0, %v2295
    %v2297 = vpop.f32.mrb[0].mxu0
    %v2298 = vadd.f32 0.0, %v2297
    %v2299 = vpop.f32.mrb[0].mxu0
    %v2300 = vadd.f32 0.0, %v2299
    %2301 = vmatprep.mubr.bf16.mxu0 0
    %2302 = vmatmul.mubr.bf16.gmra.mrb[0].mxu0 %v2115
    %v2303 = vpop.f32.mrb[0].mxu0
    %v2304 = vadd.f32 0.0, %v2303
    %v2305 = vpop.f32.mrb[0].mxu0
    %v2306 = vadd.f32 0.0, %v2305
    %v2307 = vpop.f32.mrb[0].mxu0
    %v2308 = vadd.f32 0.0, %v2307
    %v2309 = vpop.f32.mrb[0].mxu0
    %v2310 = vadd.f32 0.0, %v2309
    %2311 = vmatprep.mubr.bf16.mxu0 0
    %2312 = vmatmul.mubr.bf16.gmra.mrb[0].mxu0 %v2116
    %v2313 = vpop.f32.mrb[0].mxu0
    %v2314 = vadd.f32 0.0, %v2313
    %v2315 = vpop.f32.mrb[0].mxu0
    %v2316 = vadd.f32 0.0, %v2315
    %v2317 = vpop.f32.mrb[0].mxu0
    %v2318 = vadd.f32 0.0, %v2317
    %v2319 = vpop.f32.mrb[0].mxu0
    %v2320 = vadd.f32 0.0, %v2319
    %2321 = vmatprep.mubr.bf16.mxu0 0
    %2322 = vmatmul.mubr.bf16.gmra.mrb[0].mxu0 %v2117
    %v2323 = vpop.f32.mrb[0].mxu0
    %v2324 = vadd.f32 0.0, %v2323
    %v2325 = vpop.f32.mrb[0].mxu0
    %v2326 = vadd.f32 0.0, %v2325
    %v2327 = vpop.f32.mrb[0].mxu0
    %v2328 = vadd.f32 0.0, %v2327
    %v2329 = vpop.f32.mrb[0].mxu0
    %v2330 = vadd.f32 0.0, %v2329
    %2331 = vmatprep.mubr.bf16.mxu0 0
    %2332 = vmatmul.mubr.bf16.gmra.mrb[0].mxu0 %v2118
    %v2333 = vpop.f32.mrb[0].mxu0
    %v2334 = vadd.f32 0.0, %v2333
    %v2335 = vpop.f32.mrb[0].mxu0
    %v2336 = vadd.f32 0.0, %v2335
    %v2337 = vpop.f32.mrb[0].mxu0
    %v2338 = vadd.f32 0.0, %v2337
    %v2339 = vpop.f32.mrb[0].mxu0
    %v2340 = vadd.f32 0.0, %v2339
    %2341 = vmatprep.mubr.bf16.mxu0 0
    %2342 = vmatmul.mubr.bf16.gmra.mrb[0].mxu0 %v2119
    %v2343 = vpop.f32.mrb[0].mxu0
    %v2344 = vadd.f32 0.0, %v2343
    %v2345 = vpop.f32.mrb[0].mxu0
    %v2346 = vadd.f32 0.0, %v2345
    %v2347 = vpop.f32.mrb[0].mxu0
    %v2348 = vadd.f32 0.0, %v2347
    %v2349 = vpop.f32.mrb[0].mxu0
    %v2350 = vadd.f32 0.0, %v2349
    %2351 = vmatprep.mubr.bf16.mxu0 0
    %2352 = vmatmul.mubr.bf16.gmra.mrb[0].mxu0 %v2120
    %v2353 = vpop.f32.mrb[0].mxu0
    %v2354 = vadd.f32 0.0, %v2353
    %v2355 = vpop.f32.mrb[0].mxu0
    %v2356 = vadd.f32 0.0, %v2355
    %v2357 = vpop.f32.mrb[0].mxu0
    %v2358 = vadd.f32 0.0, %v2357
    %v2359 = vpop.f32.mrb[0].mxu0
    %v2360 = vadd.f32 0.0, %v2359
    %2361 = vdwg.mxu0
    %2362 = vmatprep.subr.bf16.mxu0 %v2154
    %2363 = vmatpush1.bf16.msra.mxu0 %v2153
    %2364 = vmatprep.subr.bf16.mxu0 %v2156
    %2365 = vmatpush1.bf16.msra.mxu0 %v2155
    %2366 = vmatprep.subr.bf16.mxu0 %v2158
    %2367 = vmatpush1.bf16.msra.mxu0 %v2157
    %2368 = vmatprep.subr.bf16.mxu0 %v2160
    %2369 = vmatpush1.bf16.msra.mxu0 %v2159
    %2370 = vmatprep.subr.bf16.mxu0 %v2162
    %2371 = vmatpush1.bf16.msra.mxu0 %v2161
    %2372 = vmatprep.subr.bf16.mxu0 %v2164
    %2373 = vmatpush1.bf16.msra.mxu0 %v2163
    %2374 = vmatprep.subr.bf16.mxu0 %v2166
    %2375 = vmatpush1.bf16.msra.mxu0 %v2165
    %2376 = vmatprep.subr.bf16.mxu0 %v2168
    %2377 = vmatpush1.bf16.msra.mxu0 %v2167
    %2378 = vmatprep.subr.bf16.mxu0 0
    %2379 = vmatpush1.bf16.msra.mxu0 0
    %2380 = vmatprep.subr.bf16.mxu0 0
    %2381 = vmatpush1.bf16.msra.mxu0 0
    %2382 = vmatprep.subr.bf16.mxu0 0
    %2383 = vmatpush1.bf16.msra.mxu0 0
    %2384 = vmatprep.subr.bf16.mxu0 0
    %2385 = vmatpush1.bf16.msra.mxu0 0
    %2386 = vmatprep.subr.bf16.mxu0 0
    %2387 = vmatpush1.bf16.msra.mxu0 0
    %2388 = vmatprep.subr.bf16.mxu0 0
    %2389 = vmatpush1.bf16.msra.mxu0 0
    %2390 = vmatprep.subr.bf16.mxu0 0
    %2391 = vmatpush1.bf16.msra.mxu0 0
    %2392 = vmatprep.subr.bf16.mxu0 0
    %2393 = vmatpush1.bf16.msra.mxu0 0
    %2394 = vmatprep.mubr.bf16.mxu0 0
    %2395 = vmatmul.mubr.bf16.gmra.mrb[0].mxu0 %v2121
    %v2396 = vpop.f32.mrb[0].mxu0
    %v2397 = vadd.f32 0.0, %v2396
    %v2398 = vpop.f32.mrb[0].mxu0
    %v2399 = vadd.f32 0.0, %v2398
    %v2400 = vpop.f32.mrb[0].mxu0
    %v2401 = vadd.f32 0.0, %v2400
    %v2402 = vpop.f32.mrb[0].mxu0
    %v2403 = vadd.f32 0.0, %v2402
    %2404 = vmatprep.mubr.bf16.mxu0 0
    %2405 = vmatmul.mubr.bf16.gmra.mrb[0].mxu0 %v2122
    %v2406 = vpop.f32.mrb[0].mxu0
    %v2407 = vadd.f32 0.0, %v2406
    %v2408 = vpop.f32.mrb[0].mxu0
    %v2409 = vadd.f32 0.0, %v2408
    %v2410 = vpop.f32.mrb[0].mxu0
    %v2411 = vadd.f32 0.0, %v2410
    %v2412 = vpop.f32.mrb[0].mxu0
    %v2413 = vadd.f32 0.0, %v2412
    %2414 = vmatprep.mubr.bf16.mxu0 0
    %2415 = vmatmul.mubr.bf16.gmra.mrb[0].mxu0 %v2123
    %v2416 = vpop.f32.mrb[0].mxu0
    %v2417 = vadd.f32 0.0, %v2416
    %v2418 = vpop.f32.mrb[0].mxu0
    %v2419 = vadd.f32 0.0, %v2418
    %v2420 = vpop.f32.mrb[0].mxu0
    %v2421 = vadd.f32 0.0, %v2420
    %v2422 = vpop.f32.mrb[0].mxu0
    %v2423 = vadd.f32 0.0, %v2422
    %2424 = vmatprep.mubr.bf16.mxu0 0
    %2425 = vmatmul.mubr.bf16.gmra.mrb[0].mxu0 %v2124
    %v2426 = vpop.f32.mrb[0].mxu0
    %v2427 = vadd.f32 0.0, %v2426
    %v2428 = vpop.f32.mrb[0].mxu0
    %v2429 = vadd.f32 0.0, %v2428
    %v2430 = vpop.f32.mrb[0].mxu0
    %v2431 = vadd.f32 0.0, %v2430
    %v2432 = vpop.f32.mrb[0].mxu0
    %v2433 = vadd.f32 0.0, %v2432
    %2434 = vmatprep.mubr.bf16.mxu0 0
    %2435 = vmatmul.mubr.bf16.gmra.mrb[0].mxu0 %v2125
    %v2436 = vpop.f32.mrb[0].mxu0
    %v2437 = vadd.f32 0.0, %v2436
    %v2438 = vpop.f32.mrb[0].mxu0
    %v2439 = vadd.f32 0.0, %v2438
    %v2440 = vpop.f32.mrb[0].mxu0
    %v2441 = vadd.f32 0.0, %v2440
    %v2442 = vpop.f32.mrb[0].mxu0
    %v2443 = vadd.f32 0.0, %v2442
    %2444 = vmatprep.mubr.bf16.mxu0 0
    %2445 = vmatmul.mubr.bf16.gmra.mrb[0].mxu0 %v2126
    %v2446 = vpop.f32.mrb[0].mxu0
    %v2447 = vadd.f32 0.0, %v2446
    %v2448 = vpop.f32.mrb[0].mxu0
    %v2449 = vadd.f32 0.0, %v2448
    %v2450 = vpop.f32.mrb[0].mxu0
    %v2451 = vadd.f32 0.0, %v2450
    %v2452 = vpop.f32.mrb[0].mxu0
    %v2453 = vadd.f32 0.0, %v2452
    %2454 = vmatprep.mubr.bf16.mxu0 0
    %2455 = vmatmul.mubr.bf16.gmra.mrb[0].mxu0 %v2127
    %v2456 = vpop.f32.mrb[0].mxu0
    %v2457 = vadd.f32 0.0, %v2456
    %v2458 = vpop.f32.mrb[0].mxu0
    %v2459 = vadd.f32 0.0, %v2458
    %v2460 = vpop.f32.mrb[0].mxu0
    %v2461 = vadd.f32 0.0, %v2460
    %v2462 = vpop.f32.mrb[0].mxu0
    %v2463 = vadd.f32 0.0, %v2462
    %2464 = vmatprep.mubr.bf16.mxu0 0
    %2465 = vmatmul.mubr.bf16.gmra.mrb[0].mxu0 %v2128
    %v2466 = vpop.f32.mrb[0].mxu0
    %v2467 = vadd.f32 0.0, %v2466
    %v2468 = vpop.f32.mrb[0].mxu0
    %v2469 = vadd.f32 0.0, %v2468
    %v2470 = vpop.f32.mrb[0].mxu0
    %v2471 = vadd.f32 0.0, %v2470
    %v2472 = vpop.f32.mrb[0].mxu0
    %v2473 = vadd.f32 0.0, %v2472
    %2474 = vmatprep.mubr.bf16.mxu0 0
    %2475 = vmatmul.mubr.bf16.gmra.mrb[0].mxu0 %v2129
    %v2476 = vpop.f32.mrb[0].mxu0
    %v2477 = vadd.f32 0.0, %v2476
    %v2478 = vpop.f32.mrb[0].mxu0
    %v2479 = vadd.f32 0.0, %v2478
    %v2480 = vpop.f32.mrb[0].mxu0
    %v2481 = vadd.f32 0.0, %v2480
    %v2482 = vpop.f32.mrb[0].mxu0
    %v2483 = vadd.f32 0.0, %v2482
    %2484 = vmatprep.mubr.bf16.mxu0 0
    %2485 = vmatmul.mubr.bf16.gmra.mrb[0].mxu0 %v2130
    %v2486 = vpop.f32.mrb[0].mxu0
    %v2487 = vadd.f32 0.0, %v2486
    %v2488 = vpop.f32.mrb[0].mxu0
    %v2489 = vadd.f32 0.0, %v2488
    %v2490 = vpop.f32.mrb[0].mxu0
    %v2491 = vadd.f32 0.0, %v2490
    %v2492 = vpop.f32.mrb[0].mxu0
    %v2493 = vadd.f32 0.0, %v2492
    %2494 = vmatprep.mubr.bf16.mxu0 0
    %2495 = vmatmul.mubr.bf16.gmra.mrb[0].mxu0 %v2131
    %v2496 = vpop.f32.mrb[0].mxu0
    %v2497 = vadd.f32 0.0, %v2496
    %v2498 = vpop.f32.mrb[0].mxu0
    %v2499 = vadd.f32 0.0, %v2498
    %v2500 = vpop.f32.mrb[0].mxu0
    %v2501 = vadd.f32 0.0, %v2500
    %v2502 = vpop.f32.mrb[0].mxu0
    %v2503 = vadd.f32 0.0, %v2502
    %2504 = vmatprep.mubr.bf16.mxu0 0
    %2505 = vmatmul.mubr.bf16.gmra.mrb[0].mxu0 %v2132
    %v2506 = vpop.f32.mrb[0].mxu0
    %v2507 = vadd.f32 0.0, %v2506
    %v2508 = vpop.f32.mrb[0].mxu0
    %v2509 = vadd.f32 0.0, %v2508
    %v2510 = vpop.f32.mrb[0].mxu0
    %v2511 = vadd.f32 0.0, %v2510
    %v2512 = vpop.f32.mrb[0].mxu0
    %v2513 = vadd.f32 0.0, %v2512
    %2514 = vmatprep.mubr.bf16.mxu0 0
    %2515 = vmatmul.mubr.bf16.gmra.mrb[0].mxu0 %v2133
    %v2516 = vpop.f32.mrb[0].mxu0
    %v2517 = vadd.f32 0.0, %v2516
    %v2518 = vpop.f32.mrb[0].mxu0
    %v2519 = vadd.f32 0.0, %v2518
    %v2520 = vpop.f32.mrb[0].mxu0
    %v2521 = vadd.f32 0.0, %v2520
    %v2522 = vpop.f32.mrb[0].mxu0
    %v2523 = vadd.f32 0.0, %v2522
    %2524 = vmatprep.mubr.bf16.mxu0 0
    %2525 = vmatmul.mubr.bf16.gmra.mrb[0].mxu0 %v2134
    %v2526 = vpop.f32.mrb[0].mxu0
    %v2527 = vadd.f32 0.0, %v2526
    %v2528 = vpop.f32.mrb[0].mxu0
    %v2529 = vadd.f32 0.0, %v2528
    %v2530 = vpop.f32.mrb[0].mxu0
    %v2531 = vadd.f32 0.0, %v2530
    %v2532 = vpop.f32.mrb[0].mxu0
    %v2533 = vadd.f32 0.0, %v2532
    %2534 = vmatprep.mubr.bf16.mxu0 0
    %2535 = vmatmul.mubr.bf16.gmra.mrb[0].mxu0 %v2135
    %v2536 = vpop.f32.mrb[0].mxu0
    %v2537 = vadd.f32 0.0, %v2536
    %v2538 = vpop.f32.mrb[0].mxu0
    %v2539 = vadd.f32 0.0, %v2538
    %v2540 = vpop.f32.mrb[0].mxu0
    %v2541 = vadd.f32 0.0, %v2540
    %v2542 = vpop.f32.mrb[0].mxu0
    %v2543 = vadd.f32 0.0, %v2542
    %2544 = vmatprep.mubr.bf16.mxu0 0
    %2545 = vmatmul.mubr.bf16.gmra.mrb[0].mxu0 %v2136
    %v2546 = vpop.f32.mrb[0].mxu0
    %v2547 = vadd.f32 0.0, %v2546
    %v2548 = vpop.f32.mrb[0].mxu0
    %v2549 = vadd.f32 0.0, %v2548
    %v2550 = vpop.f32.mrb[0].mxu0
    %v2551 = vadd.f32 0.0, %v2550
    %v2552 = vpop.f32.mrb[0].mxu0
    %v2553 = vadd.f32 0.0, %v2552
    %2554 = vdwg.mxu0
    %v2555 = vmax.f32 %v2204, %v2206
    %2556 = vmax.xlane.f32.xlu0 %v2555
    %v2557 = vpop.xlane.xlu0 %2556
    %v2558 = vmax.f32 %v2208, %v2210
    %2559 = vmax.xlane.f32.xlu0 %v2558
    %v2560 = vpop.xlane.xlu0 %2559
    %v2561 = vmax.f32 %v2214, %v2216
    %2562 = vmax.xlane.f32.xlu0 %v2561
    %v2563 = vpop.xlane.xlu0 %2562
    %v2564 = vmax.f32 %v2218, %v2220
    %2565 = vmax.xlane.f32.xlu0 %v2564
    %v2566 = vpop.xlane.xlu0 %2565
    %v2567 = vmax.f32 %v2224, %v2226
    %2568 = vmax.xlane.f32.xlu0 %v2567
    %v2569 = vpop.xlane.xlu0 %2568
    %v2570 = vmax.f32 %v2228, %v2230
    %2571 = vmax.xlane.f32.xlu0 %v2570
    %v2572 = vpop.xlane.xlu0 %2571
    %v2573 = vmax.f32 %v2234, %v2236
    %2574 = vmax.xlane.f32.xlu0 %v2573
    %v2575 = vpop.xlane.xlu0 %2574
    %v2576 = vmax.f32 %v2238, %v2240
    %2577 = vmax.xlane.f32.xlu0 %v2576
    %v2578 = vpop.xlane.xlu0 %2577
    %v2579 = vmax.f32 %v2244, %v2246
    %2580 = vmax.xlane.f32.xlu0 %v2579
    %v2581 = vpop.xlane.xlu0 %2580
    %v2582 = vmax.f32 %v2248, %v2250
    %2583 = vmax.xlane.f32.xlu0 %v2582
    %v2584 = vpop.xlane.xlu0 %2583
    %v2585 = vmax.f32 %v2254, %v2256
    %2586 = vmax.xlane.f32.xlu0 %v2585
    %v2587 = vpop.xlane.xlu0 %2586
    %v2588 = vmax.f32 %v2258, %v2260
    %2589 = vmax.xlane.f32.xlu0 %v2588
    %v2590 = vpop.xlane.xlu0 %2589
    %v2591 = vmax.f32 %v2264, %v2266
    %2592 = vmax.xlane.f32.xlu0 %v2591
    %v2593 = vpop.xlane.xlu0 %2592
    %v2594 = vmax.f32 %v2268, %v2270
    %2595 = vmax.xlane.f32.xlu0 %v2594
    %v2596 = vpop.xlane.xlu0 %2595
    %v2597 = vmax.f32 %v2274, %v2276
    %2598 = vmax.xlane.f32.xlu0 %v2597
    %v2599 = vpop.xlane.xlu0 %2598
    %v2600 = vmax.f32 %v2278, %v2280
    %2601 = vmax.xlane.f32.xlu0 %v2600
    %v2602 = vpop.xlane.xlu0 %2601
    %v2603 = vmax.f32 %v2284, %v2286
    %2604 = vmax.xlane.f32.xlu0 %v2603
    %v2605 = vpop.xlane.xlu0 %2604
    %v2606 = vmax.f32 %v2288, %v2290
    %2607 = vmax.xlane.f32.xlu0 %v2606
    %v2608 = vpop.xlane.xlu0 %2607
    %v2609 = vmax.f32 %v2294, %v2296
    %2610 = vmax.xlane.f32.xlu0 %v2609
    %v2611 = vpop.xlane.xlu0 %2610
    %v2612 = vmax.f32 %v2298, %v2300
    %2613 = vmax.xlane.f32.xlu0 %v2612
    %v2614 = vpop.xlane.xlu0 %2613
    %v2615 = vmax.f32 %v2304, %v2306
    %2616 = vmax.xlane.f32.xlu0 %v2615
    %v2617 = vpop.xlane.xlu0 %2616
    %v2618 = vmax.f32 %v2308, %v2310
    %2619 = vmax.xlane.f32.xlu0 %v2618
    %v2620 = vpop.xlane.xlu0 %2619
    %v2621 = vmax.f32 %v2314, %v2316
    %2622 = vmax.xlane.f32.xlu0 %v2621
    %v2623 = vpop.xlane.xlu0 %2622
    %v2624 = vmax.f32 %v2318, %v2320
    %2625 = vmax.xlane.f32.xlu0 %v2624
    %v2626 = vpop.xlane.xlu0 %2625
    %v2627 = vmax.f32 %v2324, %v2326
    %2628 = vmax.xlane.f32.xlu0 %v2627
    %v2629 = vpop.xlane.xlu0 %2628
    %v2630 = vmax.f32 %v2328, %v2330
    %2631 = vmax.xlane.f32.xlu0 %v2630
    %v2632 = vpop.xlane.xlu0 %2631
    %v2633 = vmax.f32 %v2334, %v2336
    %2634 = vmax.xlane.f32.xlu0 %v2633
    %v2635 = vpop.xlane.xlu0 %2634
    %v2636 = vmax.f32 %v2338, %v2340
    %2637 = vmax.xlane.f32.xlu0 %v2636
    %v2638 = vpop.xlane.xlu0 %2637
    %v2639 = vmax.f32 %v2344, %v2346
    %2640 = vmax.xlane.f32.xlu0 %v2639
    %v2641 = vpop.xlane.xlu0 %2640
    %v2642 = vmax.f32 %v2348, %v2350
    %2643 = vmax.xlane.f32.xlu0 %v2642
    %v2644 = vpop.xlane.xlu0 %2643
    %v2645 = vmax.f32 %v2354, %v2356
    %2646 = vmax.xlane.f32.xlu0 %v2645
    %v2647 = vpop.xlane.xlu0 %2646
    %v2648 = vmax.f32 %v2358, %v2360
    %2649 = vmax.xlane.f32.xlu0 %v2648
    %v2650 = vpop.xlane.xlu0 %2649
    %v2651 = vmax.f32 %v2397, %v2399
    %2652 = vmax.xlane.f32.xlu0 %v2651
    %v2653 = vpop.xlane.xlu0 %2652
    %v2654 = vmax.f32 %v2401, %v2403
    %2655 = vmax.xlane.f32.xlu0 %v2654
    %v2656 = vpop.xlane.xlu0 %2655
    %v2657 = vmax.f32 %v2407, %v2409
    %2658 = vmax.xlane.f32.xlu0 %v2657
    %v2659 = vpop.xlane.xlu0 %2658
    %v2660 = vmax.f32 %v2411, %v2413
    %2661 = vmax.xlane.f32.xlu0 %v2660
    %v2662 = vpop.xlane.xlu0 %2661
    %v2663 = vmax.f32 %v2417, %v2419
    %2664 = vmax.xlane.f32.xlu0 %v2663
    %v2665 = vpop.xlane.xlu0 %2664
    %v2666 = vmax.f32 %v2421, %v2423
    %2667 = vmax.xlane.f32.xlu0 %v2666
    %v2668 = vpop.xlane.xlu0 %2667
    %v2669 = vmax.f32 %v2427, %v2429
    %2670 = vmax.xlane.f32.xlu0 %v2669
    %v2671 = vpop.xlane.xlu0 %2670
    %v2672 = vmax.f32 %v2431, %v2433
    %2673 = vmax.xlane.f32.xlu0 %v2672
    %v2674 = vpop.xlane.xlu0 %2673
    %v2675 = vmax.f32 %v2437, %v2439
    %2676 = vmax.xlane.f32.xlu0 %v2675
    %v2677 = vpop.xlane.xlu0 %2676
    %v2678 = vmax.f32 %v2441, %v2443
    %2679 = vmax.xlane.f32.xlu0 %v2678
    %v2680 = vpop.xlane.xlu0 %2679
    %v2681 = vmax.f32 %v2447, %v2449
    %2682 = vmax.xlane.f32.xlu0 %v2681
    %v2683 = vpop.xlane.xlu0 %2682
    %v2684 = vmax.f32 %v2451, %v2453
    %2685 = vmax.xlane.f32.xlu0 %v2684
    %v2686 = vpop.xlane.xlu0 %2685
    %v2687 = vmax.f32 %v2457, %v2459
    %2688 = vmax.xlane.f32.xlu0 %v2687
    %v2689 = vpop.xlane.xlu0 %2688
    %v2690 = vmax.f32 %v2461, %v2463
    %2691 = vmax.xlane.f32.xlu0 %v2690
    %v2692 = vpop.xlane.xlu0 %2691
    %v2693 = vmax.f32 %v2467, %v2469
    %2694 = vmax.xlane.f32.xlu0 %v2693
    %v2695 = vpop.xlane.xlu0 %2694
    %v2696 = vmax.f32 %v2471, %v2473
    %2697 = vmax.xlane.f32.xlu0 %v2696
    %v2698 = vpop.xlane.xlu0 %2697
    %v2699 = vmax.f32 %v2477, %v2479
    %2700 = vmax.xlane.f32.xlu0 %v2699
    %v2701 = vpop.xlane.xlu0 %2700
    %v2702 = vmax.f32 %v2481, %v2483
    %2703 = vmax.xlane.f32.xlu0 %v2702
    %v2704 = vpop.xlane.xlu0 %2703
    %v2705 = vmax.f32 %v2487, %v2489
    %2706 = vmax.xlane.f32.xlu0 %v2705
    %v2707 = vpop.xlane.xlu0 %2706
    %v2708 = vmax.f32 %v2491, %v2493
    %2709 = vmax.xlane.f32.xlu0 %v2708
    %v2710 = vpop.xlane.xlu0 %2709
    %v2711 = vmax.f32 %v2497, %v2499
    %2712 = vmax.xlane.f32.xlu0 %v2711
    %v2713 = vpop.xlane.xlu0 %2712
    %v2714 = vmax.f32 %v2501, %v2503
    %2715 = vmax.xlane.f32.xlu0 %v2714
    %v2716 = vpop.xlane.xlu0 %2715
    %v2717 = vmax.f32 %v2507, %v2509
    %2718 = vmax.xlane.f32.xlu0 %v2717
    %v2719 = vpop.xlane.xlu0 %2718
    %v2720 = vmax.f32 %v2511, %v2513
    %2721 = vmax.xlane.f32.xlu0 %v2720
    %v2722 = vpop.xlane.xlu0 %2721
    %v2723 = vmax.f32 %v2517, %v2519
    %2724 = vmax.xlane.f32.xlu0 %v2723
    %v2725 = vpop.xlane.xlu0 %2724
    %v2726 = vmax.f32 %v2521, %v2523
    %2727 = vmax.xlane.f32.xlu0 %v2726
    %v2728 = vpop.xlane.xlu0 %2727
    %v2729 = vmax.f32 %v2527, %v2529
    %2730 = vmax.xlane.f32.xlu0 %v2729
    %v2731 = vpop.xlane.xlu0 %2730
    %v2732 = vmax.f32 %v2531, %v2533
    %2733 = vmax.xlane.f32.xlu0 %v2732
    %v2734 = vpop.xlane.xlu0 %2733
    %v2735 = vmax.f32 %v2537, %v2539
    %2736 = vmax.xlane.f32.xlu0 %v2735
    %v2737 = vpop.xlane.xlu0 %2736
    %v2738 = vmax.f32 %v2541, %v2543
    %2739 = vmax.xlane.f32.xlu0 %v2738
    %v2740 = vpop.xlane.xlu0 %2739
    %v2741 = vmax.f32 %v2547, %v2549
    %2742 = vmax.xlane.f32.xlu0 %v2741
    %v2743 = vpop.xlane.xlu0 %2742
    %v2744 = vmax.f32 %v2551, %v2553
    %2745 = vmax.xlane.f32.xlu0 %v2744
    %v2746 = vpop.xlane.xlu0 %2745
    %v2747 = vsub.f32 %v2204, %v2557
    %v2748 = vsub.f32 %v2206, %v2557
    %v2749 = vsub.f32 %v2208, %v2560
    %v2750 = vsub.f32 %v2210, %v2560
    %v2751 = vsub.f32 %v2214, %v2563
    %v2752 = vsub.f32 %v2216, %v2563
    %v2753 = vsub.f32 %v2218, %v2566
    %v2754 = vsub.f32 %v2220, %v2566
    %v2755 = vsub.f32 %v2224, %v2569
    %v2756 = vsub.f32 %v2226, %v2569
    %v2757 = vsub.f32 %v2228, %v2572
    %v2758 = vsub.f32 %v2230, %v2572
    %v2759 = vsub.f32 %v2234, %v2575
    %v2760 = vsub.f32 %v2236, %v2575
    %v2761 = vsub.f32 %v2238, %v2578
    %v2762 = vsub.f32 %v2240, %v2578
    %v2763 = vsub.f32 %v2244, %v2581
    %v2764 = vsub.f32 %v2246, %v2581
    %v2765 = vsub.f32 %v2248, %v2584
    %v2766 = vsub.f32 %v2250, %v2584
    %v2767 = vsub.f32 %v2254, %v2587
    %v2768 = vsub.f32 %v2256, %v2587
    %v2769 = vsub.f32 %v2258, %v2590
    %v2770 = vsub.f32 %v2260, %v2590
    %v2771 = vsub.f32 %v2264, %v2593
    %v2772 = vsub.f32 %v2266, %v2593
    %v2773 = vsub.f32 %v2268, %v2596
    %v2774 = vsub.f32 %v2270, %v2596
    %v2775 = vsub.f32 %v2274, %v2599
    %v2776 = vsub.f32 %v2276, %v2599
    %v2777 = vsub.f32 %v2278, %v2602
    %v2778 = vsub.f32 %v2280, %v2602
    %v2779 = vsub.f32 %v2284, %v2605
    %v2780 = vsub.f32 %v2286, %v2605
    %v2781 = vsub.f32 %v2288, %v2608
    %v2782 = vsub.f32 %v2290, %v2608
    %v2783 = vsub.f32 %v2294, %v2611
    %v2784 = vsub.f32 %v2296, %v2611
    %v2785 = vsub.f32 %v2298, %v2614
    %v2786 = vsub.f32 %v2300, %v2614
    %v2787 = vsub.f32 %v2304, %v2617
    %v2788 = vsub.f32 %v2306, %v2617
    %v2789 = vsub.f32 %v2308, %v2620
    %v2790 = vsub.f32 %v2310, %v2620
    %v2791 = vsub.f32 %v2314, %v2623
    %v2792 = vsub.f32 %v2316, %v2623
    %v2793 = vsub.f32 %v2318, %v2626
    %v2794 = vsub.f32 %v2320, %v2626
    %v2795 = vsub.f32 %v2324, %v2629
    %v2796 = vsub.f32 %v2326, %v2629
    %v2797 = vsub.f32 %v2328, %v2632
    %v2798 = vsub.f32 %v2330, %v2632
    %v2799 = vsub.f32 %v2334, %v2635
    %v2800 = vsub.f32 %v2336, %v2635
    %v2801 = vsub.f32 %v2338, %v2638
    %v2802 = vsub.f32 %v2340, %v2638
    %v2803 = vsub.f32 %v2344, %v2641
    %v2804 = vsub.f32 %v2346, %v2641
    %v2805 = vsub.f32 %v2348, %v2644
    %v2806 = vsub.f32 %v2350, %v2644
    %v2807 = vsub.f32 %v2354, %v2647
    %v2808 = vsub.f32 %v2356, %v2647
    %v2809 = vsub.f32 %v2358, %v2650
    %v2810 = vsub.f32 %v2360, %v2650
    %v2811 = vsub.f32 %v2397, %v2653
    %v2812 = vsub.f32 %v2399, %v2653
    %v2813 = vsub.f32 %v2401, %v2656
    %v2814 = vsub.f32 %v2403, %v2656
    %v2815 = vsub.f32 %v2407, %v2659
    %v2816 = vsub.f32 %v2409, %v2659
    %v2817 = vsub.f32 %v2411, %v2662
    %v2818 = vsub.f32 %v2413, %v2662
    %v2819 = vsub.f32 %v2417, %v2665
    %v2820 = vsub.f32 %v2419, %v2665
    %v2821 = vsub.f32 %v2421, %v2668
    %v2822 = vsub.f32 %v2423, %v2668
    %v2823 = vsub.f32 %v2427, %v2671
    %v2824 = vsub.f32 %v2429, %v2671
    %v2825 = vsub.f32 %v2431, %v2674
    %v2826 = vsub.f32 %v2433, %v2674
    %v2827 = vsub.f32 %v2437, %v2677
    %v2828 = vsub.f32 %v2439, %v2677
    %v2829 = vsub.f32 %v2441, %v2680
    %v2830 = vsub.f32 %v2443, %v2680
    %v2831 = vsub.f32 %v2447, %v2683
    %v2832 = vsub.f32 %v2449, %v2683
    %v2833 = vsub.f32 %v2451, %v2686
    %v2834 = vsub.f32 %v2453, %v2686
    %v2835 = vsub.f32 %v2457, %v2689
    %v2836 = vsub.f32 %v2459, %v2689
    %v2837 = vsub.f32 %v2461, %v2692
    %v2838 = vsub.f32 %v2463, %v2692
    %v2839 = vsub.f32 %v2467, %v2695
    %v2840 = vsub.f32 %v2469, %v2695
    %v2841 = vsub.f32 %v2471, %v2698
    %v2842 = vsub.f32 %v2473, %v2698
    %v2843 = vsub.f32 %v2477, %v2701
    %v2844 = vsub.f32 %v2479, %v2701
    %v2845 = vsub.f32 %v2481, %v2704
    %v2846 = vsub.f32 %v2483, %v2704
    %v2847 = vsub.f32 %v2487, %v2707
    %v2848 = vsub.f32 %v2489, %v2707
    %v2849 = vsub.f32 %v2491, %v2710
    %v2850 = vsub.f32 %v2493, %v2710
    %v2851 = vsub.f32 %v2497, %v2713
    %v2852 = vsub.f32 %v2499, %v2713
    %v2853 = vsub.f32 %v2501, %v2716
    %v2854 = vsub.f32 %v2503, %v2716
    %v2855 = vsub.f32 %v2507, %v2719
    %v2856 = vsub.f32 %v2509, %v2719
    %v2857 = vsub.f32 %v2511, %v2722
    %v2858 = vsub.f32 %v2513, %v2722
    %v2859 = vsub.f32 %v2517, %v2725
    %v2860 = vsub.f32 %v2519, %v2725
    %v2861 = vsub.f32 %v2521, %v2728
    %v2862 = vsub.f32 %v2523, %v2728
    %v2863 = vsub.f32 %v2527, %v2731
    %v2864 = vsub.f32 %v2529, %v2731
    %v2865 = vsub.f32 %v2531, %v2734
    %v2866 = vsub.f32 %v2533, %v2734
    %v2867 = vsub.f32 %v2537, %v2737
    %v2868 = vsub.f32 %v2539, %v2737
    %v2869 = vsub.f32 %v2541, %v2740
    %v2870 = vsub.f32 %v2543, %v2740
    %v2871 = vsub.f32 %v2547, %v2743
    %v2872 = vsub.f32 %v2549, %v2743
    %v2873 = vsub.f32 %v2551, %v2746
    %v2874 = vsub.f32 %v2553, %v2746
    %v2875 = vmul.f32 %v2747, 1.442695
    %v2876 = vpow.pop %v2875
    %v2877 = vmul.f32 %v2748, 1.442695
    %v2878 = vpow.pop %v2877
    %v2879 = vmul.f32 %v2749, 1.442695
    %v2880 = vpow.pop %v2879
    %v2881 = vmul.f32 %v2750, 1.442695
    %v2882 = vpow.pop %v2881
    %v2883 = vmul.f32 %v2751, 1.442695
    %v2884 = vpow.pop %v2883
    %v2885 = vmul.f32 %v2752, 1.442695
    %v2886 = vpow.pop %v2885
    %v2887 = vmul.f32 %v2753, 1.442695
    %v2888 = vpow.pop %v2887
    %v2889 = vmul.f32 %v2754, 1.442695
    %v2890 = vpow.pop %v2889
    %v2891 = vmul.f32 %v2755, 1.442695
    %v2892 = vpow.pop %v2891
    %v2893 = vmul.f32 %v2756, 1.442695
    %v2894 = vpow.pop %v2893
    %v2895 = vmul.f32 %v2757, 1.442695
    %v2896 = vpow.pop %v2895
    %v2897 = vmul.f32 %v2758, 1.442695
    %v2898 = vpow.pop %v2897
    %v2899 = vmul.f32 %v2759, 1.442695
    %v2900 = vpow.pop %v2899
    %v2901 = vmul.f32 %v2760, 1.442695
    %v2902 = vpow.pop %v2901
    %v2903 = vmul.f32 %v2761, 1.442695
    %v2904 = vpow.pop %v2903
    %v2905 = vmul.f32 %v2762, 1.442695
    %v2906 = vpow.pop %v2905
    %v2907 = vmul.f32 %v2763, 1.442695
    %v2908 = vpow.pop %v2907
    %v2909 = vmul.f32 %v2764, 1.442695
    %v2910 = vpow.pop %v2909
    %v2911 = vmul.f32 %v2765, 1.442695
    %v2912 = vpow.pop %v2911
    %v2913 = vmul.f32 %v2766, 1.442695
    %v2914 = vpow.pop %v2913
    %v2915 = vmul.f32 %v2767, 1.442695
    %v2916 = vpow.pop %v2915
    %v2917 = vmul.f32 %v2768, 1.442695
    %v2918 = vpow.pop %v2917
    %v2919 = vmul.f32 %v2769, 1.442695
    %v2920 = vpow.pop %v2919
    %v2921 = vmul.f32 %v2770, 1.442695
    %v2922 = vpow.pop %v2921
    %v2923 = vmul.f32 %v2771, 1.442695
    %v2924 = vpow.pop %v2923
    %v2925 = vmul.f32 %v2772, 1.442695
    %v2926 = vpow.pop %v2925
    %v2927 = vmul.f32 %v2773, 1.442695
    %v2928 = vpow.pop %v2927
    %v2929 = vmul.f32 %v2774, 1.442695
    %v2930 = vpow.pop %v2929
    %v2931 = vmul.f32 %v2775, 1.442695
    %v2932 = vpow.pop %v2931
    %v2933 = vmul.f32 %v2776, 1.442695
    %v2934 = vpow.pop %v2933
    %v2935 = vmul.f32 %v2777, 1.442695
    %v2936 = vpow.pop %v2935
    %v2937 = vmul.f32 %v2778, 1.442695
    %v2938 = vpow.pop %v2937
    %v2939 = vmul.f32 %v2779, 1.442695
    %v2940 = vpow.pop %v2939
    %v2941 = vmul.f32 %v2780, 1.442695
    %v2942 = vpow.pop %v2941
    %v2943 = vmul.f32 %v2781, 1.442695
    %v2944 = vpow.pop %v2943
    %v2945 = vmul.f32 %v2782, 1.442695
    %v2946 = vpow.pop %v2945
    %v2947 = vmul.f32 %v2783, 1.442695
    %v2948 = vpow.pop %v2947
    %v2949 = vmul.f32 %v2784, 1.442695
    %v2950 = vpow.pop %v2949
    %v2951 = vmul.f32 %v2785, 1.442695
    %v2952 = vpow.pop %v2951
    %v2953 = vmul.f32 %v2786, 1.442695
    %v2954 = vpow.pop %v2953
    %v2955 = vmul.f32 %v2787, 1.442695
    %v2956 = vpow.pop %v2955
    %v2957 = vmul.f32 %v2788, 1.442695
    %v2958 = vpow.pop %v2957
    %v2959 = vmul.f32 %v2789, 1.442695
    %v2960 = vpow.pop %v2959
    %v2961 = vmul.f32 %v2790, 1.442695
    %v2962 = vpow.pop %v2961
    %v2963 = vmul.f32 %v2791, 1.442695
    %v2964 = vpow.pop %v2963
    %v2965 = vmul.f32 %v2792, 1.442695
    %v2966 = vpow.pop %v2965
    %v2967 = vmul.f32 %v2793, 1.442695
    %v2968 = vpow.pop %v2967
    %v2969 = vmul.f32 %v2794, 1.442695
    %v2970 = vpow.pop %v2969
    %v2971 = vmul.f32 %v2795, 1.442695
    %v2972 = vpow.pop %v2971
    %v2973 = vmul.f32 %v2796, 1.442695
    %v2974 = vpow.pop %v2973
    %v2975 = vmul.f32 %v2797, 1.442695
    %v2976 = vpow.pop %v2975
    %v2977 = vmul.f32 %v2798, 1.442695
    %v2978 = vpow.pop %v2977
    %v2979 = vmul.f32 %v2799, 1.442695
    %v2980 = vpow.pop %v2979
    %v2981 = vmul.f32 %v2800, 1.442695
    %v2982 = vpow.pop %v2981
    %v2983 = vmul.f32 %v2801, 1.442695
    %v2984 = vpow.pop %v2983
    %v2985 = vmul.f32 %v2802, 1.442695
    %v2986 = vpow.pop %v2985
    %v2987 = vmul.f32 %v2803, 1.442695
    %v2988 = vpow.pop %v2987
    %v2989 = vmul.f32 %v2804, 1.442695
    %v2990 = vpow.pop %v2989
    %v2991 = vmul.f32 %v2805, 1.442695
    %v2992 = vpow.pop %v2991
    %v2993 = vmul.f32 %v2806, 1.442695
    %v2994 = vpow.pop %v2993
    %v2995 = vmul.f32 %v2807, 1.442695
    %v2996 = vpow.pop %v2995
    %v2997 = vmul.f32 %v2808, 1.442695
    %v2998 = vpow.pop %v2997
    %v2999 = vmul.f32 %v2809, 1.442695
    %v3000 = vpow.pop %v2999
    %v3001 = vmul.f32 %v2810, 1.442695
    %v3002 = vpow.pop %v3001
    %v3003 = vmul.f32 %v2811, 1.442695
    %v3004 = vpow.pop %v3003
    %v3005 = vmul.f32 %v2812, 1.442695
    %v3006 = vpow.pop %v3005
    %v3007 = vmul.f32 %v2813, 1.442695
    %v3008 = vpow.pop %v3007
    %v3009 = vmul.f32 %v2814, 1.442695
    %v3010 = vpow.pop %v3009
    %v3011 = vmul.f32 %v2815, 1.442695
    %v3012 = vpow.pop %v3011
    %v3013 = vmul.f32 %v2816, 1.442695
    %v3014 = vpow.pop %v3013
    %v3015 = vmul.f32 %v2817, 1.442695
    %v3016 = vpow.pop %v3015
    %v3017 = vmul.f32 %v2818, 1.442695
    %v3018 = vpow.pop %v3017
    %v3019 = vmul.f32 %v2819, 1.442695
    %v3020 = vpow.pop %v3019
    %v3021 = vmul.f32 %v2820, 1.442695
    %v3022 = vpow.pop %v3021
    %v3023 = vmul.f32 %v2821, 1.442695
    %v3024 = vpow.pop %v3023
    %v3025 = vmul.f32 %v2822, 1.442695
    %v3026 = vpow.pop %v3025
    %v3027 = vmul.f32 %v2823, 1.442695
    %v3028 = vpow.pop %v3027
    %v3029 = vmul.f32 %v2824, 1.442695
    %v3030 = vpow.pop %v3029
    %v3031 = vmul.f32 %v2825, 1.442695
    %v3032 = vpow.pop %v3031
    %v3033 = vmul.f32 %v2826, 1.442695
    %v3034 = vpow.pop %v3033
    %v3035 = vmul.f32 %v2827, 1.442695
    %v3036 = vpow.pop %v3035
    %v3037 = vmul.f32 %v2828, 1.442695
    %v3038 = vpow.pop %v3037
    %v3039 = vmul.f32 %v2829, 1.442695
    %v3040 = vpow.pop %v3039
    %v3041 = vmul.f32 %v2830, 1.442695
    %v3042 = vpow.pop %v3041
    %v3043 = vmul.f32 %v2831, 1.442695
    %v3044 = vpow.pop %v3043
    %v3045 = vmul.f32 %v2832, 1.442695
    %v3046 = vpow.pop %v3045
    %v3047 = vmul.f32 %v2833, 1.442695
    %v3048 = vpow.pop %v3047
    %v3049 = vmul.f32 %v2834, 1.442695
    %v3050 = vpow.pop %v3049
    %v3051 = vmul.f32 %v2835, 1.442695
    %v3052 = vpow.pop %v3051
    %v3053 = vmul.f32 %v2836, 1.442695
    %v3054 = vpow.pop %v3053
    %v3055 = vmul.f32 %v2837, 1.442695
    %v3056 = vpow.pop %v3055
    %v3057 = vmul.f32 %v2838, 1.442695
    %v3058 = vpow.pop %v3057
    %v3059 = vmul.f32 %v2839, 1.442695
    %v3060 = vpow.pop %v3059
    %v3061 = vmul.f32 %v2840, 1.442695
    %v3062 = vpow.pop %v3061
    %v3063 = vmul.f32 %v2841, 1.442695
    %v3064 = vpow.pop %v3063
    %v3065 = vmul.f32 %v2842, 1.442695
    %v3066 = vpow.pop %v3065
    %v3067 = vmul.f32 %v2843, 1.442695
    %v3068 = vpow.pop %v3067
    %v3069 = vmul.f32 %v2844, 1.442695
    %v3070 = vpow.pop %v3069
    %v3071 = vmul.f32 %v2845, 1.442695
    %v3072 = vpow.pop %v3071
    %v3073 = vmul.f32 %v2846, 1.442695
    %v3074 = vpow.pop %v3073
    %v3075 = vmul.f32 %v2847, 1.442695
    %v3076 = vpow.pop %v3075
    %v3077 = vmul.f32 %v2848, 1.442695
    %v3078 = vpow.pop %v3077
    %v3079 = vmul.f32 %v2849, 1.442695
    %v3080 = vpow.pop %v3079
    %v3081 = vmul.f32 %v2850, 1.442695
    %v3082 = vpow.pop %v3081
    %v3083 = vmul.f32 %v2851, 1.442695
    %v3084 = vpow.pop %v3083
    %v3085 = vmul.f32 %v2852, 1.442695
    %v3086 = vpow.pop %v3085
    %v3087 = vmul.f32 %v2853, 1.442695
    %v3088 = vpow.pop %v3087
    %v3089 = vmul.f32 %v2854, 1.442695
    %v3090 = vpow.pop %v3089
    %v3091 = vmul.f32 %v2855, 1.442695
    %v3092 = vpow.pop %v3091
    %v3093 = vmul.f32 %v2856, 1.442695
    %v3094 = vpow.pop %v3093
    %v3095 = vmul.f32 %v2857, 1.442695
    %v3096 = vpow.pop %v3095
    %v3097 = vmul.f32 %v2858, 1.442695
    %v3098 = vpow.pop %v3097
    %v3099 = vmul.f32 %v2859, 1.442695
    %v3100 = vpow.pop %v3099
    %v3101 = vmul.f32 %v2860, 1.442695
    %v3102 = vpow.pop %v3101
    %v3103 = vmul.f32 %v2861, 1.442695
    %v3104 = vpow.pop %v3103
    %v3105 = vmul.f32 %v2862, 1.442695
    %v3106 = vpow.pop %v3105
    %v3107 = vmul.f32 %v2863, 1.442695
    %v3108 = vpow.pop %v3107
    %v3109 = vmul.f32 %v2864, 1.442695
    %v3110 = vpow.pop %v3109
    %v3111 = vmul.f32 %v2865, 1.442695
    %v3112 = vpow.pop %v3111
    %v3113 = vmul.f32 %v2866, 1.442695
    %v3114 = vpow.pop %v3113
    %v3115 = vmul.f32 %v2867, 1.442695
    %v3116 = vpow.pop %v3115
    %v3117 = vmul.f32 %v2868, 1.442695
    %v3118 = vpow.pop %v3117
    %v3119 = vmul.f32 %v2869, 1.442695
    %v3120 = vpow.pop %v3119
    %v3121 = vmul.f32 %v2870, 1.442695
    %v3122 = vpow.pop %v3121
    %v3123 = vmul.f32 %v2871, 1.442695
    %v3124 = vpow.pop %v3123
    %v3125 = vmul.f32 %v2872, 1.442695
    %v3126 = vpow.pop %v3125
    %v3127 = vmul.f32 %v2873, 1.442695
    %v3128 = vpow.pop %v3127
    %v3129 = vmul.f32 %v2874, 1.442695
    %v3130 = vpow.pop %v3129
    %v3131 = vadd.f32 %v2876, %v2878
    %3132 = vadd.xlane.f32.xlu0 %v3131
    %v3133 = vpop.xlane.xlu0 %3132
    %v3134 = vadd.f32 %v2880, %v2882
    %3135 = vadd.xlane.f32.xlu0 %v3134
    %v3136 = vpop.xlane.xlu0 %3135
    %v3137 = vadd.f32 %v2884, %v2886
    %3138 = vadd.xlane.f32.xlu0 %v3137
    %v3139 = vpop.xlane.xlu0 %3138
    %v3140 = vadd.f32 %v2888, %v2890
    %3141 = vadd.xlane.f32.xlu0 %v3140
    %v3142 = vpop.xlane.xlu0 %3141
    %v3143 = vadd.f32 %v2892, %v2894
    %3144 = vadd.xlane.f32.xlu0 %v3143
    %v3145 = vpop.xlane.xlu0 %3144
    %v3146 = vadd.f32 %v2896, %v2898
    %3147 = vadd.xlane.f32.xlu0 %v3146
    %v3148 = vpop.xlane.xlu0 %3147
    %v3149 = vadd.f32 %v2900, %v2902
    %3150 = vadd.xlane.f32.xlu0 %v3149
    %v3151 = vpop.xlane.xlu0 %3150
    %v3152 = vadd.f32 %v2904, %v2906
    %3153 = vadd.xlane.f32.xlu0 %v3152
    %v3154 = vpop.xlane.xlu0 %3153
    %v3155 = vadd.f32 %v2908, %v2910
    %3156 = vadd.xlane.f32.xlu0 %v3155
    %v3157 = vpop.xlane.xlu0 %3156
    %v3158 = vadd.f32 %v2912, %v2914
    %3159 = vadd.xlane.f32.xlu0 %v3158
    %v3160 = vpop.xlane.xlu0 %3159
    %v3161 = vadd.f32 %v2916, %v2918
    %3162 = vadd.xlane.f32.xlu0 %v3161
    %v3163 = vpop.xlane.xlu0 %3162
    %v3164 = vadd.f32 %v2920, %v2922
    %3165 = vadd.xlane.f32.xlu0 %v3164
    %v3166 = vpop.xlane.xlu0 %3165
    %v3167 = vadd.f32 %v2924, %v2926
    %3168 = vadd.xlane.f32.xlu0 %v3167
    %v3169 = vpop.xlane.xlu0 %3168
    %v3170 = vadd.f32 %v2928, %v2930
    %3171 = vadd.xlane.f32.xlu0 %v3170
    %v3172 = vpop.xlane.xlu0 %3171
    %v3173 = vadd.f32 %v2932, %v2934
    %3174 = vadd.xlane.f32.xlu0 %v3173
    %v3175 = vpop.xlane.xlu0 %3174
    %v3176 = vadd.f32 %v2936, %v2938
    %3177 = vadd.xlane.f32.xlu0 %v3176
    %v3178 = vpop.xlane.xlu0 %3177
    %v3179 = vadd.f32 %v2940, %v2942
    %3180 = vadd.xlane.f32.xlu0 %v3179
    %v3181 = vpop.xlane.xlu0 %3180
    %v3182 = vadd.f32 %v2944, %v2946
    %3183 = vadd.xlane.f32.xlu0 %v3182
    %v3184 = vpop.xlane.xlu0 %3183
    %v3185 = vadd.f32 %v2948, %v2950
    %3186 = vadd.xlane.f32.xlu0 %v3185
    %v3187 = vpop.xlane.xlu0 %3186
    %v3188 = vadd.f32 %v2952, %v2954
    %3189 = vadd.xlane.f32.xlu0 %v3188
    %v3190 = vpop.xlane.xlu0 %3189
    %v3191 = vadd.f32 %v2956, %v2958
    %3192 = vadd.xlane.f32.xlu0 %v3191
    %v3193 = vpop.xlane.xlu0 %3192
    %v3194 = vadd.f32 %v2960, %v2962
    %3195 = vadd.xlane.f32.xlu0 %v3194
    %v3196 = vpop.xlane.xlu0 %3195
    %v3197 = vadd.f32 %v2964, %v2966
    %3198 = vadd.xlane.f32.xlu0 %v3197
    %v3199 = vpop.xlane.xlu0 %3198
    %v3200 = vadd.f32 %v2968, %v2970
    %3201 = vadd.xlane.f32.xlu0 %v3200
    %v3202 = vpop.xlane.xlu0 %3201
    %v3203 = vadd.f32 %v2972, %v2974
    %3204 = vadd.xlane.f32.xlu0 %v3203
    %v3205 = vpop.xlane.xlu0 %3204
    %v3206 = vadd.f32 %v2976, %v2978
    %3207 = vadd.xlane.f32.xlu0 %v3206
    %v3208 = vpop.xlane.xlu0 %3207
    %v3209 = vadd.f32 %v2980, %v2982
    %3210 = vadd.xlane.f32.xlu0 %v3209
    %v3211 = vpop.xlane.xlu0 %3210
    %v3212 = vadd.f32 %v2984, %v2986
    %3213 = vadd.xlane.f32.xlu0 %v3212
    %v3214 = vpop.xlane.xlu0 %3213
    %v3215 = vadd.f32 %v2988, %v2990
    %3216 = vadd.xlane.f32.xlu0 %v3215
    %v3217 = vpop.xlane.xlu0 %3216
    %v3218 = vadd.f32 %v2992, %v2994
    %3219 = vadd.xlane.f32.xlu0 %v3218
    %v3220 = vpop.xlane.xlu0 %3219
    %v3221 = vadd.f32 %v2996, %v2998
    %3222 = vadd.xlane.f32.xlu0 %v3221
    %v3223 = vpop.xlane.xlu0 %3222
    %v3224 = vadd.f32 %v3000, %v3002
    %3225 = vadd.xlane.f32.xlu0 %v3224
    %v3226 = vpop.xlane.xlu0 %3225
    %v3227 = vadd.f32 %v3004, %v3006
    %3228 = vadd.xlane.f32.xlu0 %v3227
    %v3229 = vpop.xlane.xlu0 %3228
    %v3230 = vadd.f32 %v3008, %v3010
    %3231 = vadd.xlane.f32.xlu0 %v3230
    %v3232 = vpop.xlane.xlu0 %3231
    %v3233 = vadd.f32 %v3012, %v3014
    %3234 = vadd.xlane.f32.xlu0 %v3233
    %v3235 = vpop.xlane.xlu0 %3234
    %v3236 = vadd.f32 %v3016, %v3018
    %3237 = vadd.xlane.f32.xlu0 %v3236
    %v3238 = vpop.xlane.xlu0 %3237
    %v3239 = vadd.f32 %v3020, %v3022
    %3240 = vadd.xlane.f32.xlu0 %v3239
    %v3241 = vpop.xlane.xlu0 %3240
    %v3242 = vadd.f32 %v3024, %v3026
    %3243 = vadd.xlane.f32.xlu0 %v3242
    %v3244 = vpop.xlane.xlu0 %3243
    %v3245 = vadd.f32 %v3028, %v3030
    %3246 = vadd.xlane.f32.xlu0 %v3245
    %v3247 = vpop.xlane.xlu0 %3246
    %v3248 = vadd.f32 %v3032, %v3034
    %3249 = vadd.xlane.f32.xlu0 %v3248
    %v3250 = vpop.xlane.xlu0 %3249
    %v3251 = vadd.f32 %v3036, %v3038
    %3252 = vadd.xlane.f32.xlu0 %v3251
    %v3253 = vpop.xlane.xlu0 %3252
    %v3254 = vadd.f32 %v3040, %v3042
    %3255 = vadd.xlane.f32.xlu0 %v3254
    %v3256 = vpop.xlane.xlu0 %3255
    %v3257 = vadd.f32 %v3044, %v3046
    %3258 = vadd.xlane.f32.xlu0 %v3257
    %v3259 = vpop.xlane.xlu0 %3258
    %v3260 = vadd.f32 %v3048, %v3050
    %3261 = vadd.xlane.f32.xlu0 %v3260
    %v3262 = vpop.xlane.xlu0 %3261
    %v3263 = vadd.f32 %v3052, %v3054
    %3264 = vadd.xlane.f32.xlu0 %v3263
    %v3265 = vpop.xlane.xlu0 %3264
    %v3266 = vadd.f32 %v3056, %v3058
    %3267 = vadd.xlane.f32.xlu0 %v3266
    %v3268 = vpop.xlane.xlu0 %3267
    %v3269 = vadd.f32 %v3060, %v3062
    %3270 = vadd.xlane.f32.xlu0 %v3269
    %v3271 = vpop.xlane.xlu0 %3270
    %v3272 = vadd.f32 %v3064, %v3066
    %3273 = vadd.xlane.f32.xlu0 %v3272
    %v3274 = vpop.xlane.xlu0 %3273
    %v3275 = vadd.f32 %v3068, %v3070
    %3276 = vadd.xlane.f32.xlu0 %v3275
    %v3277 = vpop.xlane.xlu0 %3276
    %v3278 = vadd.f32 %v3072, %v3074
    %3279 = vadd.xlane.f32.xlu0 %v3278
    %v3280 = vpop.xlane.xlu0 %3279
    %v3281 = vadd.f32 %v3076, %v3078
    %3282 = vadd.xlane.f32.xlu0 %v3281
    %v3283 = vpop.xlane.xlu0 %3282
    %v3284 = vadd.f32 %v3080, %v3082
    %3285 = vadd.xlane.f32.xlu0 %v3284
    %v3286 = vpop.xlane.xlu0 %3285
    %v3287 = vadd.f32 %v3084, %v3086
    %3288 = vadd.xlane.f32.xlu0 %v3287
    %v3289 = vpop.xlane.xlu0 %3288
    %v3290 = vadd.f32 %v3088, %v3090
    %3291 = vadd.xlane.f32.xlu0 %v3290
    %v3292 = vpop.xlane.xlu0 %3291
    %v3293 = vadd.f32 %v3092, %v3094
    %3294 = vadd.xlane.f32.xlu0 %v3293
    %v3295 = vpop.xlane.xlu0 %3294
    %v3296 = vadd.f32 %v3096, %v3098
    %3297 = vadd.xlane.f32.xlu0 %v3296
    %v3298 = vpop.xlane.xlu0 %3297
    %v3299 = vadd.f32 %v3100, %v3102
    %3300 = vadd.xlane.f32.xlu0 %v3299
    %v3301 = vpop.xlane.xlu0 %3300
    %v3302 = vadd.f32 %v3104, %v3106
    %3303 = vadd.xlane.f32.xlu0 %v3302
    %v3304 = vpop.xlane.xlu0 %3303
    %v3305 = vadd.f32 %v3108, %v3110
    %3306 = vadd.xlane.f32.xlu0 %v3305
    %v3307 = vpop.xlane.xlu0 %3306
    %v3308 = vadd.f32 %v3112, %v3114
    %3309 = vadd.xlane.f32.xlu0 %v3308
    %v3310 = vpop.xlane.xlu0 %3309
    %v3311 = vadd.f32 %v3116, %v3118
    %3312 = vadd.xlane.f32.xlu0 %v3311
    %v3313 = vpop.xlane.xlu0 %3312
    %v3314 = vadd.f32 %v3120, %v3122
    %3315 = vadd.xlane.f32.xlu0 %v3314
    %v3316 = vpop.xlane.xlu0 %3315
    %v3317 = vadd.f32 %v3124, %v3126
    %3318 = vadd.xlane.f32.xlu0 %v3317
    %v3319 = vpop.xlane.xlu0 %3318
    %v3320 = vadd.f32 %v3128, %v3130
    %3321 = vadd.xlane.f32.xlu0 %v3320
    %v3322 = vpop.xlane.xlu0 %3321
    %v3323 = vpack.c.bf16 %v2880, %v2876
    %v3324 = vpack.c.bf16 %v2882, %v2878
    %v3325 = vpack.c.bf16 %v2888, %v2884
    %v3326 = vpack.c.bf16 %v2890, %v2886
    %v3327 = vpack.c.bf16 %v2896, %v2892
    %v3328 = vpack.c.bf16 %v2898, %v2894
    %v3329 = vpack.c.bf16 %v2904, %v2900
    %v3330 = vpack.c.bf16 %v2906, %v2902
    %v3331 = vpack.c.bf16 %v2912, %v2908
    %v3332 = vpack.c.bf16 %v2914, %v2910
    %v3333 = vpack.c.bf16 %v2920, %v2916
    %v3334 = vpack.c.bf16 %v2922, %v2918
    %v3335 = vpack.c.bf16 %v2928, %v2924
    %v3336 = vpack.c.bf16 %v2930, %v2926
    %v3337 = vpack.c.bf16 %v2936, %v2932
    %v3338 = vpack.c.bf16 %v2938, %v2934
    %v3339 = vpack.c.bf16 %v2944, %v2940
    %v3340 = vpack.c.bf16 %v2946, %v2942
    %v3341 = vpack.c.bf16 %v2952, %v2948
    %v3342 = vpack.c.bf16 %v2954, %v2950
    %v3343 = vpack.c.bf16 %v2960, %v2956
    %v3344 = vpack.c.bf16 %v2962, %v2958
    %v3345 = vpack.c.bf16 %v2968, %v2964
    %v3346 = vpack.c.bf16 %v2970, %v2966
    %v3347 = vpack.c.bf16 %v2976, %v2972
    %v3348 = vpack.c.bf16 %v2978, %v2974
    %v3349 = vpack.c.bf16 %v2984, %v2980
    %v3350 = vpack.c.bf16 %v2986, %v2982
    %v3351 = vpack.c.bf16 %v2992, %v2988
    %v3352 = vpack.c.bf16 %v2994, %v2990
    %v3353 = vpack.c.bf16 %v3000, %v2996
    %v3354 = vpack.c.bf16 %v3002, %v2998
    %v3355 = vpack.c.bf16 %v3008, %v3004
    %v3356 = vpack.c.bf16 %v3010, %v3006
    %v3357 = vpack.c.bf16 %v3016, %v3012
    %v3358 = vpack.c.bf16 %v3018, %v3014
    %v3359 = vpack.c.bf16 %v3024, %v3020
    %v3360 = vpack.c.bf16 %v3026, %v3022
    %v3361 = vpack.c.bf16 %v3032, %v3028
    %v3362 = vpack.c.bf16 %v3034, %v3030
    %v3363 = vpack.c.bf16 %v3040, %v3036
    %v3364 = vpack.c.bf16 %v3042, %v3038
    %v3365 = vpack.c.bf16 %v3048, %v3044
    %v3366 = vpack.c.bf16 %v3050, %v3046
    %v3367 = vpack.c.bf16 %v3056, %v3052
    %v3368 = vpack.c.bf16 %v3058, %v3054
    %v3369 = vpack.c.bf16 %v3064, %v3060
    %v3370 = vpack.c.bf16 %v3066, %v3062
    %v3371 = vpack.c.bf16 %v3072, %v3068
    %v3372 = vpack.c.bf16 %v3074, %v3070
    %v3373 = vpack.c.bf16 %v3080, %v3076
    %v3374 = vpack.c.bf16 %v3082, %v3078
    %v3375 = vpack.c.bf16 %v3088, %v3084
    %v3376 = vpack.c.bf16 %v3090, %v3086
    %v3377 = vpack.c.bf16 %v3096, %v3092
    %v3378 = vpack.c.bf16 %v3098, %v3094
    %v3379 = vpack.c.bf16 %v3104, %v3100
    %v3380 = vpack.c.bf16 %v3106, %v3102
    %v3381 = vpack.c.bf16 %v3112, %v3108
    %v3382 = vpack.c.bf16 %v3114, %v3110
    %v3383 = vpack.c.bf16 %v3120, %v3116
    %v3384 = vpack.c.bf16 %v3122, %v3118
    %v3385 = vpack.c.bf16 %v3128, %v3124
    %v3386 = vpack.c.bf16 %v3130, %v3126
    %v3387 = vld [vmem:[#allocation4] sm:$0xff]
    %v3388 = vld [vmem:[#allocation4 + $0x8] sm:$0xff]
    %v3389 = vld [vmem:[#allocation4 + $0x10] sm:$0xff]
    %v3390 = vld [vmem:[#allocation4 + $0x18] sm:$0xff]
    %v3391 = vld [vmem:[#allocation4 + $0x20] sm:$0xff]
    %v3392 = vld [vmem:[#allocation4 + $0x28] sm:$0xff]
    %v3393 = vld [vmem:[#allocation4 + $0x30] sm:$0xff]
    %v3394 = vld [vmem:[#allocation4 + $0x38] sm:$0xff]
    %v3395 = vld [vmem:[#allocation4 + $0x40] sm:$0xff]
    %v3396 = vld [vmem:[#allocation4 + $0x48] sm:$0xff]
    %v3397 = vld [vmem:[#allocation4 + $0x50] sm:$0xff]
    %v3398 = vld [vmem:[#allocation4 + $0x58] sm:$0xff]
    %v3399 = vld [vmem:[#allocation4 + $0x60] sm:$0xff]
    %v3400 = vld [vmem:[#allocation4 + $0x68] sm:$0xff]
    %v3401 = vld [vmem:[#allocation4 + $0x70] sm:$0xff]
    %v3402 = vld [vmem:[#allocation4 + $0x78] sm:$0xff]
    %v3403 = vld [vmem:[#allocation4 + $0x80] sm:$0xff]
    %v3404 = vld [vmem:[#allocation4 + $0x88] sm:$0xff]
    %v3405 = vld [vmem:[#allocation4 + $0x90] sm:$0xff]
    %v3406 = vld [vmem:[#allocation4 + $0x98] sm:$0xff]
    %v3407 = vld [vmem:[#allocation4 + $0xa0] sm:$0xff]
    %v3408 = vld [vmem:[#allocation4 + $0xa8] sm:$0xff]
    %v3409 = vld [vmem:[#allocation4 + $0xb0] sm:$0xff]
    %v3410 = vld [vmem:[#allocation4 + $0xb8] sm:$0xff]
    %v3411 = vld [vmem:[#allocation4 + $0xc0] sm:$0xff]
    %v3412 = vld [vmem:[#allocation4 + $0xc8] sm:$0xff]
    %v3413 = vld [vmem:[#allocation4 + $0xd0] sm:$0xff]
    %v3414 = vld [vmem:[#allocation4 + $0xd8] sm:$0xff]
    %v3415 = vld [vmem:[#allocation4 + $0xe0] sm:$0xff]
    %v3416 = vld [vmem:[#allocation4 + $0xe8] sm:$0xff]
    %v3417 = vld [vmem:[#allocation4 + $0xf0] sm:$0xff]
    %v3418 = vld [vmem:[#allocation4 + $0xf8] sm:$0xff]
    %3419 = vmatprep.subr.bf16.mxu0 0
    %3420 = vmatpush1.bf16.msra.mxu0 %v3387
    %3421 = vmatprep.subr.bf16.mxu0 0
    %3422 = vmatpush1.bf16.msra.mxu0 %v3388
    %3423 = vmatprep.subr.bf16.mxu0 0
    %3424 = vmatpush1.bf16.msra.mxu0 %v3389
    %3425 = vmatprep.subr.bf16.mxu0 0
    %3426 = vmatpush1.bf16.msra.mxu0 %v3390
    %3427 = vmatprep.subr.bf16.mxu0 0
    %3428 = vmatpush1.bf16.msra.mxu0 %v3391
    %3429 = vmatprep.subr.bf16.mxu0 0
    %3430 = vmatpush1.bf16.msra.mxu0 %v3392
    %3431 = vmatprep.subr.bf16.mxu0 0
    %3432 = vmatpush1.bf16.msra.mxu0 %v3393
    %3433 = vmatprep.subr.bf16.mxu0 0
    %3434 = vmatpush1.bf16.msra.mxu0 %v3394
    %3435 = vmatprep.subr.bf16.mxu0 0
    %3436 = vmatpush1.bf16.msra.mxu0 %v3395
    %3437 = vmatprep.subr.bf16.mxu0 0
    %3438 = vmatpush1.bf16.msra.mxu0 %v3396
    %3439 = vmatprep.subr.bf16.mxu0 0
    %3440 = vmatpush1.bf16.msra.mxu0 %v3397
    %3441 = vmatprep.subr.bf16.mxu0 0
    %3442 = vmatpush1.bf16.msra.mxu0 %v3398
    %3443 = vmatprep.subr.bf16.mxu0 0
    %3444 = vmatpush1.bf16.msra.mxu0 %v3399
    %3445 = vmatprep.subr.bf16.mxu0 0
    %3446 = vmatpush1.bf16.msra.mxu0 %v3400
    %3447 = vmatprep.subr.bf16.mxu0 0
    %3448 = vmatpush1.bf16.msra.mxu0 %v3401
    %3449 = vmatprep.subr.bf16.mxu0 0
    %3450 = vmatpush1.bf16.msra.mxu0 %v3402
    %3451 = vmatprep.mubr.bf16.mxu0 %v3324
    %3452 = vmatmul.mubr.bf16.gmra.mrb[0].mxu0 %v3323
    %v3453 = vpop.f32.mrb[0].mxu0
    %v3454 = vadd.f32 0.0, %v3453
    %v3455 = vpop.f32.mrb[0].mxu0
    %v3456 = vpop.f32.mrb[0].mxu0
    %v3457 = vadd.f32 0.0, %v3456
    %v3458 = vpop.f32.mrb[0].mxu0
    %3459 = vmatprep.mubr.bf16.mxu0 %v3326
    %3460 = vmatmul.mubr.bf16.gmra.mrb[0].mxu0 %v3325
    %v3461 = vpop.f32.mrb[0].mxu0
    %v3462 = vadd.f32 0.0, %v3461
    %v3463 = vpop.f32.mrb[0].mxu0
    %v3464 = vpop.f32.mrb[0].mxu0
    %v3465 = vadd.f32 0.0, %v3464
    %v3466 = vpop.f32.mrb[0].mxu0
    %3467 = vmatprep.mubr.bf16.mxu0 %v3328
    %3468 = vmatmul.mubr.bf16.gmra.mrb[0].mxu0 %v3327
    %v3469 = vpop.f32.mrb[0].mxu0
    %v3470 = vadd.f32 0.0, %v3469
    %v3471 = vpop.f32.mrb[0].mxu0
    %v3472 = vpop.f32.mrb[0].mxu0
    %v3473 = vadd.f32 0.0, %v3472
    %v3474 = vpop.f32.mrb[0].mxu0
    %3475 = vmatprep.mubr.bf16.mxu0 %v3330
    %3476 = vmatmul.mubr.bf16.gmra.mrb[0].mxu0 %v3329
    %v3477 = vpop.f32.mrb[0].mxu0
    %v3478 = vadd.f32 0.0, %v3477
    %v3479 = vpop.f32.mrb[0].mxu0
    %v3480 = vpop.f32.mrb[0].mxu0
    %v3481 = vadd.f32 0.0, %v3480
    %v3482 = vpop.f32.mrb[0].mxu0
    %3483 = vmatprep.mubr.bf16.mxu0 %v3332
    %3484 = vmatmul.mubr.bf16.gmra.mrb[0].mxu0 %v3331
    %v3485 = vpop.f32.mrb[0].mxu0
    %v3486 = vadd.f32 0.0, %v3485
    %v3487 = vpop.f32.mrb[0].mxu0
    %v3488 = vpop.f32.mrb[0].mxu0
    %v3489 = vadd.f32 0.0, %v3488
    %v3490 = vpop.f32.mrb[0].mxu0
    %3491 = vmatprep.mubr.bf16.mxu0 %v3334
    %3492 = vmatmul.mubr.bf16.gmra.mrb[0].mxu0 %v3333
    %v3493 = vpop.f32.mrb[0].mxu0
    %v3494 = vadd.f32 0.0, %v3493
    %v3495 = vpop.f32.mrb[0].mxu0
    %v3496 = vpop.f32.mrb[0].mxu0
    %v3497 = vadd.f32 0.0, %v3496
    %v3498 = vpop.f32.mrb[0].mxu0
    %3499 = vmatprep.mubr.bf16.mxu0 %v3336
    %3500 = vmatmul.mubr.bf16.gmra.mrb[0].mxu0 %v3335
    %v3501 = vpop.f32.mrb[0].mxu0
    %v3502 = vadd.f32 0.0, %v3501
    %v3503 = vpop.f32.mrb[0].mxu0
    %v3504 = vpop.f32.mrb[0].mxu0
    %v3505 = vadd.f32 0.0, %v3504
    %v3506 = vpop.f32.mrb[0].mxu0
    %3507 = vmatprep.mubr.bf16.mxu0 %v3338
    %3508 = vmatmul.mubr.bf16.gmra.mrb[0].mxu0 %v3337
    %v3509 = vpop.f32.mrb[0].mxu0
    %v3510 = vadd.f32 0.0, %v3509
    %v3511 = vpop.f32.mrb[0].mxu0
    %v3512 = vpop.f32.mrb[0].mxu0
    %v3513 = vadd.f32 0.0, %v3512
    %v3514 = vpop.f32.mrb[0].mxu0
    %3515 = vmatprep.mubr.bf16.mxu0 %v3340
    %3516 = vmatmul.mubr.bf16.gmra.mrb[0].mxu0 %v3339
    %v3517 = vpop.f32.mrb[0].mxu0
    %v3518 = vadd.f32 0.0, %v3517
    %v3519 = vpop.f32.mrb[0].mxu0
    %v3520 = vpop.f32.mrb[0].mxu0
    %v3521 = vadd.f32 0.0, %v3520
    %v3522 = vpop.f32.mrb[0].mxu0
    %3523 = vmatprep.mubr.bf16.mxu0 %v3342
    %3524 = vmatmul.mubr.bf16.gmra.mrb[0].mxu0 %v3341
    %v3525 = vpop.f32.mrb[0].mxu0
    %v3526 = vadd.f32 0.0, %v3525
    %v3527 = vpop.f32.mrb[0].mxu0
    %v3528 = vpop.f32.mrb[0].mxu0
    %v3529 = vadd.f32 0.0, %v3528
    %v3530 = vpop.f32.mrb[0].mxu0
    %3531 = vmatprep.mubr.bf16.mxu0 %v3344
    %3532 = vmatmul.mubr.bf16.gmra.mrb[0].mxu0 %v3343
    %v3533 = vpop.f32.mrb[0].mxu0
    %v3534 = vadd.f32 0.0, %v3533
    %v3535 = vpop.f32.mrb[0].mxu0
    %v3536 = vpop.f32.mrb[0].mxu0
    %v3537 = vadd.f32 0.0, %v3536
    %v3538 = vpop.f32.mrb[0].mxu0
    %3539 = vmatprep.mubr.bf16.mxu0 %v3346
    %3540 = vmatmul.mubr.bf16.gmra.mrb[0].mxu0 %v3345
    %v3541 = vpop.f32.mrb[0].mxu0
    %v3542 = vadd.f32 0.0, %v3541
    %v3543 = vpop.f32.mrb[0].mxu0
    %v3544 = vpop.f32.mrb[0].mxu0
    %v3545 = vadd.f32 0.0, %v3544
    %v3546 = vpop.f32.mrb[0].mxu0
    %3547 = vmatprep.mubr.bf16.mxu0 %v3348
    %3548 = vmatmul.mubr.bf16.gmra.mrb[0].mxu0 %v3347
    %v3549 = vpop.f32.mrb[0].mxu0
    %v3550 = vadd.f32 0.0, %v3549
    %v3551 = vpop.f32.mrb[0].mxu0
    %v3552 = vpop.f32.mrb[0].mxu0
    %v3553 = vadd.f32 0.0, %v3552
    %v3554 = vpop.f32.mrb[0].mxu0
    %3555 = vmatprep.mubr.bf16.mxu0 %v3350
    %3556 = vmatmul.mubr.bf16.gmra.mrb[0].mxu0 %v3349
    %v3557 = vpop.f32.mrb[0].mxu0
    %v3558 = vadd.f32 0.0, %v3557
    %v3559 = vpop.f32.mrb[0].mxu0
    %v3560 = vpop.f32.mrb[0].mxu0
    %v3561 = vadd.f32 0.0, %v3560
    %v3562 = vpop.f32.mrb[0].mxu0
    %3563 = vmatprep.mubr.bf16.mxu0 %v3352
    %3564 = vmatmul.mubr.bf16.gmra.mrb[0].mxu0 %v3351
    %v3565 = vpop.f32.mrb[0].mxu0
    %v3566 = vadd.f32 0.0, %v3565
    %v3567 = vpop.f32.mrb[0].mxu0
    %v3568 = vpop.f32.mrb[0].mxu0
    %v3569 = vadd.f32 0.0, %v3568
    %v3570 = vpop.f32.mrb[0].mxu0
    %3571 = vmatprep.mubr.bf16.mxu0 %v3354
    %3572 = vmatmul.mubr.bf16.gmra.mrb[0].mxu0 %v3353
    %v3573 = vpop.f32.mrb[0].mxu0
    %v3574 = vadd.f32 0.0, %v3573
    %v3575 = vpop.f32.mrb[0].mxu0
    %v3576 = vpop.f32.mrb[0].mxu0
    %v3577 = vadd.f32 0.0, %v3576
    %v3578 = vpop.f32.mrb[0].mxu0
    %3579 = vdwg.mxu0
    %3580 = vmatprep.subr.bf16.mxu0 0
    %3581 = vmatpush1.bf16.msra.mxu0 %v3403
    %3582 = vmatprep.subr.bf16.mxu0 0
    %3583 = vmatpush1.bf16.msra.mxu0 %v3404
    %3584 = vmatprep.subr.bf16.mxu0 0
    %3585 = vmatpush1.bf16.msra.mxu0 %v3405
    %3586 = vmatprep.subr.bf16.mxu0 0
    %3587 = vmatpush1.bf16.msra.mxu0 %v3406
    %3588 = vmatprep.subr.bf16.mxu0 0
    %3589 = vmatpush1.bf16.msra.mxu0 %v3407
    %3590 = vmatprep.subr.bf16.mxu0 0
    %3591 = vmatpush1.bf16.msra.mxu0 %v3408
    %3592 = vmatprep.subr.bf16.mxu0 0
    %3593 = vmatpush1.bf16.msra.mxu0 %v3409
    %3594 = vmatprep.subr.bf16.mxu0 0
    %3595 = vmatpush1.bf16.msra.mxu0 %v3410
    %3596 = vmatprep.subr.bf16.mxu0 0
    %3597 = vmatpush1.bf16.msra.mxu0 %v3411
    %3598 = vmatprep.subr.bf16.mxu0 0
    %3599 = vmatpush1.bf16.msra.mxu0 %v3412
    %3600 = vmatprep.subr.bf16.mxu0 0
    %3601 = vmatpush1.bf16.msra.mxu0 %v3413
    %3602 = vmatprep.subr.bf16.mxu0 0
    %3603 = vmatpush1.bf16.msra.mxu0 %v3414
    %3604 = vmatprep.subr.bf16.mxu0 0
    %3605 = vmatpush1.bf16.msra.mxu0 %v3415
    %3606 = vmatprep.subr.bf16.mxu0 0
    %3607 = vmatpush1.bf16.msra.mxu0 %v3416
    %3608 = vmatprep.subr.bf16.mxu0 0
    %3609 = vmatpush1.bf16.msra.mxu0 %v3417
    %3610 = vmatprep.subr.bf16.mxu0 0
    %3611 = vmatpush1.bf16.msra.mxu0 %v3418
    %3612 = vmatprep.mubr.bf16.mxu0 %v3356
    %3613 = vmatmul.mubr.bf16.gmra.mrb[0].mxu0 %v3355
    %v3614 = vpop.f32.mrb[0].mxu0
    %v3615 = vadd.f32 0.0, %v3614
    %v3616 = vpop.f32.mrb[0].mxu0
    %v3617 = vpop.f32.mrb[0].mxu0
    %v3618 = vadd.f32 0.0, %v3617
    %v3619 = vpop.f32.mrb[0].mxu0
    %3620 = vmatprep.mubr.bf16.mxu0 %v3358
    %3621 = vmatmul.mubr.bf16.gmra.mrb[0].mxu0 %v3357
    %v3622 = vpop.f32.mrb[0].mxu0
    %v3623 = vadd.f32 0.0, %v3622
    %v3624 = vpop.f32.mrb[0].mxu0
    %v3625 = vpop.f32.mrb[0].mxu0
    %v3626 = vadd.f32 0.0, %v3625
    %v3627 = vpop.f32.mrb[0].mxu0
    %3628 = vmatprep.mubr.bf16.mxu0 %v3360
    %3629 = vmatmul.mubr.bf16.gmra.mrb[0].mxu0 %v3359
    %v3630 = vpop.f32.mrb[0].mxu0
    %v3631 = vadd.f32 0.0, %v3630
    %v3632 = vpop.f32.mrb[0].mxu0
    %v3633 = vpop.f32.mrb[0].mxu0
    %v3634 = vadd.f32 0.0, %v3633
    %v3635 = vpop.f32.mrb[0].mxu0
    %3636 = vmatprep.mubr.bf16.mxu0 %v3362
    %3637 = vmatmul.mubr.bf16.gmra.mrb[0].mxu0 %v3361
    %v3638 = vpop.f32.mrb[0].mxu0
    %v3639 = vadd.f32 0.0, %v3638
    %v3640 = vpop.f32.mrb[0].mxu0
    %v3641 = vpop.f32.mrb[0].mxu0
    %v3642 = vadd.f32 0.0, %v3641
    %v3643 = vpop.f32.mrb[0].mxu0
    %3644 = vmatprep.mubr.bf16.mxu0 %v3364
    %3645 = vmatmul.mubr.bf16.gmra.mrb[0].mxu0 %v3363
    %v3646 = vpop.f32.mrb[0].mxu0
    %v3647 = vadd.f32 0.0, %v3646
    %v3648 = vpop.f32.mrb[0].mxu0
    %v3649 = vpop.f32.mrb[0].mxu0
    %v3650 = vadd.f32 0.0, %v3649
    %v3651 = vpop.f32.mrb[0].mxu0
    %3652 = vmatprep.mubr.bf16.mxu0 %v3366
    %3653 = vmatmul.mubr.bf16.gmra.mrb[0].mxu0 %v3365
    %v3654 = vpop.f32.mrb[0].mxu0
    %v3655 = vadd.f32 0.0, %v3654
    %v3656 = vpop.f32.mrb[0].mxu0
    %v3657 = vpop.f32.mrb[0].mxu0
    %v3658 = vadd.f32 0.0, %v3657
    %v3659 = vpop.f32.mrb[0].mxu0
    %3660 = vmatprep.mubr.bf16.mxu0 %v3368
    %3661 = vmatmul.mubr.bf16.gmra.mrb[0].mxu0 %v3367
    %v3662 = vpop.f32.mrb[0].mxu0
    %v3663 = vadd.f32 0.0, %v3662
    %v3664 = vpop.f32.mrb[0].mxu0
    %v3665 = vpop.f32.mrb[0].mxu0
    %v3666 = vadd.f32 0.0, %v3665
    %v3667 = vpop.f32.mrb[0].mxu0
    %3668 = vmatprep.mubr.bf16.mxu0 %v3370
    %3669 = vmatmul.mubr.bf16.gmra.mrb[0].mxu0 %v3369
    %v3670 = vpop.f32.mrb[0].mxu0
    %v3671 = vadd.f32 0.0, %v3670
    %v3672 = vpop.f32.mrb[0].mxu0
    %v3673 = vpop.f32.mrb[0].mxu0
    %v3674 = vadd.f32 0.0, %v3673
    %v3675 = vpop.f32.mrb[0].mxu0
    %3676 = vmatprep.mubr.bf16.mxu0 %v3372
    %3677 = vmatmul.mubr.bf16.gmra.mrb[0].mxu0 %v3371
    %v3678 = vpop.f32.mrb[0].mxu0
    %v3679 = vadd.f32 0.0, %v3678
    %v3680 = vpop.f32.mrb[0].mxu0
    %v3681 = vpop.f32.mrb[0].mxu0
    %v3682 = vadd.f32 0.0, %v3681
    %v3683 = vpop.f32.mrb[0].mxu0
    %3684 = vmatprep.mubr.bf16.mxu0 %v3374
    %3685 = vmatmul.mubr.bf16.gmra.mrb[0].mxu0 %v3373
    %v3686 = vpop.f32.mrb[0].mxu0
    %v3687 = vadd.f32 0.0, %v3686
    %v3688 = vpop.f32.mrb[0].mxu0
    %v3689 = vpop.f32.mrb[0].mxu0
    %v3690 = vadd.f32 0.0, %v3689
    %v3691 = vpop.f32.mrb[0].mxu0
    %3692 = vmatprep.mubr.bf16.mxu0 %v3376
    %3693 = vmatmul.mubr.bf16.gmra.mrb[0].mxu0 %v3375
    %v3694 = vpop.f32.mrb[0].mxu0
    %v3695 = vadd.f32 0.0, %v3694
    %v3696 = vpop.f32.mrb[0].mxu0
    %v3697 = vpop.f32.mrb[0].mxu0
    %v3698 = vadd.f32 0.0, %v3697
    %v3699 = vpop.f32.mrb[0].mxu0
    %3700 = vmatprep.mubr.bf16.mxu0 %v3378
    %3701 = vmatmul.mubr.bf16.gmra.mrb[0].mxu0 %v3377
    %v3702 = vpop.f32.mrb[0].mxu0
    %v3703 = vadd.f32 0.0, %v3702
    %v3704 = vpop.f32.mrb[0].mxu0
    %v3705 = vpop.f32.mrb[0].mxu0
    %v3706 = vadd.f32 0.0, %v3705
    %v3707 = vpop.f32.mrb[0].mxu0
    %3708 = vmatprep.mubr.bf16.mxu0 %v3380
    %3709 = vmatmul.mubr.bf16.gmra.mrb[0].mxu0 %v3379
    %v3710 = vpop.f32.mrb[0].mxu0
    %v3711 = vadd.f32 0.0, %v3710
    %v3712 = vpop.f32.mrb[0].mxu0
    %v3713 = vpop.f32.mrb[0].mxu0
    %v3714 = vadd.f32 0.0, %v3713
    %v3715 = vpop.f32.mrb[0].mxu0
    %3716 = vmatprep.mubr.bf16.mxu0 %v3382
    %3717 = vmatmul.mubr.bf16.gmra.mrb[0].mxu0 %v3381
    %v3718 = vpop.f32.mrb[0].mxu0
    %v3719 = vadd.f32 0.0, %v3718
    %v3720 = vpop.f32.mrb[0].mxu0
    %v3721 = vpop.f32.mrb[0].mxu0
    %v3722 = vadd.f32 0.0, %v3721
    %v3723 = vpop.f32.mrb[0].mxu0
    %3724 = vmatprep.mubr.bf16.mxu0 %v3384
    %3725 = vmatmul.mubr.bf16.gmra.mrb[0].mxu0 %v3383
    %v3726 = vpop.f32.mrb[0].mxu0
    %v3727 = vadd.f32 0.0, %v3726
    %v3728 = vpop.f32.mrb[0].mxu0
    %v3729 = vpop.f32.mrb[0].mxu0
    %v3730 = vadd.f32 0.0, %v3729
    %v3731 = vpop.f32.mrb[0].mxu0
    %3732 = vmatprep.mubr.bf16.mxu0 %v3386
    %3733 = vmatmul.mubr.bf16.gmra.mrb[0].mxu0 %v3385
    %v3734 = vpop.f32.mrb[0].mxu0
    %v3735 = vadd.f32 0.0, %v3734
    %v3736 = vpop.f32.mrb[0].mxu0
    %v3737 = vpop.f32.mrb[0].mxu0
    %v3738 = vadd.f32 0.0, %v3737
    %v3739 = vpop.f32.mrb[0].mxu0
    %3740 = vdwg.mxu0
    %v3741 = vrcp.pop %v3133
    %v3742 = vrcp.pop %v3136
    %v3743 = vrcp.pop %v3139
    %v3744 = vrcp.pop %v3142
    %v3745 = vrcp.pop %v3145
    %v3746 = vrcp.pop %v3148
    %v3747 = vrcp.pop %v3151
    %v3748 = vrcp.pop %v3154
    %v3749 = vrcp.pop %v3157
    %v3750 = vrcp.pop %v3160
    %v3751 = vrcp.pop %v3163
    %v3752 = vrcp.pop %v3166
    %v3753 = vrcp.pop %v3169
    %v3754 = vrcp.pop %v3172
    %v3755 = vrcp.pop %v3175
    %v3756 = vrcp.pop %v3178
    %v3757 = vrcp.pop %v3181
    %v3758 = vrcp.pop %v3184
    %v3759 = vrcp.pop %v3187
    %v3760 = vrcp.pop %v3190
    %v3761 = vrcp.pop %v3193
    %v3762 = vrcp.pop %v3196
    %v3763 = vrcp.pop %v3199
    %v3764 = vrcp.pop %v3202
    %v3765 = vrcp.pop %v3205
    %v3766 = vrcp.pop %v3208
    %v3767 = vrcp.pop %v3211
    %v3768 = vrcp.pop %v3214
    %v3769 = vrcp.pop %v3217
    %v3770 = vrcp.pop %v3220
    %v3771 = vrcp.pop %v3223
    %v3772 = vrcp.pop %v3226
    %v3773 = vrcp.pop %v3229
    %v3774 = vrcp.pop %v3232
    %v3775 = vrcp.pop %v3235
    %v3776 = vrcp.pop %v3238
    %v3777 = vrcp.pop %v3241
    %v3778 = vrcp.pop %v3244
    %v3779 = vrcp.pop %v3247
    %v3780 = vrcp.pop %v3250
    %v3781 = vrcp.pop %v3253
    %v3782 = vrcp.pop %v3256
    %v3783 = vrcp.pop %v3259
    %v3784 = vrcp.pop %v3262
    %v3785 = vrcp.pop %v3265
    %v3786 = vrcp.pop %v3268
    %v3787 = vrcp.pop %v3271
    %v3788 = vrcp.pop %v3274
    %v3789 = vrcp.pop %v3277
    %v3790 = vrcp.pop %v3280
    %v3791 = vrcp.pop %v3283
    %v3792 = vrcp.pop %v3286
    %v3793 = vrcp.pop %v3289
    %v3794 = vrcp.pop %v3292
    %v3795 = vrcp.pop %v3295
    %v3796 = vrcp.pop %v3298
    %v3797 = vrcp.pop %v3301
    %v3798 = vrcp.pop %v3304
    %v3799 = vrcp.pop %v3307
    %v3800 = vrcp.pop %v3310
    %v3801 = vrcp.pop %v3313
    %v3802 = vrcp.pop %v3316
    %v3803 = vrcp.pop %v3319
    %v3804 = vrcp.pop %v3322
    %v3805 = vmul.f32 %v3454, %v3741
    %v3806 = vmul.f32 %v3457, %v3742
    %v3807 = vmul.f32 %v3462, %v3743
    %v3808 = vmul.f32 %v3465, %v3744
    %v3809 = vmul.f32 %v3470, %v3745
    %v3810 = vmul.f32 %v3473, %v3746
    %v3811 = vmul.f32 %v3478, %v3747
    %v3812 = vmul.f32 %v3481, %v3748
    %v3813 = vmul.f32 %v3486, %v3749
    %v3814 = vmul.f32 %v3489, %v3750
    %v3815 = vmul.f32 %v3494, %v3751
    %v3816 = vmul.f32 %v3497, %v3752
    %v3817 = vmul.f32 %v3502, %v3753
    %v3818 = vmul.f32 %v3505, %v3754
    %v3819 = vmul.f32 %v3510, %v3755
    %v3820 = vmul.f32 %v3513, %v3756
    %v3821 = vmul.f32 %v3518, %v3757
    %v3822 = vmul.f32 %v3521, %v3758
    %v3823 = vmul.f32 %v3526, %v3759
    %v3824 = vmul.f32 %v3529, %v3760
    %v3825 = vmul.f32 %v3534, %v3761
    %v3826 = vmul.f32 %v3537, %v3762
    %v3827 = vmul.f32 %v3542, %v3763
    %v3828 = vmul.f32 %v3545, %v3764
    %v3829 = vmul.f32 %v3550, %v3765
    %v3830 = vmul.f32 %v3553, %v3766
    %v3831 = vmul.f32 %v3558, %v3767
    %v3832 = vmul.f32 %v3561, %v3768
    %v3833 = vmul.f32 %v3566, %v3769
    %v3834 = vmul.f32 %v3569, %v3770
    %v3835 = vmul.f32 %v3574, %v3771
    %v3836 = vmul.f32 %v3577, %v3772
    %v3837 = vmul.f32 %v3615, %v3773
    %v3838 = vmul.f32 %v3618, %v3774
    %v3839 = vmul.f32 %v3623, %v3775
    %v3840 = vmul.f32 %v3626, %v3776
    %v3841 = vmul.f32 %v3631, %v3777
    %v3842 = vmul.f32 %v3634, %v3778
    %v3843 = vmul.f32 %v3639, %v3779
    %v3844 = vmul.f32 %v3642, %v3780
    %v3845 = vmul.f32 %v3647, %v3781
    %v3846 = vmul.f32 %v3650, %v3782
    %v3847 = vmul.f32 %v3655, %v3783
    %v3848 = vmul.f32 %v3658, %v3784
    %v3849 = vmul.f32 %v3663, %v3785
    %v3850 = vmul.f32 %v3666, %v3786
    %v3851 = vmul.f32 %v3671, %v3787
    %v3852 = vmul.f32 %v3674, %v3788
    %v3853 = vmul.f32 %v3679, %v3789
    %v3854 = vmul.f32 %v3682, %v3790
    %v3855 = vmul.f32 %v3687, %v3791
    %v3856 = vmul.f32 %v3690, %v3792
    %v3857 = vmul.f32 %v3695, %v3793
    %v3858 = vmul.f32 %v3698, %v3794
    %v3859 = vmul.f32 %v3703, %v3795
    %v3860 = vmul.f32 %v3706, %v3796
    %v3861 = vmul.f32 %v3711, %v3797
    %v3862 = vmul.f32 %v3714, %v3798
    %v3863 = vmul.f32 %v3719, %v3799
    %v3864 = vmul.f32 %v3722, %v3800
    %v3865 = vmul.f32 %v3727, %v3801
    %v3866 = vmul.f32 %v3730, %v3802
    %v3867 = vmul.f32 %v3735, %v3803
    %v3868 = vmul.f32 %v3738, %v3804
    %v3869 = vpack.c.bf16 %v3806, %v3805
    %v3870 = vpack.c.bf16 %v3808, %v3807
    %v3871 = vpack.c.bf16 %v3810, %v3809
    %v3872 = vpack.c.bf16 %v3812, %v3811
    %v3873 = vpack.c.bf16 %v3814, %v3813
    %v3874 = vpack.c.bf16 %v3816, %v3815
    %v3875 = vpack.c.bf16 %v3818, %v3817
    %v3876 = vpack.c.bf16 %v3820, %v3819
    %v3877 = vpack.c.bf16 %v3822, %v3821
    %v3878 = vpack.c.bf16 %v3824, %v3823
    %v3879 = vpack.c.bf16 %v3826, %v3825
    %v3880 = vpack.c.bf16 %v3828, %v3827
    %v3881 = vpack.c.bf16 %v3830, %v3829
    %v3882 = vpack.c.bf16 %v3832, %v3831
    %v3883 = vpack.c.bf16 %v3834, %v3833
    %v3884 = vpack.c.bf16 %v3836, %v3835
    %v3885 = vpack.c.bf16 %v3838, %v3837
    %v3886 = vpack.c.bf16 %v3840, %v3839
    %v3887 = vpack.c.bf16 %v3842, %v3841
    %v3888 = vpack.c.bf16 %v3844, %v3843
    %v3889 = vpack.c.bf16 %v3846, %v3845
    %v3890 = vpack.c.bf16 %v3848, %v3847
    %v3891 = vpack.c.bf16 %v3850, %v3849
    %v3892 = vpack.c.bf16 %v3852, %v3851
    %v3893 = vpack.c.bf16 %v3854, %v3853
    %v3894 = vpack.c.bf16 %v3856, %v3855
    %v3895 = vpack.c.bf16 %v3858, %v3857
    %v3896 = vpack.c.bf16 %v3860, %v3859
    %v3897 = vpack.c.bf16 %v3862, %v3861
    %v3898 = vpack.c.bf16 %v3864, %v3863
    %v3899 = vpack.c.bf16 %v3866, %v3865
    %v3900 = vpack.c.bf16 %v3868, %v3867
    %v3901 = vld [vmem:[#allocation14] sm:$0xf]
    %v3902 = vld [vmem:[#allocation14 + $0x4] sm:$0xf]
    %v3903 = vld [vmem:[#allocation14 + $0x8] sm:$0xf]
    %v3904 = vld [vmem:[#allocation14 + $0xc] sm:$0xf]
    %v3905 = vld [vmem:[#allocation14 + $0x10] sm:$0xf]
    %v3906 = vld [vmem:[#allocation14 + $0x14] sm:$0xf]
    %v3907 = vld [vmem:[#allocation14 + $0x18] sm:$0xf]
    %v3908 = vld [vmem:[#allocation14 + $0x1c] sm:$0xf]
    %v3909 = vld [vmem:[#allocation14 + $0x20] sm:$0xf]
    %v3910 = vld [vmem:[#allocation14 + $0x24] sm:$0xf]
    %v3911 = vld [vmem:[#allocation14 + $0x28] sm:$0xf]
    %v3912 = vld [vmem:[#allocation14 + $0x2c] sm:$0xf]
    %v3913 = vld [vmem:[#allocation14 + $0x30] sm:$0xf]
    %v3914 = vld [vmem:[#allocation14 + $0x34] sm:$0xf]
    %v3915 = vld [vmem:[#allocation14 + $0x38] sm:$0xf]
    %v3916 = vld [vmem:[#allocation14 + $0x3c] sm:$0xf]
    %v3917 = vld [vmem:[%s11] sm:$0x1]
    %v3919 = vlaneseq
    %v3920 = vshrl.u32 %v3919, 7
    %v3921 = vsub.s32 0, %v3920
    %v3922 = vrot.slane %v3917, %v3921
    %v3940 = vunpack.c.l.b16 %v3901
    %v3941 = vunpack.c.l.b16 %v3902
    %v3942 = vunpack.c.l.b16 %v3903
    %v3943 = vunpack.c.l.b16 %v3904
    %v3944 = vunpack.c.l.b16 %v3905
    %v3945 = vunpack.c.l.b16 %v3906
    %v3946 = vunpack.c.l.b16 %v3907
    %v3947 = vunpack.c.l.b16 %v3908
    %v3948 = vunpack.c.l.b16 %v3909
    %v3949 = vunpack.c.l.b16 %v3910
    %v3950 = vunpack.c.l.b16 %v3911
    %v3951 = vunpack.c.l.b16 %v3912
    %v3952 = vunpack.c.l.b16 %v3913
    %v3953 = vunpack.c.l.b16 %v3914
    %v3954 = vunpack.c.l.b16 %v3915
    %v3955 = vunpack.c.l.b16 %v3916
    %v3956 = vpack.c.b16 %v3941, %v3940
    %v3957 = vpack.c.b16 %v3943, %v3942
    %v3958 = vpack.c.b16 %v3945, %v3944
    %v3959 = vpack.c.b16 %v3947, %v3946
    %v3960 = vpack.c.b16 %v3949, %v3948
    %v3961 = vpack.c.b16 %v3951, %v3950
    %v3962 = vpack.c.b16 %v3953, %v3952
    %v3963 = vpack.c.b16 %v3955, %v3954
    %3972 = vmatprep.subr.bf16.mxu0 0
    %3973 = vmatpush1.bf16.msra.mxu0 %v3956
    %3974 = vmatprep.subr.bf16.mxu0 0
    %3975 = vmatpush1.bf16.msra.mxu0 %v3957
    %3976 = vmatprep.subr.bf16.mxu0 0
    %3977 = vmatpush1.bf16.msra.mxu0 %v3958
    %3978 = vmatprep.subr.bf16.mxu0 0
    %3979 = vmatpush1.bf16.msra.mxu0 %v3959
    %3980 = vmatprep.subr.bf16.mxu0 0
    %3981 = vmatpush1.bf16.msra.mxu0 %v3960
    %3982 = vmatprep.subr.bf16.mxu0 0
    %3983 = vmatpush1.bf16.msra.mxu0 %v3961
    %3984 = vmatprep.subr.bf16.mxu0 0
    %3985 = vmatpush1.bf16.msra.mxu0 %v3962
    %3986 = vmatprep.subr.bf16.mxu0 0
    %3987 = vmatpush1.bf16.msra.mxu0 %v3963
    %3988 = vmatprep.subr.bf16.mxu0 0
    %3989 = vmatpush1.bf16.msra.mxu0 0
    %3990 = vmatprep.subr.bf16.mxu0 0
    %3991 = vmatpush1.bf16.msra.mxu0 0
    %3992 = vmatprep.subr.bf16.mxu0 0
    %3993 = vmatpush1.bf16.msra.mxu0 0
    %3994 = vmatprep.subr.bf16.mxu0 0
    %3995 = vmatpush1.bf16.msra.mxu0 0
    %3996 = vmatprep.subr.bf16.mxu0 0
    %3997 = vmatpush1.bf16.msra.mxu0 0
    %3998 = vmatprep.subr.bf16.mxu0 0
    %3999 = vmatpush1.bf16.msra.mxu0 0
    %4000 = vmatprep.subr.bf16.mxu0 0
    %4001 = vmatpush1.bf16.msra.mxu0 0
    %4002 = vmatprep.subr.bf16.mxu0 0
    %4003 = vmatpush1.bf16.msra.mxu0 0
    %4004 = vmatprep.mubr.bf16.mxu0 0
    %4005 = vmatmul.mubr.bf16.gmra.mrb[0].mxu0 %v3869
    %v4006 = vpop.f32.mrb[0].mxu0
    %v4007 = vadd.f32 %v3922, %v4006
    %v4008 = vpop.f32.mrb[0].mxu0
    %v4009 = vpop.f32.mrb[0].mxu0
    %v4010 = vadd.f32 %v3922, %v4009
    %v4011 = vpop.f32.mrb[0].mxu0
    %4012 = vmatprep.mubr.bf16.mxu0 0
    %4013 = vmatmul.mubr.bf16.gmra.mrb[0].mxu0 %v3870
    %v4014 = vpop.f32.mrb[0].mxu0
    %v4015 = vadd.f32 %v3922, %v4014
    %v4016 = vpop.f32.mrb[0].mxu0
    %v4017 = vpop.f32.mrb[0].mxu0
    %v4018 = vadd.f32 %v3922, %v4017
    %v4019 = vpop.f32.mrb[0].mxu0
    %4020 = vmatprep.mubr.bf16.mxu0 0
    %4021 = vmatmul.mubr.bf16.gmra.mrb[0].mxu0 %v3871
    %v4022 = vpop.f32.mrb[0].mxu0
    %v4023 = vadd.f32 %v3922, %v4022
    %v4024 = vpop.f32.mrb[0].mxu0
    %v4025 = vpop.f32.mrb[0].mxu0
    %v4026 = vadd.f32 %v3922, %v4025
    %v4027 = vpop.f32.mrb[0].mxu0
    %4028 = vmatprep.mubr.bf16.mxu0 0
    %4029 = vmatmul.mubr.bf16.gmra.mrb[0].mxu0 %v3872
    %v4030 = vpop.f32.mrb[0].mxu0
    %v4031 = vadd.f32 %v3922, %v4030
    %v4032 = vpop.f32.mrb[0].mxu0
    %v4033 = vpop.f32.mrb[0].mxu0
    %v4034 = vadd.f32 %v3922, %v4033
    %v4035 = vpop.f32.mrb[0].mxu0
    %4036 = vmatprep.mubr.bf16.mxu0 0
    %4037 = vmatmul.mubr.bf16.gmra.mrb[0].mxu0 %v3873
    %v4038 = vpop.f32.mrb[0].mxu0
    %v4039 = vadd.f32 %v3922, %v4038
    %v4040 = vpop.f32.mrb[0].mxu0
    %v4041 = vpop.f32.mrb[0].mxu0
    %v4042 = vadd.f32 %v3922, %v4041
    %v4043 = vpop.f32.mrb[0].mxu0
    %4044 = vmatprep.mubr.bf16.mxu0 0
    %4045 = vmatmul.mubr.bf16.gmra.mrb[0].mxu0 %v3874
    %v4046 = vpop.f32.mrb[0].mxu0
    %v4047 = vadd.f32 %v3922, %v4046
    %v4048 = vpop.f32.mrb[0].mxu0
    %v4049 = vpop.f32.mrb[0].mxu0
    %v4050 = vadd.f32 %v3922, %v4049
    %v4051 = vpop.f32.mrb[0].mxu0
    %4052 = vmatprep.mubr.bf16.mxu0 0
    %4053 = vmatmul.mubr.bf16.gmra.mrb[0].mxu0 %v3875
    %v4054 = vpop.f32.mrb[0].mxu0
    %v4055 = vadd.f32 %v3922, %v4054
    %v4056 = vpop.f32.mrb[0].mxu0
    %v4057 = vpop.f32.mrb[0].mxu0
    %v4058 = vadd.f32 %v3922, %v4057
    %v4059 = vpop.f32.mrb[0].mxu0
    %4060 = vmatprep.mubr.bf16.mxu0 0
    %4061 = vmatmul.mubr.bf16.gmra.mrb[0].mxu0 %v3876
    %v4062 = vpop.f32.mrb[0].mxu0
    %v4063 = vadd.f32 %v3922, %v4062
    %v4064 = vpop.f32.mrb[0].mxu0
    %v4065 = vpop.f32.mrb[0].mxu0
    %v4066 = vadd.f32 %v3922, %v4065
    %v4067 = vpop.f32.mrb[0].mxu0
    %4068 = vmatprep.mubr.bf16.mxu0 0
    %4069 = vmatmul.mubr.bf16.gmra.mrb[0].mxu0 %v3877
    %v4070 = vpop.f32.mrb[0].mxu0
    %v4071 = vadd.f32 %v3922, %v4070
    %v4072 = vpop.f32.mrb[0].mxu0
    %v4073 = vpop.f32.mrb[0].mxu0
    %v4074 = vadd.f32 %v3922, %v4073
    %v4075 = vpop.f32.mrb[0].mxu0
    %4076 = vmatprep.mubr.bf16.mxu0 0
    %4077 = vmatmul.mubr.bf16.gmra.mrb[0].mxu0 %v3878
    %v4078 = vpop.f32.mrb[0].mxu0
    %v4079 = vadd.f32 %v3922, %v4078
    %v4080 = vpop.f32.mrb[0].mxu0
    %v4081 = vpop.f32.mrb[0].mxu0
    %v4082 = vadd.f32 %v3922, %v4081
    %v4083 = vpop.f32.mrb[0].mxu0
    %4084 = vmatprep.mubr.bf16.mxu0 0
    %4085 = vmatmul.mubr.bf16.gmra.mrb[0].mxu0 %v3879
    %v4086 = vpop.f32.mrb[0].mxu0
    %v4087 = vadd.f32 %v3922, %v4086
    %v4088 = vpop.f32.mrb[0].mxu0
    %v4089 = vpop.f32.mrb[0].mxu0
    %v4090 = vadd.f32 %v3922, %v4089
    %v4091 = vpop.f32.mrb[0].mxu0
    %4092 = vmatprep.mubr.bf16.mxu0 0
    %4093 = vmatmul.mubr.bf16.gmra.mrb[0].mxu0 %v3880
    %v4094 = vpop.f32.mrb[0].mxu0
    %v4095 = vadd.f32 %v3922, %v4094
    %v4096 = vpop.f32.mrb[0].mxu0
    %v4097 = vpop.f32.mrb[0].mxu0
    %v4098 = vadd.f32 %v3922, %v4097
    %v4099 = vpop.f32.mrb[0].mxu0
    %4100 = vmatprep.mubr.bf16.mxu0 0
    %4101 = vmatmul.mubr.bf16.gmra.mrb[0].mxu0 %v3881
    %v4102 = vpop.f32.mrb[0].mxu0
    %v4103 = vadd.f32 %v3922, %v4102
    %v4104 = vpop.f32.mrb[0].mxu0
    %v4105 = vpop.f32.mrb[0].mxu0
    %v4106 = vadd.f32 %v3922, %v4105
    %v4107 = vpop.f32.mrb[0].mxu0
    %4108 = vmatprep.mubr.bf16.mxu0 0
    %4109 = vmatmul.mubr.bf16.gmra.mrb[0].mxu0 %v3882
    %v4110 = vpop.f32.mrb[0].mxu0
    %v4111 = vadd.f32 %v3922, %v4110
    %v4112 = vpop.f32.mrb[0].mxu0
    %v4113 = vpop.f32.mrb[0].mxu0
    %v4114 = vadd.f32 %v3922, %v4113
    %v4115 = vpop.f32.mrb[0].mxu0
    %4116 = vmatprep.mubr.bf16.mxu0 0
    %4117 = vmatmul.mubr.bf16.gmra.mrb[0].mxu0 %v3883
    %v4118 = vpop.f32.mrb[0].mxu0
    %v4119 = vadd.f32 %v3922, %v4118
    %v4120 = vpop.f32.mrb[0].mxu0
    %v4121 = vpop.f32.mrb[0].mxu0
    %v4122 = vadd.f32 %v3922, %v4121
    %v4123 = vpop.f32.mrb[0].mxu0
    %4124 = vmatprep.mubr.bf16.mxu0 0
    %4125 = vmatmul.mubr.bf16.gmra.mrb[0].mxu0 %v3884
    %v4126 = vpop.f32.mrb[0].mxu0
    %v4127 = vadd.f32 %v3922, %v4126
    %v4128 = vpop.f32.mrb[0].mxu0
    %v4129 = vpop.f32.mrb[0].mxu0
    %v4130 = vadd.f32 %v3922, %v4129
    %v4131 = vpop.f32.mrb[0].mxu0
    %4132 = vmatprep.mubr.bf16.mxu0 0
    %4133 = vmatmul.mubr.bf16.gmra.mrb[0].mxu0 %v3885
    %v4134 = vpop.f32.mrb[0].mxu0
    %v4135 = vadd.f32 %v3922, %v4134
    %v4136 = vpop.f32.mrb[0].mxu0
    %v4137 = vpop.f32.mrb[0].mxu0
    %v4138 = vadd.f32 %v3922, %v4137
    %v4139 = vpop.f32.mrb[0].mxu0
    %4140 = vmatprep.mubr.bf16.mxu0 0
    %4141 = vmatmul.mubr.bf16.gmra.mrb[0].mxu0 %v3886
    %v4142 = vpop.f32.mrb[0].mxu0
    %v4143 = vadd.f32 %v3922, %v4142
    %v4144 = vpop.f32.mrb[0].mxu0
    %v4145 = vpop.f32.mrb[0].mxu0
    %v4146 = vadd.f32 %v3922, %v4145
    %v4147 = vpop.f32.mrb[0].mxu0
    %4148 = vmatprep.mubr.bf16.mxu0 0
    %4149 = vmatmul.mubr.bf16.gmra.mrb[0].mxu0 %v3887
    %v4150 = vpop.f32.mrb[0].mxu0
    %v4151 = vadd.f32 %v3922, %v4150
    %v4152 = vpop.f32.mrb[0].mxu0
    %v4153 = vpop.f32.mrb[0].mxu0
    %v4154 = vadd.f32 %v3922, %v4153
    %v4155 = vpop.f32.mrb[0].mxu0
    %4156 = vmatprep.mubr.bf16.mxu0 0
    %4157 = vmatmul.mubr.bf16.gmra.mrb[0].mxu0 %v3888
    %v4158 = vpop.f32.mrb[0].mxu0
    %v4159 = vadd.f32 %v3922, %v4158
    %v4160 = vpop.f32.mrb[0].mxu0
    %v4161 = vpop.f32.mrb[0].mxu0
    %v4162 = vadd.f32 %v3922, %v4161
    %v4163 = vpop.f32.mrb[0].mxu0
    %4164 = vmatprep.mubr.bf16.mxu0 0
    %4165 = vmatmul.mubr.bf16.gmra.mrb[0].mxu0 %v3889
    %v4166 = vpop.f32.mrb[0].mxu0
    %v4167 = vadd.f32 %v3922, %v4166
    %v4168 = vpop.f32.mrb[0].mxu0
    %v4169 = vpop.f32.mrb[0].mxu0
    %v4170 = vadd.f32 %v3922, %v4169
    %v4171 = vpop.f32.mrb[0].mxu0
    %4172 = vmatprep.mubr.bf16.mxu0 0
    %4173 = vmatmul.mubr.bf16.gmra.mrb[0].mxu0 %v3890
    %v4174 = vpop.f32.mrb[0].mxu0
    %v4175 = vadd.f32 %v3922, %v4174
    %v4176 = vpop.f32.mrb[0].mxu0
    %v4177 = vpop.f32.mrb[0].mxu0
    %v4178 = vadd.f32 %v3922, %v4177
    %v4179 = vpop.f32.mrb[0].mxu0
    %4180 = vmatprep.mubr.bf16.mxu0 0
    %4181 = vmatmul.mubr.bf16.gmra.mrb[0].mxu0 %v3891
    %v4182 = vpop.f32.mrb[0].mxu0
    %v4183 = vadd.f32 %v3922, %v4182
    %v4184 = vpop.f32.mrb[0].mxu0
    %v4185 = vpop.f32.mrb[0].mxu0
    %v4186 = vadd.f32 %v3922, %v4185
    %v4187 = vpop.f32.mrb[0].mxu0
    %4188 = vmatprep.mubr.bf16.mxu0 0
    %4189 = vmatmul.mubr.bf16.gmra.mrb[0].mxu0 %v3892
    %v4190 = vpop.f32.mrb[0].mxu0
    %v4191 = vadd.f32 %v3922, %v4190
    %v4192 = vpop.f32.mrb[0].mxu0
    %v4193 = vpop.f32.mrb[0].mxu0
    %v4194 = vadd.f32 %v3922, %v4193
    %v4195 = vpop.f32.mrb[0].mxu0
    %4196 = vmatprep.mubr.bf16.mxu0 0
    %4197 = vmatmul.mubr.bf16.gmra.mrb[0].mxu0 %v3893
    %v4198 = vpop.f32.mrb[0].mxu0
    %v4199 = vadd.f32 %v3922, %v4198
    %v4200 = vpop.f32.mrb[0].mxu0
    %v4201 = vpop.f32.mrb[0].mxu0
    %v4202 = vadd.f32 %v3922, %v4201
    %v4203 = vpop.f32.mrb[0].mxu0
    %4204 = vmatprep.mubr.bf16.mxu0 0
    %4205 = vmatmul.mubr.bf16.gmra.mrb[0].mxu0 %v3894
    %v4206 = vpop.f32.mrb[0].mxu0
    %v4207 = vadd.f32 %v3922, %v4206
    %v4208 = vpop.f32.mrb[0].mxu0
    %v4209 = vpop.f32.mrb[0].mxu0
    %v4210 = vadd.f32 %v3922, %v4209
    %v4211 = vpop.f32.mrb[0].mxu0
    %4212 = vmatprep.mubr.bf16.mxu0 0
    %4213 = vmatmul.mubr.bf16.gmra.mrb[0].mxu0 %v3895
    %v4214 = vpop.f32.mrb[0].mxu0
    %v4215 = vadd.f32 %v3922, %v4214
    %v4216 = vpop.f32.mrb[0].mxu0
    %v4217 = vpop.f32.mrb[0].mxu0
    %v4218 = vadd.f32 %v3922, %v4217
    %v4219 = vpop.f32.mrb[0].mxu0
    %4220 = vmatprep.mubr.bf16.mxu0 0
    %4221 = vmatmul.mubr.bf16.gmra.mrb[0].mxu0 %v3896
    %v4222 = vpop.f32.mrb[0].mxu0
    %v4223 = vadd.f32 %v3922, %v4222
    %v4224 = vpop.f32.mrb[0].mxu0
    %v4225 = vpop.f32.mrb[0].mxu0
    %v4226 = vadd.f32 %v3922, %v4225
    %v4227 = vpop.f32.mrb[0].mxu0
    %4228 = vmatprep.mubr.bf16.mxu0 0
    %4229 = vmatmul.mubr.bf16.gmra.mrb[0].mxu0 %v3897
    %v4230 = vpop.f32.mrb[0].mxu0
    %v4231 = vadd.f32 %v3922, %v4230
    %v4232 = vpop.f32.mrb[0].mxu0
    %v4233 = vpop.f32.mrb[0].mxu0
    %v4234 = vadd.f32 %v3922, %v4233
    %v4235 = vpop.f32.mrb[0].mxu0
    %4236 = vmatprep.mubr.bf16.mxu0 0
    %4237 = vmatmul.mubr.bf16.gmra.mrb[0].mxu0 %v3898
    %v4238 = vpop.f32.mrb[0].mxu0
    %v4239 = vadd.f32 %v3922, %v4238
    %v4240 = vpop.f32.mrb[0].mxu0
    %v4241 = vpop.f32.mrb[0].mxu0
    %v4242 = vadd.f32 %v3922, %v4241
    %v4243 = vpop.f32.mrb[0].mxu0
    %4244 = vmatprep.mubr.bf16.mxu0 0
    %4245 = vmatmul.mubr.bf16.gmra.mrb[0].mxu0 %v3899
    %v4246 = vpop.f32.mrb[0].mxu0
    %v4247 = vadd.f32 %v3922, %v4246
    %v4248 = vpop.f32.mrb[0].mxu0
    %v4249 = vpop.f32.mrb[0].mxu0
    %v4250 = vadd.f32 %v3922, %v4249
    %v4251 = vpop.f32.mrb[0].mxu0
    %4252 = vmatprep.mubr.bf16.mxu0 0
    %4253 = vmatmul.mubr.bf16.gmra.mrb[0].mxu0 %v3900
    %v4254 = vpop.f32.mrb[0].mxu0
    %v4255 = vadd.f32 %v3922, %v4254
    %v4256 = vpop.f32.mrb[0].mxu0
    %v4257 = vpop.f32.mrb[0].mxu0
    %v4258 = vadd.f32 %v3922, %v4257
    %v4259 = vpop.f32.mrb[0].mxu0
    %4260 = vdwg.mxu0
    %s4261 = scalar_lea.vmem [#allocation5], %s2100
    %v4262 = vld [vmem:[%s4261] sm:$0xff]
    %v4263 = vld [vmem:[%s4261 + $0x8] sm:$0xff]
    %v4264 = vld [vmem:[%s4261 + $0x10] sm:$0xff]
    %v4265 = vld [vmem:[%s4261 + $0x18] sm:$0xff]
    %v4266 = vld [vmem:[%s4261 + $0x20] sm:$0xff]
    %v4267 = vld [vmem:[%s4261 + $0x28] sm:$0xff]
    %v4268 = vld [vmem:[%s4261 + $0x30] sm:$0xff]
    %v4269 = vld [vmem:[%s4261 + $0x38] sm:$0xff]
    %v4270 = vld [vmem:[%s4261 + $0x40] sm:$0xff]
    %v4271 = vld [vmem:[%s4261 + $0x48] sm:$0xff]
    %v4272 = vld [vmem:[%s4261 + $0x50] sm:$0xff]
    %v4273 = vld [vmem:[%s4261 + $0x58] sm:$0xff]
    %v4274 = vld [vmem:[%s4261 + $0x60] sm:$0xff]
    %v4275 = vld [vmem:[%s4261 + $0x68] sm:$0xff]
    %v4276 = vld [vmem:[%s4261 + $0x70] sm:$0xff]
    %v4277 = vld [vmem:[%s4261 + $0x78] sm:$0xff]
    %v4278 = vld [vmem:[%s4261 + $0x80] sm:$0xff]
    %v4279 = vld [vmem:[%s4261 + $0x88] sm:$0xff]
    %v4280 = vld [vmem:[%s4261 + $0x90] sm:$0xff]
    %v4281 = vld [vmem:[%s4261 + $0x98] sm:$0xff]
    %v4282 = vld [vmem:[%s4261 + $0xa0] sm:$0xff]
    %v4283 = vld [vmem:[%s4261 + $0xa8] sm:$0xff]
    %v4284 = vld [vmem:[%s4261 + $0xb0] sm:$0xff]
    %v4285 = vld [vmem:[%s4261 + $0xb8] sm:$0xff]
    %v4286 = vld [vmem:[%s4261 + $0xc0] sm:$0xff]
    %v4287 = vld [vmem:[%s4261 + $0xc8] sm:$0xff]
    %v4288 = vld [vmem:[%s4261 + $0xd0] sm:$0xff]
    %v4289 = vld [vmem:[%s4261 + $0xd8] sm:$0xff]
    %v4290 = vld [vmem:[%s4261 + $0xe0] sm:$0xff]
    %v4291 = vld [vmem:[%s4261 + $0xe8] sm:$0xff]
    %v4292 = vld [vmem:[%s4261 + $0xf0] sm:$0xff]
    %v4293 = vld [vmem:[%s4261 + $0xf8] sm:$0xff]
    %v4294 = vld [vmem:[%s4261 + $0x100] sm:$0xff]
    %v4295 = vld [vmem:[%s4261 + $0x108] sm:$0xff]
    %v4296 = vld [vmem:[%s4261 + $0x110] sm:$0xff]
    %v4297 = vld [vmem:[%s4261 + $0x118] sm:$0xff]
    %v4298 = vld [vmem:[%s4261 + $0x120] sm:$0xff]
    %v4299 = vld [vmem:[%s4261 + $0x128] sm:$0xff]
    %v4300 = vld [vmem:[%s4261 + $0x130] sm:$0xff]
    %v4301 = vld [vmem:[%s4261 + $0x138] sm:$0xff]
    %v4302 = vld [vmem:[%s4261 + $0x140] sm:$0xff]
    %v4303 = vld [vmem:[%s4261 + $0x148] sm:$0xff]
    %v4304 = vld [vmem:[%s4261 + $0x150] sm:$0xff]
    %v4305 = vld [vmem:[%s4261 + $0x158] sm:$0xff]
    %v4306 = vld [vmem:[%s4261 + $0x160] sm:$0xff]
    %v4307 = vld [vmem:[%s4261 + $0x168] sm:$0xff]
    %v4308 = vld [vmem:[%s4261 + $0x170] sm:$0xff]
    %v4309 = vld [vmem:[%s4261 + $0x178] sm:$0xff]
    %v4310 = vld [vmem:[%s4261 + $0x180] sm:$0xff]
    %v4311 = vld [vmem:[%s4261 + $0x188] sm:$0xff]
    %v4312 = vld [vmem:[%s4261 + $0x190] sm:$0xff]
    %v4313 = vld [vmem:[%s4261 + $0x198] sm:$0xff]
    %v4314 = vld [vmem:[%s4261 + $0x1a0] sm:$0xff]
    %v4315 = vld [vmem:[%s4261 + $0x1a8] sm:$0xff]
    %v4316 = vld [vmem:[%s4261 + $0x1b0] sm:$0xff]
    %v4317 = vld [vmem:[%s4261 + $0x1b8] sm:$0xff]
    %v4318 = vld [vmem:[%s4261 + $0x1c0] sm:$0xff]
    %v4319 = vld [vmem:[%s4261 + $0x1c8] sm:$0xff]
    %v4320 = vld [vmem:[%s4261 + $0x1d0] sm:$0xff]
    %v4321 = vld [vmem:[%s4261 + $0x1d8] sm:$0xff]
    %v4322 = vld [vmem:[%s4261 + $0x1e0] sm:$0xff]
    %v4323 = vld [vmem:[%s4261 + $0x1e8] sm:$0xff]
    %v4324 = vld [vmem:[%s4261 + $0x1f0] sm:$0xff]
    %v4325 = vld [vmem:[%s4261 + $0x1f8] sm:$0xff]
    %v4326 = vadd.f32 %v4262, %v4007
    %v4327 = vadd.f32 %v4263, %v4010
    %v4328 = vadd.f32 %v4264, %v4015
    %v4329 = vadd.f32 %v4265, %v4018
    %v4330 = vadd.f32 %v4266, %v4023
    %v4331 = vadd.f32 %v4267, %v4026
    %v4332 = vadd.f32 %v4268, %v4031
    %v4333 = vadd.f32 %v4269, %v4034
    %v4334 = vadd.f32 %v4270, %v4039
    %v4335 = vadd.f32 %v4271, %v4042
    %v4336 = vadd.f32 %v4272, %v4047
    %v4337 = vadd.f32 %v4273, %v4050
    %v4338 = vadd.f32 %v4274, %v4055
    %v4339 = vadd.f32 %v4275, %v4058
    %v4340 = vadd.f32 %v4276, %v4063
    %v4341 = vadd.f32 %v4277, %v4066
    %v4342 = vadd.f32 %v4278, %v4071
    %v4343 = vadd.f32 %v4279, %v4074
    %v4344 = vadd.f32 %v4280, %v4079
    %v4345 = vadd.f32 %v4281, %v4082
    %v4346 = vadd.f32 %v4282, %v4087
    %v4347 = vadd.f32 %v4283, %v4090
    %v4348 = vadd.f32 %v4284, %v4095
    %v4349 = vadd.f32 %v4285, %v4098
    %v4350 = vadd.f32 %v4286, %v4103
    %v4351 = vadd.f32 %v4287, %v4106
    %v4352 = vadd.f32 %v4288, %v4111
    %v4353 = vadd.f32 %v4289, %v4114
    %v4354 = vadd.f32 %v4290, %v4119
    %v4355 = vadd.f32 %v4291, %v4122
    %v4356 = vadd.f32 %v4292, %v4127
    %v4357 = vadd.f32 %v4293, %v4130
    %v4358 = vadd.f32 %v4294, %v4135
    %v4359 = vadd.f32 %v4295, %v4138
    %v4360 = vadd.f32 %v4296, %v4143
    %v4361 = vadd.f32 %v4297, %v4146
    %v4362 = vadd.f32 %v4298, %v4151
    %v4363 = vadd.f32 %v4299, %v4154
    %v4364 = vadd.f32 %v4300, %v4159
    %v4365 = vadd.f32 %v4301, %v4162
    %v4366 = vadd.f32 %v4302, %v4167
    %v4367 = vadd.f32 %v4303, %v4170
    %v4368 = vadd.f32 %v4304, %v4175
    %v4369 = vadd.f32 %v4305, %v4178
    %v4370 = vadd.f32 %v4306, %v4183
    %v4371 = vadd.f32 %v4307, %v4186
    %v4372 = vadd.f32 %v4308, %v4191
    %v4373 = vadd.f32 %v4309, %v4194
    %v4374 = vadd.f32 %v4310, %v4199
    %v4375 = vadd.f32 %v4311, %v4202
    %v4376 = vadd.f32 %v4312, %v4207
    %v4377 = vadd.f32 %v4313, %v4210
    %v4378 = vadd.f32 %v4314, %v4215
    %v4379 = vadd.f32 %v4315, %v4218
    %v4380 = vadd.f32 %v4316, %v4223
    %v4381 = vadd.f32 %v4317, %v4226
    %v4382 = vadd.f32 %v4318, %v4231
    %v4383 = vadd.f32 %v4319, %v4234
    %v4384 = vadd.f32 %v4320, %v4239
    %v4385 = vadd.f32 %v4321, %v4242
    %v4386 = vadd.f32 %v4322, %v4247
    %v4387 = vadd.f32 %v4323, %v4250
    %v4388 = vadd.f32 %v4324, %v4255
    %v4389 = vadd.f32 %v4325, %v4258
    %4390 = vst [vmem:[#allocation16] sm:$0xff] %v4326
    %4391 = vst [vmem:[#allocation16 + $0x8] sm:$0xff] %v4327
    %4392 = vst [vmem:[#allocation16 + $0x10] sm:$0xff] %v4328
    %4393 = vst [vmem:[#allocation16 + $0x18] sm:$0xff] %v4329
    %4394 = vst [vmem:[#allocation16 + $0x20] sm:$0xff] %v4330
    %4395 = vst [vmem:[#allocation16 + $0x28] sm:$0xff] %v4331
    %4396 = vst [vmem:[#allocation16 + $0x30] sm:$0xff] %v4332
    %4397 = vst [vmem:[#allocation16 + $0x38] sm:$0xff] %v4333
    %4398 = vst [vmem:[#allocation16 + $0x40] sm:$0xff] %v4334
    %4399 = vst [vmem:[#allocation16 + $0x48] sm:$0xff] %v4335
    %4400 = vst [vmem:[#allocation16 + $0x50] sm:$0xff] %v4336
    %4401 = vst [vmem:[#allocation16 + $0x58] sm:$0xff] %v4337
    %4402 = vst [vmem:[#allocation16 + $0x60] sm:$0xff] %v4338
    %4403 = vst [vmem:[#allocation16 + $0x68] sm:$0xff] %v4339
    %4404 = vst [vmem:[#allocation16 + $0x70] sm:$0xff] %v4340
    %4405 = vst [vmem:[#allocation16 + $0x78] sm:$0xff] %v4341
    %4406 = vst [vmem:[#allocation16 + $0x80] sm:$0xff] %v4342
    %4407 = vst [vmem:[#allocation16 + $0x88] sm:$0xff] %v4343
    %4408 = vst [vmem:[#allocation16 + $0x90] sm:$0xff] %v4344
    %4409 = vst [vmem:[#allocation16 + $0x98] sm:$0xff] %v4345
    %4410 = vst [vmem:[#allocation16 + $0xa0] sm:$0xff] %v4346
    %4411 = vst [vmem:[#allocation16 + $0xa8] sm:$0xff] %v4347
    %4412 = vst [vmem:[#allocation16 + $0xb0] sm:$0xff] %v4348
    %4413 = vst [vmem:[#allocation16 + $0xb8] sm:$0xff] %v4349
    %4414 = vst [vmem:[#allocation16 + $0xc0] sm:$0xff] %v4350
    %4415 = vst [vmem:[#allocation16 + $0xc8] sm:$0xff] %v4351
    %4416 = vst [vmem:[#allocation16 + $0xd0] sm:$0xff] %v4352
    %4417 = vst [vmem:[#allocation16 + $0xd8] sm:$0xff] %v4353
    %4418 = vst [vmem:[#allocation16 + $0xe0] sm:$0xff] %v4354
    %4419 = vst [vmem:[#allocation16 + $0xe8] sm:$0xff] %v4355
    %4420 = vst [vmem:[#allocation16 + $0xf0] sm:$0xff] %v4356
    %4421 = vst [vmem:[#allocation16 + $0xf8] sm:$0xff] %v4357
    %4422 = vst [vmem:[#allocation16 + $0x100] sm:$0xff] %v4358
    %4423 = vst [vmem:[#allocation16 + $0x108] sm:$0xff] %v4359
    %4424 = vst [vmem:[#allocation16 + $0x110] sm:$0xff] %v4360
    %4425 = vst [vmem:[#allocation16 + $0x118] sm:$0xff] %v4361
    %4426 = vst [vmem:[#allocation16 + $0x120] sm:$0xff] %v4362
    %4427 = vst [vmem:[#allocation16 + $0x128] sm:$0xff] %v4363
    %4428 = vst [vmem:[#allocation16 + $0x130] sm:$0xff] %v4364
    %4429 = vst [vmem:[#allocation16 + $0x138] sm:$0xff] %v4365
    %4430 = vst [vmem:[#allocation16 + $0x140] sm:$0xff] %v4366
    %4431 = vst [vmem:[#allocation16 + $0x148] sm:$0xff] %v4367
    %4432 = vst [vmem:[#allocation16 + $0x150] sm:$0xff] %v4368
    %4433 = vst [vmem:[#allocation16 + $0x158] sm:$0xff] %v4369
    %4434 = vst [vmem:[#allocation16 + $0x160] sm:$0xff] %v4370
    %4435 = vst [vmem:[#allocation16 + $0x168] sm:$0xff] %v4371
    %4436 = vst [vmem:[#allocation16 + $0x170] sm:$0xff] %v4372
    %4437 = vst [vmem:[#allocation16 + $0x178] sm:$0xff] %v4373
    %4438 = vst [vmem:[#allocation16 + $0x180] sm:$0xff] %v4374
    %4439 = vst [vmem:[#allocation16 + $0x188] sm:$0xff] %v4375
    %4440 = vst [vmem:[#allocation16 + $0x190] sm:$0xff] %v4376
    %4441 = vst [vmem:[#allocation16 + $0x198] sm:$0xff] %v4377
    %4442 = vst [vmem:[#allocation16 + $0x1a0] sm:$0xff] %v4378
    %4443 = vst [vmem:[#allocation16 + $0x1a8] sm:$0xff] %v4379
    %4444 = vst [vmem:[#allocation16 + $0x1b0] sm:$0xff] %v4380
    %4445 = vst [vmem:[#allocation16 + $0x1b8] sm:$0xff] %v4381
    %4446 = vst [vmem:[#allocation16 + $0x1c0] sm:$0xff] %v4382
    %4447 = vst [vmem:[#allocation16 + $0x1c8] sm:$0xff] %v4383
    %4448 = vst [vmem:[#allocation16 + $0x1d0] sm:$0xff] %v4384
    %4449 = vst [vmem:[#allocation16 + $0x1d8] sm:$0xff] %v4385
    %4450 = vst [vmem:[#allocation16 + $0x1e0] sm:$0xff] %v4386
    %4451 = vst [vmem:[#allocation16 + $0x1e8] sm:$0xff] %v4387
    %4452 = vst [vmem:[#allocation16 + $0x1f0] sm:$0xff] %v4388
    %4453 = vst [vmem:[#allocation16 + $0x1f8] sm:$0xff] %v4389
    // Predicated region
    $region78: #{tpu_custom_call.1} parent=1 // pred_check
      _
    $region79: #{tpu_custom_call.1} parent=1 // pred_check_branch
      %4455 = sbr.rel (0) target = $region81
    $region80: #{tpu_custom_call.1} parent=1 // pred_region
      %s4457 = ssub.s32 8192, 8192
      %4458 = vsyncadd [#allocation7], %s4457
      %s4459 = sshll.u32 [#allocation16], 4
      %s4460 = int_to_ptr.vmem [resolvable:$true] %s4459
      %4465 = dma.vmem_to_hbm [thread:$0]  %s4460, 8192, %s12, [#allocation7], 128, 128, 8
    $region81: #{tpu_custom_call.1} parent=1 // pred_fallthru
      _
    // Predicated region
    $region82: #{tpu_custom_call.1} parent=1 // pred_check
      _
    $region83: #{tpu_custom_call.1} parent=1 // pred_check_branch
      %4467 = sbr.rel (0) target = $region85
    $region84: #{tpu_custom_call.1} parent=1 // pred_region
      %4468 = dma.done [#allocation7], 8192
    $region85: #{tpu_custom_call.1} parent=1 // pred_fallthru
      _
    %4469 = vsyncpa [#allocation6], 1
    %4470 = vsyncpa [#allocation9], 1
    %4471 = vsyncpa [#allocation12], 1
    %4472 = vsyncpa [#allocation15], 1
    %4473 = vsyncpa [#allocation7], 1

// kernel: tpu_custom_call.1
$region0: #{tpu_custom_call.1}
  #allocation0 [shape = 'u32[]', space=smem, size = 0x4, offset = 0x4, fixed_abs, tag = 'smem constant byte address 0x4 - core index']
  #allocation1 [shape = 'u32[144,128]{1,0:T(1,128)}', space=vmem, size = 0x12000, scoped, tag = 'internal scratch']
  #allocation2 [shape = 'bf16[2,256,128]{2,1,0:T(16,128)(2,1)}', space=vmem, size = 0x20000, scoped, tag = 'scratch operand']
  #allocation3 [shape = 'bf16[2,128,256]{2,1,0:T(16,128)(2,1)}', space=vmem, size = 0x20000, scoped, tag = 'scratch operand']
  #allocation4 [shape = 'bf16[2,256,128]{2,1,0:T(16,128)(2,1)}', space=vmem, size = 0x20000, scoped, tag = 'scratch operand']
  %s0 = inlined_call_operand.hbm [shape: f32[2,256,128], index: 0, kind: input, shape index: {}]
  %s1 = inlined_call_operand.vmem [shape: f32[1,128], index: 1, kind: input, shape index: {}]
  %s2 = inlined_call_operand.vmem [shape: f32[1,128], index: 2, kind: input, shape index: {}]
  %s3 = inlined_call_operand.hbm [shape: f32[128,128], index: 3, kind: input, shape index: {}]
  %s4 = inlined_call_operand.hbm [shape: bf16[128,128], index: 4, kind: input, shape index: {}]
  %s5 = inlined_call_operand.vmem [shape: f32[1,128], index: 5, kind: input, shape index: {}]
  %s6 = inlined_call_operand.hbm [shape: bf16[128,128], index: 6, kind: input, shape index: {}]
  %s7 = inlined_call_operand.vmem [shape: f32[1,128], index: 7, kind: input, shape index: {}]
  %s8 = inlined_call_operand.hbm [shape: bf16[128,128], index: 8, kind: input, shape index: {}]
  %s9 = inlined_call_operand.vmem [shape: f32[1,128], index: 9, kind: input, shape index: {}]
  %s10 = inlined_call_operand.hbm [shape: bf16[128,128], index: 10, kind: input, shape index: {}]
  %s11 = inlined_call_operand.vmem [shape: f32[1,128], index: 11, kind: input, shape index: {}]
  %s12 = inlined_call_operand.hbm [shape: f32[2,256,128], index: 12, kind: output, shape index: {}]
  %s13 = sld [smem:[#allocation0]]
  $region86: #{tpu_custom_call.1} parent=0
    _
  %s15 = ssub.s32 1, %s13
  %s16 = scalar_select 0, %s15, %s13
  $region1: #{tpu_custom_call.1} parent=0
    #allocation5 [shape = 'u8[262144]{0}', space=vmem, size = 0x40000, scoped, tag = 'input window, operand 0, single buffered']
    #allocation6 [shape = 's32[1]{0}', space=sflag, size = 0x4, scoped, tag = 'scoped memory for tpu_custom_call.1']
    #allocation7 [shape = 's32[1]{0}', space=sflag, size = 0x4, scoped, tag = 'scoped memory for tpu_custom_call.1']
    #allocation8 [shape = 'u8[65536]{0}', space=vmem, size = 0x10000, scoped, tag = 'input window, operand 3, single buffered']
    #allocation9 [shape = 's32[1]{0}', space=sflag, size = 0x4, scoped, tag = 'scoped memory for tpu_custom_call.1']
    #allocation10 [shape = 'u8[32768]{0}', space=vmem, size = 0x8000, scoped, tag = 'input window, operand 4, single buffered']
    #allocation11 [shape = 'u8[32768]{0}', space=vmem, size = 0x8000, scoped, tag = 'input window, operand 6, single buffered']
    #allocation12 [shape = 's32[1]{0}', space=sflag, size = 0x4, scoped, tag = 'scoped memory for tpu_custom_call.1']
    #allocation13 [shape = 'u8[32768]{0}', space=vmem, size = 0x8000, scoped, tag = 'input window, operand 8, single buffered']
    #allocation14 [shape = 'u8[32768]{0}', space=vmem, size = 0x8000, scoped, tag = 'input window, operand 10, single buffered']
    #allocation15 [shape = 's32[1]{0}', space=sflag, size = 0x4, scoped, tag = 'scoped memory for tpu_custom_call.1']
    #allocation16 [shape = 'u8[262144]{0}', space=vmem, size = 0x40000, scoped, tag = 'output window, operand 0, single buffered']
    %17 = vsyncpa [#allocation6], 0
    %18 = vsyncpa [#allocation9], 0
    %19 = vsyncpa [#allocation12], 0
    %20 = vsyncpa [#allocation15], 0
    %21 = vsyncpa [#allocation7], 0
    // Predicated region
    $region2: #{tpu_custom_call.1} parent=1 // pred_check
      _
    $region3: #{tpu_custom_call.1} parent=1 // pred_check_branch
      %23 = sbr.rel (0) target = $region5
    $region4: #{tpu_custom_call.1} parent=1 // pred_region
      %s25 = ssub.s32 8192, 8192
      %26 = vsyncadd [#allocation6], %s25
      %s27 = sshll.u32 [#allocation5], 4
      %s28 = int_to_ptr.vmem [resolvable:$true] %s27
      %33 = dma.hbm_to_vmem [thread:$0]  %s0, 8192, %s28, [#allocation6], 128, 128, 8
    $region5: #{tpu_custom_call.1} parent=1 // pred_fallthru
      _
    // Predicated region
    $region6: #{tpu_custom_call.1} parent=1 // pred_check
      _
    $region7: #{tpu_custom_call.1} parent=1 // pred_check_branch
      %35 = sbr.rel (0) target = $region9
    $region8: #{tpu_custom_call.1} parent=1 // pred_region
      _
    $region9: #{tpu_custom_call.1} parent=1 // pred_fallthru
      _
    // Predicated region
    $region10: #{tpu_custom_call.1} parent=1 // pred_check
      _
    $region11: #{tpu_custom_call.1} parent=1 // pred_check_branch
      %37 = sbr.rel (0) target = $region13
    $region12: #{tpu_custom_call.1} parent=1 // pred_region
      _
    $region13: #{tpu_custom_call.1} parent=1 // pred_fallthru
      _
    // Predicated region
    $region14: #{tpu_custom_call.1} parent=1 // pred_check
      _
    $region15: #{tpu_custom_call.1} parent=1 // pred_check_branch
      %39 = sbr.rel (0) target = $region17
    $region16: #{tpu_custom_call.1} parent=1 // pred_region
      %s41 = ssub.s32 2048, 2048
      %42 = vsyncadd [#allocation9], %s41
      %s43 = sshll.u32 [#allocation8], 4
      %s44 = int_to_ptr.vmem [resolvable:$true] %s43
      %49 = dma.hbm_to_vmem [thread:$0]  %s3, 2048, %s44, [#allocation9], 128, 128, 8
    $region17: #{tpu_custom_call.1} parent=1 // pred_fallthru
      _
    // Predicated region
    $region18: #{tpu_custom_call.1} parent=1 // pred_check
      _
    $region19: #{tpu_custom_call.1} parent=1 // pred_check_branch
      %51 = sbr.rel (0) target = $region21
    $region20: #{tpu_custom_call.1} parent=1 // pred_region
      %s53 = ssub.s32 1024, 1024
      %54 = vsyncadd [#allocation9], %s53
      %s55 = sshll.u32 [#allocation10], 4
      %s56 = int_to_ptr.vmem [resolvable:$true] %s55
      %61 = dma.hbm_to_vmem [thread:$0]  %s4, 1024, %s56, [#allocation9], 64, 64, 4
    $region21: #{tpu_custom_call.1} parent=1 // pred_fallthru
      _
    // Predicated region
    $region22: #{tpu_custom_call.1} parent=1 // pred_check
      _
    $region23: #{tpu_custom_call.1} parent=1 // pred_check_branch
      %63 = sbr.rel (0) target = $region25
    $region24: #{tpu_custom_call.1} parent=1 // pred_region
      _
    $region25: #{tpu_custom_call.1} parent=1 // pred_fallthru
      _
    // Predicated region
    $region26: #{tpu_custom_call.1} parent=1 // pred_check
      _
    $region27: #{tpu_custom_call.1} parent=1 // pred_check_branch
      %65 = sbr.rel (0) target = $region29
    $region28: #{tpu_custom_call.1} parent=1 // pred_region
      %s67 = ssub.s32 1024, 1024
      %68 = vsyncadd [#allocation12], %s67
      %s69 = sshll.u32 [#allocation11], 4
      %s70 = int_to_ptr.vmem [resolvable:$true] %s69
      %75 = dma.hbm_to_vmem [thread:$0]  %s6, 1024, %s70, [#allocation12], 64, 64, 4
    $region29: #{tpu_custom_call.1} parent=1 // pred_fallthru
      _
    // Predicated region
    $region30: #{tpu_custom_call.1} parent=1 // pred_check
      _
    $region31: #{tpu_custom_call.1} parent=1 // pred_check_branch
      %77 = sbr.rel (0) target = $region33
    $region32: #{tpu_custom_call.1} parent=1 // pred_region
      _
    $region33: #{tpu_custom_call.1} parent=1 // pred_fallthru
      _
    // Predicated region
    $region34: #{tpu_custom_call.1} parent=1 // pred_check
      _
    $region35: #{tpu_custom_call.1} parent=1 // pred_check_branch
      %79 = sbr.rel (0) target = $region37
    $region36: #{tpu_custom_call.1} parent=1 // pred_region
      %s81 = ssub.s32 1024, 1024
      %82 = vsyncadd [#allocation12], %s81
      %s83 = sshll.u32 [#allocation13], 4
      %s84 = int_to_ptr.vmem [resolvable:$true] %s83
      %89 = dma.hbm_to_vmem [thread:$0]  %s8, 1024, %s84, [#allocation12], 64, 64, 4
    $region37: #{tpu_custom_call.1} parent=1 // pred_fallthru
      _
    // Predicated region
    $region38: #{tpu_custom_call.1} parent=1 // pred_check
      _
    $region39: #{tpu_custom_call.1} parent=1 // pred_check_branch
      %91 = sbr.rel (0) target = $region41
    $region40: #{tpu_custom_call.1} parent=1 // pred_region
      _
    $region41: #{tpu_custom_call.1} parent=1 // pred_fallthru
      _
    // Predicated region
    $region42: #{tpu_custom_call.1} parent=1 // pred_check
      _
    $region43: #{tpu_custom_call.1} parent=1 // pred_check_branch
      %93 = sbr.rel (0) target = $region45
    $region44: #{tpu_custom_call.1} parent=1 // pred_region
      %s95 = ssub.s32 1024, 1024
      %96 = vsyncadd [#allocation15], %s95
      %s97 = sshll.u32 [#allocation14], 4
      %s98 = int_to_ptr.vmem [resolvable:$true] %s97
      %103 = dma.hbm_to_vmem [thread:$0]  %s10, 1024, %s98, [#allocation15], 64, 64, 4
    $region45: #{tpu_custom_call.1} parent=1 // pred_fallthru
      _
    // Predicated region
    $region46: #{tpu_custom_call.1} parent=1 // pred_check
      _
    $region47: #{tpu_custom_call.1} parent=1 // pred_check_branch
      %105 = sbr.rel (0) target = $region49
    $region48: #{tpu_custom_call.1} parent=1 // pred_region
      _
    $region49: #{tpu_custom_call.1} parent=1 // pred_fallthru
      _
    // Predicated region
    $region50: #{tpu_custom_call.1} parent=1 // pred_check
      _
    $region51: #{tpu_custom_call.1} parent=1 // pred_check_branch
      %107 = sbr.rel (0) target = $region53
    $region52: #{tpu_custom_call.1} parent=1 // pred_region
      %108 = dma.done [#allocation6], 8192
    $region53: #{tpu_custom_call.1} parent=1 // pred_fallthru
      _
    // Predicated region
    $region54: #{tpu_custom_call.1} parent=1 // pred_check
      _
    $region55: #{tpu_custom_call.1} parent=1 // pred_check_branch
      %110 = sbr.rel (0) target = $region57
    $region56: #{tpu_custom_call.1} parent=1 // pred_region
      %111 = dma.done [#allocation9], 2048
    $region57: #{tpu_custom_call.1} parent=1 // pred_fallthru
      _
    // Predicated region
    $region58: #{tpu_custom_call.1} parent=1 // pred_check
      _
    $region59: #{tpu_custom_call.1} parent=1 // pred_check_branch
      %113 = sbr.rel (0) target = $region61
    $region60: #{tpu_custom_call.1} parent=1 // pred_region
      %114 = dma.done [#allocation9], 1024
    $region61: #{tpu_custom_call.1} parent=1 // pred_fallthru
      _
    // Predicated region
    $region62: #{tpu_custom_call.1} parent=1 // pred_check
      _
    $region63: #{tpu_custom_call.1} parent=1 // pred_check_branch
      %116 = sbr.rel (0) target = $region65
    $region64: #{tpu_custom_call.1} parent=1 // pred_region
      %117 = dma.done [#allocation12], 1024
    $region65: #{tpu_custom_call.1} parent=1 // pred_fallthru
      _
    // Predicated region
    $region66: #{tpu_custom_call.1} parent=1 // pred_check
      _
    $region67: #{tpu_custom_call.1} parent=1 // pred_check_branch
      %119 = sbr.rel (0) target = $region69
    $region68: #{tpu_custom_call.1} parent=1 // pred_region
      %120 = dma.done [#allocation12], 1024
    $region69: #{tpu_custom_call.1} parent=1 // pred_fallthru
      _
    // Predicated region
    $region70: #{tpu_custom_call.1} parent=1 // pred_check
      _
    $region71: #{tpu_custom_call.1} parent=1 // pred_check_branch
      %122 = sbr.rel (0) target = $region73
    $region72: #{tpu_custom_call.1} parent=1 // pred_region
      %123 = dma.done [#allocation15], 1024
    $region73: #{tpu_custom_call.1} parent=1 // pred_fallthru
      _
    %p125 = scmp.eq.s32.totalorder 0, 0
    // Predicated region
    $region74: #{tpu_custom_call.1} parent=1 // pred_check
      %p126 = pneg %p125
    $region75: #{tpu_custom_call.1} parent=1 // pred_check_branch
      %128 = sbr.rel (%p126) target = $region77
    $region76: #{tpu_custom_call.1} parent=1 // pred_region
      %v129 = vld [vmem:[#allocation5] sm:$0xff]
      %v130 = vld [vmem:[#allocation5 + $0x8] sm:$0xff]
      %v131 = vld [vmem:[#allocation5 + $0x10] sm:$0xff]
      %v132 = vld [vmem:[#allocation5 + $0x18] sm:$0xff]
      %v133 = vld [vmem:[#allocation5 + $0x20] sm:$0xff]
      %v134 = vld [vmem:[#allocation5 + $0x28] sm:$0xff]
      %v135 = vld [vmem:[#allocation5 + $0x30] sm:$0xff]
      %v136 = vld [vmem:[#allocation5 + $0x38] sm:$0xff]
      %v137 = vld [vmem:[#allocation5 + $0x40] sm:$0xff]
      %v138 = vld [vmem:[#allocation5 + $0x48] sm:$0xff]
      %v139 = vld [vmem:[#allocation5 + $0x50] sm:$0xff]
      %v140 = vld [vmem:[#allocation5 + $0x58] sm:$0xff]
      %v141 = vld [vmem:[#allocation5 + $0x60] sm:$0xff]
      %v142 = vld [vmem:[#allocation5 + $0x68] sm:$0xff]
      %v143 = vld [vmem:[#allocation5 + $0x70] sm:$0xff]
      %v144 = vld [vmem:[#allocation5 + $0x78] sm:$0xff]
      %v145 = vld [vmem:[#allocation5 + $0x80] sm:$0xff]
      %v146 = vld [vmem:[#allocation5 + $0x88] sm:$0xff]
      %v147 = vld [vmem:[#allocation5 + $0x90] sm:$0xff]
      %v148 = vld [vmem:[#allocation5 + $0x98] sm:$0xff]
      %v149 = vld [vmem:[#allocation5 + $0xa0] sm:$0xff]
      %v150 = vld [vmem:[#allocation5 + $0xa8] sm:$0xff]
      %v151 = vld [vmem:[#allocation5 + $0xb0] sm:$0xff]
      %v152 = vld [vmem:[#allocation5 + $0xb8] sm:$0xff]
      %v153 = vld [vmem:[#allocation5 + $0xc0] sm:$0xff]
      %v154 = vld [vmem:[#allocation5 + $0xc8] sm:$0xff]
      %v155 = vld [vmem:[#allocation5 + $0xd0] sm:$0xff]
      %v156 = vld [vmem:[#allocation5 + $0xd8] sm:$0xff]
      %v157 = vld [vmem:[#allocation5 + $0xe0] sm:$0xff]
      %v158 = vld [vmem:[#allocation5 + $0xe8] sm:$0xff]
      %v159 = vld [vmem:[#allocation5 + $0xf0] sm:$0xff]
      %v160 = vld [vmem:[#allocation5 + $0xf8] sm:$0xff]
      %v161 = vld [vmem:[#allocation5 + $0x100] sm:$0xff]
      %v162 = vld [vmem:[#allocation5 + $0x108] sm:$0xff]
      %v163 = vld [vmem:[#allocation5 + $0x110] sm:$0xff]
      %v164 = vld [vmem:[#allocation5 + $0x118] sm:$0xff]
      %v165 = vld [vmem:[#allocation5 + $0x120] sm:$0xff]
      %v166 = vld [vmem:[#allocation5 + $0x128] sm:$0xff]
      %v167 = vld [vmem:[#allocation5 + $0x130] sm:$0xff]
      %v168 = vld [vmem:[#allocation5 + $0x138] sm:$0xff]
      %v169 = vld [vmem:[#allocation5 + $0x140] sm:$0xff]
      %v170 = vld [vmem:[#allocation5 + $0x148] sm:$0xff]
      %v171 = vld [vmem:[#allocation5 + $0x150] sm:$0xff]
      %v172 = vld [vmem:[#allocation5 + $0x158] sm:$0xff]
      %v173 = vld [vmem:[#allocation5 + $0x160] sm:$0xff]
      %v174 = vld [vmem:[#allocation5 + $0x168] sm:$0xff]
      %v175 = vld [vmem:[#allocation5 + $0x170] sm:$0xff]
      %v176 = vld [vmem:[#allocation5 + $0x178] sm:$0xff]
      %v177 = vld [vmem:[#allocation5 + $0x180] sm:$0xff]
      %v178 = vld [vmem:[#allocation5 + $0x188] sm:$0xff]
      %v179 = vld [vmem:[#allocation5 + $0x190] sm:$0xff]
      %v180 = vld [vmem:[#allocation5 + $0x198] sm:$0xff]
      %v181 = vld [vmem:[#allocation5 + $0x1a0] sm:$0xff]
      %v182 = vld [vmem:[#allocation5 + $0x1a8] sm:$0xff]
      %v183 = vld [vmem:[#allocation5 + $0x1b0] sm:$0xff]
      %v184 = vld [vmem:[#allocation5 + $0x1b8] sm:$0xff]
      %v185 = vld [vmem:[#allocation5 + $0x1c0] sm:$0xff]
      %v186 = vld [vmem:[#allocation5 + $0x1c8] sm:$0xff]
      %v187 = vld [vmem:[#allocation5 + $0x1d0] sm:$0xff]
      %v188 = vld [vmem:[#allocation5 + $0x1d8] sm:$0xff]
      %v189 = vld [vmem:[#allocation5 + $0x1e0] sm:$0xff]
      %v190 = vld [vmem:[#allocation5 + $0x1e8] sm:$0xff]
      %v191 = vld [vmem:[#allocation5 + $0x1f0] sm:$0xff]
      %v192 = vld [vmem:[#allocation5 + $0x1f8] sm:$0xff]
      %v193 = vadd.f32 %v129, %v130
      %v194 = vadd.f32 %v193, %v131
      %v195 = vadd.f32 %v194, %v132
      %v196 = vadd.f32 %v195, %v133
      %v197 = vadd.f32 %v196, %v134
      %v198 = vadd.f32 %v197, %v135
      %v199 = vadd.f32 %v198, %v136
      %v200 = vadd.f32 %v199, %v137
      %v201 = vadd.f32 %v200, %v138
      %v202 = vadd.f32 %v201, %v139
      %v203 = vadd.f32 %v202, %v140
      %v204 = vadd.f32 %v203, %v141
      %v205 = vadd.f32 %v204, %v142
      %v206 = vadd.f32 %v205, %v143
      %v207 = vadd.f32 %v206, %v144
      %v208 = vadd.f32 %v207, %v145
      %v209 = vadd.f32 %v208, %v146
      %v210 = vadd.f32 %v209, %v147
      %v211 = vadd.f32 %v210, %v148
      %v212 = vadd.f32 %v211, %v149
      %v213 = vadd.f32 %v212, %v150
      %v214 = vadd.f32 %v213, %v151
      %v215 = vadd.f32 %v214, %v152
      %v216 = vadd.f32 %v215, %v153
      %v217 = vadd.f32 %v216, %v154
      %v218 = vadd.f32 %v217, %v155
      %v219 = vadd.f32 %v218, %v156
      %v220 = vadd.f32 %v219, %v157
      %v221 = vadd.f32 %v220, %v158
      %v222 = vadd.f32 %v221, %v159
      %v223 = vadd.f32 %v222, %v160
      %v224 = vrot.slane %v223, 4
      %v225 = vadd.f32 %v223, %v224
      %v226 = vrot.slane %v225, 2
      %v227 = vadd.f32 %v225, %v226
      %v228 = vrot.slane %v227, 1
      %v229 = vadd.f32 %v227, %v228
      %v230 = vadd.f32 %v161, %v162
      %v231 = vadd.f32 %v230, %v163
      %v232 = vadd.f32 %v231, %v164
      %v233 = vadd.f32 %v232, %v165
      %v234 = vadd.f32 %v233, %v166
      %v235 = vadd.f32 %v234, %v167
      %v236 = vadd.f32 %v235, %v168
      %v237 = vadd.f32 %v236, %v169
      %v238 = vadd.f32 %v237, %v170
      %v239 = vadd.f32 %v238, %v171
      %v240 = vadd.f32 %v239, %v172
      %v241 = vadd.f32 %v240, %v173
      %v242 = vadd.f32 %v241, %v174
      %v243 = vadd.f32 %v242, %v175
      %v244 = vadd.f32 %v243, %v176
      %v245 = vadd.f32 %v244, %v177
      %v246 = vadd.f32 %v245, %v178
      %v247 = vadd.f32 %v246, %v179
      %v248 = vadd.f32 %v247, %v180
      %v249 = vadd.f32 %v248, %v181
      %v250 = vadd.f32 %v249, %v182
      %v251 = vadd.f32 %v250, %v183
      %v252 = vadd.f32 %v251, %v184
      %v253 = vadd.f32 %v252, %v185
      %v254 = vadd.f32 %v253, %v186
      %v255 = vadd.f32 %v254, %v187
      %v256 = vadd.f32 %v255, %v188
      %v257 = vadd.f32 %v256, %v189
      %v258 = vadd.f32 %v257, %v190
      %v259 = vadd.f32 %v258, %v191
      %v260 = vadd.f32 %v259, %v192
      %v261 = vrot.slane %v260, 4
      %v262 = vadd.f32 %v260, %v261
      %v263 = vrot.slane %v262, 2
      %v264 = vadd.f32 %v262, %v263
      %v265 = vrot.slane %v264, 1
      %v266 = vadd.f32 %v264, %v265
      %v267 = vrcp.pop 256.0
      %v268 = vmul.f32 %v229, %v267
      %v269 = vmul.f32 %v266, %v267
      %v270 = vmul.f32 %v129, %v129
      %v271 = vmul.f32 %v130, %v130
      %v272 = vmul.f32 %v131, %v131
      %v273 = vmul.f32 %v132, %v132
      %v274 = vmul.f32 %v133, %v133
      %v275 = vmul.f32 %v134, %v134
      %v276 = vmul.f32 %v135, %v135
      %v277 = vmul.f32 %v136, %v136
      %v278 = vmul.f32 %v137, %v137
      %v279 = vmul.f32 %v138, %v138
      %v280 = vmul.f32 %v139, %v139
      %v281 = vmul.f32 %v140, %v140
      %v282 = vmul.f32 %v141, %v141
      %v283 = vmul.f32 %v142, %v142
      %v284 = vmul.f32 %v143, %v143
      %v285 = vmul.f32 %v144, %v144
      %v286 = vmul.f32 %v145, %v145
      %v287 = vmul.f32 %v146, %v146
      %v288 = vmul.f32 %v147, %v147
      %v289 = vmul.f32 %v148, %v148
      %v290 = vmul.f32 %v149, %v149
      %v291 = vmul.f32 %v150, %v150
      %v292 = vmul.f32 %v151, %v151
      %v293 = vmul.f32 %v152, %v152
      %v294 = vmul.f32 %v153, %v153
      %v295 = vmul.f32 %v154, %v154
      %v296 = vmul.f32 %v155, %v155
      %v297 = vmul.f32 %v156, %v156
      %v298 = vmul.f32 %v157, %v157
      %v299 = vmul.f32 %v158, %v158
      %v300 = vmul.f32 %v159, %v159
      %v301 = vmul.f32 %v160, %v160
      %v302 = vmul.f32 %v161, %v161
      %v303 = vmul.f32 %v162, %v162
      %v304 = vmul.f32 %v163, %v163
      %v305 = vmul.f32 %v164, %v164
      %v306 = vmul.f32 %v165, %v165
      %v307 = vmul.f32 %v166, %v166
      %v308 = vmul.f32 %v167, %v167
      %v309 = vmul.f32 %v168, %v168
      %v310 = vmul.f32 %v169, %v169
      %v311 = vmul.f32 %v170, %v170
      %v312 = vmul.f32 %v171, %v171
      %v313 = vmul.f32 %v172, %v172
      %v314 = vmul.f32 %v173, %v173
      %v315 = vmul.f32 %v174, %v174
      %v316 = vmul.f32 %v175, %v175
      %v317 = vmul.f32 %v176, %v176
      %v318 = vmul.f32 %v177, %v177
      %v319 = vmul.f32 %v178, %v178
      %v320 = vmul.f32 %v179, %v179
      %v321 = vmul.f32 %v180, %v180
      %v322 = vmul.f32 %v181, %v181
      %v323 = vmul.f32 %v182, %v182
      %v324 = vmul.f32 %v183, %v183
      %v325 = vmul.f32 %v184, %v184
      %v326 = vmul.f32 %v185, %v185
      %v327 = vmul.f32 %v186, %v186
      %v328 = vmul.f32 %v187, %v187
      %v329 = vmul.f32 %v188, %v188
      %v330 = vmul.f32 %v189, %v189
      %v331 = vmul.f32 %v190, %v190
      %v332 = vmul.f32 %v191, %v191
      %v333 = vmul.f32 %v192, %v192
      %v334 = vadd.f32 %v270, %v271
      %v335 = vadd.f32 %v334, %v272
      %v336 = vadd.f32 %v335, %v273
      %v337 = vadd.f32 %v336, %v274
      %v338 = vadd.f32 %v337, %v275
      %v339 = vadd.f32 %v338, %v276
      %v340 = vadd.f32 %v339, %v277
      %v341 = vadd.f32 %v340, %v278
      %v342 = vadd.f32 %v341, %v279
      %v343 = vadd.f32 %v342, %v280
      %v344 = vadd.f32 %v343, %v281
      %v345 = vadd.f32 %v344, %v282
      %v346 = vadd.f32 %v345, %v283
      %v347 = vadd.f32 %v346, %v284
      %v348 = vadd.f32 %v347, %v285
      %v349 = vadd.f32 %v348, %v286
      %v350 = vadd.f32 %v349, %v287
      %v351 = vadd.f32 %v350, %v288
      %v352 = vadd.f32 %v351, %v289
      %v353 = vadd.f32 %v352, %v290
      %v354 = vadd.f32 %v353, %v291
      %v355 = vadd.f32 %v354, %v292
      %v356 = vadd.f32 %v355, %v293
      %v357 = vadd.f32 %v356, %v294
      %v358 = vadd.f32 %v357, %v295
      %v359 = vadd.f32 %v358, %v296
      %v360 = vadd.f32 %v359, %v297
      %v361 = vadd.f32 %v360, %v298
      %v362 = vadd.f32 %v361, %v299
      %v363 = vadd.f32 %v362, %v300
      %v364 = vadd.f32 %v363, %v301
      %v365 = vrot.slane %v364, 4
      %v366 = vadd.f32 %v364, %v365
      %v367 = vrot.slane %v366, 2
      %v368 = vadd.f32 %v366, %v367
      %v369 = vrot.slane %v368, 1
      %v370 = vadd.f32 %v368, %v369
      %v371 = vadd.f32 %v302, %v303
      %v372 = vadd.f32 %v371, %v304
      %v373 = vadd.f32 %v372, %v305
      %v374 = vadd.f32 %v373, %v306
      %v375 = vadd.f32 %v374, %v307
      %v376 = vadd.f32 %v375, %v308
      %v377 = vadd.f32 %v376, %v309
      %v378 = vadd.f32 %v377, %v310
      %v379 = vadd.f32 %v378, %v311
      %v380 = vadd.f32 %v379, %v312
      %v381 = vadd.f32 %v380, %v313
      %v382 = vadd.f32 %v381, %v314
      %v383 = vadd.f32 %v382, %v315
      %v384 = vadd.f32 %v383, %v316
      %v385 = vadd.f32 %v384, %v317
      %v386 = vadd.f32 %v385, %v318
      %v387 = vadd.f32 %v386, %v319
      %v388 = vadd.f32 %v387, %v320
      %v389 = vadd.f32 %v388, %v321
      %v390 = vadd.f32 %v389, %v322
      %v391 = vadd.f32 %v390, %v323
      %v392 = vadd.f32 %v391, %v324
      %v393 = vadd.f32 %v392, %v325
      %v394 = vadd.f32 %v393, %v326
      %v395 = vadd.f32 %v394, %v327
      %v396 = vadd.f32 %v395, %v328
      %v397 = vadd.f32 %v396, %v329
      %v398 = vadd.f32 %v397, %v330
      %v399 = vadd.f32 %v398, %v331
      %v400 = vadd.f32 %v399, %v332
      %v401 = vadd.f32 %v400, %v333
      %v402 = vrot.slane %v401, 4
      %v403 = vadd.f32 %v401, %v402
      %v404 = vrot.slane %v403, 2
      %v405 = vadd.f32 %v403, %v404
      %v406 = vrot.slane %v405, 1
      %v407 = vadd.f32 %v405, %v406
      %v408 = vmul.f32 %v370, %v267
      %v409 = vmul.f32 %v407, %v267
      %vm412 = vcmask 1041409
      %v413 = vsel %vm412, %v269, %v268
      %vm417 = vcmask 1043459
      %v418 = vsel %vm417, %v409, %v408
      %vm420 = vcmask 1041408
      %v421 = vsel %vm420, %v413, %v418
      %v422 = vld [vmem:[#allocation8] sm:$0xff]
      %v423 = vld [vmem:[#allocation8 + $0x8] sm:$0xff]
      %v424 = vld [vmem:[#allocation8 + $0x10] sm:$0xff]
      %v425 = vld [vmem:[#allocation8 + $0x18] sm:$0xff]
      %v426 = vld [vmem:[#allocation8 + $0x20] sm:$0xff]
      %v427 = vld [vmem:[#allocation8 + $0x28] sm:$0xff]
      %v428 = vld [vmem:[#allocation8 + $0x30] sm:$0xff]
      %v429 = vld [vmem:[#allocation8 + $0x38] sm:$0xff]
      %v430 = vld [vmem:[#allocation8 + $0x40] sm:$0xff]
      %v431 = vld [vmem:[#allocation8 + $0x48] sm:$0xff]
      %v432 = vld [vmem:[#allocation8 + $0x50] sm:$0xff]
      %v433 = vld [vmem:[#allocation8 + $0x58] sm:$0xff]
      %v434 = vld [vmem:[#allocation8 + $0x60] sm:$0xff]
      %v435 = vld [vmem:[#allocation8 + $0x68] sm:$0xff]
      %v436 = vld [vmem:[#allocation8 + $0x70] sm:$0xff]
      %v437 = vld [vmem:[#allocation8 + $0x78] sm:$0xff]
      %438 = vmatprep.subr.mxu0 0.0
      %439 = vmatpush1.msra.mxu0 %v422
      %440 = vmatprep.subr.mxu0 0.0
      %441 = vmatpush1.msra.mxu0 %v423
      %442 = vmatprep.subr.mxu0 0.0
      %443 = vmatpush1.msra.mxu0 %v424
      %444 = vmatprep.subr.mxu0 0.0
      %445 = vmatpush1.msra.mxu0 %v425
      %446 = vmatprep.subr.mxu0 0.0
      %447 = vmatpush1.msra.mxu0 %v426
      %448 = vmatprep.subr.mxu0 0.0
      %449 = vmatpush1.msra.mxu0 %v427
      %450 = vmatprep.subr.mxu0 0.0
      %451 = vmatpush1.msra.mxu0 %v428
      %452 = vmatprep.subr.mxu0 0.0
      %453 = vmatpush1.msra.mxu0 %v429
      %454 = vmatprep.subr.mxu0 0.0
      %455 = vmatpush1.msra.mxu0 %v430
      %456 = vmatprep.subr.mxu0 0.0
      %457 = vmatpush1.msra.mxu0 %v431
      %458 = vmatprep.subr.mxu0 0.0
      %459 = vmatpush1.msra.mxu0 %v432
      %460 = vmatprep.subr.mxu0 0.0
      %461 = vmatpush1.msra.mxu0 %v433
      %462 = vmatprep.subr.mxu0 0.0
      %463 = vmatpush1.msra.mxu0 %v434
      %464 = vmatprep.subr.mxu0 0.0
      %465 = vmatpush1.msra.mxu0 %v435
      %466 = vmatprep.subr.mxu0 0.0
      %467 = vmatpush1.msra.mxu0 %v436
      %468 = vmatprep.subr.mxu0 0.0
      %469 = vmatpush1.msra.mxu0 %v437
      %470 = vmatprep.subr.mxu0 0.0
      %471 = vmatpush1.msra.mxu0 0.0
      %472 = vmatprep.subr.mxu0 0.0
      %473 = vmatpush1.msra.mxu0 0.0
      %474 = vmatprep.subr.mxu0 0.0
      %475 = vmatpush1.msra.mxu0 0.0
      %476 = vmatprep.subr.mxu0 0.0
      %477 = vmatpush1.msra.mxu0 0.0
      %478 = vmatprep.subr.mxu0 0.0
      %479 = vmatpush1.msra.mxu0 0.0
      %480 = vmatprep.subr.mxu0 0.0
      %481 = vmatpush1.msra.mxu0 0.0
      %482 = vmatprep.subr.mxu0 0.0
      %483 = vmatpush1.msra.mxu0 0.0
      %484 = vmatprep.subr.mxu0 0.0
      %485 = vmatpush1.msra.mxu0 0.0
      %486 = vmatprep.subr.mxu0 0.0
      %487 = vmatpush1.msra.mxu0 0.0
      %488 = vmatprep.subr.mxu0 0.0
      %489 = vmatpush1.msra.mxu0 0.0
      %490 = vmatprep.subr.mxu0 0.0
      %491 = vmatpush1.msra.mxu0 0.0
      %492 = vmatprep.subr.mxu0 0.0
      %493 = vmatpush1.msra.mxu0 0.0
      %494 = vmatprep.subr.mxu0 0.0
      %495 = vmatpush1.msra.mxu0 0.0
      %496 = vmatprep.subr.mxu0 0.0
      %497 = vmatpush1.msra.mxu0 0.0
      %498 = vmatprep.subr.mxu0 0.0
      %499 = vmatpush1.msra.mxu0 0.0
      %500 = vmatprep.subr.mxu0 0.0
      %501 = vmatpush1.msra.mxu0 0.0
      %502 = vmatprep.mubr.f32.mxu0 0.0
      %503 = vmatmul.mubr.f32.gmra.mrb[0].mxu0 %v421
      %v504 = vpop.f32.mrb[0].mxu0
      %v505 = vadd.f32 0.0, %v504
      %v506 = vpop.f32.mrb[0].mxu0
      %507 = vdwg.mxu0
      %v508 = vmul.f32 %v505, %v505
      %v510 = vrot.slane %v508, 6
      %v512 = vsub.f32 %v505, %v510
      %v513 = vmax.f32 %v512, 0.0
      %v514 = vadd.f32 %v513, 1e-06
      %v515 = vrsqrt.pop %v514
      %v516 = vld [vmem:[%s1] sm:$0x1]
      %v518 = vlaneseq
      %v519 = vshrl.u32 %v518, 7
      %v520 = vsub.s32 0, %v519
      %v521 = vrot.slane %v516, %v520
      %v523 = vmul.f32 %v515, %v521
      %v524 = vld [vmem:[%s2] sm:$0x1]
      %v526 = vrot.slane %v523, 2
      %v528 = vmul.f32 %v505, %v526
      %v530 = vlaneseq
      %v531 = vshrl.u32 %v530, 7
      %v532 = vsub.s32 0, %v531
      %v533 = vrot.slane %v524, %v532
      %v535 = vsub.f32 %v533, %v528
      %v537 = vunpack.c.l.s4 1966171168
      %v538 = vunpack.c.0.s8 %v537
      %v539 = vlaneseq
      %v540 = vshrl.u32 %v539, 7
      %v541 = vsub.s32 %v538, %v540
      %v542 = vrot.slane %v523, %v541
      %v543 = vcombine.high %v542, %v542
      %v545 = vunpack.c.l.s4 1966171168
      %v546 = vunpack.c.0.s8 %v545
      %v547 = vlaneseq
      %v548 = vshrl.u32 %v547, 7
      %v549 = vsub.s32 %v546, %v548
      %v550 = vrot.slane %v542, %v549
      %v552 = vunpack.c.l.s4 1966171168
      %v553 = vunpack.c.0.s8 %v552
      %v554 = vlaneseq
      %v555 = vshrl.u32 %v554, 7
      %v556 = vsub.s32 %v553, %v555
      %v557 = vrot.slane %v543, %v556
      %v558 = vcombine.high %v550, %v550
      %v559 = vcombine.high %v557, %v557
      %v560 = vlaneseq
      %v561 = vshrl.u32 %v560, 7
      %v562 = vsub.s32 0, %v561
      %v563 = vrot.slane %v558, %v562
      %v564 = vlaneseq
      %v565 = vshrl.u32 %v564, 7
      %v566 = vsub.s32 0, %v565
      %v567 = vrot.slane %v559, %v566
      %v570 = vmul.f32 %v129, %v563
      %v571 = vmul.f32 %v130, %v563
      %v572 = vmul.f32 %v131, %v563
      %v573 = vmul.f32 %v132, %v563
      %v574 = vmul.f32 %v133, %v563
      %v575 = vmul.f32 %v134, %v563
      %v576 = vmul.f32 %v135, %v563
      %v577 = vmul.f32 %v136, %v563
      %v578 = vmul.f32 %v137, %v563
      %v579 = vmul.f32 %v138, %v563
      %v580 = vmul.f32 %v139, %v563
      %v581 = vmul.f32 %v140, %v563
      %v582 = vmul.f32 %v141, %v563
      %v583 = vmul.f32 %v142, %v563
      %v584 = vmul.f32 %v143, %v563
      %v585 = vmul.f32 %v144, %v563
      %v586 = vmul.f32 %v145, %v563
      %v587 = vmul.f32 %v146, %v563
      %v588 = vmul.f32 %v147, %v563
      %v589 = vmul.f32 %v148, %v563
      %v590 = vmul.f32 %v149, %v563
      %v591 = vmul.f32 %v150, %v563
      %v592 = vmul.f32 %v151, %v563
      %v593 = vmul.f32 %v152, %v563
      %v594 = vmul.f32 %v153, %v563
      %v595 = vmul.f32 %v154, %v563
      %v596 = vmul.f32 %v155, %v563
      %v597 = vmul.f32 %v156, %v563
      %v598 = vmul.f32 %v157, %v563
      %v599 = vmul.f32 %v158, %v563
      %v600 = vmul.f32 %v159, %v563
      %v601 = vmul.f32 %v160, %v563
      %v602 = vmul.f32 %v161, %v567
      %v603 = vmul.f32 %v162, %v567
      %v604 = vmul.f32 %v163, %v567
      %v605 = vmul.f32 %v164, %v567
      %v606 = vmul.f32 %v165, %v567
      %v607 = vmul.f32 %v166, %v567
      %v608 = vmul.f32 %v167, %v567
      %v609 = vmul.f32 %v168, %v567
      %v610 = vmul.f32 %v169, %v567
      %v611 = vmul.f32 %v170, %v567
      %v612 = vmul.f32 %v171, %v567
      %v613 = vmul.f32 %v172, %v567
      %v614 = vmul.f32 %v173, %v567
      %v615 = vmul.f32 %v174, %v567
      %v616 = vmul.f32 %v175, %v567
      %v617 = vmul.f32 %v176, %v567
      %v618 = vmul.f32 %v177, %v567
      %v619 = vmul.f32 %v178, %v567
      %v620 = vmul.f32 %v179, %v567
      %v621 = vmul.f32 %v180, %v567
      %v622 = vmul.f32 %v181, %v567
      %v623 = vmul.f32 %v182, %v567
      %v624 = vmul.f32 %v183, %v567
      %v625 = vmul.f32 %v184, %v567
      %v626 = vmul.f32 %v185, %v567
      %v627 = vmul.f32 %v186, %v567
      %v628 = vmul.f32 %v187, %v567
      %v629 = vmul.f32 %v188, %v567
      %v630 = vmul.f32 %v189, %v567
      %v631 = vmul.f32 %v190, %v567
      %v632 = vmul.f32 %v191, %v567
      %v633 = vmul.f32 %v192, %v567
      %v636 = vunpack.c.l.s4 1966171168
      %v637 = vunpack.c.0.s8 %v636
      %v638 = vlaneseq
      %v639 = vshrl.u32 %v638, 7
      %v640 = vsub.s32 %v637, %v639
      %v641 = vrot.slane %v535, %v640
      %v642 = vcombine.high %v641, %v641
      %v644 = vunpack.c.l.s4 1966171168
      %v645 = vunpack.c.0.s8 %v644
      %v646 = vlaneseq
      %v647 = vshrl.u32 %v646, 7
      %v648 = vsub.s32 %v645, %v647
      %v649 = vrot.slane %v641, %v648
      %v651 = vunpack.c.l.s4 1966171168
      %v652 = vunpack.c.0.s8 %v651
      %v653 = vlaneseq
      %v654 = vshrl.u32 %v653, 7
      %v655 = vsub.s32 %v652, %v654
      %v656 = vrot.slane %v642, %v655
      %v657 = vlaneseq
      %v658 = vshrl.u32 %v657, 7
      %v659 = vsub.s32 0, %v658
      %v660 = vrot.slane %v649, %v659
      %v661 = vlaneseq
      %v662 = vshrl.u32 %v661, 7
      %v663 = vsub.s32 0, %v662
      %v664 = vrot.slane %v656, %v663
      %v667 = vadd.f32 %v570, %v660
      %v668 = vadd.f32 %v571, %v660
      %v669 = vadd.f32 %v572, %v660
      %v670 = vadd.f32 %v573, %v660
      %v671 = vadd.f32 %v574, %v660
      %v672 = vadd.f32 %v575, %v660
      %v673 = vadd.f32 %v576, %v660
      %v674 = vadd.f32 %v577, %v660
      %v675 = vadd.f32 %v578, %v660
      %v676 = vadd.f32 %v579, %v660
      %v677 = vadd.f32 %v580, %v660
      %v678 = vadd.f32 %v581, %v660
      %v679 = vadd.f32 %v582, %v660
      %v680 = vadd.f32 %v583, %v660
      %v681 = vadd.f32 %v584, %v660
      %v682 = vadd.f32 %v585, %v660
      %v683 = vadd.f32 %v586, %v660
      %v684 = vadd.f32 %v587, %v660
      %v685 = vadd.f32 %v588, %v660
      %v686 = vadd.f32 %v589, %v660
      %v687 = vadd.f32 %v590, %v660
      %v688 = vadd.f32 %v591, %v660
      %v689 = vadd.f32 %v592, %v660
      %v690 = vadd.f32 %v593, %v660
      %v691 = vadd.f32 %v594, %v660
      %v692 = vadd.f32 %v595, %v660
      %v693 = vadd.f32 %v596, %v660
      %v694 = vadd.f32 %v597, %v660
      %v695 = vadd.f32 %v598, %v660
      %v696 = vadd.f32 %v599, %v660
      %v697 = vadd.f32 %v600, %v660
      %v698 = vadd.f32 %v601, %v660
      %v699 = vadd.f32 %v602, %v664
      %v700 = vadd.f32 %v603, %v664
      %v701 = vadd.f32 %v604, %v664
      %v702 = vadd.f32 %v605, %v664
      %v703 = vadd.f32 %v606, %v664
      %v704 = vadd.f32 %v607, %v664
      %v705 = vadd.f32 %v608, %v664
      %v706 = vadd.f32 %v609, %v664
      %v707 = vadd.f32 %v610, %v664
      %v708 = vadd.f32 %v611, %v664
      %v709 = vadd.f32 %v612, %v664
      %v710 = vadd.f32 %v613, %v664
      %v711 = vadd.f32 %v614, %v664
      %v712 = vadd.f32 %v615, %v664
      %v713 = vadd.f32 %v616, %v664
      %v714 = vadd.f32 %v617, %v664
      %v715 = vadd.f32 %v618, %v664
      %v716 = vadd.f32 %v619, %v664
      %v717 = vadd.f32 %v620, %v664
      %v718 = vadd.f32 %v621, %v664
      %v719 = vadd.f32 %v622, %v664
      %v720 = vadd.f32 %v623, %v664
      %v721 = vadd.f32 %v624, %v664
      %v722 = vadd.f32 %v625, %v664
      %v723 = vadd.f32 %v626, %v664
      %v724 = vadd.f32 %v627, %v664
      %v725 = vadd.f32 %v628, %v664
      %v726 = vadd.f32 %v629, %v664
      %v727 = vadd.f32 %v630, %v664
      %v728 = vadd.f32 %v631, %v664
      %v729 = vadd.f32 %v632, %v664
      %v730 = vadd.f32 %v633, %v664
      %v731 = vpack.c.bf16 %v668, %v667
      %v732 = vpack.c.bf16 %v670, %v669
      %v733 = vpack.c.bf16 %v672, %v671
      %v734 = vpack.c.bf16 %v674, %v673
      %v735 = vpack.c.bf16 %v676, %v675
      %v736 = vpack.c.bf16 %v678, %v677
      %v737 = vpack.c.bf16 %v680, %v679
      %v738 = vpack.c.bf16 %v682, %v681
      %v739 = vpack.c.bf16 %v684, %v683
      %v740 = vpack.c.bf16 %v686, %v685
      %v741 = vpack.c.bf16 %v688, %v687
      %v742 = vpack.c.bf16 %v690, %v689
      %v743 = vpack.c.bf16 %v692, %v691
      %v744 = vpack.c.bf16 %v694, %v693
      %v745 = vpack.c.bf16 %v696, %v695
      %v746 = vpack.c.bf16 %v698, %v697
      %v747 = vpack.c.bf16 %v700, %v699
      %v748 = vpack.c.bf16 %v702, %v701
      %v749 = vpack.c.bf16 %v704, %v703
      %v750 = vpack.c.bf16 %v706, %v705
      %v751 = vpack.c.bf16 %v708, %v707
      %v752 = vpack.c.bf16 %v710, %v709
      %v753 = vpack.c.bf16 %v712, %v711
      %v754 = vpack.c.bf16 %v714, %v713
      %v755 = vpack.c.bf16 %v716, %v715
      %v756 = vpack.c.bf16 %v718, %v717
      %v757 = vpack.c.bf16 %v720, %v719
      %v758 = vpack.c.bf16 %v722, %v721
      %v759 = vpack.c.bf16 %v724, %v723
      %v760 = vpack.c.bf16 %v726, %v725
      %v761 = vpack.c.bf16 %v728, %v727
      %v762 = vpack.c.bf16 %v730, %v729
      %v763 = vld [vmem:[#allocation10] sm:$0xf]
      %v764 = vld [vmem:[#allocation10 + $0x4] sm:$0xf]
      %v765 = vld [vmem:[#allocation10 + $0x8] sm:$0xf]
      %v766 = vld [vmem:[#allocation10 + $0xc] sm:$0xf]
      %v767 = vld [vmem:[#allocation10 + $0x10] sm:$0xf]
      %v768 = vld [vmem:[#allocation10 + $0x14] sm:$0xf]
      %v769 = vld [vmem:[#allocation10 + $0x18] sm:$0xf]
      %v770 = vld [vmem:[#allocation10 + $0x1c] sm:$0xf]
      %v771 = vld [vmem:[#allocation10 + $0x20] sm:$0xf]
      %v772 = vld [vmem:[#allocation10 + $0x24] sm:$0xf]
      %v773 = vld [vmem:[#allocation10 + $0x28] sm:$0xf]
      %v774 = vld [vmem:[#allocation10 + $0x2c] sm:$0xf]
      %v775 = vld [vmem:[#allocation10 + $0x30] sm:$0xf]
      %v776 = vld [vmem:[#allocation10 + $0x34] sm:$0xf]
      %v777 = vld [vmem:[#allocation10 + $0x38] sm:$0xf]
      %v778 = vld [vmem:[#allocation10 + $0x3c] sm:$0xf]
      %v779 = vld [vmem:[%s5] sm:$0x1]
      %v781 = vlaneseq
      %v782 = vshrl.u32 %v781, 7
      %v783 = vsub.s32 0, %v782
      %v784 = vrot.slane %v779, %v783
      %v802 = vunpack.c.l.b16 %v763
      %v803 = vunpack.c.l.b16 %v764
      %v804 = vunpack.c.l.b16 %v765
      %v805 = vunpack.c.l.b16 %v766
      %v806 = vunpack.c.l.b16 %v767
      %v807 = vunpack.c.l.b16 %v768
      %v808 = vunpack.c.l.b16 %v769
      %v809 = vunpack.c.l.b16 %v770
      %v810 = vunpack.c.l.b16 %v771
      %v811 = vunpack.c.l.b16 %v772
      %v812 = vunpack.c.l.b16 %v773
      %v813 = vunpack.c.l.b16 %v774
      %v814 = vunpack.c.l.b16 %v775
      %v815 = vunpack.c.l.b16 %v776
      %v816 = vunpack.c.l.b16 %v777
      %v817 = vunpack.c.l.b16 %v778
      %v818 = vpack.c.b16 %v803, %v802
      %v819 = vpack.c.b16 %v805, %v804
      %v820 = vpack.c.b16 %v807, %v806
      %v821 = vpack.c.b16 %v809, %v808
      %v822 = vpack.c.b16 %v811, %v810
      %v823 = vpack.c.b16 %v813, %v812
      %v824 = vpack.c.b16 %v815, %v814
      %v825 = vpack.c.b16 %v817, %v816
      %834 = vmatprep.subr.bf16.mxu0 0
      %835 = vmatpush1.bf16.msra.mxu0 %v818
      %836 = vmatprep.subr.bf16.mxu0 0
      %837 = vmatpush1.bf16.msra.mxu0 %v819
      %838 = vmatprep.subr.bf16.mxu0 0
      %839 = vmatpush1.bf16.msra.mxu0 %v820
      %840 = vmatprep.subr.bf16.mxu0 0
      %841 = vmatpush1.bf16.msra.mxu0 %v821
      %842 = vmatprep.subr.bf16.mxu0 0
      %843 = vmatpush1.bf16.msra.mxu0 %v822
      %844 = vmatprep.subr.bf16.mxu0 0
      %845 = vmatpush1.bf16.msra.mxu0 %v823
      %846 = vmatprep.subr.bf16.mxu0 0
      %847 = vmatpush1.bf16.msra.mxu0 %v824
      %848 = vmatprep.subr.bf16.mxu0 0
      %849 = vmatpush1.bf16.msra.mxu0 %v825
      %850 = vmatprep.subr.bf16.mxu0 0
      %851 = vmatpush1.bf16.msra.mxu0 0
      %852 = vmatprep.subr.bf16.mxu0 0
      %853 = vmatpush1.bf16.msra.mxu0 0
      %854 = vmatprep.subr.bf16.mxu0 0
      %855 = vmatpush1.bf16.msra.mxu0 0
      %856 = vmatprep.subr.bf16.mxu0 0
      %857 = vmatpush1.bf16.msra.mxu0 0
      %858 = vmatprep.subr.bf16.mxu0 0
      %859 = vmatpush1.bf16.msra.mxu0 0
      %860 = vmatprep.subr.bf16.mxu0 0
      %861 = vmatpush1.bf16.msra.mxu0 0
      %862 = vmatprep.subr.bf16.mxu0 0
      %863 = vmatpush1.bf16.msra.mxu0 0
      %864 = vmatprep.subr.bf16.mxu0 0
      %865 = vmatpush1.bf16.msra.mxu0 0
      %866 = vmatprep.mubr.bf16.mxu0 0
      %867 = vmatmul.mubr.bf16.gmra.mrb[0].mxu0 %v731
      %v868 = vpop.f32.mrb[0].mxu0
      %v869 = vadd.f32 %v784, %v868
      %v870 = vpop.f32.mrb[0].mxu0
      %v871 = vpop.f32.mrb[0].mxu0
      %v872 = vadd.f32 %v784, %v871
      %v873 = vpop.f32.mrb[0].mxu0
      %874 = vmatprep.mubr.bf16.mxu0 0
      %875 = vmatmul.mubr.bf16.gmra.mrb[0].mxu0 %v732
      %v876 = vpop.f32.mrb[0].mxu0
      %v877 = vadd.f32 %v784, %v876
      %v878 = vpop.f32.mrb[0].mxu0
      %v879 = vpop.f32.mrb[0].mxu0
      %v880 = vadd.f32 %v784, %v879
      %v881 = vpop.f32.mrb[0].mxu0
      %882 = vmatprep.mubr.bf16.mxu0 0
      %883 = vmatmul.mubr.bf16.gmra.mrb[0].mxu0 %v733
      %v884 = vpop.f32.mrb[0].mxu0
      %v885 = vadd.f32 %v784, %v884
      %v886 = vpop.f32.mrb[0].mxu0
      %v887 = vpop.f32.mrb[0].mxu0
      %v888 = vadd.f32 %v784, %v887
      %v889 = vpop.f32.mrb[0].mxu0
      %890 = vmatprep.mubr.bf16.mxu0 0
      %891 = vmatmul.mubr.bf16.gmra.mrb[0].mxu0 %v734
      %v892 = vpop.f32.mrb[0].mxu0
      %v893 = vadd.f32 %v784, %v892
      %v894 = vpop.f32.mrb[0].mxu0
      %v895 = vpop.f32.mrb[0].mxu0
      %v896 = vadd.f32 %v784, %v895
      %v897 = vpop.f32.mrb[0].mxu0
      %898 = vmatprep.mubr.bf16.mxu0 0
      %899 = vmatmul.mubr.bf16.gmra.mrb[0].mxu0 %v735
      %v900 = vpop.f32.mrb[0].mxu0
      %v901 = vadd.f32 %v784, %v900
      %v902 = vpop.f32.mrb[0].mxu0
      %v903 = vpop.f32.mrb[0].mxu0
      %v904 = vadd.f32 %v784, %v903
      %v905 = vpop.f32.mrb[0].mxu0
      %906 = vmatprep.mubr.bf16.mxu0 0
      %907 = vmatmul.mubr.bf16.gmra.mrb[0].mxu0 %v736
      %v908 = vpop.f32.mrb[0].mxu0
      %v909 = vadd.f32 %v784, %v908
      %v910 = vpop.f32.mrb[0].mxu0
      %v911 = vpop.f32.mrb[0].mxu0
      %v912 = vadd.f32 %v784, %v911
      %v913 = vpop.f32.mrb[0].mxu0
      %914 = vmatprep.mubr.bf16.mxu0 0
      %915 = vmatmul.mubr.bf16.gmra.mrb[0].mxu0 %v737
      %v916 = vpop.f32.mrb[0].mxu0
      %v917 = vadd.f32 %v784, %v916
      %v918 = vpop.f32.mrb[0].mxu0
      %v919 = vpop.f32.mrb[0].mxu0
      %v920 = vadd.f32 %v784, %v919
      %v921 = vpop.f32.mrb[0].mxu0
      %922 = vmatprep.mubr.bf16.mxu0 0
      %923 = vmatmul.mubr.bf16.gmra.mrb[0].mxu0 %v738
      %v924 = vpop.f32.mrb[0].mxu0
      %v925 = vadd.f32 %v784, %v924
      %v926 = vpop.f32.mrb[0].mxu0
      %v927 = vpop.f32.mrb[0].mxu0
      %v928 = vadd.f32 %v784, %v927
      %v929 = vpop.f32.mrb[0].mxu0
      %930 = vmatprep.mubr.bf16.mxu0 0
      %931 = vmatmul.mubr.bf16.gmra.mrb[0].mxu0 %v739
      %v932 = vpop.f32.mrb[0].mxu0
      %v933 = vadd.f32 %v784, %v932
      %v934 = vpop.f32.mrb[0].mxu0
      %v935 = vpop.f32.mrb[0].mxu0
      %v936 = vadd.f32 %v784, %v935
      %v937 = vpop.f32.mrb[0].mxu0
      %938 = vmatprep.mubr.bf16.mxu0 0
      %939 = vmatmul.mubr.bf16.gmra.mrb[0].mxu0 %v740
      %v940 = vpop.f32.mrb[0].mxu0
      %v941 = vadd.f32 %v784, %v940
      %v942 = vpop.f32.mrb[0].mxu0
      %v943 = vpop.f32.mrb[0].mxu0
      %v944 = vadd.f32 %v784, %v943
      %v945 = vpop.f32.mrb[0].mxu0
      %946 = vmatprep.mubr.bf16.mxu0 0
      %947 = vmatmul.mubr.bf16.gmra.mrb[0].mxu0 %v741
      %v948 = vpop.f32.mrb[0].mxu0
      %v949 = vadd.f32 %v784, %v948
      %v950 = vpop.f32.mrb[0].mxu0
      %v951 = vpop.f32.mrb[0].mxu0
      %v952 = vadd.f32 %v784, %v951
      %v953 = vpop.f32.mrb[0].mxu0
      %954 = vmatprep.mubr.bf16.mxu0 0
      %955 = vmatmul.mubr.bf16.gmra.mrb[0].mxu0 %v742
      %v956 = vpop.f32.mrb[0].mxu0
      %v957 = vadd.f32 %v784, %v956
      %v958 = vpop.f32.mrb[0].mxu0
      %v959 = vpop.f32.mrb[0].mxu0
      %v960 = vadd.f32 %v784, %v959
      %v961 = vpop.f32.mrb[0].mxu0
      %962 = vmatprep.mubr.bf16.mxu0 0
      %963 = vmatmul.mubr.bf16.gmra.mrb[0].mxu0 %v743
      %v964 = vpop.f32.mrb[0].mxu0
      %v965 = vadd.f32 %v784, %v964
      %v966 = vpop.f32.mrb[0].mxu0
      %v967 = vpop.f32.mrb[0].mxu0
      %v968 = vadd.f32 %v784, %v967
      %v969 = vpop.f32.mrb[0].mxu0
      %970 = vmatprep.mubr.bf16.mxu0 0
      %971 = vmatmul.mubr.bf16.gmra.mrb[0].mxu0 %v744
      %v972 = vpop.f32.mrb[0].mxu0
      %v973 = vadd.f32 %v784, %v972
      %v974 = vpop.f32.mrb[0].mxu0
      %v975 = vpop.f32.mrb[0].mxu0
      %v976 = vadd.f32 %v784, %v975
      %v977 = vpop.f32.mrb[0].mxu0
      %978 = vmatprep.mubr.bf16.mxu0 0
      %979 = vmatmul.mubr.bf16.gmra.mrb[0].mxu0 %v745
      %v980 = vpop.f32.mrb[0].mxu0
      %v981 = vadd.f32 %v784, %v980
      %v982 = vpop.f32.mrb[0].mxu0
      %v983 = vpop.f32.mrb[0].mxu0
      %v984 = vadd.f32 %v784, %v983
      %v985 = vpop.f32.mrb[0].mxu0
      %986 = vmatprep.mubr.bf16.mxu0 0
      %987 = vmatmul.mubr.bf16.gmra.mrb[0].mxu0 %v746
      %v988 = vpop.f32.mrb[0].mxu0
      %v989 = vadd.f32 %v784, %v988
      %v990 = vpop.f32.mrb[0].mxu0
      %v991 = vpop.f32.mrb[0].mxu0
      %v992 = vadd.f32 %v784, %v991
      %v993 = vpop.f32.mrb[0].mxu0
      %994 = vmatprep.mubr.bf16.mxu0 0
      %995 = vmatmul.mubr.bf16.gmra.mrb[0].mxu0 %v747
      %v996 = vpop.f32.mrb[0].mxu0
      %v997 = vadd.f32 %v784, %v996
      %v998 = vpop.f32.mrb[0].mxu0
      %v999 = vpop.f32.mrb[0].mxu0
      %v1000 = vadd.f32 %v784, %v999
      %v1001 = vpop.f32.mrb[0].mxu0
      %1002 = vmatprep.mubr.bf16.mxu0 0
      %1003 = vmatmul.mubr.bf16.gmra.mrb[0].mxu0 %v748
      %v1004 = vpop.f32.mrb[0].mxu0
      %v1005 = vadd.f32 %v784, %v1004
      %v1006 = vpop.f32.mrb[0].mxu0
      %v1007 = vpop.f32.mrb[0].mxu0
      %v1008 = vadd.f32 %v784, %v1007
      %v1009 = vpop.f32.mrb[0].mxu0
      %1010 = vmatprep.mubr.bf16.mxu0 0
      %1011 = vmatmul.mubr.bf16.gmra.mrb[0].mxu0 %v749
      %v1012 = vpop.f32.mrb[0].mxu0
      %v1013 = vadd.f32 %v784, %v1012
      %v1014 = vpop.f32.mrb[0].mxu0
      %v1015 = vpop.f32.mrb[0].mxu0
      %v1016 = vadd.f32 %v784, %v1015
      %v1017 = vpop.f32.mrb[0].mxu0
      %1018 = vmatprep.mubr.bf16.mxu0 0
      %1019 = vmatmul.mubr.bf16.gmra.mrb[0].mxu0 %v750
      %v1020 = vpop.f32.mrb[0].mxu0
      %v1021 = vadd.f32 %v784, %v1020
      %v1022 = vpop.f32.mrb[0].mxu0
      %v1023 = vpop.f32.mrb[0].mxu0
      %v1024 = vadd.f32 %v784, %v1023
      %v1025 = vpop.f32.mrb[0].mxu0
      %1026 = vmatprep.mubr.bf16.mxu0 0
      %1027 = vmatmul.mubr.bf16.gmra.mrb[0].mxu0 %v751
      %v1028 = vpop.f32.mrb[0].mxu0
      %v1029 = vadd.f32 %v784, %v1028
      %v1030 = vpop.f32.mrb[0].mxu0
      %v1031 = vpop.f32.mrb[0].mxu0
      %v1032 = vadd.f32 %v784, %v1031
      %v1033 = vpop.f32.mrb[0].mxu0
      %1034 = vmatprep.mubr.bf16.mxu0 0
      %1035 = vmatmul.mubr.bf16.gmra.mrb[0].mxu0 %v752
      %v1036 = vpop.f32.mrb[0].mxu0
      %v1037 = vadd.f32 %v784, %v1036
      %v1038 = vpop.f32.mrb[0].mxu0
      %v1039 = vpop.f32.mrb[0].mxu0
      %v1040 = vadd.f32 %v784, %v1039
      %v1041 = vpop.f32.mrb[0].mxu0
      %1042 = vmatprep.mubr.bf16.mxu0 0
      %1043 = vmatmul.mubr.bf16.gmra.mrb[0].mxu0 %v753
      %v1044 = vpop.f32.mrb[0].mxu0
      %v1045 = vadd.f32 %v784, %v1044
      %v1046 = vpop.f32.mrb[0].mxu0
      %v1047 = vpop.f32.mrb[0].mxu0
      %v1048 = vadd.f32 %v784, %v1047
      %v1049 = vpop.f32.mrb[0].mxu0
      %1050 = vmatprep.mubr.bf16.mxu0 0
      %1051 = vmatmul.mubr.bf16.gmra.mrb[0].mxu0 %v754
      %v1052 = vpop.f32.mrb[0].mxu0
      %v1053 = vadd.f32 %v784, %v1052
      %v1054 = vpop.f32.mrb[0].mxu0
      %v1055 = vpop.f32.mrb[0].mxu0
      %v1056 = vadd.f32 %v784, %v1055
      %v1057 = vpop.f32.mrb[0].mxu0
      %1058 = vmatprep.mubr.bf16.mxu0 0
      %1059 = vmatmul.mubr.bf16.gmra.mrb[0].mxu0 %v755
      %v1060 = vpop.f32.mrb[0].mxu0
      %v1061 = vadd.f32 %v784, %v1060
      %v1062 = vpop.f32.mrb[0].mxu0
      %v1063 = vpop.f32.mrb[0].mxu0
      %v1064 = vadd.f32 %v784, %v1063
      %v1065 = vpop.f32.mrb[0].mxu0
      %1066 = vmatprep.mubr.bf16.mxu0 0
      %1067 = vmatmul.mubr.bf16.gmra.mrb[0].mxu0 %v756
      %v1068 = vpop.f32.mrb[0].mxu0
      %v1069 = vadd.f32 %v784, %v1068
      %v1070 = vpop.f32.mrb[0].mxu0
      %v1071 = vpop.f32.mrb[0].mxu0
      %v1072 = vadd.f32 %v784, %v1071
      %v1073 = vpop.f32.mrb[0].mxu0
      %1074 = vmatprep.mubr.bf16.mxu0 0
      %1075 = vmatmul.mubr.bf16.gmra.mrb[0].mxu0 %v757
      %v1076 = vpop.f32.mrb[0].mxu0
      %v1077 = vadd.f32 %v784, %v1076
      %v1078 = vpop.f32.mrb[0].mxu0
      %v1079 = vpop.f32.mrb[0].mxu0
      %v1080 = vadd.f32 %v784, %v1079
      %v1081 = vpop.f32.mrb[0].mxu0
      %1082 = vmatprep.mubr.bf16.mxu0 0
      %1083 = vmatmul.mubr.bf16.gmra.mrb[0].mxu0 %v758
      %v1084 = vpop.f32.mrb[0].mxu0
      %v1085 = vadd.f32 %v784, %v1084
      %v1086 = vpop.f32.mrb[0].mxu0
      %v1087 = vpop.f32.mrb[0].mxu0
      %v1088 = vadd.f32 %v784, %v1087
      %v1089 = vpop.f32.mrb[0].mxu0
      %1090 = vmatprep.mubr.bf16.mxu0 0
      %1091 = vmatmul.mubr.bf16.gmra.mrb[0].mxu0 %v759
      %v1092 = vpop.f32.mrb[0].mxu0
      %v1093 = vadd.f32 %v784, %v1092
      %v1094 = vpop.f32.mrb[0].mxu0
      %v1095 = vpop.f32.mrb[0].mxu0
      %v1096 = vadd.f32 %v784, %v1095
      %v1097 = vpop.f32.mrb[0].mxu0
      %1098 = vmatprep.mubr.bf16.mxu0 0
      %1099 = vmatmul.mubr.bf16.gmra.mrb[0].mxu0 %v760
      %v1100 = vpop.f32.mrb[0].mxu0
      %v1101 = vadd.f32 %v784, %v1100
      %v1102 = vpop.f32.mrb[0].mxu0
      %v1103 = vpop.f32.mrb[0].mxu0
      %v1104 = vadd.f32 %v784, %v1103
      %v1105 = vpop.f32.mrb[0].mxu0
      %1106 = vmatprep.mubr.bf16.mxu0 0
      %1107 = vmatmul.mubr.bf16.gmra.mrb[0].mxu0 %v761
      %v1108 = vpop.f32.mrb[0].mxu0
      %v1109 = vadd.f32 %v784, %v1108
      %v1110 = vpop.f32.mrb[0].mxu0
      %v1111 = vpop.f32.mrb[0].mxu0
      %v1112 = vadd.f32 %v784, %v1111
      %v1113 = vpop.f32.mrb[0].mxu0
      %1114 = vmatprep.mubr.bf16.mxu0 0
      %1115 = vmatmul.mubr.bf16.gmra.mrb[0].mxu0 %v762
      %v1116 = vpop.f32.mrb[0].mxu0
      %v1117 = vadd.f32 %v784, %v1116
      %v1118 = vpop.f32.mrb[0].mxu0
      %v1119 = vpop.f32.mrb[0].mxu0
      %v1120 = vadd.f32 %v784, %v1119
      %v1121 = vpop.f32.mrb[0].mxu0
      %1122 = vdwg.mxu0
      %v1123 = vpack.c.bf16 %v872, %v869
      %v1124 = vpack.c.bf16 %v880, %v877
      %v1125 = vpack.c.bf16 %v888, %v885
      %v1126 = vpack.c.bf16 %v896, %v893
      %v1127 = vpack.c.bf16 %v904, %v901
      %v1128 = vpack.c.bf16 %v912, %v909
      %v1129 = vpack.c.bf16 %v920, %v917
      %v1130 = vpack.c.bf16 %v928, %v925
      %v1131 = vpack.c.bf16 %v936, %v933
      %v1132 = vpack.c.bf16 %v944, %v941
      %v1133 = vpack.c.bf16 %v952, %v949
      %v1134 = vpack.c.bf16 %v960, %v957
      %v1135 = vpack.c.bf16 %v968, %v965
      %v1136 = vpack.c.bf16 %v976, %v973
      %v1137 = vpack.c.bf16 %v984, %v981
      %v1138 = vpack.c.bf16 %v992, %v989
      %v1139 = vpack.c.bf16 %v1000, %v997
      %v1140 = vpack.c.bf16 %v1008, %v1005
      %v1141 = vpack.c.bf16 %v1016, %v1013
      %v1142 = vpack.c.bf16 %v1024, %v1021
      %v1143 = vpack.c.bf16 %v1032, %v1029
      %v1144 = vpack.c.bf16 %v1040, %v1037
      %v1145 = vpack.c.bf16 %v1048, %v1045
      %v1146 = vpack.c.bf16 %v1056, %v1053
      %v1147 = vpack.c.bf16 %v1064, %v1061
      %v1148 = vpack.c.bf16 %v1072, %v1069
      %v1149 = vpack.c.bf16 %v1080, %v1077
      %v1150 = vpack.c.bf16 %v1088, %v1085
      %v1151 = vpack.c.bf16 %v1096, %v1093
      %v1152 = vpack.c.bf16 %v1104, %v1101
      %v1153 = vpack.c.bf16 %v1112, %v1109
      %v1154 = vpack.c.bf16 %v1120, %v1117
      %1155 = vst [vmem:[#allocation2] sm:$0xff] %v1123
      %1156 = vst [vmem:[#allocation2 + $0x8] sm:$0xff] %v1124
      %1157 = vst [vmem:[#allocation2 + $0x10] sm:$0xff] %v1125
      %1158 = vst [vmem:[#allocation2 + $0x18] sm:$0xff] %v1126
      %1159 = vst [vmem:[#allocation2 + $0x20] sm:$0xff] %v1127
      %1160 = vst [vmem:[#allocation2 + $0x28] sm:$0xff] %v1128
      %1161 = vst [vmem:[#allocation2 + $0x30] sm:$0xff] %v1129
      %1162 = vst [vmem:[#allocation2 + $0x38] sm:$0xff] %v1130
      %1163 = vst [vmem:[#allocation2 + $0x40] sm:$0xff] %v1131
      %1164 = vst [vmem:[#allocation2 + $0x48] sm:$0xff] %v1132
      %1165 = vst [vmem:[#allocation2 + $0x50] sm:$0xff] %v1133
      %1166 = vst [vmem:[#allocation2 + $0x58] sm:$0xff] %v1134
      %1167 = vst [vmem:[#allocation2 + $0x60] sm:$0xff] %v1135
      %1168 = vst [vmem:[#allocation2 + $0x68] sm:$0xff] %v1136
      %1169 = vst [vmem:[#allocation2 + $0x70] sm:$0xff] %v1137
      %1170 = vst [vmem:[#allocation2 + $0x78] sm:$0xff] %v1138
      %1171 = vst [vmem:[#allocation2 + $0x80] sm:$0xff] %v1139
      %1172 = vst [vmem:[#allocation2 + $0x88] sm:$0xff] %v1140
      %1173 = vst [vmem:[#allocation2 + $0x90] sm:$0xff] %v1141
      %1174 = vst [vmem:[#allocation2 + $0x98] sm:$0xff] %v1142
      %1175 = vst [vmem:[#allocation2 + $0xa0] sm:$0xff] %v1143
      %1176 = vst [vmem:[#allocation2 + $0xa8] sm:$0xff] %v1144
      %1177 = vst [vmem:[#allocation2 + $0xb0] sm:$0xff] %v1145
      %1178 = vst [vmem:[#allocation2 + $0xb8] sm:$0xff] %v1146
      %1179 = vst [vmem:[#allocation2 + $0xc0] sm:$0xff] %v1147
      %1180 = vst [vmem:[#allocation2 + $0xc8] sm:$0xff] %v1148
      %1181 = vst [vmem:[#allocation2 + $0xd0] sm:$0xff] %v1149
      %1182 = vst [vmem:[#allocation2 + $0xd8] sm:$0xff] %v1150
      %1183 = vst [vmem:[#allocation2 + $0xe0] sm:$0xff] %v1151
      %1184 = vst [vmem:[#allocation2 + $0xe8] sm:$0xff] %v1152
      %1185 = vst [vmem:[#allocation2 + $0xf0] sm:$0xff] %v1153
      %1186 = vst [vmem:[#allocation2 + $0xf8] sm:$0xff] %v1154
      %v1187 = vld [vmem:[#allocation11] sm:$0xf]
      %v1188 = vld [vmem:[#allocation11 + $0x4] sm:$0xf]
      %v1189 = vld [vmem:[#allocation11 + $0x8] sm:$0xf]
      %v1190 = vld [vmem:[#allocation11 + $0xc] sm:$0xf]
      %v1191 = vld [vmem:[#allocation11 + $0x10] sm:$0xf]
      %v1192 = vld [vmem:[#allocation11 + $0x14] sm:$0xf]
      %v1193 = vld [vmem:[#allocation11 + $0x18] sm:$0xf]
      %v1194 = vld [vmem:[#allocation11 + $0x1c] sm:$0xf]
      %v1195 = vld [vmem:[#allocation11 + $0x20] sm:$0xf]
      %v1196 = vld [vmem:[#allocation11 + $0x24] sm:$0xf]
      %v1197 = vld [vmem:[#allocation11 + $0x28] sm:$0xf]
      %v1198 = vld [vmem:[#allocation11 + $0x2c] sm:$0xf]
      %v1199 = vld [vmem:[#allocation11 + $0x30] sm:$0xf]
      %v1200 = vld [vmem:[#allocation11 + $0x34] sm:$0xf]
      %v1201 = vld [vmem:[#allocation11 + $0x38] sm:$0xf]
      %v1202 = vld [vmem:[#allocation11 + $0x3c] sm:$0xf]
      %v1203 = vld [vmem:[%s7] sm:$0x1]
      %v1205 = vlaneseq
      %v1206 = vshrl.u32 %v1205, 7
      %v1207 = vsub.s32 0, %v1206
      %v1208 = vrot.slane %v1203, %v1207
      %v1226 = vunpack.c.l.b16 %v1187
      %v1227 = vunpack.c.l.b16 %v1188
      %v1228 = vunpack.c.l.b16 %v1189
      %v1229 = vunpack.c.l.b16 %v1190
      %v1230 = vunpack.c.l.b16 %v1191
      %v1231 = vunpack.c.l.b16 %v1192
      %v1232 = vunpack.c.l.b16 %v1193
      %v1233 = vunpack.c.l.b16 %v1194
      %v1234 = vunpack.c.l.b16 %v1195
      %v1235 = vunpack.c.l.b16 %v1196
      %v1236 = vunpack.c.l.b16 %v1197
      %v1237 = vunpack.c.l.b16 %v1198
      %v1238 = vunpack.c.l.b16 %v1199
      %v1239 = vunpack.c.l.b16 %v1200
      %v1240 = vunpack.c.l.b16 %v1201
      %v1241 = vunpack.c.l.b16 %v1202
      %v1242 = vpack.c.b16 %v1227, %v1226
      %v1243 = vpack.c.b16 %v1229, %v1228
      %v1244 = vpack.c.b16 %v1231, %v1230
      %v1245 = vpack.c.b16 %v1233, %v1232
      %v1246 = vpack.c.b16 %v1235, %v1234
      %v1247 = vpack.c.b16 %v1237, %v1236
      %v1248 = vpack.c.b16 %v1239, %v1238
      %v1249 = vpack.c.b16 %v1241, %v1240
      %1258 = vmatprep.subr.bf16.mxu0 0
      %1259 = vmatpush1.bf16.msra.mxu0 %v1242
      %1260 = vmatprep.subr.bf16.mxu0 0
      %1261 = vmatpush1.bf16.msra.mxu0 %v1243
      %1262 = vmatprep.subr.bf16.mxu0 0
      %1263 = vmatpush1.bf16.msra.mxu0 %v1244
      %1264 = vmatprep.subr.bf16.mxu0 0
      %1265 = vmatpush1.bf16.msra.mxu0 %v1245
      %1266 = vmatprep.subr.bf16.mxu0 0
      %1267 = vmatpush1.bf16.msra.mxu0 %v1246
      %1268 = vmatprep.subr.bf16.mxu0 0
      %1269 = vmatpush1.bf16.msra.mxu0 %v1247
      %1270 = vmatprep.subr.bf16.mxu0 0
      %1271 = vmatpush1.bf16.msra.mxu0 %v1248
      %1272 = vmatprep.subr.bf16.mxu0 0
      %1273 = vmatpush1.bf16.msra.mxu0 %v1249
      %1274 = vmatprep.subr.bf16.mxu0 0
      %1275 = vmatpush1.bf16.msra.mxu0 0
      %1276 = vmatprep.subr.bf16.mxu0 0
      %1277 = vmatpush1.bf16.msra.mxu0 0
      %1278 = vmatprep.subr.bf16.mxu0 0
      %1279 = vmatpush1.bf16.msra.mxu0 0
      %1280 = vmatprep.subr.bf16.mxu0 0
      %1281 = vmatpush1.bf16.msra.mxu0 0
      %1282 = vmatprep.subr.bf16.mxu0 0
      %1283 = vmatpush1.bf16.msra.mxu0 0
      %1284 = vmatprep.subr.bf16.mxu0 0
      %1285 = vmatpush1.bf16.msra.mxu0 0
      %1286 = vmatprep.subr.bf16.mxu0 0
      %1287 = vmatpush1.bf16.msra.mxu0 0
      %1288 = vmatprep.subr.bf16.mxu0 0
      %1289 = vmatpush1.bf16.msra.mxu0 0
      %1290 = vmatprep.mubr.bf16.mxu0 0
      %1291 = vmatmul.mubr.bf16.gmra.mrb[0].mxu0 %v731
      %v1292 = vpop.f32.mrb[0].mxu0
      %v1293 = vadd.f32 %v1208, %v1292
      %v1294 = vpop.f32.mrb[0].mxu0
      %v1295 = vpop.f32.mrb[0].mxu0
      %v1296 = vadd.f32 %v1208, %v1295
      %v1297 = vpop.f32.mrb[0].mxu0
      %1298 = vmatprep.mubr.bf16.mxu0 0
      %1299 = vmatmul.mubr.bf16.gmra.mrb[0].mxu0 %v732
      %v1300 = vpop.f32.mrb[0].mxu0
      %v1301 = vadd.f32 %v1208, %v1300
      %v1302 = vpop.f32.mrb[0].mxu0
      %v1303 = vpop.f32.mrb[0].mxu0
      %v1304 = vadd.f32 %v1208, %v1303
      %v1305 = vpop.f32.mrb[0].mxu0
      %1306 = vmatprep.mubr.bf16.mxu0 0
      %1307 = vmatmul.mubr.bf16.gmra.mrb[0].mxu0 %v733
      %v1308 = vpop.f32.mrb[0].mxu0
      %v1309 = vadd.f32 %v1208, %v1308
      %v1310 = vpop.f32.mrb[0].mxu0
      %v1311 = vpop.f32.mrb[0].mxu0
      %v1312 = vadd.f32 %v1208, %v1311
      %v1313 = vpop.f32.mrb[0].mxu0
      %1314 = vmatprep.mubr.bf16.mxu0 0
      %1315 = vmatmul.mubr.bf16.gmra.mrb[0].mxu0 %v734
      %v1316 = vpop.f32.mrb[0].mxu0
      %v1317 = vadd.f32 %v1208, %v1316
      %v1318 = vpop.f32.mrb[0].mxu0
      %v1319 = vpop.f32.mrb[0].mxu0
      %v1320 = vadd.f32 %v1208, %v1319
      %v1321 = vpop.f32.mrb[0].mxu0
      %1322 = vmatprep.mubr.bf16.mxu0 0
      %1323 = vmatmul.mubr.bf16.gmra.mrb[0].mxu0 %v735
      %v1324 = vpop.f32.mrb[0].mxu0
      %v1325 = vadd.f32 %v1208, %v1324
      %v1326 = vpop.f32.mrb[0].mxu0
      %v1327 = vpop.f32.mrb[0].mxu0
      %v1328 = vadd.f32 %v1208, %v1327
      %v1329 = vpop.f32.mrb[0].mxu0
      %1330 = vmatprep.mubr.bf16.mxu0 0
      %1331 = vmatmul.mubr.bf16.gmra.mrb[0].mxu0 %v736
      %v1332 = vpop.f32.mrb[0].mxu0
      %v1333 = vadd.f32 %v1208, %v1332
      %v1334 = vpop.f32.mrb[0].mxu0
      %v1335 = vpop.f32.mrb[0].mxu0
      %v1336 = vadd.f32 %v1208, %v1335
      %v1337 = vpop.f32.mrb[0].mxu0
      %1338 = vmatprep.mubr.bf16.mxu0 0
      %1339 = vmatmul.mubr.bf16.gmra.mrb[0].mxu0 %v737
      %v1340 = vpop.f32.mrb[0].mxu0
      %v1341 = vadd.f32 %v1208, %v1340
      %v1342 = vpop.f32.mrb[0].mxu0
      %v1343 = vpop.f32.mrb[0].mxu0
      %v1344 = vadd.f32 %v1208, %v1343
      %v1345 = vpop.f32.mrb[0].mxu0
      %1346 = vmatprep.mubr.bf16.mxu0 0
      %1347 = vmatmul.mubr.bf16.gmra.mrb[0].mxu0 %v738
      %v1348 = vpop.f32.mrb[0].mxu0
      %v1349 = vadd.f32 %v1208, %v1348
      %v1350 = vpop.f32.mrb[0].mxu0
      %v1351 = vpop.f32.mrb[0].mxu0
      %v1352 = vadd.f32 %v1208, %v1351
      %v1353 = vpop.f32.mrb[0].mxu0
      %1354 = vmatprep.mubr.bf16.mxu0 0
      %1355 = vmatmul.mubr.bf16.gmra.mrb[0].mxu0 %v739
      %v1356 = vpop.f32.mrb[0].mxu0
      %v1357 = vadd.f32 %v1208, %v1356
      %v1358 = vpop.f32.mrb[0].mxu0
      %v1359 = vpop.f32.mrb[0].mxu0
      %v1360 = vadd.f32 %v1208, %v1359
      %v1361 = vpop.f32.mrb[0].mxu0
      %1362 = vmatprep.mubr.bf16.mxu0 0
      %1363 = vmatmul.mubr.bf16.gmra.mrb[0].mxu0 %v740
      %v1364 = vpop.f32.mrb[0].mxu0
      %v1365 = vadd.f32 %v1208, %v1364
      %v1366 = vpop.f32.mrb[0].mxu0
      %v1367 = vpop.f32.mrb[0].mxu0
      %v1368 = vadd.f32 %v1208, %v1367
      %v1369 = vpop.f32.mrb[0].mxu0
      %1370 = vmatprep.mubr.bf16.mxu0 0
      %1371 = vmatmul.mubr.bf16.gmra.mrb[0].mxu0 %v741
      %v1372 = vpop.f32.mrb[0].mxu0
      %v1373 = vadd.f32 %v1208, %v1372
      %v1374 = vpop.f32.mrb[0].mxu0
      %v1375 = vpop.f32.mrb[0].mxu0
      %v1376 = vadd.f32 %v1208, %v1375
      %v1377 = vpop.f32.mrb[0].mxu0
      %1378 = vmatprep.mubr.bf16.mxu0 0
      %1379 = vmatmul.mubr.bf16.gmra.mrb[0].mxu0 %v742
      %v1380 = vpop.f32.mrb[0].mxu0
      %v1381 = vadd.f32 %v1208, %v1380
      %v1382 = vpop.f32.mrb[0].mxu0
      %v1383 = vpop.f32.mrb[0].mxu0
      %v1384 = vadd.f32 %v1208, %v1383
      %v1385 = vpop.f32.mrb[0].mxu0
      %1386 = vmatprep.mubr.bf16.mxu0 0
      %1387 = vmatmul.mubr.bf16.gmra.mrb[0].mxu0 %v743
      %v1388 = vpop.f32.mrb[0].mxu0
      %v1389 = vadd.f32 %v1208, %v1388
      %v1390 = vpop.f32.mrb[0].mxu0
      %v1391 = vpop.f32.mrb[0].mxu0
      %v1392 = vadd.f32 %v1208, %v1391
      %v1393 = vpop.f32.mrb[0].mxu0
      %1394 = vmatprep.mubr.bf16.mxu0 0
      %1395 = vmatmul.mubr.bf16.gmra.mrb[0].mxu0 %v744
      %v1396 = vpop.f32.mrb[0].mxu0
      %v1397 = vadd.f32 %v1208, %v1396
      %v1398 = vpop.f32.mrb[0].mxu0
      %v1399 = vpop.f32.mrb[0].mxu0
      %v1400 = vadd.f32 %v1208, %v1399
      %v1401 = vpop.f32.mrb[0].mxu0
      %1402 = vmatprep.mubr.bf16.mxu0 0
      %1403 = vmatmul.mubr.bf16.gmra.mrb[0].mxu0 %v745
      %v1404 = vpop.f32.mrb[0].mxu0
      %v1405 = vadd.f32 %v1208, %v1404
      %v1406 = vpop.f32.mrb[0].mxu0
      %v1407 = vpop.f32.mrb[0].mxu0
      %v1408 = vadd.f32 %v1208, %v1407
      %v1409 = vpop.f32.mrb[0].mxu0
      %1410 = vmatprep.mubr.bf16.mxu0 0
      %1411 = vmatmul.mubr.bf16.gmra.mrb[0].mxu0 %v746
      %v1412 = vpop.f32.mrb[0].mxu0
      %v1413 = vadd.f32 %v1208, %v1412
      %v1414 = vpop.f32.mrb[0].mxu0
      %v1415 = vpop.f32.mrb[0].mxu0
      %v1416 = vadd.f32 %v1208, %v1415
      %v1417 = vpop.f32.mrb[0].mxu0
      %1418 = vmatprep.mubr.bf16.mxu0 0
      %1419 = vmatmul.mubr.bf16.gmra.mrb[0].mxu0 %v747
      %v1420 = vpop.f32.mrb[0].mxu0
      %v1421 = vadd.f32 %v1208, %v1420
      %v1422 = vpop.f32.mrb[0].mxu0
      %v1423 = vpop.f32.mrb[0].mxu0
      %v1424 = vadd.f32 %v1208, %v1423
      %v1425 = vpop.f32.mrb[0].mxu0
      %1426 = vmatprep.mubr.bf16.mxu0 0
      %1427 = vmatmul.mubr.bf16.gmra.mrb[0].mxu0 %v748
      %v1428 = vpop.f32.mrb[0].mxu0
      %v1429 = vadd.f32 %v1208, %v1428
      %v1430 = vpop.f32.mrb[0].mxu0
      %v1431 = vpop.f32.mrb[0].mxu0
      %v1432 = vadd.f32 %v1208, %v1431
      %v1433 = vpop.f32.mrb[0].mxu0
      %1434 = vmatprep.mubr.bf16.mxu0 0
      %1435 = vmatmul.mubr.bf16.gmra.mrb[0].mxu0 %v749
      %v1436 = vpop.f32.mrb[0].mxu0
      %v1437 = vadd.f32 %v1208, %v1436
      %v1438 = vpop.f32.mrb[0].mxu0
      %v1439 = vpop.f32.mrb[0].mxu0
      %v1440 = vadd.f32 %v1208, %v1439
      %v1441 = vpop.f32.mrb[0].mxu0
      %1442 = vmatprep.mubr.bf16.mxu0 0
      %1443 = vmatmul.mubr.bf16.gmra.mrb[0].mxu0 %v750
      %v1444 = vpop.f32.mrb[0].mxu0
      %v1445 = vadd.f32 %v1208, %v1444
      %v1446 = vpop.f32.mrb[0].mxu0
      %v1447 = vpop.f32.mrb[0].mxu0
      %v1448 = vadd.f32 %v1208, %v1447
      %v1449 = vpop.f32.mrb[0].mxu0
      %1450 = vmatprep.mubr.bf16.mxu0 0
      %1451 = vmatmul.mubr.bf16.gmra.mrb[0].mxu0 %v751
      %v1452 = vpop.f32.mrb[0].mxu0
      %v1453 = vadd.f32 %v1208, %v1452
      %v1454 = vpop.f32.mrb[0].mxu0
      %v1455 = vpop.f32.mrb[0].mxu0
      %v1456 = vadd.f32 %v1208, %v1455
      %v1457 = vpop.f32.mrb[0].mxu0
      %1458 = vmatprep.mubr.bf16.mxu0 0
      %1459 = vmatmul.mubr.bf16.gmra.mrb[0].mxu0 %v752
      %v1460 = vpop.f32.mrb[0].mxu0
      %v1461 = vadd.f32 %v1208, %v1460
      %v1462 = vpop.f32.mrb[0].mxu0
      %v1463 = vpop.f32.mrb[0].mxu0
      %v1464 = vadd.f32 %v1208, %v1463
      %v1465 = vpop.f32.mrb[0].mxu0
      %1466 = vmatprep.mubr.bf16.mxu0 0
      %1467 = vmatmul.mubr.bf16.gmra.mrb[0].mxu0 %v753
      %v1468 = vpop.f32.mrb[0].mxu0
      %v1469 = vadd.f32 %v1208, %v1468
      %v1470 = vpop.f32.mrb[0].mxu0
      %v1471 = vpop.f32.mrb[0].mxu0
      %v1472 = vadd.f32 %v1208, %v1471
      %v1473 = vpop.f32.mrb[0].mxu0
      %1474 = vmatprep.mubr.bf16.mxu0 0
      %1475 = vmatmul.mubr.bf16.gmra.mrb[0].mxu0 %v754
      %v1476 = vpop.f32.mrb[0].mxu0
      %v1477 = vadd.f32 %v1208, %v1476
      %v1478 = vpop.f32.mrb[0].mxu0
      %v1479 = vpop.f32.mrb[0].mxu0
      %v1480 = vadd.f32 %v1208, %v1479
      %v1481 = vpop.f32.mrb[0].mxu0
      %1482 = vmatprep.mubr.bf16.mxu0 0
      %1483 = vmatmul.mubr.bf16.gmra.mrb[0].mxu0 %v755
      %v1484 = vpop.f32.mrb[0].mxu0
      %v1485 = vadd.f32 %v1208, %v1484
      %v1486 = vpop.f32.mrb[0].mxu0
      %v1487 = vpop.f32.mrb[0].mxu0
      %v1488 = vadd.f32 %v1208, %v1487
      %v1489 = vpop.f32.mrb[0].mxu0
      %1490 = vmatprep.mubr.bf16.mxu0 0
      %1491 = vmatmul.mubr.bf16.gmra.mrb[0].mxu0 %v756
      %v1492 = vpop.f32.mrb[0].mxu0
      %v1493 = vadd.f32 %v1208, %v1492
      %v1494 = vpop.f32.mrb[0].mxu0
      %v1495 = vpop.f32.mrb[0].mxu0
      %v1496 = vadd.f32 %v1208, %v1495
      %v1497 = vpop.f32.mrb[0].mxu0
      %1498 = vmatprep.mubr.bf16.mxu0 0
      %1499 = vmatmul.mubr.bf16.gmra.mrb[0].mxu0 %v757
      %v1500 = vpop.f32.mrb[0].mxu0
      %v1501 = vadd.f32 %v1208, %v1500
      %v1502 = vpop.f32.mrb[0].mxu0
      %v1503 = vpop.f32.mrb[0].mxu0
      %v1504 = vadd.f32 %v1208, %v1503
      %v1505 = vpop.f32.mrb[0].mxu0
      %1506 = vmatprep.mubr.bf16.mxu0 0
      %1507 = vmatmul.mubr.bf16.gmra.mrb[0].mxu0 %v758
      %v1508 = vpop.f32.mrb[0].mxu0
      %v1509 = vadd.f32 %v1208, %v1508
      %v1510 = vpop.f32.mrb[0].mxu0
      %v1511 = vpop.f32.mrb[0].mxu0
      %v1512 = vadd.f32 %v1208, %v1511
      %v1513 = vpop.f32.mrb[0].mxu0
      %1514 = vmatprep.mubr.bf16.mxu0 0
      %1515 = vmatmul.mubr.bf16.gmra.mrb[0].mxu0 %v759
      %v1516 = vpop.f32.mrb[0].mxu0
      %v1517 = vadd.f32 %v1208, %v1516
      %v1518 = vpop.f32.mrb[0].mxu0
      %v1519 = vpop.f32.mrb[0].mxu0
      %v1520 = vadd.f32 %v1208, %v1519
      %v1521 = vpop.f32.mrb[0].mxu0
      %1522 = vmatprep.mubr.bf16.mxu0 0
      %1523 = vmatmul.mubr.bf16.gmra.mrb[0].mxu0 %v760
      %v1524 = vpop.f32.mrb[0].mxu0
      %v1525 = vadd.f32 %v1208, %v1524
      %v1526 = vpop.f32.mrb[0].mxu0
      %v1527 = vpop.f32.mrb[0].mxu0
      %v1528 = vadd.f32 %v1208, %v1527
      %v1529 = vpop.f32.mrb[0].mxu0
      %1530 = vmatprep.mubr.bf16.mxu0 0
      %1531 = vmatmul.mubr.bf16.gmra.mrb[0].mxu0 %v761
      %v1532 = vpop.f32.mrb[0].mxu0
      %v1533 = vadd.f32 %v1208, %v1532
      %v1534 = vpop.f32.mrb[0].mxu0
      %v1535 = vpop.f32.mrb[0].mxu0
      %v1536 = vadd.f32 %v1208, %v1535
      %v1537 = vpop.f32.mrb[0].mxu0
      %1538 = vmatprep.mubr.bf16.mxu0 0
      %1539 = vmatmul.mubr.bf16.gmra.mrb[0].mxu0 %v762
      %v1540 = vpop.f32.mrb[0].mxu0
      %v1541 = vadd.f32 %v1208, %v1540
      %v1542 = vpop.f32.mrb[0].mxu0
      %v1543 = vpop.f32.mrb[0].mxu0
      %v1544 = vadd.f32 %v1208, %v1543
      %v1545 = vpop.f32.mrb[0].mxu0
      %1546 = vdwg.mxu0
      %v1547 = vpack.c.bf16 %v1296, %v1293
      %v1548 = vpack.c.bf16 %v1304, %v1301
      %v1549 = vpack.c.bf16 %v1312, %v1309
      %v1550 = vpack.c.bf16 %v1320, %v1317
      %v1551 = vpack.c.bf16 %v1328, %v1325
      %v1552 = vpack.c.bf16 %v1336, %v1333
      %v1553 = vpack.c.bf16 %v1344, %v1341
      %v1554 = vpack.c.bf16 %v1352, %v1349
      %v1555 = vpack.c.bf16 %v1360, %v1357
      %v1556 = vpack.c.bf16 %v1368, %v1365
      %v1557 = vpack.c.bf16 %v1376, %v1373
      %v1558 = vpack.c.bf16 %v1384, %v1381
      %v1559 = vpack.c.bf16 %v1392, %v1389
      %v1560 = vpack.c.bf16 %v1400, %v1397
      %v1561 = vpack.c.bf16 %v1408, %v1405
      %v1562 = vpack.c.bf16 %v1416, %v1413
      %v1563 = vpack.c.bf16 %v1424, %v1421
      %v1564 = vpack.c.bf16 %v1432, %v1429
      %v1565 = vpack.c.bf16 %v1440, %v1437
      %v1566 = vpack.c.bf16 %v1448, %v1445
      %v1567 = vpack.c.bf16 %v1456, %v1453
      %v1568 = vpack.c.bf16 %v1464, %v1461
      %v1569 = vpack.c.bf16 %v1472, %v1469
      %v1570 = vpack.c.bf16 %v1480, %v1477
      %v1571 = vpack.c.bf16 %v1488, %v1485
      %v1572 = vpack.c.bf16 %v1496, %v1493
      %v1573 = vpack.c.bf16 %v1504, %v1501
      %v1574 = vpack.c.bf16 %v1512, %v1509
      %v1575 = vpack.c.bf16 %v1520, %v1517
      %v1576 = vpack.c.bf16 %v1528, %v1525
      %v1577 = vpack.c.bf16 %v1536, %v1533
      %v1578 = vpack.c.bf16 %v1544, %v1541
      %1579 = vxpose.xlu0.c.b16.start [1/8] %v1547, 128
      %1580 = vxpose.xlu0.c.b16.cont [2/8] %v1548, 128
      %1581 = vxpose.xlu0.c.b16.cont [3/8] %v1549, 128
      %1582 = vxpose.xlu0.c.b16.cont [4/8] %v1550, 128
      %1583 = vxpose.xlu0.c.b16.cont [5/8] %v1551, 128
      %1584 = vxpose.xlu0.c.b16.cont [6/8] %v1552, 128
      %1585 = vxpose.xlu0.c.b16.cont [7/8] %v1553, 128
      %1586 = vxpose.xlu0.c.b16.end [8/8] %v1554, 128
      %v1587 = vpop.trf.xlu0
      %v1588 = vpop.trf.xlu0
      %v1589 = vpop.trf.xlu0
      %v1590 = vpop.trf.xlu0
      %v1591 = vpop.trf.xlu0
      %v1592 = vpop.trf.xlu0
      %v1593 = vpop.trf.xlu0
      %v1594 = vpop.trf.xlu0
      %1595 = vxpose.xlu0.c.b16.start [1/8] %v1555, 128
      %1596 = vxpose.xlu0.c.b16.cont [2/8] %v1556, 128
      %1597 = vxpose.xlu0.c.b16.cont [3/8] %v1557, 128
      %1598 = vxpose.xlu0.c.b16.cont [4/8] %v1558, 128
      %1599 = vxpose.xlu0.c.b16.cont [5/8] %v1559, 128
      %1600 = vxpose.xlu0.c.b16.cont [6/8] %v1560, 128
      %1601 = vxpose.xlu0.c.b16.cont [7/8] %v1561, 128
      %1602 = vxpose.xlu0.c.b16.end [8/8] %v1562, 128
      %v1603 = vpop.trf.xlu0
      %v1604 = vpop.trf.xlu0
      %v1605 = vpop.trf.xlu0
      %v1606 = vpop.trf.xlu0
      %v1607 = vpop.trf.xlu0
      %v1608 = vpop.trf.xlu0
      %v1609 = vpop.trf.xlu0
      %v1610 = vpop.trf.xlu0
      %1611 = vst [vmem:[#allocation3] sm:$0xff] %v1587
      %1612 = vst [vmem:[#allocation3 + $0x8] sm:$0xff] %v1603
      %1613 = vst [vmem:[#allocation3 + $0x10] sm:$0xff] %v1588
      %1614 = vst [vmem:[#allocation3 + $0x18] sm:$0xff] %v1604
      %1615 = vst [vmem:[#allocation3 + $0x20] sm:$0xff] %v1589
      %1616 = vst [vmem:[#allocation3 + $0x28] sm:$0xff] %v1605
      %1617 = vst [vmem:[#allocation3 + $0x30] sm:$0xff] %v1590
      %1618 = vst [vmem:[#allocation3 + $0x38] sm:$0xff] %v1606
      %1619 = vst [vmem:[#allocation3 + $0x40] sm:$0xff] %v1591
      %1620 = vst [vmem:[#allocation3 + $0x48] sm:$0xff] %v1607
      %1621 = vst [vmem:[#allocation3 + $0x50] sm:$0xff] %v1592
      %1622 = vst [vmem:[#allocation3 + $0x58] sm:$0xff] %v1608
      %1623 = vst [vmem:[#allocation3 + $0x60] sm:$0xff] %v1593
      %1624 = vst [vmem:[#allocation3 + $0x68] sm:$0xff] %v1609
      %1625 = vst [vmem:[#allocation3 + $0x70] sm:$0xff] %v1594
      %1626 = vst [vmem:[#allocation3 + $0x78] sm:$0xff] %v1610
      %1627 = vxpose.xlu0.c.b16.start [1/8] %v1563, 128
      %1628 = vxpose.xlu0.c.b16.cont [2/8] %v1564, 128
      %1629 = vxpose.xlu0.c.b16.cont [3/8] %v1565, 128
      %1630 = vxpose.xlu0.c.b16.cont [4/8] %v1566, 128
      %1631 = vxpose.xlu0.c.b16.cont [5/8] %v1567, 128
      %1632 = vxpose.xlu0.c.b16.cont [6/8] %v1568, 128
      %1633 = vxpose.xlu0.c.b16.cont [7/8] %v1569, 128
      %1634 = vxpose.xlu0.c.b16.end [8/8] %v1570, 128
      %v1635 = vpop.trf.xlu0
      %v1636 = vpop.trf.xlu0
      %v1637 = vpop.trf.xlu0
      %v1638 = vpop.trf.xlu0
      %v1639 = vpop.trf.xlu0
      %v1640 = vpop.trf.xlu0
      %v1641 = vpop.trf.xlu0
      %v1642 = vpop.trf.xlu0
      %1643 = vxpose.xlu0.c.b16.start [1/8] %v1571, 128
      %1644 = vxpose.xlu0.c.b16.cont [2/8] %v1572, 128
      %1645 = vxpose.xlu0.c.b16.cont [3/8] %v1573, 128
      %1646 = vxpose.xlu0.c.b16.cont [4/8] %v1574, 128
      %1647 = vxpose.xlu0.c.b16.cont [5/8] %v1575, 128
      %1648 = vxpose.xlu0.c.b16.cont [6/8] %v1576, 128
      %1649 = vxpose.xlu0.c.b16.cont [7/8] %v1577, 128
      %1650 = vxpose.xlu0.c.b16.end [8/8] %v1578, 128
      %v1651 = vpop.trf.xlu0
      %v1652 = vpop.trf.xlu0
      %v1653 = vpop.trf.xlu0
      %v1654 = vpop.trf.xlu0
      %v1655 = vpop.trf.xlu0
      %v1656 = vpop.trf.xlu0
      %v1657 = vpop.trf.xlu0
      %v1658 = vpop.trf.xlu0
      %s1659 = scalar_lea.vmem [#allocation3], 128
      %1660 = vst [vmem:[%s1659] sm:$0xff] %v1635
      %1661 = vst [vmem:[%s1659 + $0x8] sm:$0xff] %v1651
      %1662 = vst [vmem:[%s1659 + $0x10] sm:$0xff] %v1636
      %1663 = vst [vmem:[%s1659 + $0x18] sm:$0xff] %v1652
      %1664 = vst [vmem:[%s1659 + $0x20] sm:$0xff] %v1637
      %1665 = vst [vmem:[%s1659 + $0x28] sm:$0xff] %v1653
      %1666 = vst [vmem:[%s1659 + $0x30] sm:$0xff] %v1638
      %1667 = vst [vmem:[%s1659 + $0x38] sm:$0xff] %v1654
      %1668 = vst [vmem:[%s1659 + $0x40] sm:$0xff] %v1639
      %1669 = vst [vmem:[%s1659 + $0x48] sm:$0xff] %v1655
      %1670 = vst [vmem:[%s1659 + $0x50] sm:$0xff] %v1640
      %1671 = vst [vmem:[%s1659 + $0x58] sm:$0xff] %v1656
      %1672 = vst [vmem:[%s1659 + $0x60] sm:$0xff] %v1641
      %1673 = vst [vmem:[%s1659 + $0x68] sm:$0xff] %v1657
      %1674 = vst [vmem:[%s1659 + $0x70] sm:$0xff] %v1642
      %1675 = vst [vmem:[%s1659 + $0x78] sm:$0xff] %v1658
      %v1676 = vld [vmem:[#allocation13] sm:$0xf]
      %v1677 = vld [vmem:[#allocation13 + $0x4] sm:$0xf]
      %v1678 = vld [vmem:[#allocation13 + $0x8] sm:$0xf]
      %v1679 = vld [vmem:[#allocation13 + $0xc] sm:$0xf]
      %v1680 = vld [vmem:[#allocation13 + $0x10] sm:$0xf]
      %v1681 = vld [vmem:[#allocation13 + $0x14] sm:$0xf]
      %v1682 = vld [vmem:[#allocation13 + $0x18] sm:$0xf]
      %v1683 = vld [vmem:[#allocation13 + $0x1c] sm:$0xf]
      %v1684 = vld [vmem:[#allocation13 + $0x20] sm:$0xf]
      %v1685 = vld [vmem:[#allocation13 + $0x24] sm:$0xf]
      %v1686 = vld [vmem:[#allocation13 + $0x28] sm:$0xf]
      %v1687 = vld [vmem:[#allocation13 + $0x2c] sm:$0xf]
      %v1688 = vld [vmem:[#allocation13 + $0x30] sm:$0xf]
      %v1689 = vld [vmem:[#allocation13 + $0x34] sm:$0xf]
      %v1690 = vld [vmem:[#allocation13 + $0x38] sm:$0xf]
      %v1691 = vld [vmem:[#allocation13 + $0x3c] sm:$0xf]
      %v1692 = vld [vmem:[%s9] sm:$0x1]
      %v1694 = vlaneseq
      %v1695 = vshrl.u32 %v1694, 7
      %v1696 = vsub.s32 0, %v1695
      %v1697 = vrot.slane %v1692, %v1696
      %v1715 = vunpack.c.l.b16 %v1676
      %v1716 = vunpack.c.l.b16 %v1677
      %v1717 = vunpack.c.l.b16 %v1678
      %v1718 = vunpack.c.l.b16 %v1679
      %v1719 = vunpack.c.l.b16 %v1680
      %v1720 = vunpack.c.l.b16 %v1681
      %v1721 = vunpack.c.l.b16 %v1682
      %v1722 = vunpack.c.l.b16 %v1683
      %v1723 = vunpack.c.l.b16 %v1684
      %v1724 = vunpack.c.l.b16 %v1685
      %v1725 = vunpack.c.l.b16 %v1686
      %v1726 = vunpack.c.l.b16 %v1687
      %v1727 = vunpack.c.l.b16 %v1688
      %v1728 = vunpack.c.l.b16 %v1689
      %v1729 = vunpack.c.l.b16 %v1690
      %v1730 = vunpack.c.l.b16 %v1691
      %v1731 = vpack.c.b16 %v1716, %v1715
      %v1732 = vpack.c.b16 %v1718, %v1717
      %v1733 = vpack.c.b16 %v1720, %v1719
      %v1734 = vpack.c.b16 %v1722, %v1721
      %v1735 = vpack.c.b16 %v1724, %v1723
      %v1736 = vpack.c.b16 %v1726, %v1725
      %v1737 = vpack.c.b16 %v1728, %v1727
      %v1738 = vpack.c.b16 %v1730, %v1729
      %1747 = vmatprep.subr.bf16.mxu0 0
      %1748 = vmatpush1.bf16.msra.mxu0 %v1731
      %1749 = vmatprep.subr.bf16.mxu0 0
      %1750 = vmatpush1.bf16.msra.mxu0 %v1732
      %1751 = vmatprep.subr.bf16.mxu0 0
      %1752 = vmatpush1.bf16.msra.mxu0 %v1733
      %1753 = vmatprep.subr.bf16.mxu0 0
      %1754 = vmatpush1.bf16.msra.mxu0 %v1734
      %1755 = vmatprep.subr.bf16.mxu0 0
      %1756 = vmatpush1.bf16.msra.mxu0 %v1735
      %1757 = vmatprep.subr.bf16.mxu0 0
      %1758 = vmatpush1.bf16.msra.mxu0 %v1736
      %1759 = vmatprep.subr.bf16.mxu0 0
      %1760 = vmatpush1.bf16.msra.mxu0 %v1737
      %1761 = vmatprep.subr.bf16.mxu0 0
      %1762 = vmatpush1.bf16.msra.mxu0 %v1738
      %1763 = vmatprep.subr.bf16.mxu0 0
      %1764 = vmatpush1.bf16.msra.mxu0 0
      %1765 = vmatprep.subr.bf16.mxu0 0
      %1766 = vmatpush1.bf16.msra.mxu0 0
      %1767 = vmatprep.subr.bf16.mxu0 0
      %1768 = vmatpush1.bf16.msra.mxu0 0
      %1769 = vmatprep.subr.bf16.mxu0 0
      %1770 = vmatpush1.bf16.msra.mxu0 0
      %1771 = vmatprep.subr.bf16.mxu0 0
      %1772 = vmatpush1.bf16.msra.mxu0 0
      %1773 = vmatprep.subr.bf16.mxu0 0
      %1774 = vmatpush1.bf16.msra.mxu0 0
      %1775 = vmatprep.subr.bf16.mxu0 0
      %1776 = vmatpush1.bf16.msra.mxu0 0
      %1777 = vmatprep.subr.bf16.mxu0 0
      %1778 = vmatpush1.bf16.msra.mxu0 0
      %1779 = vmatprep.mubr.bf16.mxu0 0
      %1780 = vmatmul.mubr.bf16.gmra.mrb[0].mxu0 %v731
      %v1781 = vpop.f32.mrb[0].mxu0
      %v1782 = vadd.f32 %v1697, %v1781
      %v1783 = vpop.f32.mrb[0].mxu0
      %v1784 = vpop.f32.mrb[0].mxu0
      %v1785 = vadd.f32 %v1697, %v1784
      %v1786 = vpop.f32.mrb[0].mxu0
      %1787 = vmatprep.mubr.bf16.mxu0 0
      %1788 = vmatmul.mubr.bf16.gmra.mrb[0].mxu0 %v732
      %v1789 = vpop.f32.mrb[0].mxu0
      %v1790 = vadd.f32 %v1697, %v1789
      %v1791 = vpop.f32.mrb[0].mxu0
      %v1792 = vpop.f32.mrb[0].mxu0
      %v1793 = vadd.f32 %v1697, %v1792
      %v1794 = vpop.f32.mrb[0].mxu0
      %1795 = vmatprep.mubr.bf16.mxu0 0
      %1796 = vmatmul.mubr.bf16.gmra.mrb[0].mxu0 %v733
      %v1797 = vpop.f32.mrb[0].mxu0
      %v1798 = vadd.f32 %v1697, %v1797
      %v1799 = vpop.f32.mrb[0].mxu0
      %v1800 = vpop.f32.mrb[0].mxu0
      %v1801 = vadd.f32 %v1697, %v1800
      %v1802 = vpop.f32.mrb[0].mxu0
      %1803 = vmatprep.mubr.bf16.mxu0 0
      %1804 = vmatmul.mubr.bf16.gmra.mrb[0].mxu0 %v734
      %v1805 = vpop.f32.mrb[0].mxu0
      %v1806 = vadd.f32 %v1697, %v1805
      %v1807 = vpop.f32.mrb[0].mxu0
      %v1808 = vpop.f32.mrb[0].mxu0
      %v1809 = vadd.f32 %v1697, %v1808
      %v1810 = vpop.f32.mrb[0].mxu0
      %1811 = vmatprep.mubr.bf16.mxu0 0
      %1812 = vmatmul.mubr.bf16.gmra.mrb[0].mxu0 %v735
      %v1813 = vpop.f32.mrb[0].mxu0
      %v1814 = vadd.f32 %v1697, %v1813
      %v1815 = vpop.f32.mrb[0].mxu0
      %v1816 = vpop.f32.mrb[0].mxu0
      %v1817 = vadd.f32 %v1697, %v1816
      %v1818 = vpop.f32.mrb[0].mxu0
      %1819 = vmatprep.mubr.bf16.mxu0 0
      %1820 = vmatmul.mubr.bf16.gmra.mrb[0].mxu0 %v736
      %v1821 = vpop.f32.mrb[0].mxu0
      %v1822 = vadd.f32 %v1697, %v1821
      %v1823 = vpop.f32.mrb[0].mxu0
      %v1824 = vpop.f32.mrb[0].mxu0
      %v1825 = vadd.f32 %v1697, %v1824
      %v1826 = vpop.f32.mrb[0].mxu0
      %1827 = vmatprep.mubr.bf16.mxu0 0
      %1828 = vmatmul.mubr.bf16.gmra.mrb[0].mxu0 %v737
      %v1829 = vpop.f32.mrb[0].mxu0
      %v1830 = vadd.f32 %v1697, %v1829
      %v1831 = vpop.f32.mrb[0].mxu0
      %v1832 = vpop.f32.mrb[0].mxu0
      %v1833 = vadd.f32 %v1697, %v1832
      %v1834 = vpop.f32.mrb[0].mxu0
      %1835 = vmatprep.mubr.bf16.mxu0 0
      %1836 = vmatmul.mubr.bf16.gmra.mrb[0].mxu0 %v738
      %v1837 = vpop.f32.mrb[0].mxu0
      %v1838 = vadd.f32 %v1697, %v1837
      %v1839 = vpop.f32.mrb[0].mxu0
      %v1840 = vpop.f32.mrb[0].mxu0
      %v1841 = vadd.f32 %v1697, %v1840
      %v1842 = vpop.f32.mrb[0].mxu0
      %1843 = vmatprep.mubr.bf16.mxu0 0
      %1844 = vmatmul.mubr.bf16.gmra.mrb[0].mxu0 %v739
      %v1845 = vpop.f32.mrb[0].mxu0
      %v1846 = vadd.f32 %v1697, %v1845
      %v1847 = vpop.f32.mrb[0].mxu0
      %v1848 = vpop.f32.mrb[0].mxu0
      %v1849 = vadd.f32 %v1697, %v1848
      %v1850 = vpop.f32.mrb[0].mxu0
      %1851 = vmatprep.mubr.bf16.mxu0 0
      %1852 = vmatmul.mubr.bf16.gmra.mrb[0].mxu0 %v740
      %v1853 = vpop.f32.mrb[0].mxu0
      %v1854 = vadd.f32 %v1697, %v1853
      %v1855 = vpop.f32.mrb[0].mxu0
      %v1856 = vpop.f32.mrb[0].mxu0
      %v1857 = vadd.f32 %v1697, %v1856
      %v1858 = vpop.f32.mrb[0].mxu0
      %1859 = vmatprep.mubr.bf16.mxu0 0
      %1860 = vmatmul.mubr.bf16.gmra.mrb[0].mxu0 %v741
      %v1861 = vpop.f32.mrb[0].mxu0
      %v1862 = vadd.f32 %v1697, %v1861
      %v1863 = vpop.f32.mrb[0].mxu0
      %v1864 = vpop.f32.mrb[0].mxu0
      %v1865 = vadd.f32 %v1697, %v1864
      %v1866 = vpop.f32.mrb[0].mxu0
      %1867 = vmatprep.mubr.bf16.mxu0 0
      %1868 = vmatmul.mubr.bf16.gmra.mrb[0].mxu0 %v742
      %v1869 = vpop.f32.mrb[0].mxu0
      %v1870 = vadd.f32 %v1697, %v1869
      %v1871 = vpop.f32.mrb[0].mxu0
      %v1872 = vpop.f32.mrb[0].mxu0
      %v1873 = vadd.f32 %v1697, %v1872
      %v1874 = vpop.f32.mrb[0].mxu0
      %1875 = vmatprep.mubr.bf16.mxu0 0
      %1876 = vmatmul.mubr.bf16.gmra.mrb[0].mxu0 %v743
      %v1877 = vpop.f32.mrb[0].mxu0
      %v1878 = vadd.f32 %v1697, %v1877
      %v1879 = vpop.f32.mrb[0].mxu0
      %v1880 = vpop.f32.mrb[0].mxu0
      %v1881 = vadd.f32 %v1697, %v1880
      %v1882 = vpop.f32.mrb[0].mxu0
      %1883 = vmatprep.mubr.bf16.mxu0 0
      %1884 = vmatmul.mubr.bf16.gmra.mrb[0].mxu0 %v744
      %v1885 = vpop.f32.mrb[0].mxu0
      %v1886 = vadd.f32 %v1697, %v1885
      %v1887 = vpop.f32.mrb[0].mxu0
      %v1888 = vpop.f32.mrb[0].mxu0
      %v1889 = vadd.f32 %v1697, %v1888
      %v1890 = vpop.f32.mrb[0].mxu0
      %1891 = vmatprep.mubr.bf16.mxu0 0
      %1892 = vmatmul.mubr.bf16.gmra.mrb[0].mxu0 %v745
      %v1893 = vpop.f32.mrb[0].mxu0
      %v1894 = vadd.f32 %v1697, %v1893
      %v1895 = vpop.f32.mrb[0].mxu0
      %v1896 = vpop.f32.mrb[0].mxu0
      %v1897 = vadd.f32 %v1697, %v1896
      %v1898 = vpop.f32.mrb[0].mxu0
      %1899 = vmatprep.mubr.bf16.mxu0 0
      %1900 = vmatmul.mubr.bf16.gmra.mrb[0].mxu0 %v746
      %v1901 = vpop.f32.mrb[0].mxu0
      %v1902 = vadd.f32 %v1697, %v1901
      %v1903 = vpop.f32.mrb[0].mxu0
      %v1904 = vpop.f32.mrb[0].mxu0
      %v1905 = vadd.f32 %v1697, %v1904
      %v1906 = vpop.f32.mrb[0].mxu0
      %1907 = vmatprep.mubr.bf16.mxu0 0
      %1908 = vmatmul.mubr.bf16.gmra.mrb[0].mxu0 %v747
      %v1909 = vpop.f32.mrb[0].mxu0
      %v1910 = vadd.f32 %v1697, %v1909
      %v1911 = vpop.f32.mrb[0].mxu0
      %v1912 = vpop.f32.mrb[0].mxu0
      %v1913 = vadd.f32 %v1697, %v1912
      %v1914 = vpop.f32.mrb[0].mxu0
      %1915 = vmatprep.mubr.bf16.mxu0 0
      %1916 = vmatmul.mubr.bf16.gmra.mrb[0].mxu0 %v748
      %v1917 = vpop.f32.mrb[0].mxu0
      %v1918 = vadd.f32 %v1697, %v1917
      %v1919 = vpop.f32.mrb[0].mxu0
      %v1920 = vpop.f32.mrb[0].mxu0
      %v1921 = vadd.f32 %v1697, %v1920
      %v1922 = vpop.f32.mrb[0].mxu0
      %1923 = vmatprep.mubr.bf16.mxu0 0
      %1924 = vmatmul.mubr.bf16.gmra.mrb[0].mxu0 %v749
      %v1925 = vpop.f32.mrb[0].mxu0
      %v1926 = vadd.f32 %v1697, %v1925
      %v1927 = vpop.f32.mrb[0].mxu0
      %v1928 = vpop.f32.mrb[0].mxu0
      %v1929 = vadd.f32 %v1697, %v1928
      %v1930 = vpop.f32.mrb[0].mxu0
      %1931 = vmatprep.mubr.bf16.mxu0 0
      %1932 = vmatmul.mubr.bf16.gmra.mrb[0].mxu0 %v750
      %v1933 = vpop.f32.mrb[0].mxu0
      %v1934 = vadd.f32 %v1697, %v1933
      %v1935 = vpop.f32.mrb[0].mxu0
      %v1936 = vpop.f32.mrb[0].mxu0
      %v1937 = vadd.f32 %v1697, %v1936
      %v1938 = vpop.f32.mrb[0].mxu0
      %1939 = vmatprep.mubr.bf16.mxu0 0
      %1940 = vmatmul.mubr.bf16.gmra.mrb[0].mxu0 %v751
      %v1941 = vpop.f32.mrb[0].mxu0
      %v1942 = vadd.f32 %v1697, %v1941
      %v1943 = vpop.f32.mrb[0].mxu0
      %v1944 = vpop.f32.mrb[0].mxu0
      %v1945 = vadd.f32 %v1697, %v1944
      %v1946 = vpop.f32.mrb[0].mxu0
      %1947 = vmatprep.mubr.bf16.mxu0 0
      %1948 = vmatmul.mubr.bf16.gmra.mrb[0].mxu0 %v752
      %v1949 = vpop.f32.mrb[0].mxu0
      %v1950 = vadd.f32 %v1697, %v1949
      %v1951 = vpop.f32.mrb[0].mxu0
      %v1952 = vpop.f32.mrb[0].mxu0
      %v1953 = vadd.f32 %v1697, %v1952
      %v1954 = vpop.f32.mrb[0].mxu0
      %1955 = vmatprep.mubr.bf16.mxu0 0
      %1956 = vmatmul.mubr.bf16.gmra.mrb[0].mxu0 %v753
      %v1957 = vpop.f32.mrb[0].mxu0
      %v1958 = vadd.f32 %v1697, %v1957
      %v1959 = vpop.f32.mrb[0].mxu0
      %v1960 = vpop.f32.mrb[0].mxu0
      %v1961 = vadd.f32 %v1697, %v1960
      %v1962 = vpop.f32.mrb[0].mxu0
      %1963 = vmatprep.mubr.bf16.mxu0 0
      %1964 = vmatmul.mubr.bf16.gmra.mrb[0].mxu0 %v754
      %v1965 = vpop.f32.mrb[0].mxu0
      %v1966 = vadd.f32 %v1697, %v1965
      %v1967 = vpop.f32.mrb[0].mxu0
      %v1968 = vpop.f32.mrb[0].mxu0
      %v1969 = vadd.f32 %v1697, %v1968
      %v1970 = vpop.f32.mrb[0].mxu0
      %1971 = vmatprep.mubr.bf16.mxu0 0
      %1972 = vmatmul.mubr.bf16.gmra.mrb[0].mxu0 %v755
      %v1973 = vpop.f32.mrb[0].mxu0
      %v1974 = vadd.f32 %v1697, %v1973
      %v1975 = vpop.f32.mrb[0].mxu0
      %v1976 = vpop.f32.mrb[0].mxu0
      %v1977 = vadd.f32 %v1697, %v1976
      %v1978 = vpop.f32.mrb[0].mxu0
      %1979 = vmatprep.mubr.bf16.mxu0 0
      %1980 = vmatmul.mubr.bf16.gmra.mrb[0].mxu0 %v756
      %v1981 = vpop.f32.mrb[0].mxu0
      %v1982 = vadd.f32 %v1697, %v1981
      %v1983 = vpop.f32.mrb[0].mxu0
      %v1984 = vpop.f32.mrb[0].mxu0
      %v1985 = vadd.f32 %v1697, %v1984
      %v1986 = vpop.f32.mrb[0].mxu0
      %1987 = vmatprep.mubr.bf16.mxu0 0
      %1988 = vmatmul.mubr.bf16.gmra.mrb[0].mxu0 %v757
      %v1989 = vpop.f32.mrb[0].mxu0
      %v1990 = vadd.f32 %v1697, %v1989
      %v1991 = vpop.f32.mrb[0].mxu0
      %v1992 = vpop.f32.mrb[0].mxu0
      %v1993 = vadd.f32 %v1697, %v1992
      %v1994 = vpop.f32.mrb[0].mxu0
      %1995 = vmatprep.mubr.bf16.mxu0 0
      %1996 = vmatmul.mubr.bf16.gmra.mrb[0].mxu0 %v758
      %v1997 = vpop.f32.mrb[0].mxu0
      %v1998 = vadd.f32 %v1697, %v1997
      %v1999 = vpop.f32.mrb[0].mxu0
      %v2000 = vpop.f32.mrb[0].mxu0
      %v2001 = vadd.f32 %v1697, %v2000
      %v2002 = vpop.f32.mrb[0].mxu0
      %2003 = vmatprep.mubr.bf16.mxu0 0
      %2004 = vmatmul.mubr.bf16.gmra.mrb[0].mxu0 %v759
      %v2005 = vpop.f32.mrb[0].mxu0
      %v2006 = vadd.f32 %v1697, %v2005
      %v2007 = vpop.f32.mrb[0].mxu0
      %v2008 = vpop.f32.mrb[0].mxu0
      %v2009 = vadd.f32 %v1697, %v2008
      %v2010 = vpop.f32.mrb[0].mxu0
      %2011 = vmatprep.mubr.bf16.mxu0 0
      %2012 = vmatmul.mubr.bf16.gmra.mrb[0].mxu0 %v760
      %v2013 = vpop.f32.mrb[0].mxu0
      %v2014 = vadd.f32 %v1697, %v2013
      %v2015 = vpop.f32.mrb[0].mxu0
      %v2016 = vpop.f32.mrb[0].mxu0
      %v2017 = vadd.f32 %v1697, %v2016
      %v2018 = vpop.f32.mrb[0].mxu0
      %2019 = vmatprep.mubr.bf16.mxu0 0
      %2020 = vmatmul.mubr.bf16.gmra.mrb[0].mxu0 %v761
      %v2021 = vpop.f32.mrb[0].mxu0
      %v2022 = vadd.f32 %v1697, %v2021
      %v2023 = vpop.f32.mrb[0].mxu0
      %v2024 = vpop.f32.mrb[0].mxu0
      %v2025 = vadd.f32 %v1697, %v2024
      %v2026 = vpop.f32.mrb[0].mxu0
      %2027 = vmatprep.mubr.bf16.mxu0 0
      %2028 = vmatmul.mubr.bf16.gmra.mrb[0].mxu0 %v762
      %v2029 = vpop.f32.mrb[0].mxu0
      %v2030 = vadd.f32 %v1697, %v2029
      %v2031 = vpop.f32.mrb[0].mxu0
      %v2032 = vpop.f32.mrb[0].mxu0
      %v2033 = vadd.f32 %v1697, %v2032
      %v2034 = vpop.f32.mrb[0].mxu0
      %2035 = vdwg.mxu0
      %v2036 = vpack.c.bf16 %v1785, %v1782
      %v2037 = vpack.c.bf16 %v1793, %v1790
      %v2038 = vpack.c.bf16 %v1801, %v1798
      %v2039 = vpack.c.bf16 %v1809, %v1806
      %v2040 = vpack.c.bf16 %v1817, %v1814
      %v2041 = vpack.c.bf16 %v1825, %v1822
      %v2042 = vpack.c.bf16 %v1833, %v1830
      %v2043 = vpack.c.bf16 %v1841, %v1838
      %v2044 = vpack.c.bf16 %v1849, %v1846
      %v2045 = vpack.c.bf16 %v1857, %v1854
      %v2046 = vpack.c.bf16 %v1865, %v1862
      %v2047 = vpack.c.bf16 %v1873, %v1870
      %v2048 = vpack.c.bf16 %v1881, %v1878
      %v2049 = vpack.c.bf16 %v1889, %v1886
      %v2050 = vpack.c.bf16 %v1897, %v1894
      %v2051 = vpack.c.bf16 %v1905, %v1902
      %v2052 = vpack.c.bf16 %v1913, %v1910
      %v2053 = vpack.c.bf16 %v1921, %v1918
      %v2054 = vpack.c.bf16 %v1929, %v1926
      %v2055 = vpack.c.bf16 %v1937, %v1934
      %v2056 = vpack.c.bf16 %v1945, %v1942
      %v2057 = vpack.c.bf16 %v1953, %v1950
      %v2058 = vpack.c.bf16 %v1961, %v1958
      %v2059 = vpack.c.bf16 %v1969, %v1966
      %v2060 = vpack.c.bf16 %v1977, %v1974
      %v2061 = vpack.c.bf16 %v1985, %v1982
      %v2062 = vpack.c.bf16 %v1993, %v1990
      %v2063 = vpack.c.bf16 %v2001, %v1998
      %v2064 = vpack.c.bf16 %v2009, %v2006
      %v2065 = vpack.c.bf16 %v2017, %v2014
      %v2066 = vpack.c.bf16 %v2025, %v2022
      %v2067 = vpack.c.bf16 %v2033, %v2030
      %2068 = vst [vmem:[#allocation4] sm:$0xff] %v2036
      %2069 = vst [vmem:[#allocation4 + $0x8] sm:$0xff] %v2037
      %2070 = vst [vmem:[#allocation4 + $0x10] sm:$0xff] %v2038
      %2071 = vst [vmem:[#allocation4 + $0x18] sm:$0xff] %v2039
      %2072 = vst [vmem:[#allocation4 + $0x20] sm:$0xff] %v2040
      %2073 = vst [vmem:[#allocation4 + $0x28] sm:$0xff] %v2041
      %2074 = vst [vmem:[#allocation4 + $0x30] sm:$0xff] %v2042
      %2075 = vst [vmem:[#allocation4 + $0x38] sm:$0xff] %v2043
      %2076 = vst [vmem:[#allocation4 + $0x40] sm:$0xff] %v2044
      %2077 = vst [vmem:[#allocation4 + $0x48] sm:$0xff] %v2045
      %2078 = vst [vmem:[#allocation4 + $0x50] sm:$0xff] %v2046
      %2079 = vst [vmem:[#allocation4 + $0x58] sm:$0xff] %v2047
      %2080 = vst [vmem:[#allocation4 + $0x60] sm:$0xff] %v2048
      %2081 = vst [vmem:[#allocation4 + $0x68] sm:$0xff] %v2049
      %2082 = vst [vmem:[#allocation4 + $0x70] sm:$0xff] %v2050
      %2083 = vst [vmem:[#allocation4 + $0x78] sm:$0xff] %v2051
      %2084 = vst [vmem:[#allocation4 + $0x80] sm:$0xff] %v2052
      %2085 = vst [vmem:[#allocation4 + $0x88] sm:$0xff] %v2053
      %2086 = vst [vmem:[#allocation4 + $0x90] sm:$0xff] %v2054
      %2087 = vst [vmem:[#allocation4 + $0x98] sm:$0xff] %v2055
      %2088 = vst [vmem:[#allocation4 + $0xa0] sm:$0xff] %v2056
      %2089 = vst [vmem:[#allocation4 + $0xa8] sm:$0xff] %v2057
      %2090 = vst [vmem:[#allocation4 + $0xb0] sm:$0xff] %v2058
      %2091 = vst [vmem:[#allocation4 + $0xb8] sm:$0xff] %v2059
      %2092 = vst [vmem:[#allocation4 + $0xc0] sm:$0xff] %v2060
      %2093 = vst [vmem:[#allocation4 + $0xc8] sm:$0xff] %v2061
      %2094 = vst [vmem:[#allocation4 + $0xd0] sm:$0xff] %v2062
      %2095 = vst [vmem:[#allocation4 + $0xd8] sm:$0xff] %v2063
      %2096 = vst [vmem:[#allocation4 + $0xe0] sm:$0xff] %v2064
      %2097 = vst [vmem:[#allocation4 + $0xe8] sm:$0xff] %v2065
      %2098 = vst [vmem:[#allocation4 + $0xf0] sm:$0xff] %v2066
      %2099 = vst [vmem:[#allocation4 + $0xf8] sm:$0xff] %v2067
    $region77: #{tpu_custom_call.1} parent=1 // pred_fallthru
      _
    %s2100 = smul.u32 0, 256
    %s2101 = sshra.s32 %s2100, 4
    %s2102 = sand.u32 %s2100, 15
    %s2103 = smul.addr %s2101, 8
    %s2104 = scalar_lea.vmem [#allocation2], %s2103
    %v2105 = vld [vmem:[%s2104] sm:$0xff]
    %v2106 = vld [vmem:[%s2104 + $0x8] sm:$0xff]
    %v2107 = vld [vmem:[%s2104 + $0x10] sm:$0xff]
    %v2108 = vld [vmem:[%s2104 + $0x18] sm:$0xff]
    %v2109 = vld [vmem:[%s2104 + $0x20] sm:$0xff]
    %v2110 = vld [vmem:[%s2104 + $0x28] sm:$0xff]
    %v2111 = vld [vmem:[%s2104 + $0x30] sm:$0xff]
    %v2112 = vld [vmem:[%s2104 + $0x38] sm:$0xff]
    %v2113 = vld [vmem:[%s2104 + $0x40] sm:$0xff]
    %v2114 = vld [vmem:[%s2104 + $0x48] sm:$0xff]
    %v2115 = vld [vmem:[%s2104 + $0x50] sm:$0xff]
    %v2116 = vld [vmem:[%s2104 + $0x58] sm:$0xff]
    %v2117 = vld [vmem:[%s2104 + $0x60] sm:$0xff]
    %v2118 = vld [vmem:[%s2104 + $0x68] sm:$0xff]
    %v2119 = vld [vmem:[%s2104 + $0x70] sm:$0xff]
    %v2120 = vld [vmem:[%s2104 + $0x78] sm:$0xff]
    %v2121 = vld [vmem:[%s2104 + $0x80] sm:$0xff]
    %v2122 = vld [vmem:[%s2104 + $0x88] sm:$0xff]
    %v2123 = vld [vmem:[%s2104 + $0x90] sm:$0xff]
    %v2124 = vld [vmem:[%s2104 + $0x98] sm:$0xff]
    %v2125 = vld [vmem:[%s2104 + $0xa0] sm:$0xff]
    %v2126 = vld [vmem:[%s2104 + $0xa8] sm:$0xff]
    %v2127 = vld [vmem:[%s2104 + $0xb0] sm:$0xff]
    %v2128 = vld [vmem:[%s2104 + $0xb8] sm:$0xff]
    %v2129 = vld [vmem:[%s2104 + $0xc0] sm:$0xff]
    %v2130 = vld [vmem:[%s2104 + $0xc8] sm:$0xff]
    %v2131 = vld [vmem:[%s2104 + $0xd0] sm:$0xff]
    %v2132 = vld [vmem:[%s2104 + $0xd8] sm:$0xff]
    %v2133 = vld [vmem:[%s2104 + $0xe0] sm:$0xff]
    %v2134 = vld [vmem:[%s2104 + $0xe8] sm:$0xff]
    %v2135 = vld [vmem:[%s2104 + $0xf0] sm:$0xff]
    %v2136 = vld [vmem:[%s2104 + $0xf8] sm:$0xff]
    %v2137 = vld [vmem:[#allocation3] sm:$0xff]
    %v2138 = vld [vmem:[#allocation3 + $0x8] sm:$0xff]
    %v2139 = vld [vmem:[#allocation3 + $0x10] sm:$0xff]
    %v2140 = vld [vmem:[#allocation3 + $0x18] sm:$0xff]
    %v2141 = vld [vmem:[#allocation3 + $0x20] sm:$0xff]
    %v2142 = vld [vmem:[#allocation3 + $0x28] sm:$0xff]
    %v2143 = vld [vmem:[#allocation3 + $0x30] sm:$0xff]
    %v2144 = vld [vmem:[#allocation3 + $0x38] sm:$0xff]
    %v2145 = vld [vmem:[#allocation3 + $0x40] sm:$0xff]
    %v2146 = vld [vmem:[#allocation3 + $0x48] sm:$0xff]
    %v2147 = vld [vmem:[#allocation3 + $0x50] sm:$0xff]
    %v2148 = vld [vmem:[#allocation3 + $0x58] sm:$0xff]
    %v2149 = vld [vmem:[#allocation3 + $0x60] sm:$0xff]
    %v2150 = vld [vmem:[#allocation3 + $0x68] sm:$0xff]
    %v2151 = vld [vmem:[#allocation3 + $0x70] sm:$0xff]
    %v2152 = vld [vmem:[#allocation3 + $0x78] sm:$0xff]
    %v2153 = vld [vmem:[#allocation3 + $0x80] sm:$0xff]
    %v2154 = vld [vmem:[#allocation3 + $0x88] sm:$0xff]
    %v2155 = vld [vmem:[#allocation3 + $0x90] sm:$0xff]
    %v2156 = vld [vmem:[#allocation3 + $0x98] sm:$0xff]
    %v2157 = vld [vmem:[#allocation3 + $0xa0] sm:$0xff]
    %v2158 = vld [vmem:[#allocation3 + $0xa8] sm:$0xff]
    %v2159 = vld [vmem:[#allocation3 + $0xb0] sm:$0xff]
    %v2160 = vld [vmem:[#allocation3 + $0xb8] sm:$0xff]
    %v2161 = vld [vmem:[#allocation3 + $0xc0] sm:$0xff]
    %v2162 = vld [vmem:[#allocation3 + $0xc8] sm:$0xff]
    %v2163 = vld [vmem:[#allocation3 + $0xd0] sm:$0xff]
    %v2164 = vld [vmem:[#allocation3 + $0xd8] sm:$0xff]
    %v2165 = vld [vmem:[#allocation3 + $0xe0] sm:$0xff]
    %v2166 = vld [vmem:[#allocation3 + $0xe8] sm:$0xff]
    %v2167 = vld [vmem:[#allocation3 + $0xf0] sm:$0xff]
    %v2168 = vld [vmem:[#allocation3 + $0xf8] sm:$0xff]
    %2169 = vmatprep.subr.bf16.mxu0 %v2138
    %2170 = vmatpush1.bf16.msra.mxu0 %v2137
    %2171 = vmatprep.subr.bf16.mxu0 %v2140
    %2172 = vmatpush1.bf16.msra.mxu0 %v2139
    %2173 = vmatprep.subr.bf16.mxu0 %v2142
    %2174 = vmatpush1.bf16.msra.mxu0 %v2141
    %2175 = vmatprep.subr.bf16.mxu0 %v2144
    %2176 = vmatpush1.bf16.msra.mxu0 %v2143
    %2177 = vmatprep.subr.bf16.mxu0 %v2146
    %2178 = vmatpush1.bf16.msra.mxu0 %v2145
    %2179 = vmatprep.subr.bf16.mxu0 %v2148
    %2180 = vmatpush1.bf16.msra.mxu0 %v2147
    %2181 = vmatprep.subr.bf16.mxu0 %v2150
    %2182 = vmatpush1.bf16.msra.mxu0 %v2149
    %2183 = vmatprep.subr.bf16.mxu0 %v2152
    %2184 = vmatpush1.bf16.msra.mxu0 %v2151
    %2185 = vmatprep.subr.bf16.mxu0 0
    %2186 = vmatpush1.bf16.msra.mxu0 0
    %2187 = vmatprep.subr.bf16.mxu0 0
    %2188 = vmatpush1.bf16.msra.mxu0 0
    %2189 = vmatprep.subr.bf16.mxu0 0
    %2190 = vmatpush1.bf16.msra.mxu0 0
    %2191 = vmatprep.subr.bf16.mxu0 0
    %2192 = vmatpush1.bf16.msra.mxu0 0
    %2193 = vmatprep.subr.bf16.mxu0 0
    %2194 = vmatpush1.bf16.msra.mxu0 0
    %2195 = vmatprep.subr.bf16.mxu0 0
    %2196 = vmatpush1.bf16.msra.mxu0 0
    %2197 = vmatprep.subr.bf16.mxu0 0
    %2198 = vmatpush1.bf16.msra.mxu0 0
    %2199 = vmatprep.subr.bf16.mxu0 0
    %2200 = vmatpush1.bf16.msra.mxu0 0
    %2201 = vmatprep.mubr.bf16.mxu0 0
    %2202 = vmatmul.mubr.bf16.gmra.mrb[0].mxu0 %v2105
    %v2203 = vpop.f32.mrb[0].mxu0
    %v2204 = vadd.f32 0.0, %v2203
    %v2205 = vpop.f32.mrb[0].mxu0
    %v2206 = vadd.f32 0.0, %v2205
    %v2207 = vpop.f32.mrb[0].mxu0
    %v2208 = vadd.f32 0.0, %v2207
    %v2209 = vpop.f32.mrb[0].mxu0
    %v2210 = vadd.f32 0.0, %v2209
    %2211 = vmatprep.mubr.bf16.mxu0 0
    %2212 = vmatmul.mubr.bf16.gmra.mrb[0].mxu0 %v2106
    %v2213 = vpop.f32.mrb[0].mxu0
    %v2214 = vadd.f32 0.0, %v2213
    %v2215 = vpop.f32.mrb[0].mxu0
    %v2216 = vadd.f32 0.0, %v2215
    %v2217 = vpop.f32.mrb[0].mxu0
    %v2218 = vadd.f32 0.0, %v2217
    %v2219 = vpop.f32.mrb[0].mxu0
    %v2220 = vadd.f32 0.0, %v2219
    %2221 = vmatprep.mubr.bf16.mxu0 0
    %2222 = vmatmul.mubr.bf16.gmra.mrb[0].mxu0 %v2107
    %v2223 = vpop.f32.mrb[0].mxu0
    %v2224 = vadd.f32 0.0, %v2223
    %v2225 = vpop.f32.mrb[0].mxu0
    %v2226 = vadd.f32 0.0, %v2225
    %v2227 = vpop.f32.mrb[0].mxu0
    %v2228 = vadd.f32 0.0, %v2227
    %v2229 = vpop.f32.mrb[0].mxu0
    %v2230 = vadd.f32 0.0, %v2229
    %2231 = vmatprep.mubr.bf16.mxu0 0
    %2232 = vmatmul.mubr.bf16.gmra.mrb[0].mxu0 %v2108
    %v2233 = vpop.f32.mrb[0].mxu0
    %v2234 = vadd.f32 0.0, %v2233
    %v2235 = vpop.f32.mrb[0].mxu0
    %v2236 = vadd.f32 0.0, %v2235
    %v2237 = vpop.f32.mrb[0].mxu0
    %v2238 = vadd.f32 0.0, %v2237
    %v2239 = vpop.f32.mrb[0].mxu0
    %v2240 = vadd.f32 0.0, %v2239
    %2241 = vmatprep.mubr.bf16.mxu0 0
    %2242 = vmatmul.mubr.bf16.gmra.mrb[0].mxu0 %v2109
    %v2243 = vpop.f32.mrb[0].mxu0
    %v2244 = vadd.f32 0.0, %v2243
    %v2245 = vpop.f32.mrb[0].mxu0
    %v2246 = vadd.f32 0.0, %v2245
    %v2247 = vpop.f32.mrb[0].mxu0
    %v2248 = vadd.f32 0.0, %v2247
    %v2249 = vpop.f32.mrb[0].mxu0
    %v2250 = vadd.f32 0.0, %v2249
    %2251 = vmatprep.mubr.bf16.mxu0 0
    %2252 = vmatmul.mubr.bf16.gmra.mrb[0].mxu0 %v2110
    %v2253 = vpop.f32.mrb[0].mxu0
    %v2254 = vadd.f32 0.0, %v2253
    %v2255 = vpop.f32.mrb[0].mxu0
    %v2256 = vadd.f32 0.0, %v2255
    %v2257 = vpop.f32.mrb[0].mxu0
    %v2258 = vadd.f32 0.0, %v2257
    %v2259 = vpop.f32.mrb[0].mxu0
    %v2260 = vadd.f32 0.0, %v2259
    %2261 = vmatprep.mubr.bf16.mxu0 0
    %2262 = vmatmul.mubr.bf16.gmra.mrb[0].mxu0 %v2111
    %v2263 = vpop.f32.mrb[0].mxu0
    %v2264 = vadd.f32 0.0, %v2263
    %v2265 = vpop.f32.mrb[0].mxu0
    %v2266 = vadd.f32 0.0, %v2265
    %v2267 = vpop.f32.mrb[0].mxu0
    %v2268 = vadd.f32 0.0, %v2267
    %v2269 = vpop.f32.mrb[0].mxu0
    %v2270 = vadd.f32 0.0, %v2269
    %2271 = vmatprep.mubr.bf16.mxu0 0
    %2272 = vmatmul.mubr.bf16.gmra.mrb[0].mxu0 %v2112
    %v2273 = vpop.f32.mrb[0].mxu0
    %v2274 = vadd.f32 0.0, %v2273
    %v2275 = vpop.f32.mrb[0].mxu0
    %v2276 = vadd.f32 0.0, %v2275
    %v2277 = vpop.f32.mrb[0].mxu0
    %v2278 = vadd.f32 0.0, %v2277
    %v2279 = vpop.f32.mrb[0].mxu0
    %v2280 = vadd.f32 0.0, %v2279
    %2281 = vmatprep.mubr.bf16.mxu0 0
    %2282 = vmatmul.mubr.bf16.gmra.mrb[0].mxu0 %v2113
    %v2283 = vpop.f32.mrb[0].mxu0
    %v2284 = vadd.f32 0.0, %v2283
    %v2285 = vpop.f32.mrb[0].mxu0
    %v2286 = vadd.f32 0.0, %v2285
    %v2287 = vpop.f32.mrb[0].mxu0
    %v2288 = vadd.f32 0.0, %v2287
    %v2289 = vpop.f32.mrb[0].mxu0
    %v2290 = vadd.f32 0.0, %v2289
    %2291 = vmatprep.mubr.bf16.mxu0 0
    %2292 = vmatmul.mubr.bf16.gmra.mrb[0].mxu0 %v2114
    %v2293 = vpop.f32.mrb[0].mxu0
    %v2294 = vadd.f32 0.0, %v2293
    %v2295 = vpop.f32.mrb[0].mxu0
    %v2296 = vadd.f32 0.0, %v2295
    %v2297 = vpop.f32.mrb[0].mxu0
    %v2298 = vadd.f32 0.0, %v2297
    %v2299 = vpop.f32.mrb[0].mxu0
    %v2300 = vadd.f32 0.0, %v2299
    %2301 = vmatprep.mubr.bf16.mxu0 0
    %2302 = vmatmul.mubr.bf16.gmra.mrb[0].mxu0 %v2115
    %v2303 = vpop.f32.mrb[0].mxu0
    %v2304 = vadd.f32 0.0, %v2303
    %v2305 = vpop.f32.mrb[0].mxu0
    %v2306 = vadd.f32 0.0, %v2305
    %v2307 = vpop.f32.mrb[0].mxu0
    %v2308 = vadd.f32 0.0, %v2307
    %v2309 = vpop.f32.mrb[0].mxu0
    %v2310 = vadd.f32 0.0, %v2309
    %2311 = vmatprep.mubr.bf16.mxu0 0
    %2312 = vmatmul.mubr.bf16.gmra.mrb[0].mxu0 %v2116
    %v2313 = vpop.f32.mrb[0].mxu0
    %v2314 = vadd.f32 0.0, %v2313
    %v2315 = vpop.f32.mrb[0].mxu0
    %v2316 = vadd.f32 0.0, %v2315
    %v2317 = vpop.f32.mrb[0].mxu0
    %v2318 = vadd.f32 0.0, %v2317
    %v2319 = vpop.f32.mrb[0].mxu0
    %v2320 = vadd.f32 0.0, %v2319
    %2321 = vmatprep.mubr.bf16.mxu0 0
    %2322 = vmatmul.mubr.bf16.gmra.mrb[0].mxu0 %v2117
    %v2323 = vpop.f32.mrb[0].mxu0
    %v2324 = vadd.f32 0.0, %v2323
    %v2325 = vpop.f32.mrb[0].mxu0
    %v2326 = vadd.f32 0.0, %v2325
    %v2327 = vpop.f32.mrb[0].mxu0
    %v2328 = vadd.f32 0.0, %v2327
    %v2329 = vpop.f32.mrb[0].mxu0
    %v2330 = vadd.f32 0.0, %v2329
    %2331 = vmatprep.mubr.bf16.mxu0 0
    %2332 = vmatmul.mubr.bf16.gmra.mrb[0].mxu0 %v2118
    %v2333 = vpop.f32.mrb[0].mxu0
    %v2334 = vadd.f32 0.0, %v2333
    %v2335 = vpop.f32.mrb[0].mxu0
    %v2336 = vadd.f32 0.0, %v2335
    %v2337 = vpop.f32.mrb[0].mxu0
    %v2338 = vadd.f32 0.0, %v2337
    %v2339 = vpop.f32.mrb[0].mxu0
    %v2340 = vadd.f32 0.0, %v2339
    %2341 = vmatprep.mubr.bf16.mxu0 0
    %2342 = vmatmul.mubr.bf16.gmra.mrb[0].mxu0 %v2119
    %v2343 = vpop.f32.mrb[0].mxu0
    %v2344 = vadd.f32 0.0, %v2343
    %v2345 = vpop.f32.mrb[0].mxu0
    %v2346 = vadd.f32 0.0, %v2345
    %v2347 = vpop.f32.mrb[0].mxu0
    %v2348 = vadd.f32 0.0, %v2347
    %v2349 = vpop.f32.mrb[0].mxu0
    %v2350 = vadd.f32 0.0, %v2349
    %2351 = vmatprep.mubr.bf16.mxu0 0
    %2352 = vmatmul.mubr.bf16.gmra.mrb[0].mxu0 %v2120
    %v2353 = vpop.f32.mrb[0].mxu0
    %v2354 = vadd.f32 0.0, %v2353
    %v2355 = vpop.f32.mrb[0].mxu0
    %v2356 = vadd.f32 0.0, %v2355
    %v2357 = vpop.f32.mrb[0].mxu0
    %v2358 = vadd.f32 0.0, %v2357
    %v2359 = vpop.f32.mrb[0].mxu0
    %v2360 = vadd.f32 0.0, %v2359
    %2361 = vdwg.mxu0
    %2362 = vmatprep.subr.bf16.mxu0 %v2154
    %2363 = vmatpush1.bf16.msra.mxu0 %v2153
    %2364 = vmatprep.subr.bf16.mxu0 %v2156
    %2365 = vmatpush1.bf16.msra.mxu0 %v2155
    %2366 = vmatprep.subr.bf16.mxu0 %v2158
    %2367 = vmatpush1.bf16.msra.mxu0 %v2157
    %2368 = vmatprep.subr.bf16.mxu0 %v2160
    %2369 = vmatpush1.bf16.msra.mxu0 %v2159
    %2370 = vmatprep.subr.bf16.mxu0 %v2162
    %2371 = vmatpush1.bf16.msra.mxu0 %v2161
    %2372 = vmatprep.subr.bf16.mxu0 %v2164
    %2373 = vmatpush1.bf16.msra.mxu0 %v2163
    %2374 = vmatprep.subr.bf16.mxu0 %v2166
    %2375 = vmatpush1.bf16.msra.mxu0 %v2165
    %2376 = vmatprep.subr.bf16.mxu0 %v2168
    %2377 = vmatpush1.bf16.msra.mxu0 %v2167
    %2378 = vmatprep.subr.bf16.mxu0 0
    %2379 = vmatpush1.bf16.msra.mxu0 0
    %2380 = vmatprep.subr.bf16.mxu0 0
    %2381 = vmatpush1.bf16.msra.mxu0 0
    %2382 = vmatprep.subr.bf16.mxu0 0
    %2383 = vmatpush1.bf16.msra.mxu0 0
    %2384 = vmatprep.subr.bf16.mxu0 0
    %2385 = vmatpush1.bf16.msra.mxu0 0
    %2386 = vmatprep.subr.bf16.mxu0 0
    %2387 = vmatpush1.bf16.msra.mxu0 0
    %2388 = vmatprep.subr.bf16.mxu0 0
    %2389 = vmatpush1.bf16.msra.mxu0 0
    %2390 = vmatprep.subr.bf16.mxu0 0
    %2391 = vmatpush1.bf16.msra.mxu0 0
    %2392 = vmatprep.subr.bf16.mxu0 0
    %2393 = vmatpush1.bf16.msra.mxu0 0
    %2394 = vmatprep.mubr.bf16.mxu0 0
    %2395 = vmatmul.mubr.bf16.gmra.mrb[0].mxu0 %v2121
    %v2396 = vpop.f32.mrb[0].mxu0
    %v2397 = vadd.f32 0.0, %v2396
    %v2398 = vpop.f32.mrb[0].mxu0
    %v2399 = vadd.f32 0.0, %v2398
    %v2400 = vpop.f32.mrb[0].mxu0
    %v2401 = vadd.f32 0.0, %v2400
    %v2402 = vpop.f32.mrb[0].mxu0
    %v2403 = vadd.f32 0.0, %v2402
    %2404 = vmatprep.mubr.bf16.mxu0 0
    %2405 = vmatmul.mubr.bf16.gmra.mrb[0].mxu0 %v2122
    %v2406 = vpop.f32.mrb[0].mxu0
    %v2407 = vadd.f32 0.0, %v2406
    %v2408 = vpop.f32.mrb[0].mxu0
    %v2409 = vadd.f32 0.0, %v2408
    %v2410 = vpop.f32.mrb[0].mxu0
    %v2411 = vadd.f32 0.0, %v2410
    %v2412 = vpop.f32.mrb[0].mxu0
    %v2413 = vadd.f32 0.0, %v2412
    %2414 = vmatprep.mubr.bf16.mxu0 0
    %2415 = vmatmul.mubr.bf16.gmra.mrb[0].mxu0 %v2123
    %v2416 = vpop.f32.mrb[0].mxu0
    %v2417 = vadd.f32 0.0, %v2416
    %v2418 = vpop.f32.mrb[0].mxu0
    %v2419 = vadd.f32 0.0, %v2418
    %v2420 = vpop.f32.mrb[0].mxu0
    %v2421 = vadd.f32 0.0, %v2420
    %v2422 = vpop.f32.mrb[0].mxu0
    %v2423 = vadd.f32 0.0, %v2422
    %2424 = vmatprep.mubr.bf16.mxu0 0
    %2425 = vmatmul.mubr.bf16.gmra.mrb[0].mxu0 %v2124
    %v2426 = vpop.f32.mrb[0].mxu0
    %v2427 = vadd.f32 0.0, %v2426
    %v2428 = vpop.f32.mrb[0].mxu0
    %v2429 = vadd.f32 0.0, %v2428
    %v2430 = vpop.f32.mrb[0].mxu0
    %v2431 = vadd.f32 0.0, %v2430
    %v2432 = vpop.f32.mrb[0].mxu0
    %v2433 = vadd.f32 0.0, %v2432
    %2434 = vmatprep.mubr.bf16.mxu0 0
    %2435 = vmatmul.mubr.bf16.gmra.mrb[0].mxu0 %v2125
    %v2436 = vpop.f32.mrb[0].mxu0
    %v2437 = vadd.f32 0.0, %v2436
    %v2438 = vpop.f32.mrb[0].mxu0
    %v2439 = vadd.f32 0.0, %v2438
    %v2440 = vpop.f32.mrb[0].mxu0
    %v2441 = vadd.f32 0.0, %v2440
    %v2442 = vpop.f32.mrb[0].mxu0
    %v2443 = vadd.f32 0.0, %v2442
    %2444 = vmatprep.mubr.bf16.mxu0 0
    %2445 = vmatmul.mubr.bf16.gmra.mrb[0].mxu0 %v2126
    %v2446 = vpop.f32.mrb[0].mxu0
    %v2447 = vadd.f32 0.0, %v2446
    %v2448 = vpop.f32.mrb[0].mxu0
    %v2449 = vadd.f32 0.0, %v2448
    %v2450 = vpop.f32.mrb[0].mxu0
    %v2451 = vadd.f32 0.0, %v2450
    %v2452 = vpop.f32.mrb[0].mxu0
    %v2453 = vadd.f32 0.0, %v2452
    %2454 = vmatprep.mubr.bf16.mxu0 0
    %2455 = vmatmul.mubr.bf16.gmra.mrb[0].mxu0 %v2127
    %v2456 = vpop.f32.mrb[0].mxu0
    %v2457 = vadd.f32 0.0, %v2456
    %v2458 = vpop.f32.mrb[0].mxu0
    %v2459 = vadd.f32 0.0, %v2458
    %v2460 = vpop.f32.mrb[0].mxu0
    %v2461 = vadd.f32 0.0, %v2460
    %v2462 = vpop.f32.mrb[0].mxu0
    %v2463 = vadd.f32 0.0, %v2462
    %2464 = vmatprep.mubr.bf16.mxu0 0
    %2465 = vmatmul.mubr.bf16.gmra.mrb[0].mxu0 %v2128
    %v2466 = vpop.f32.mrb[0].mxu0
    %v2467 = vadd.f32 0.0, %v2466
    %v2468 = vpop.f32.mrb[0].mxu0
    %v2469 = vadd.f32 0.0, %v2468
    %v2470 = vpop.f32.mrb[0].mxu0
    %v2471 = vadd.f32 0.0, %v2470
    %v2472 = vpop.f32.mrb[0].mxu0
    %v2473 = vadd.f32 0.0, %v2472
    %2474 = vmatprep.mubr.bf16.mxu0 0
    %2475 = vmatmul.mubr.bf16.gmra.mrb[0].mxu0 %v2129
    %v2476 = vpop.f32.mrb[0].mxu0
    %v2477 = vadd.f32 0.0, %v2476
    %v2478 = vpop.f32.mrb[0].mxu0
    %v2479 = vadd.f32 0.0, %v2478
    %v2480 = vpop.f32.mrb[0].mxu0
    %v2481 = vadd.f32 0.0, %v2480
    %v2482 = vpop.f32.mrb[0].mxu0
    %v2483 = vadd.f32 0.0, %v2482
    %2484 = vmatprep.mubr.bf16.mxu0 0
    %2485 = vmatmul.mubr.bf16.gmra.mrb[0].mxu0 %v2130
    %v2486 = vpop.f32.mrb[0].mxu0
    %v2487 = vadd.f32 0.0, %v2486
    %v2488 = vpop.f32.mrb[0].mxu0
    %v2489 = vadd.f32 0.0, %v2488
    %v2490 = vpop.f32.mrb[0].mxu0
    %v2491 = vadd.f32 0.0, %v2490
    %v2492 = vpop.f32.mrb[0].mxu0
    %v2493 = vadd.f32 0.0, %v2492
    %2494 = vmatprep.mubr.bf16.mxu0 0
    %2495 = vmatmul.mubr.bf16.gmra.mrb[0].mxu0 %v2131
    %v2496 = vpop.f32.mrb[0].mxu0
    %v2497 = vadd.f32 0.0, %v2496
    %v2498 = vpop.f32.mrb[0].mxu0
    %v2499 = vadd.f32 0.0, %v2498
    %v2500 = vpop.f32.mrb[0].mxu0
    %v2501 = vadd.f32 0.0, %v2500
    %v2502 = vpop.f32.mrb[0].mxu0
    %v2503 = vadd.f32 0.0, %v2502
    %2504 = vmatprep.mubr.bf16.mxu0 0
    %2505 = vmatmul.mubr.bf16.gmra.mrb[0].mxu0 %v2132
    %v2506 = vpop.f32.mrb[0].mxu0
    %v2507 = vadd.f32 0.0, %v2506
    %v2508 = vpop.f32.mrb[0].mxu0
    %v2509 = vadd.f32 0.0, %v2508
    %v2510 = vpop.f32.mrb[0].mxu0
    %v2511 = vadd.f32 0.0, %v2510
    %v2512 = vpop.f32.mrb[0].mxu0
    %v2513 = vadd.f32 0.0, %v2512
    %2514 = vmatprep.mubr.bf16.mxu0 0
    %2515 = vmatmul.mubr.bf16.gmra.mrb[0].mxu0 %v2133
    %v2516 = vpop.f32.mrb[0].mxu0
    %v2517 = vadd.f32 0.0, %v2516
    %v2518 = vpop.f32.mrb[0].mxu0
    %v2519 = vadd.f32 0.0, %v2518
    %v2520 = vpop.f32.mrb[0].mxu0
    %v2521 = vadd.f32 0.0, %v2520
    %v2522 = vpop.f32.mrb[0].mxu0
    %v2523 = vadd.f32 0.0, %v2522
    %2524 = vmatprep.mubr.bf16.mxu0 0
    %2525 = vmatmul.mubr.bf16.gmra.mrb[0].mxu0 %v2134
    %v2526 = vpop.f32.mrb[0].mxu0
    %v2527 = vadd.f32 0.0, %v2526
    %v2528 = vpop.f32.mrb[0].mxu0
    %v2529 = vadd.f32 0.0, %v2528
    %v2530 = vpop.f32.mrb[0].mxu0
    %v2531 = vadd.f32 0.0, %v2530
    %v2532 = vpop.f32.mrb[0].mxu0
    %v2533 = vadd.f32 0.0, %v2532
    %2534 = vmatprep.mubr.bf16.mxu0 0
    %2535 = vmatmul.mubr.bf16.gmra.mrb[0].mxu0 %v2135
    %v2536 = vpop.f32.mrb[0].mxu0
    %v2537 = vadd.f32 0.0, %v2536
    %v2538 = vpop.f32.mrb[0].mxu0
    %v2539 = vadd.f32 0.0, %v2538
    %v2540 = vpop.f32.mrb[0].mxu0
    %v2541 = vadd.f32 0.0, %v2540
    %v2542 = vpop.f32.mrb[0].mxu0
    %v2543 = vadd.f32 0.0, %v2542
    %2544 = vmatprep.mubr.bf16.mxu0 0
    %2545 = vmatmul.mubr.bf16.gmra.mrb[0].mxu0 %v2136
    %v2546 = vpop.f32.mrb[0].mxu0
    %v2547 = vadd.f32 0.0, %v2546
    %v2548 = vpop.f32.mrb[0].mxu0
    %v2549 = vadd.f32 0.0, %v2548
    %v2550 = vpop.f32.mrb[0].mxu0
    %v2551 = vadd.f32 0.0, %v2550
    %v2552 = vpop.f32.mrb[0].mxu0
    %v2553 = vadd.f32 0.0, %v2552
    %2554 = vdwg.mxu0
    %v2555 = vmax.f32 %v2204, %v2206
    %2556 = vmax.xlane.f32.xlu0 %v2555
    %v2557 = vpop.xlane.xlu0 %2556
    %v2558 = vmax.f32 %v2208, %v2210
    %2559 = vmax.xlane.f32.xlu0 %v2558
    %v2560 = vpop.xlane.xlu0 %2559
    %v2561 = vmax.f32 %v2214, %v2216
    %2562 = vmax.xlane.f32.xlu0 %v2561
    %v2563 = vpop.xlane.xlu0 %2562
    %v2564 = vmax.f32 %v2218, %v2220
    %2565 = vmax.xlane.f32.xlu0 %v2564
    %v2566 = vpop.xlane.xlu0 %2565
    %v2567 = vmax.f32 %v2224, %v2226
    %2568 = vmax.xlane.f32.xlu0 %v2567
    %v2569 = vpop.xlane.xlu0 %2568
    %v2570 = vmax.f32 %v2228, %v2230
    %2571 = vmax.xlane.f32.xlu0 %v2570
    %v2572 = vpop.xlane.xlu0 %2571
    %v2573 = vmax.f32 %v2234, %v2236
    %2574 = vmax.xlane.f32.xlu0 %v2573
    %v2575 = vpop.xlane.xlu0 %2574
    %v2576 = vmax.f32 %v2238, %v2240
    %2577 = vmax.xlane.f32.xlu0 %v2576
    %v2578 = vpop.xlane.xlu0 %2577
    %v2579 = vmax.f32 %v2244, %v2246
    %2580 = vmax.xlane.f32.xlu0 %v2579
    %v2581 = vpop.xlane.xlu0 %2580
    %v2582 = vmax.f32 %v2248, %v2250
    %2583 = vmax.xlane.f32.xlu0 %v2582
    %v2584 = vpop.xlane.xlu0 %2583
    %v2585 = vmax.f32 %v2254, %v2256
    %2586 = vmax.xlane.f32.xlu0 %v2585
    %v2587 = vpop.xlane.xlu0 %2586
    %v2588 = vmax.f32 %v2258, %v2260
    %2589 = vmax.xlane.f32.xlu0 %v2588
    %v2590 = vpop.xlane.xlu0 %2589
    %v2591 = vmax.f32 %v2264, %v2266
    %2592 = vmax.xlane.f32.xlu0 %v2591
    %v2593 = vpop.xlane.xlu0 %2592
    %v2594 = vmax.f32 %v2268, %v2270
    %2595 = vmax.xlane.f32.xlu0 %v2594
    %v2596 = vpop.xlane.xlu0 %2595
    %v2597 = vmax.f32 %v2274, %v2276
    %2598 = vmax.xlane.f32.xlu0 %v2597
    %v2599 = vpop.xlane.xlu0 %2598
    %v2600 = vmax.f32 %v2278, %v2280
    %2601 = vmax.xlane.f32.xlu0 %v2600
    %v2602 = vpop.xlane.xlu0 %2601
    %v2603 = vmax.f32 %v2284, %v2286
    %2604 = vmax.xlane.f32.xlu0 %v2603
    %v2605 = vpop.xlane.xlu0 %2604
    %v2606 = vmax.f32 %v2288, %v2290
    %2607 = vmax.xlane.f32.xlu0 %v2606
    %v2608 = vpop.xlane.xlu0 %2607
    %v2609 = vmax.f32 %v2294, %v2296
    %2610 = vmax.xlane.f32.xlu0 %v2609
    %v2611 = vpop.xlane.xlu0 %2610
    %v2612 = vmax.f32 %v2298, %v2300
    %2613 = vmax.xlane.f32.xlu0 %v2612
    %v2614 = vpop.xlane.xlu0 %2613
    %v2615 = vmax.f32 %v2304, %v2306
    %2616 = vmax.xlane.f32.xlu0 %v2615
    %v2617 = vpop.xlane.xlu0 %2616
    %v2618 = vmax.f32 %v2308, %v2310
    %2619 = vmax.xlane.f32.xlu0 %v2618
    %v2620 = vpop.xlane.xlu0 %2619
    %v2621 = vmax.f32 %v2314, %v2316
    %2622 = vmax.xlane.f32.xlu0 %v2621
    %v2623 = vpop.xlane.xlu0 %2622
    %v2624 = vmax.f32 %v2318, %v2320
    %2625 = vmax.xlane.f32.xlu0 %v2624
    %v2626 = vpop.xlane.xlu0 %2625
    %v2627 = vmax.f32 %v2324, %v2326
    %2628 = vmax.xlane.f32.xlu0 %v2627
    %v2629 = vpop.xlane.xlu0 %2628
    %v2630 = vmax.f32 %v2328, %v2330
    %2631 = vmax.xlane.f32.xlu0 %v2630
    %v2632 = vpop.xlane.xlu0 %2631
    %v2633 = vmax.f32 %v2334, %v2336
    %2634 = vmax.xlane.f32.xlu0 %v2633
    %v2635 = vpop.xlane.xlu0 %2634
    %v2636 = vmax.f32 %v2338, %v2340
    %2637 = vmax.xlane.f32.xlu0 %v2636
    %v2638 = vpop.xlane.xlu0 %2637
    %v2639 = vmax.f32 %v2344, %v2346
    %2640 = vmax.xlane.f32.xlu0 %v2639
    %v2641 = vpop.xlane.xlu0 %2640
    %v2642 = vmax.f32 %v2348, %v2350
    %2643 = vmax.xlane.f32.xlu0 %v2642
    %v2644 = vpop.xlane.xlu0 %2643
    %v2645 = vmax.f32 %v2354, %v2356
    %2646 = vmax.xlane.f32.xlu0 %v2645
    %v2647 = vpop.xlane.xlu0 %2646
    %v2648 = vmax.f32 %v2358, %v2360
    %2649 = vmax.xlane.f32.xlu0 %v2648
    %v2650 = vpop.xlane.xlu0 %2649
    %v2651 = vmax.f32 %v2397, %v2399
    %2652 = vmax.xlane.f32.xlu0 %v2651
    %v2653 = vpop.xlane.xlu0 %2652
    %v2654 = vmax.f32 %v2401, %v2403
    %2655 = vmax.xlane.f32.xlu0 %v2654
    %v2656 = vpop.xlane.xlu0 %2655
    %v2657 = vmax.f32 %v2407, %v2409
    %2658 = vmax.xlane.f32.xlu0 %v2657
    %v2659 = vpop.xlane.xlu0 %2658
    %v2660 = vmax.f32 %v2411, %v2413
    %2661 = vmax.xlane.f32.xlu0 %v2660
    %v2662 = vpop.xlane.xlu0 %2661
    %v2663 = vmax.f32 %v2417, %v2419
    %2664 = vmax.xlane.f32.xlu0 %v2663
    %v2665 = vpop.xlane.xlu0 %2664
    %v2666 = vmax.f32 %v2421, %v2423
    %2667 = vmax.xlane.f32.xlu0 %v2666
    %v2668 = vpop.xlane.xlu0 %2667
    %v2669 = vmax.f32 %v2427, %v2429
    %2670 = vmax.xlane.f32.xlu0 %v2669
    %v2671 = vpop.xlane.xlu0 %2670
    %v2672 = vmax.f32 %v2431, %v2433
    %2673 = vmax.xlane.f32.xlu0 %v2672
    %v2674 = vpop.xlane.xlu0 %2673
    %v2675 = vmax.f32 %v2437, %v2439
    %2676 = vmax.xlane.f32.xlu0 %v2675
    %v2677 = vpop.xlane.xlu0 %2676
    %v2678 = vmax.f32 %v2441, %v2443
    %2679 = vmax.xlane.f32.xlu0 %v2678
    %v2680 = vpop.xlane.xlu0 %2679
    %v2681 = vmax.f32 %v2447, %v2449
    %2682 = vmax.xlane.f32.xlu0 %v2681
    %v2683 = vpop.xlane.xlu0 %2682
    %v2684 = vmax.f32 %v2451, %v2453
    %2685 = vmax.xlane.f32.xlu0 %v2684
    %v2686 = vpop.xlane.xlu0 %2685
    %v2687 = vmax.f32 %v2457, %v2459
    %2688 = vmax.xlane.f32.xlu0 %v2687
    %v2689 = vpop.xlane.xlu0 %2688
    %v2690 = vmax.f32 %v2461, %v2463
    %2691 = vmax.xlane.f32.xlu0 %v2690
    %v2692 = vpop.xlane.xlu0 %2691
    %v2693 = vmax.f32 %v2467, %v2469
    %2694 = vmax.xlane.f32.xlu0 %v2693
    %v2695 = vpop.xlane.xlu0 %2694
    %v2696 = vmax.f32 %v2471, %v2473
    %2697 = vmax.xlane.f32.xlu0 %v2696
    %v2698 = vpop.xlane.xlu0 %2697
    %v2699 = vmax.f32 %v2477, %v2479
    %2700 = vmax.xlane.f32.xlu0 %v2699
    %v2701 = vpop.xlane.xlu0 %2700
    %v2702 = vmax.f32 %v2481, %v2483
    %2703 = vmax.xlane.f32.xlu0 %v2702
    %v2704 = vpop.xlane.xlu0 %2703
    %v2705 = vmax.f32 %v2487, %v2489
    %2706 = vmax.xlane.f32.xlu0 %v2705
    %v2707 = vpop.xlane.xlu0 %2706
    %v2708 = vmax.f32 %v2491, %v2493
    %2709 = vmax.xlane.f32.xlu0 %v2708
    %v2710 = vpop.xlane.xlu0 %2709
    %v2711 = vmax.f32 %v2497, %v2499
    %2712 = vmax.xlane.f32.xlu0 %v2711
    %v2713 = vpop.xlane.xlu0 %2712
    %v2714 = vmax.f32 %v2501, %v2503
    %2715 = vmax.xlane.f32.xlu0 %v2714
    %v2716 = vpop.xlane.xlu0 %2715
    %v2717 = vmax.f32 %v2507, %v2509
    %2718 = vmax.xlane.f32.xlu0 %v2717
    %v2719 = vpop.xlane.xlu0 %2718
    %v2720 = vmax.f32 %v2511, %v2513
    %2721 = vmax.xlane.f32.xlu0 %v2720
    %v2722 = vpop.xlane.xlu0 %2721
    %v2723 = vmax.f32 %v2517, %v2519
    %2724 = vmax.xlane.f32.xlu0 %v2723
    %v2725 = vpop.xlane.xlu0 %2724
    %v2726 = vmax.f32 %v2521, %v2523
    %2727 = vmax.xlane.f32.xlu0 %v2726
    %v2728 = vpop.xlane.xlu0 %2727
    %v2729 = vmax.f32 %v2527, %v2529
    %2730 = vmax.xlane.f32.xlu0 %v2729
    %v2731 = vpop.xlane.xlu0 %2730
    %v2732 = vmax.f32 %v2531, %v2533
    %2733 = vmax.xlane.f32.xlu0 %v2732
    %v2734 = vpop.xlane.xlu0 %2733
    %v2735 = vmax.f32 %v2537, %v2539
    %2736 = vmax.xlane.f32.xlu0 %v2735
    %v2737 = vpop.xlane.xlu0 %2736
    %v2738 = vmax.f32 %v2541, %v2543
    %2739 = vmax.xlane.f32.xlu0 %v2738
    %v2740 = vpop.xlane.xlu0 %2739
    %v2741 = vmax.f32 %v2547, %v2549
    %2742 = vmax.xlane.f32.xlu0 %v2741
    %v2743 = vpop.xlane.xlu0 %2742
    %v2744 = vmax.f32 %v2551, %v2553
    %2745 = vmax.xlane.f32.xlu0 %v2744
    %v2746 = vpop.xlane.xlu0 %2745
    %v2747 = vsub.f32 %v2204, %v2557
    %v2748 = vsub.f32 %v2206, %v2557
    %v2749 = vsub.f32 %v2208, %v2560
    %v2750 = vsub.f32 %v2210, %v2560
    %v2751 = vsub.f32 %v2214, %v2563
    %v2752 = vsub.f32 %v2216, %v2563
    %v2753 = vsub.f32 %v2218, %v2566
    %v2754 = vsub.f32 %v2220, %v2566
    %v2755 = vsub.f32 %v2224, %v2569
    %v2756 = vsub.f32 %v2226, %v2569
    %v2757 = vsub.f32 %v2228, %v2572
    %v2758 = vsub.f32 %v2230, %v2572
    %v2759 = vsub.f32 %v2234, %v2575
    %v2760 = vsub.f32 %v2236, %v2575
    %v2761 = vsub.f32 %v2238, %v2578
    %v2762 = vsub.f32 %v2240, %v2578
    %v2763 = vsub.f32 %v2244, %v2581
    %v2764 = vsub.f32 %v2246, %v2581
    %v2765 = vsub.f32 %v2248, %v2584
    %v2766 = vsub.f32 %v2250, %v2584
    %v2767 = vsub.f32 %v2254, %v2587
    %v2768 = vsub.f32 %v2256, %v2587
    %v2769 = vsub.f32 %v2258, %v2590
    %v2770 = vsub.f32 %v2260, %v2590
    %v2771 = vsub.f32 %v2264, %v2593
    %v2772 = vsub.f32 %v2266, %v2593
    %v2773 = vsub.f32 %v2268, %v2596
    %v2774 = vsub.f32 %v2270, %v2596
    %v2775 = vsub.f32 %v2274, %v2599
    %v2776 = vsub.f32 %v2276, %v2599
    %v2777 = vsub.f32 %v2278, %v2602
    %v2778 = vsub.f32 %v2280, %v2602
    %v2779 = vsub.f32 %v2284, %v2605
    %v2780 = vsub.f32 %v2286, %v2605
    %v2781 = vsub.f32 %v2288, %v2608
    %v2782 = vsub.f32 %v2290, %v2608
    %v2783 = vsub.f32 %v2294, %v2611
    %v2784 = vsub.f32 %v2296, %v2611
    %v2785 = vsub.f32 %v2298, %v2614
    %v2786 = vsub.f32 %v2300, %v2614
    %v2787 = vsub.f32 %v2304, %v2617
    %v2788 = vsub.f32 %v2306, %v2617
    %v2789 = vsub.f32 %v2308, %v2620
    %v2790 = vsub.f32 %v2310, %v2620
    %v2791 = vsub.f32 %v2314, %v2623
    %v2792 = vsub.f32 %v2316, %v2623
    %v2793 = vsub.f32 %v2318, %v2626
    %v2794 = vsub.f32 %v2320, %v2626
    %v2795 = vsub.f32 %v2324, %v2629
    %v2796 = vsub.f32 %v2326, %v2629
    %v2797 = vsub.f32 %v2328, %v2632
    %v2798 = vsub.f32 %v2330, %v2632
    %v2799 = vsub.f32 %v2334, %v2635
    %v2800 = vsub.f32 %v2336, %v2635
    %v2801 = vsub.f32 %v2338, %v2638
    %v2802 = vsub.f32 %v2340, %v2638
    %v2803 = vsub.f32 %v2344, %v2641
    %v2804 = vsub.f32 %v2346, %v2641
    %v2805 = vsub.f32 %v2348, %v2644
    %v2806 = vsub.f32 %v2350, %v2644
    %v2807 = vsub.f32 %v2354, %v2647
    %v2808 = vsub.f32 %v2356, %v2647
    %v2809 = vsub.f32 %v2358, %v2650
    %v2810 = vsub.f32 %v2360, %v2650
    %v2811 = vsub.f32 %v2397, %v2653
    %v2812 = vsub.f32 %v2399, %v2653
    %v2813 = vsub.f32 %v2401, %v2656
    %v2814 = vsub.f32 %v2403, %v2656
    %v2815 = vsub.f32 %v2407, %v2659
    %v2816 = vsub.f32 %v2409, %v2659
    %v2817 = vsub.f32 %v2411, %v2662
    %v2818 = vsub.f32 %v2413, %v2662
    %v2819 = vsub.f32 %v2417, %v2665
    %v2820 = vsub.f32 %v2419, %v2665
    %v2821 = vsub.f32 %v2421, %v2668
    %v2822 = vsub.f32 %v2423, %v2668
    %v2823 = vsub.f32 %v2427, %v2671
    %v2824 = vsub.f32 %v2429, %v2671
    %v2825 = vsub.f32 %v2431, %v2674
    %v2826 = vsub.f32 %v2433, %v2674
    %v2827 = vsub.f32 %v2437, %v2677
    %v2828 = vsub.f32 %v2439, %v2677
    %v2829 = vsub.f32 %v2441, %v2680
    %v2830 = vsub.f32 %v2443, %v2680
    %v2831 = vsub.f32 %v2447, %v2683
    %v2832 = vsub.f32 %v2449, %v2683
    %v2833 = vsub.f32 %v2451, %v2686
    %v2834 = vsub.f32 %v2453, %v2686
    %v2835 = vsub.f32 %v2457, %v2689
    %v2836 = vsub.f32 %v2459, %v2689
    %v2837 = vsub.f32 %v2461, %v2692
    %v2838 = vsub.f32 %v2463, %v2692
    %v2839 = vsub.f32 %v2467, %v2695
    %v2840 = vsub.f32 %v2469, %v2695
    %v2841 = vsub.f32 %v2471, %v2698
    %v2842 = vsub.f32 %v2473, %v2698
    %v2843 = vsub.f32 %v2477, %v2701
    %v2844 = vsub.f32 %v2479, %v2701
    %v2845 = vsub.f32 %v2481, %v2704
    %v2846 = vsub.f32 %v2483, %v2704
    %v2847 = vsub.f32 %v2487, %v2707
    %v2848 = vsub.f32 %v2489, %v2707
    %v2849 = vsub.f32 %v2491, %v2710
    %v2850 = vsub.f32 %v2493, %v2710
    %v2851 = vsub.f32 %v2497, %v2713
    %v2852 = vsub.f32 %v2499, %v2713
    %v2853 = vsub.f32 %v2501, %v2716
    %v2854 = vsub.f32 %v2503, %v2716
    %v2855 = vsub.f32 %v2507, %v2719
    %v2856 = vsub.f32 %v2509, %v2719
    %v2857 = vsub.f32 %v2511, %v2722
    %v2858 = vsub.f32 %v2513, %v2722
    %v2859 = vsub.f32 %v2517, %v2725
    %v2860 = vsub.f32 %v2519, %v2725
    %v2861 = vsub.f32 %v2521, %v2728
    %v2862 = vsub.f32 %v2523, %v2728
    %v2863 = vsub.f32 %v2527, %v2731
    %v2864 = vsub.f32 %v2529, %v2731
    %v2865 = vsub.f32 %v2531, %v2734
    %v2866 = vsub.f32 %v2533, %v2734
    %v2867 = vsub.f32 %v2537, %v2737
    %v2868 = vsub.f32 %v2539, %v2737
    %v2869 = vsub.f32 %v2541, %v2740
    %v2870 = vsub.f32 %v2543, %v2740
    %v2871 = vsub.f32 %v2547, %v2743
    %v2872 = vsub.f32 %v2549, %v2743
    %v2873 = vsub.f32 %v2551, %v2746
    %v2874 = vsub.f32 %v2553, %v2746
    %v2875 = vmul.f32 %v2747, 1.442695
    %v2876 = vpow.pop %v2875
    %v2877 = vmul.f32 %v2748, 1.442695
    %v2878 = vpow.pop %v2877
    %v2879 = vmul.f32 %v2749, 1.442695
    %v2880 = vpow.pop %v2879
    %v2881 = vmul.f32 %v2750, 1.442695
    %v2882 = vpow.pop %v2881
    %v2883 = vmul.f32 %v2751, 1.442695
    %v2884 = vpow.pop %v2883
    %v2885 = vmul.f32 %v2752, 1.442695
    %v2886 = vpow.pop %v2885
    %v2887 = vmul.f32 %v2753, 1.442695
    %v2888 = vpow.pop %v2887
    %v2889 = vmul.f32 %v2754, 1.442695
    %v2890 = vpow.pop %v2889
    %v2891 = vmul.f32 %v2755, 1.442695
    %v2892 = vpow.pop %v2891
    %v2893 = vmul.f32 %v2756, 1.442695
    %v2894 = vpow.pop %v2893
    %v2895 = vmul.f32 %v2757, 1.442695
    %v2896 = vpow.pop %v2895
    %v2897 = vmul.f32 %v2758, 1.442695
    %v2898 = vpow.pop %v2897
    %v2899 = vmul.f32 %v2759, 1.442695
    %v2900 = vpow.pop %v2899
    %v2901 = vmul.f32 %v2760, 1.442695
    %v2902 = vpow.pop %v2901
    %v2903 = vmul.f32 %v2761, 1.442695
    %v2904 = vpow.pop %v2903
    %v2905 = vmul.f32 %v2762, 1.442695
    %v2906 = vpow.pop %v2905
    %v2907 = vmul.f32 %v2763, 1.442695
    %v2908 = vpow.pop %v2907
    %v2909 = vmul.f32 %v2764, 1.442695
    %v2910 = vpow.pop %v2909
    %v2911 = vmul.f32 %v2765, 1.442695
    %v2912 = vpow.pop %v2911
    %v2913 = vmul.f32 %v2766, 1.442695
    %v2914 = vpow.pop %v2913
    %v2915 = vmul.f32 %v2767, 1.442695
    %v2916 = vpow.pop %v2915
    %v2917 = vmul.f32 %v2768, 1.442695
    %v2918 = vpow.pop %v2917
    %v2919 = vmul.f32 %v2769, 1.442695
    %v2920 = vpow.pop %v2919
    %v2921 = vmul.f32 %v2770, 1.442695
    %v2922 = vpow.pop %v2921
    %v2923 = vmul.f32 %v2771, 1.442695
    %v2924 = vpow.pop %v2923
    %v2925 = vmul.f32 %v2772, 1.442695
    %v2926 = vpow.pop %v2925
    %v2927 = vmul.f32 %v2773, 1.442695
    %v2928 = vpow.pop %v2927
    %v2929 = vmul.f32 %v2774, 1.442695
    %v2930 = vpow.pop %v2929
    %v2931 = vmul.f32 %v2775, 1.442695
    %v2932 = vpow.pop %v2931
    %v2933 = vmul.f32 %v2776, 1.442695
    %v2934 = vpow.pop %v2933
    %v2935 = vmul.f32 %v2777, 1.442695
    %v2936 = vpow.pop %v2935
    %v2937 = vmul.f32 %v2778, 1.442695
    %v2938 = vpow.pop %v2937
    %v2939 = vmul.f32 %v2779, 1.442695
    %v2940 = vpow.pop %v2939
    %v2941 = vmul.f32 %v2780, 1.442695
    %v2942 = vpow.pop %v2941
    %v2943 = vmul.f32 %v2781, 1.442695
    %v2944 = vpow.pop %v2943
    %v2945 = vmul.f32 %v2782, 1.442695
    %v2946 = vpow.pop %v2945
    %v2947 = vmul.f32 %v2783, 1.442695
    %v2948 = vpow.pop %v2947
    %v2949 = vmul.f32 %v2784, 1.442695
    %v2950 = vpow.pop %v2949
    %v2951 = vmul.f32 %v2785, 1.442695
    %v2952 = vpow.pop %v2951
    %v2953 = vmul.f32 %v2786, 1.442695
    %v2954 = vpow.pop %v2953
    %v2955 = vmul.f32 %v2787, 1.442695
    %v2956 = vpow.pop %v2955
    %v2957 = vmul.f32 %v2788, 1.442695
    %v2958 = vpow.pop %v2957
    %v2959 = vmul.f32 %v2789, 1.442695
    %v2960 = vpow.pop %v2959
    %v2961 = vmul.f32 %v2790, 1.442695
    %v2962 = vpow.pop %v2961
    %v2963 = vmul.f32 %v2791, 1.442695
    %v2964 = vpow.pop %v2963
    %v2965 = vmul.f32 %v2792, 1.442695
    %v2966 = vpow.pop %v2965
    %v2967 = vmul.f32 %v2793, 1.442695
    %v2968 = vpow.pop %v2967
    %v2969 = vmul.f32 %v2794, 1.442695
    %v2970 = vpow.pop %v2969
    %v2971 = vmul.f32 %v2795, 1.442695
    %v2972 = vpow.pop %v2971
    %v2973 = vmul.f32 %v2796, 1.442695
    %v2974 = vpow.pop %v2973
    %v2975 = vmul.f32 %v2797, 1.442695
    %v2976 = vpow.pop %v2975
    %v2977 = vmul.f32 %v2798, 1.442695
    %v2978 = vpow.pop %v2977
    %v2979 = vmul.f32 %v2799, 1.442695
    %v2980 = vpow.pop %v2979
    %v2981 = vmul.f32 %v2800, 1.442695
    %v2982 = vpow.pop %v2981
    %v2983 = vmul.f32 %v2801, 1.442695
    %v2984 = vpow.pop %v2983
    %v2985 = vmul.f32 %v2802, 1.442695
    %v2986 = vpow.pop %v2985
    %v2987 = vmul.f32 %v2803, 1.442695
    %v2988 = vpow.pop %v2987
    %v2989 = vmul.f32 %v2804, 1.442695
    %v2990 = vpow.pop %v2989
    %v2991 = vmul.f32 %v2805, 1.442695
    %v2992 = vpow.pop %v2991
    %v2993 = vmul.f32 %v2806, 1.442695
    %v2994 = vpow.pop %v2993
    %v2995 = vmul.f32 %v2807, 1.442695
    %v2996 = vpow.pop %v2995
    %v2997 = vmul.f32 %v2808, 1.442695
    %v2998 = vpow.pop %v2997
    %v2999 = vmul.f32 %v2809, 1.442695
    %v3000 = vpow.pop %v2999
    %v3001 = vmul.f32 %v2810, 1.442695
    %v3002 = vpow.pop %v3001
    %v3003 = vmul.f32 %v2811, 1.442695
    %v3004 = vpow.pop %v3003
    %v3005 = vmul.f32 %v2812, 1.442695
    %v3006 = vpow.pop %v3005
    %v3007 = vmul.f32 %v2813, 1.442695
    %v3008 = vpow.pop %v3007
    %v3009 = vmul.f32 %v2814, 1.442695
    %v3010 = vpow.pop %v3009
    %v3011 = vmul.f32 %v2815, 1.442695
    %v3012 = vpow.pop %v3011
    %v3013 = vmul.f32 %v2816, 1.442695
    %v3014 = vpow.pop %v3013
    %v3015 = vmul.f32 %v2817, 1.442695
    %v3016 = vpow.pop %v3015
    %v3017 = vmul.f32 %v2818, 1.442695
    %v3018 = vpow.pop %v3017
    %v3019 = vmul.f32 %v2819, 1.442695
    %v3020 = vpow.pop %v3019
    %v3021 = vmul.f32 %v2820, 1.442695
    %v3022 = vpow.pop %v3021
    %v3023 = vmul.f32 %v2821, 1.442695
    %v3024 = vpow.pop %v3023
    %v3025 = vmul.f32 %v2822, 1.442695
    %v3026 = vpow.pop %v3025
    %v3027 = vmul.f32 %v2823, 1.442695
    %v3028 = vpow.pop %v3027
    %v3029 = vmul.f32 %v2824, 1.442695
    %v3030 = vpow.pop %v3029
    %v3031 = vmul.f32 %v2825, 1.442695
    %v3032 = vpow.pop %v3031
    %v3033 = vmul.f32 %v2826, 1.442695
    %v3034 = vpow.pop %v3033
    %v3035 = vmul.f32 %v2827, 1.442695
    %v3036 = vpow.pop %v3035
    %v3037 = vmul.f32 %v2828, 1.442695
    %v3038 = vpow.pop %v3037
    %v3039 = vmul.f32 %v2829, 1.442695
    %v3040 = vpow.pop %v3039
    %v3041 = vmul.f32 %v2830, 1.442695
    %v3042 = vpow.pop %v3041
    %v3043 = vmul.f32 %v2831, 1.442695
    %v3044 = vpow.pop %v3043
    %v3045 = vmul.f32 %v2832, 1.442695
    %v3046 = vpow.pop %v3045
    %v3047 = vmul.f32 %v2833, 1.442695
    %v3048 = vpow.pop %v3047
    %v3049 = vmul.f32 %v2834, 1.442695
    %v3050 = vpow.pop %v3049
    %v3051 = vmul.f32 %v2835, 1.442695
    %v3052 = vpow.pop %v3051
    %v3053 = vmul.f32 %v2836, 1.442695
    %v3054 = vpow.pop %v3053
    %v3055 = vmul.f32 %v2837, 1.442695
    %v3056 = vpow.pop %v3055
    %v3057 = vmul.f32 %v2838, 1.442695
    %v3058 = vpow.pop %v3057
    %v3059 = vmul.f32 %v2839, 1.442695
    %v3060 = vpow.pop %v3059
    %v3061 = vmul.f32 %v2840, 1.442695
    %v3062 = vpow.pop %v3061
    %v3063 = vmul.f32 %v2841, 1.442695
    %v3064 = vpow.pop %v3063
    %v3065 = vmul.f32 %v2842, 1.442695
    %v3066 = vpow.pop %v3065
    %v3067 = vmul.f32 %v2843, 1.442695
    %v3068 = vpow.pop %v3067
    %v3069 = vmul.f32 %v2844, 1.442695
    %v3070 = vpow.pop %v3069
    %v3071 = vmul.f32 %v2845, 1.442695
    %v3072 = vpow.pop %v3071
    %v3073 = vmul.f32 %v2846, 1.442695
    %v3074 = vpow.pop %v3073
    %v3075 = vmul.f32 %v2847, 1.442695
    %v3076 = vpow.pop %v3075
    %v3077 = vmul.f32 %v2848, 1.442695
    %v3078 = vpow.pop %v3077
    %v3079 = vmul.f32 %v2849, 1.442695
    %v3080 = vpow.pop %v3079
    %v3081 = vmul.f32 %v2850, 1.442695
    %v3082 = vpow.pop %v3081
    %v3083 = vmul.f32 %v2851, 1.442695
    %v3084 = vpow.pop %v3083
    %v3085 = vmul.f32 %v2852, 1.442695
    %v3086 = vpow.pop %v3085
    %v3087 = vmul.f32 %v2853, 1.442695
    %v3088 = vpow.pop %v3087
    %v3089 = vmul.f32 %v2854, 1.442695
    %v3090 = vpow.pop %v3089
    %v3091 = vmul.f32 %v2855, 1.442695
    %v3092 = vpow.pop %v3091
    %v3093 = vmul.f32 %v2856, 1.442695
    %v3094 = vpow.pop %v3093
    %v3095 = vmul.f32 %v2857, 1.442695
    %v3096 = vpow.pop %v3095
    %v3097 = vmul.f32 %v2858, 1.442695
    %v3098 = vpow.pop %v3097
    %v3099 = vmul.f32 %v2859, 1.442695
    %v3100 = vpow.pop %v3099
    %v3101 = vmul.f32 %v2860, 1.442695
    %v3102 = vpow.pop %v3101
    %v3103 = vmul.f32 %v2861, 1.442695
    %v3104 = vpow.pop %v3103
    %v3105 = vmul.f32 %v2862, 1.442695
    %v3106 = vpow.pop %v3105
    %v3107 = vmul.f32 %v2863, 1.442695
    %v3108 = vpow.pop %v3107
    %v3109 = vmul.f32 %v2864, 1.442695
    %v3110 = vpow.pop %v3109
    %v3111 = vmul.f32 %v2865, 1.442695
    %v3112 = vpow.pop %v3111
    %v3113 = vmul.f32 %v2866, 1.442695
    %v3114 = vpow.pop %v3113
    %v3115 = vmul.f32 %v2867, 1.442695
    %v3116 = vpow.pop %v3115
    %v3117 = vmul.f32 %v2868, 1.442695
    %v3118 = vpow.pop %v3117
    %v3119 = vmul.f32 %v2869, 1.442695
    %v3120 = vpow.pop %v3119
    %v3121 = vmul.f32 %v2870, 1.442695
    %v3122 = vpow.pop %v3121
    %v3123 = vmul.f32 %v2871, 1.442695
    %v3124 = vpow.pop %v3123
    %v3125 = vmul.f32 %v2872, 1.442695
    %v3126 = vpow.pop %v3125
    %v3127 = vmul.f32 %v2873, 1.442695
    %v3128 = vpow.pop %v3127
    %v3129 = vmul.f32 %v2874, 1.442695
    %v3130 = vpow.pop %v3129
    %v3131 = vadd.f32 %v2876, %v2878
    %3132 = vadd.xlane.f32.xlu0 %v3131
    %v3133 = vpop.xlane.xlu0 %3132
    %v3134 = vadd.f32 %v2880, %v2882
    %3135 = vadd.xlane.f32.xlu0 %v3134
    %v3136 = vpop.xlane.xlu0 %3135
    %v3137 = vadd.f32 %v2884, %v2886
    %3138 = vadd.xlane.f32.xlu0 %v3137
    %v3139 = vpop.xlane.xlu0 %3138
    %v3140 = vadd.f32 %v2888, %v2890
    %3141 = vadd.xlane.f32.xlu0 %v3140
    %v3142 = vpop.xlane.xlu0 %3141
    %v3143 = vadd.f32 %v2892, %v2894
    %3144 = vadd.xlane.f32.xlu0 %v3143
    %v3145 = vpop.xlane.xlu0 %3144
    %v3146 = vadd.f32 %v2896, %v2898
    %3147 = vadd.xlane.f32.xlu0 %v3146
    %v3148 = vpop.xlane.xlu0 %3147
    %v3149 = vadd.f32 %v2900, %v2902
    %3150 = vadd.xlane.f32.xlu0 %v3149
    %v3151 = vpop.xlane.xlu0 %3150
    %v3152 = vadd.f32 %v2904, %v2906
    %3153 = vadd.xlane.f32.xlu0 %v3152
    %v3154 = vpop.xlane.xlu0 %3153
    %v3155 = vadd.f32 %v2908, %v2910
    %3156 = vadd.xlane.f32.xlu0 %v3155
    %v3157 = vpop.xlane.xlu0 %3156
    %v3158 = vadd.f32 %v2912, %v2914
    %3159 = vadd.xlane.f32.xlu0 %v3158
    %v3160 = vpop.xlane.xlu0 %3159
    %v3161 = vadd.f32 %v2916, %v2918
    %3162 = vadd.xlane.f32.xlu0 %v3161
    %v3163 = vpop.xlane.xlu0 %3162
    %v3164 = vadd.f32 %v2920, %v2922
    %3165 = vadd.xlane.f32.xlu0 %v3164
    %v3166 = vpop.xlane.xlu0 %3165
    %v3167 = vadd.f32 %v2924, %v2926
    %3168 = vadd.xlane.f32.xlu0 %v3167
    %v3169 = vpop.xlane.xlu0 %3168
    %v3170 = vadd.f32 %v2928, %v2930
    %3171 = vadd.xlane.f32.xlu0 %v3170
    %v3172 = vpop.xlane.xlu0 %3171
    %v3173 = vadd.f32 %v2932, %v2934
    %3174 = vadd.xlane.f32.xlu0 %v3173
    %v3175 = vpop.xlane.xlu0 %3174
    %v3176 = vadd.f32 %v2936, %v2938
    %3177 = vadd.xlane.f32.xlu0 %v3176
    %v3178 = vpop.xlane.xlu0 %3177
    %v3179 = vadd.f32 %v2940, %v2942
    %3180 = vadd.xlane.f32.xlu0 %v3179
    %v3181 = vpop.xlane.xlu0 %3180
    %v3182 = vadd.f32 %v2944, %v2946
    %3183 = vadd.xlane.f32.xlu0 %v3182
    %v3184 = vpop.xlane.xlu0 %3183
    %v3185 = vadd.f32 %v2948, %v2950
    %3186 = vadd.xlane.f32.xlu0 %v3185
    %v3187 = vpop.xlane.xlu0 %3186
    %v3188 = vadd.f32 %v2952, %v2954
    %3189 = vadd.xlane.f32.xlu0 %v3188
    %v3190 = vpop.xlane.xlu0 %3189
    %v3191 = vadd.f32 %v2956, %v2958
    %3192 = vadd.xlane.f32.xlu0 %v3191
    %v3193 = vpop.xlane.xlu0 %3192
    %v3194 = vadd.f32 %v2960, %v2962
    %3195 = vadd.xlane.f32.xlu0 %v3194
    %v3196 = vpop.xlane.xlu0 %3195
    %v3197 = vadd.f32 %v2964, %v2966
    %3198 = vadd.xlane.f32.xlu0 %v3197
    %v3199 = vpop.xlane.xlu0 %3198
    %v3200 = vadd.f32 %v2968, %v2970
    %3201 = vadd.xlane.f32.xlu0 %v3200
    %v3202 = vpop.xlane.xlu0 %3201
    %v3203 = vadd.f32 %v2972, %v2974
    %3204 = vadd.xlane.f32.xlu0 %v3203
    %v3205 = vpop.xlane.xlu0 %3204
    %v3206 = vadd.f32 %v2976, %v2978
    %3207 = vadd.xlane.f32.xlu0 %v3206
    %v3208 = vpop.xlane.xlu0 %3207
    %v3209 = vadd.f32 %v2980, %v2982
    %3210 = vadd.xlane.f32.xlu0 %v3209
    %v3211 = vpop.xlane.xlu0 %3210
    %v3212 = vadd.f32 %v2984, %v2986
    %3213 = vadd.xlane.f32.xlu0 %v3212
    %v3214 = vpop.xlane.xlu0 %3213
    %v3215 = vadd.f32 %v2988, %v2990
    %3216 = vadd.xlane.f32.xlu0 %v3215
    %v3217 = vpop.xlane.xlu0 %3216
    %v3218 = vadd.f32 %v2992, %v2994
    %3219 = vadd.xlane.f32.xlu0 %v3218
    %v3220 = vpop.xlane.xlu0 %3219
    %v3221 = vadd.f32 %v2996, %v2998
    %3222 = vadd.xlane.f32.xlu0 %v3221
    %v3223 = vpop.xlane.xlu0 %3222
    %v3224 = vadd.f32 %v3000, %v3002
    %3225 = vadd.xlane.f32.xlu0 %v3224
    %v3226 = vpop.xlane.xlu0 %3225
    %v3227 = vadd.f32 %v3004, %v3006
    %3228 = vadd.xlane.f32.xlu0 %v3227
    %v3229 = vpop.xlane.xlu0 %3228
    %v3230 = vadd.f32 %v3008, %v3010
    %3231 = vadd.xlane.f32.xlu0 %v3230
    %v3232 = vpop.xlane.xlu0 %3231
    %v3233 = vadd.f32 %v3012, %v3014
    %3234 = vadd.xlane.f32.xlu0 %v3233
    %v3235 = vpop.xlane.xlu0 %3234
    %v3236 = vadd.f32 %v3016, %v3018
    %3237 = vadd.xlane.f32.xlu0 %v3236
    %v3238 = vpop.xlane.xlu0 %3237
    %v3239 = vadd.f32 %v3020, %v3022
    %3240 = vadd.xlane.f32.xlu0 %v3239
    %v3241 = vpop.xlane.xlu0 %3240
    %v3242 = vadd.f32 %v3024, %v3026
    %3243 = vadd.xlane.f32.xlu0 %v3242
    %v3244 = vpop.xlane.xlu0 %3243
    %v3245 = vadd.f32 %v3028, %v3030
    %3246 = vadd.xlane.f32.xlu0 %v3245
    %v3247 = vpop.xlane.xlu0 %3246
    %v3248 = vadd.f32 %v3032, %v3034
    %3249 = vadd.xlane.f32.xlu0 %v3248
    %v3250 = vpop.xlane.xlu0 %3249
    %v3251 = vadd.f32 %v3036, %v3038
    %3252 = vadd.xlane.f32.xlu0 %v3251
    %v3253 = vpop.xlane.xlu0 %3252
    %v3254 = vadd.f32 %v3040, %v3042
    %3255 = vadd.xlane.f32.xlu0 %v3254
    %v3256 = vpop.xlane.xlu0 %3255
    %v3257 = vadd.f32 %v3044, %v3046
    %3258 = vadd.xlane.f32.xlu0 %v3257
    %v3259 = vpop.xlane.xlu0 %3258
    %v3260 = vadd.f32 %v3048, %v3050
    %3261 = vadd.xlane.f32.xlu0 %v3260
    %v3262 = vpop.xlane.xlu0 %3261
    %v3263 = vadd.f32 %v3052, %v3054
    %3264 = vadd.xlane.f32.xlu0 %v3263
    %v3265 = vpop.xlane.xlu0 %3264
    %v3266 = vadd.f32 %v3056, %v3058
    %3267 = vadd.xlane.f32.xlu0 %v3266
    %v3268 = vpop.xlane.xlu0 %3267
    %v3269 = vadd.f32 %v3060, %v3062
    %3270 = vadd.xlane.f32.xlu0 %v3269
    %v3271 = vpop.xlane.xlu0 %3270
    %v3272 = vadd.f32 %v3064, %v3066
    %3273 = vadd.xlane.f32.xlu0 %v3272
    %v3274 = vpop.xlane.xlu0 %3273
    %v3275 = vadd.f32 %v3068, %v3070
    %3276 = vadd.xlane.f32.xlu0 %v3275
    %v3277 = vpop.xlane.xlu0 %3276
    %v3278 = vadd.f32 %v3072, %v3074
    %3279 = vadd.xlane.f32.xlu0 %v3278
    %v3280 = vpop.xlane.xlu0 %3279
    %v3281 = vadd.f32 %v3076, %v3078
    %3282 = vadd.xlane.f32.xlu0 %v3281
    %v3283 = vpop.xlane.xlu0 %3282
    %v3284 = vadd.f32 %v3080, %v3082
    %3285 = vadd.xlane.f32.xlu0 %v3284
    %v3286 = vpop.xlane.xlu0 %3285
    %v3287 = vadd.f32 %v3084, %v3086
    %3288 = vadd.xlane.f32.xlu0 %v3287
    %v3289 = vpop.xlane.xlu0 %3288
    %v3290 = vadd.f32 %v3088, %v3090
    %3291 = vadd.xlane.f32.xlu0 %v3290
    %v3292 = vpop.xlane.xlu0 %3291
    %v3293 = vadd.f32 %v3092, %v3094
    %3294 = vadd.xlane.f32.xlu0 %v3293
    %v3295 = vpop.xlane.xlu0 %3294
    %v3296 = vadd.f32 %v3096, %v3098
    %3297 = vadd.xlane.f32.xlu0 %v3296
    %v3298 = vpop.xlane.xlu0 %3297
    %v3299 = vadd.f32 %v3100, %v3102
    %3300 = vadd.xlane.f32.xlu0 %v3299
    %v3301 = vpop.xlane.xlu0 %3300
    %v3302 = vadd.f32 %v3104, %v3106
    %3303 = vadd.xlane.f32.xlu0 %v3302
    %v3304 = vpop.xlane.xlu0 %3303
    %v3305 = vadd.f32 %v3108, %v3110
    %3306 = vadd.xlane.f32.xlu0 %v3305
    %v3307 = vpop.xlane.xlu0 %3306
    %v3308 = vadd.f32 %v3112, %v3114
    %3309 = vadd.xlane.f32.xlu0 %v3308
    %v3310 = vpop.xlane.xlu0 %3309
    %v3311 = vadd.f32 %v3116, %v3118
    %3312 = vadd.xlane.f32.xlu0 %v3311
    %v3313 = vpop.xlane.xlu0 %3312
    %v3314 = vadd.f32 %v3120, %v3122
    %3315 = vadd.xlane.f32.xlu0 %v3314
    %v3316 = vpop.xlane.xlu0 %3315
    %v3317 = vadd.f32 %v3124, %v3126
    %3318 = vadd.xlane.f32.xlu0 %v3317
    %v3319 = vpop.xlane.xlu0 %3318
    %v3320 = vadd.f32 %v3128, %v3130
    %3321 = vadd.xlane.f32.xlu0 %v3320
    %v3322 = vpop.xlane.xlu0 %3321
    %v3323 = vpack.c.bf16 %v2880, %v2876
    %v3324 = vpack.c.bf16 %v2882, %v2878
    %v3325 = vpack.c.bf16 %v2888, %v2884
    %v3326 = vpack.c.bf16 %v2890, %v2886
    %v3327 = vpack.c.bf16 %v2896, %v2892
    %v3328 = vpack.c.bf16 %v2898, %v2894
    %v3329 = vpack.c.bf16 %v2904, %v2900
    %v3330 = vpack.c.bf16 %v2906, %v2902
    %v3331 = vpack.c.bf16 %v2912, %v2908
    %v3332 = vpack.c.bf16 %v2914, %v2910
    %v3333 = vpack.c.bf16 %v2920, %v2916
    %v3334 = vpack.c.bf16 %v2922, %v2918
    %v3335 = vpack.c.bf16 %v2928, %v2924
    %v3336 = vpack.c.bf16 %v2930, %v2926
    %v3337 = vpack.c.bf16 %v2936, %v2932
    %v3338 = vpack.c.bf16 %v2938, %v2934
    %v3339 = vpack.c.bf16 %v2944, %v2940
    %v3340 = vpack.c.bf16 %v2946, %v2942
    %v3341 = vpack.c.bf16 %v2952, %v2948
    %v3342 = vpack.c.bf16 %v2954, %v2950
    %v3343 = vpack.c.bf16 %v2960, %v2956
    %v3344 = vpack.c.bf16 %v2962, %v2958
    %v3345 = vpack.c.bf16 %v2968, %v2964
    %v3346 = vpack.c.bf16 %v2970, %v2966
    %v3347 = vpack.c.bf16 %v2976, %v2972
    %v3348 = vpack.c.bf16 %v2978, %v2974
    %v3349 = vpack.c.bf16 %v2984, %v2980
    %v3350 = vpack.c.bf16 %v2986, %v2982
    %v3351 = vpack.c.bf16 %v2992, %v2988
    %v3352 = vpack.c.bf16 %v2994, %v2990
    %v3353 = vpack.c.bf16 %v3000, %v2996
    %v3354 = vpack.c.bf16 %v3002, %v2998
    %v3355 = vpack.c.bf16 %v3008, %v3004
    %v3356 = vpack.c.bf16 %v3010, %v3006
    %v3357 = vpack.c.bf16 %v3016, %v3012
    %v3358 = vpack.c.bf16 %v3018, %v3014
    %v3359 = vpack.c.bf16 %v3024, %v3020
    %v3360 = vpack.c.bf16 %v3026, %v3022
    %v3361 = vpack.c.bf16 %v3032, %v3028
    %v3362 = vpack.c.bf16 %v3034, %v3030
    %v3363 = vpack.c.bf16 %v3040, %v3036
    %v3364 = vpack.c.bf16 %v3042, %v3038
    %v3365 = vpack.c.bf16 %v3048, %v3044
    %v3366 = vpack.c.bf16 %v3050, %v3046
    %v3367 = vpack.c.bf16 %v3056, %v3052
    %v3368 = vpack.c.bf16 %v3058, %v3054
    %v3369 = vpack.c.bf16 %v3064, %v3060
    %v3370 = vpack.c.bf16 %v3066, %v3062
    %v3371 = vpack.c.bf16 %v3072, %v3068
    %v3372 = vpack.c.bf16 %v3074, %v3070
    %v3373 = vpack.c.bf16 %v3080, %v3076
    %v3374 = vpack.c.bf16 %v3082, %v3078
    %v3375 = vpack.c.bf16 %v3088, %v3084
    %v3376 = vpack.c.bf16 %v3090, %v3086
    %v3377 = vpack.c.bf16 %v3096, %v3092
    %v3378 = vpack.c.bf16 %v3098, %v3094
    %v3379 = vpack.c.bf16 %v3104, %v3100
    %v3380 = vpack.c.bf16 %v3106, %v3102
    %v3381 = vpack.c.bf16 %v3112, %v3108
    %v3382 = vpack.c.bf16 %v3114, %v3110
    %v3383 = vpack.c.bf16 %v3120, %v3116
    %v3384 = vpack.c.bf16 %v3122, %v3118
    %v3385 = vpack.c.bf16 %v3128, %v3124
    %v3386 = vpack.c.bf16 %v3130, %v3126
    %v3387 = vld [vmem:[#allocation4] sm:$0xff]
    %v3388 = vld [vmem:[#allocation4 + $0x8] sm:$0xff]
    %v3389 = vld [vmem:[#allocation4 + $0x10] sm:$0xff]
    %v3390 = vld [vmem:[#allocation4 + $0x18] sm:$0xff]
    %v3391 = vld [vmem:[#allocation4 + $0x20] sm:$0xff]
    %v3392 = vld [vmem:[#allocation4 + $0x28] sm:$0xff]
    %v3393 = vld [vmem:[#allocation4 + $0x30] sm:$0xff]
    %v3394 = vld [vmem:[#allocation4 + $0x38] sm:$0xff]
    %v3395 = vld [vmem:[#allocation4 + $0x40] sm:$0xff]
    %v3396 = vld [vmem:[#allocation4 + $0x48] sm:$0xff]
    %v3397 = vld [vmem:[#allocation4 + $0x50] sm:$0xff]
    %v3398 = vld [vmem:[#allocation4 + $0x58] sm:$0xff]
    %v3399 = vld [vmem:[#allocation4 + $0x60] sm:$0xff]
    %v3400 = vld [vmem:[#allocation4 + $0x68] sm:$0xff]
    %v3401 = vld [vmem:[#allocation4 + $0x70] sm:$0xff]
    %v3402 = vld [vmem:[#allocation4 + $0x78] sm:$0xff]
    %v3403 = vld [vmem:[#allocation4 + $0x80] sm:$0xff]
    %v3404 = vld [vmem:[#allocation4 + $0x88] sm:$0xff]
    %v3405 = vld [vmem:[#allocation4 + $0x90] sm:$0xff]
    %v3406 = vld [vmem:[#allocation4 + $0x98] sm:$0xff]
    %v3407 = vld [vmem:[#allocation4 + $0xa0] sm:$0xff]
    %v3408 = vld [vmem:[#allocation4 + $0xa8] sm:$0xff]
    %v3409 = vld [vmem:[#allocation4 + $0xb0] sm:$0xff]
    %v3410 = vld [vmem:[#allocation4 + $0xb8] sm:$0xff]
    %v3411 = vld [vmem:[#allocation4 + $0xc0] sm:$0xff]
    %v3412 = vld [vmem:[#allocation4 + $0xc8] sm:$0xff]
    %v3413 = vld [vmem:[#allocation4 + $0xd0] sm:$0xff]
    %v3414 = vld [vmem:[#allocation4 + $0xd8] sm:$0xff]
    %v3415 = vld [vmem:[#allocation4 + $0xe0] sm:$0xff]
    %v3416 = vld [vmem:[#allocation4 + $0xe8] sm:$0xff]
    %v3417 = vld [vmem:[#allocation4 + $0xf0] sm:$0xff]
    %v3418 = vld [vmem:[#allocation4 + $0xf8] sm:$0xff]
    %3419 = vmatprep.subr.bf16.mxu0 0
    %3420 = vmatpush1.bf16.msra.mxu0 %v3387
    %3421 = vmatprep.subr.bf16.mxu0 0
    %3422 = vmatpush1.bf16.msra.mxu0 %v3388
    %3423 = vmatprep.subr.bf16.mxu0 0
    %3424 = vmatpush1.bf16.msra.mxu0 %v3389
    %3425 = vmatprep.subr.bf16.mxu0 0
    %3426 = vmatpush1.bf16.msra.mxu0 %v3390
    %3427 = vmatprep.subr.bf16.mxu0 0
    %3428 = vmatpush1.bf16.msra.mxu0 %v3391
    %3429 = vmatprep.subr.bf16.mxu0 0
    %3430 = vmatpush1.bf16.msra.mxu0 %v3392
    %3431 = vmatprep.subr.bf16.mxu0 0
    %3432 = vmatpush1.bf16.msra.mxu0 %v3393
    %3433 = vmatprep.subr.bf16.mxu0 0
    %3434 = vmatpush1.bf16.msra.mxu0 %v3394
    %3435 = vmatprep.subr.bf16.mxu0 0
    %3436 = vmatpush1.bf16.msra.mxu0 %v3395
    %3437 = vmatprep.subr.bf16.mxu0 0
    %3438 = vmatpush1.bf16.msra.mxu0 %v3396
    %3439 = vmatprep.subr.bf16.mxu0 0
    %3440 = vmatpush1.bf16.msra.mxu0 %v3397
    %3441 = vmatprep.subr.bf16.mxu0 0
    %3442 = vmatpush1.bf16.msra.mxu0 %v3398
    %3443 = vmatprep.subr.bf16.mxu0 0
    %3444 = vmatpush1.bf16.msra.mxu0 %v3399
    %3445 = vmatprep.subr.bf16.mxu0 0
    %3446 = vmatpush1.bf16.msra.mxu0 %v3400
    %3447 = vmatprep.subr.bf16.mxu0 0
    %3448 = vmatpush1.bf16.msra.mxu0 %v3401
    %3449 = vmatprep.subr.bf16.mxu0 0
    %3450 = vmatpush1.bf16.msra.mxu0 %v3402
    %3451 = vmatprep.mubr.bf16.mxu0 %v3324
    %3452 = vmatmul.mubr.bf16.gmra.mrb[0].mxu0 %v3323
    %v3453 = vpop.f32.mrb[0].mxu0
    %v3454 = vadd.f32 0.0, %v3453
    %v3455 = vpop.f32.mrb[0].mxu0
    %v3456 = vpop.f32.mrb[0].mxu0
    %v3457 = vadd.f32 0.0, %v3456
    %v3458 = vpop.f32.mrb[0].mxu0
    %3459 = vmatprep.mubr.bf16.mxu0 %v3326
    %3460 = vmatmul.mubr.bf16.gmra.mrb[0].mxu0 %v3325
    %v3461 = vpop.f32.mrb[0].mxu0
    %v3462 = vadd.f32 0.0, %v3461
    %v3463 = vpop.f32.mrb[0].mxu0
    %v3464 = vpop.f32.mrb[0].mxu0
    %v3465 = vadd.f32 0.0, %v3464
    %v3466 = vpop.f32.mrb[0].mxu0
    %3467 = vmatprep.mubr.bf16.mxu0 %v3328
    %3468 = vmatmul.mubr.bf16.gmra.mrb[0].mxu0 %v3327
    %v3469 = vpop.f32.mrb[0].mxu0
    %v3470 = vadd.f32 0.0, %v3469
    %v3471 = vpop.f32.mrb[0].mxu0
    %v3472 = vpop.f32.mrb[0].mxu0
    %v3473 = vadd.f32 0.0, %v3472
    %v3474 = vpop.f32.mrb[0].mxu0
    %3475 = vmatprep.mubr.bf16.mxu0 %v3330
    %3476 = vmatmul.mubr.bf16.gmra.mrb[0].mxu0 %v3329
    %v3477 = vpop.f32.mrb[0].mxu0
    %v3478 = vadd.f32 0.0, %v3477
    %v3479 = vpop.f32.mrb[0].mxu0
    %v3480 = vpop.f32.mrb[0].mxu0
    %v3481 = vadd.f32 0.0, %v3480
    %v3482 = vpop.f32.mrb[0].mxu0
    %3483 = vmatprep.mubr.bf16.mxu0 %v3332
    %3484 = vmatmul.mubr.bf16.gmra.mrb[0].mxu0 %v3331
    %v3485 = vpop.f32.mrb[0].mxu0
    %v3486 = vadd.f32 0.0, %v3485
    %v3487 = vpop.f32.mrb[0].mxu0
    %v3488 = vpop.f32.mrb[0].mxu0
    %v3489 = vadd.f32 0.0, %v3488
    %v3490 = vpop.f32.mrb[0].mxu0
    %3491 = vmatprep.mubr.bf16.mxu0 %v3334
    %3492 = vmatmul.mubr.bf16.gmra.mrb[0].mxu0 %v3333
    %v3493 = vpop.f32.mrb[0].mxu0
    %v3494 = vadd.f32 0.0, %v3493
    %v3495 = vpop.f32.mrb[0].mxu0
    %v3496 = vpop.f32.mrb[0].mxu0
    %v3497 = vadd.f32 0.0, %v3496
    %v3498 = vpop.f32.mrb[0].mxu0
    %3499 = vmatprep.mubr.bf16.mxu0 %v3336
    %3500 = vmatmul.mubr.bf16.gmra.mrb[0].mxu0 %v3335
    %v3501 = vpop.f32.mrb[0].mxu0
    %v3502 = vadd.f32 0.0, %v3501
    %v3503 = vpop.f32.mrb[0].mxu0
    %v3504 = vpop.f32.mrb[0].mxu0
    %v3505 = vadd.f32 0.0, %v3504
    %v3506 = vpop.f32.mrb[0].mxu0
    %3507 = vmatprep.mubr.bf16.mxu0 %v3338
    %3508 = vmatmul.mubr.bf16.gmra.mrb[0].mxu0 %v3337
    %v3509 = vpop.f32.mrb[0].mxu0
    %v3510 = vadd.f32 0.0, %v3509
    %v3511 = vpop.f32.mrb[0].mxu0
    %v3512 = vpop.f32.mrb[0].mxu0
    %v3513 = vadd.f32 0.0, %v3512
    %v3514 = vpop.f32.mrb[0].mxu0
    %3515 = vmatprep.mubr.bf16.mxu0 %v3340
    %3516 = vmatmul.mubr.bf16.gmra.mrb[0].mxu0 %v3339
    %v3517 = vpop.f32.mrb[0].mxu0
    %v3518 = vadd.f32 0.0, %v3517
    %v3519 = vpop.f32.mrb[0].mxu0
    %v3520 = vpop.f32.mrb[0].mxu0
    %v3521 = vadd.f32 0.0, %v3520
    %v3522 = vpop.f32.mrb[0].mxu0
    %3523 = vmatprep.mubr.bf16.mxu0 %v3342
    %3524 = vmatmul.mubr.bf16.gmra.mrb[0].mxu0 %v3341
    %v3525 = vpop.f32.mrb[0].mxu0
    %v3526 = vadd.f32 0.0, %v3525
    %v3527 = vpop.f32.mrb[0].mxu0
    %v3528 = vpop.f32.mrb[0].mxu0
    %v3529 = vadd.f32 0.0, %v3528
    %v3530 = vpop.f32.mrb[0].mxu0
    %3531 = vmatprep.mubr.bf16.mxu0 %v3344
    %3532 = vmatmul.mubr.bf16.gmra.mrb[0].mxu0 %v3343
    %v3533 = vpop.f32.mrb[0].mxu0
    %v3534 = vadd.f32 0.0, %v3533
    %v3535 = vpop.f32.mrb[0].mxu0
    %v3536 = vpop.f32.mrb[0].mxu0
    %v3537 = vadd.f32 0.0, %v3536
    %v3538 = vpop.f32.mrb[0].mxu0
    %3539 = vmatprep.mubr.bf16.mxu0 %v3346
    %3540 = vmatmul.mubr.bf16.gmra.mrb[0].mxu0 %v3345
    %v3541 = vpop.f32.mrb[0].mxu0
    %v3542 = vadd.f32 0.0, %v3541
    %v3543 = vpop.f32.mrb[0].mxu0
    %v3544 = vpop.f32.mrb[0].mxu0
    %v3545 = vadd.f32 0.0, %v3544
    %v3546 = vpop.f32.mrb[0].mxu0
    %3547 = vmatprep.mubr.bf16.mxu0 %v3348
    %3548 = vmatmul.mubr.bf16.gmra.mrb[0].mxu0 %v3347
    %v3549 = vpop.f32.mrb[0].mxu0
    %v3550 = vadd.f32 0.0, %v3549
    %v3551 = vpop.f32.mrb[0].mxu0
    %v3552 = vpop.f32.mrb[0].mxu0
    %v3553 = vadd.f32 0.0, %v3552
    %v3554 = vpop.f32.mrb[0].mxu0
    %3555 = vmatprep.mubr.bf16.mxu0 %v3350
    %3556 = vmatmul.mubr.bf16.gmra.mrb[0].mxu0 %v3349
    %v3557 = vpop.f32.mrb[0].mxu0
    %v3558 = vadd.f32 0.0, %v3557
    %v3559 = vpop.f32.mrb[0].mxu0
    %v3560 = vpop.f32.mrb[0].mxu0
    %v3561 = vadd.f32 0.0, %v3560
    %v3562 = vpop.f32.mrb[0].mxu0
    %3563 = vmatprep.mubr.bf16.mxu0 %v3352
    %3564 = vmatmul.mubr.bf16.gmra.mrb[0].mxu0 %v3351
    %v3565 = vpop.f32.mrb[0].mxu0
    %v3566 = vadd.f32 0.0, %v3565
    %v3567 = vpop.f32.mrb[0].mxu0
    %v3568 = vpop.f32.mrb[0].mxu0
    %v3569 = vadd.f32 0.0, %v3568
    %v3570 = vpop.f32.mrb[0].mxu0
    %3571 = vmatprep.mubr.bf16.mxu0 %v3354
    %3572 = vmatmul.mubr.bf16.gmra.mrb[0].mxu0 %v3353
    %v3573 = vpop.f32.mrb[0].mxu0
    %v3574 = vadd.f32 0.0, %v3573
    %v3575 = vpop.f32.mrb[0].mxu0
    %v3576 = vpop.f32.mrb[0].mxu0
    %v3577 = vadd.f32 0.0, %v3576
    %v3578 = vpop.f32.mrb[0].mxu0
    %3579 = vdwg.mxu0
    %3580 = vmatprep.subr.bf16.mxu0 0
    %3581 = vmatpush1.bf16.msra.mxu0 %v3403
    %3582 = vmatprep.subr.bf16.mxu0 0
    %3583 = vmatpush1.bf16.msra.mxu0 %v3404
    %3584 = vmatprep.subr.bf16.mxu0 0
    %3585 = vmatpush1.bf16.msra.mxu0 %v3405
    %3586 = vmatprep.subr.bf16.mxu0 0
    %3587 = vmatpush1.bf16.msra.mxu0 %v3406
    %3588 = vmatprep.subr.bf16.mxu0 0
    %3589 = vmatpush1.bf16.msra.mxu0 %v3407
    %3590 = vmatprep.subr.bf16.mxu0 0
    %3591 = vmatpush1.bf16.msra.mxu0 %v3408
    %3592 = vmatprep.subr.bf16.mxu0 0
    %3593 = vmatpush1.bf16.msra.mxu0 %v3409
    %3594 = vmatprep.subr.bf16.mxu0 0
    %3595 = vmatpush1.bf16.msra.mxu0 %v3410
    %3596 = vmatprep.subr.bf16.mxu0 0
    %3597 = vmatpush1.bf16.msra.mxu0 %v3411
    %3598 = vmatprep.subr.bf16.mxu0 0
    %3599 = vmatpush1.bf16.msra.mxu0 %v3412
    %3600 = vmatprep.subr.bf16.mxu0 0
    %3601 = vmatpush1.bf16.msra.mxu0 %v3413
    %3602 = vmatprep.subr.bf16.mxu0 0
    %3603 = vmatpush1.bf16.msra.mxu0 %v3414
    %3604 = vmatprep.subr.bf16.mxu0 0
    %3605 = vmatpush1.bf16.msra.mxu0 %v3415
    %3606 = vmatprep.subr.bf16.mxu0 0
    %3607 = vmatpush1.bf16.msra.mxu0 %v3416
    %3608 = vmatprep.subr.bf16.mxu0 0
    %3609 = vmatpush1.bf16.msra.mxu0 %v3417
    %3610 = vmatprep.subr.bf16.mxu0 0
    %3611 = vmatpush1.bf16.msra.mxu0 %v3418
    %3612 = vmatprep.mubr.bf16.mxu0 %v3356
    %3613 = vmatmul.mubr.bf16.gmra.mrb[0].mxu0 %v3355
    %v3614 = vpop.f32.mrb[0].mxu0
    %v3615 = vadd.f32 0.0, %v3614
    %v3616 = vpop.f32.mrb[0].mxu0
    %v3617 = vpop.f32.mrb[0].mxu0
    %v3618 = vadd.f32 0.0, %v3617
    %v3619 = vpop.f32.mrb[0].mxu0
    %3620 = vmatprep.mubr.bf16.mxu0 %v3358
    %3621 = vmatmul.mubr.bf16.gmra.mrb[0].mxu0 %v3357
    %v3622 = vpop.f32.mrb[0].mxu0
    %v3623 = vadd.f32 0.0, %v3622
    %v3624 = vpop.f32.mrb[0].mxu0
    %v3625 = vpop.f32.mrb[0].mxu0
    %v3626 = vadd.f32 0.0, %v3625
    %v3627 = vpop.f32.mrb[0].mxu0
    %3628 = vmatprep.mubr.bf16.mxu0 %v3360
    %3629 = vmatmul.mubr.bf16.gmra.mrb[0].mxu0 %v3359
    %v3630 = vpop.f32.mrb[0].mxu0
    %v3631 = vadd.f32 0.0, %v3630
    %v3632 = vpop.f32.mrb[0].mxu0
    %v3633 = vpop.f32.mrb[0].mxu0
    %v3634 = vadd.f32 0.0, %v3633
    %v3635 = vpop.f32.mrb[0].mxu0
    %3636 = vmatprep.mubr.bf16.mxu0 %v3362
    %3637 = vmatmul.mubr.bf16.gmra.mrb[0].mxu0 %v3361
    %v3638 = vpop.f32.mrb[0].mxu0
    %v3639 = vadd.f32 0.0, %v3638
    %v3640 = vpop.f32.mrb[0].mxu0
    %v3641 = vpop.f32.mrb[0].mxu0
    %v3642 = vadd.f32 0.0, %v3641
    %v3643 = vpop.f32.mrb[0].mxu0
    %3644 = vmatprep.mubr.bf16.mxu0 %v3364
    %3645 = vmatmul.mubr.bf16.gmra.mrb[0].mxu0 %v3363
    %v3646 = vpop.f32.mrb[0].mxu0
    %v3647 = vadd.f32 0.0, %v3646
    %v3648 = vpop.f32.mrb[0].mxu0
    %v3649 = vpop.f32.mrb[0].mxu0
    %v3650 = vadd.f32 0.0, %v3649
    %v3651 = vpop.f32.mrb[0].mxu0
    %3652 = vmatprep.mubr.bf16.mxu0 %v3366
    %3653 = vmatmul.mubr.bf16.gmra.mrb[0].mxu0 %v3365
    %v3654 = vpop.f32.mrb[0].mxu0
    %v3655 = vadd.f32 0.0, %v3654
    %v3656 = vpop.f32.mrb[0].mxu0
    %v3657 = vpop.f32.mrb[0].mxu0
    %v3658 = vadd.f32 0.0, %v3657
    %v3659 = vpop.f32.mrb[0].mxu0
    %3660 = vmatprep.mubr.bf16.mxu0 %v3368
    %3661 = vmatmul.mubr.bf16.gmra.mrb[0].mxu0 %v3367
    %v3662 = vpop.f32.mrb[0].mxu0
    %v3663 = vadd.f32 0.0, %v3662
    %v3664 = vpop.f32.mrb[0].mxu0
    %v3665 = vpop.f32.mrb[0].mxu0
    %v3666 = vadd.f32 0.0, %v3665
    %v3667 = vpop.f32.mrb[0].mxu0
    %3668 = vmatprep.mubr.bf16.mxu0 %v3370
    %3669 = vmatmul.mubr.bf16.gmra.mrb[0].mxu0 %v3369
    %v3670 = vpop.f32.mrb[0].mxu0
    %v3671 = vadd.f32 0.0, %v3670
    %v3672 = vpop.f32.mrb[0].mxu0
    %v3673 = vpop.f32.mrb[0].mxu0
    %v3674 = vadd.f32 0.0, %v3673
    %v3675 = vpop.f32.mrb[0].mxu0
    %3676 = vmatprep.mubr.bf16.mxu0 %v3372
    %3677 = vmatmul.mubr.bf16.gmra.mrb[0].mxu0 %v3371
    %v3678 = vpop.f32.mrb[0].mxu0
    %v3679 = vadd.f32 0.0, %v3678
    %v3680 = vpop.f32.mrb[0].mxu0
    %v3681 = vpop.f32.mrb[0].mxu0
    %v3682 = vadd.f32 0.0, %v3681
    %v3683 = vpop.f32.mrb[0].mxu0
    %3684 = vmatprep.mubr.bf16.mxu0 %v3374
    %3685 = vmatmul.mubr.bf16.gmra.mrb[0].mxu0 %v3373
    %v3686 = vpop.f32.mrb[0].mxu0
    %v3687 = vadd.f32 0.0, %v3686
    %v3688 = vpop.f32.mrb[0].mxu0
    %v3689 = vpop.f32.mrb[0].mxu0
    %v3690 = vadd.f32 0.0, %v3689
    %v3691 = vpop.f32.mrb[0].mxu0
    %3692 = vmatprep.mubr.bf16.mxu0 %v3376
    %3693 = vmatmul.mubr.bf16.gmra.mrb[0].mxu0 %v3375
    %v3694 = vpop.f32.mrb[0].mxu0
    %v3695 = vadd.f32 0.0, %v3694
    %v3696 = vpop.f32.mrb[0].mxu0
    %v3697 = vpop.f32.mrb[0].mxu0
    %v3698 = vadd.f32 0.0, %v3697
    %v3699 = vpop.f32.mrb[0].mxu0
    %3700 = vmatprep.mubr.bf16.mxu0 %v3378
    %3701 = vmatmul.mubr.bf16.gmra.mrb[0].mxu0 %v3377
    %v3702 = vpop.f32.mrb[0].mxu0
    %v3703 = vadd.f32 0.0, %v3702
    %v3704 = vpop.f32.mrb[0].mxu0
    %v3705 = vpop.f32.mrb[0].mxu0
    %v3706 = vadd.f32 0.0, %v3705
    %v3707 = vpop.f32.mrb[0].mxu0
    %3708 = vmatprep.mubr.bf16.mxu0 %v3380
    %3709 = vmatmul.mubr.bf16.gmra.mrb[0].mxu0 %v3379
    %v3710 = vpop.f32.mrb[0].mxu0
    %v3711 = vadd.f32 0.0, %v3710
    %v3712 = vpop.f32.mrb[0].mxu0
    %v3713 = vpop.f32.mrb[0].mxu0
    %v3714 = vadd.f32 0.0, %v3713
    %v3715 = vpop.f32.mrb[0].mxu0
    %3716 = vmatprep.mubr.bf16.mxu0 %v3382
    %3717 = vmatmul.mubr.bf16.gmra.mrb[0].mxu0 %v3381
    %v3718 = vpop.f32.mrb[0].mxu0
    %v3719 = vadd.f32 0.0, %v3718
    %v3720 = vpop.f32.mrb[0].mxu0
    %v3721 = vpop.f32.mrb[0].mxu0
    %v3722 = vadd.f32 0.0, %v3721
    %v3723 = vpop.f32.mrb[0].mxu0
    %3724 = vmatprep.mubr.bf16.mxu0 %v3384
    %3725 = vmatmul.mubr.bf16.gmra.mrb[0].mxu0 %v3383
    %v3726 = vpop.f32.mrb[0].mxu0
    %v3727 = vadd.f32 0.0, %v3726
    %v3728 = vpop.f32.mrb[0].mxu0
    %v3729 = vpop.f32.mrb[0].mxu0
    %v3730 = vadd.f32 0.0, %v3729
    %v3731 = vpop.f32.mrb[0].mxu0
    %3732 = vmatprep.mubr.bf16.mxu0 %v3386
    %3733 = vmatmul.mubr.bf16.gmra.mrb[0].mxu0 %v3385
    %v3734 = vpop.f32.mrb[0].mxu0
    %v3735 = vadd.f32 0.0, %v3734
    %v3736 = vpop.f32.mrb[0].mxu0
    %v3737 = vpop.f32.mrb[0].mxu0
    %v3738 = vadd.f32 0.0, %v3737
    %v3739 = vpop.f32.mrb[0].mxu0
    %3740 = vdwg.mxu0
    %v3741 = vrcp.pop %v3133
    %v3742 = vrcp.pop %v3136
    %v3743 = vrcp.pop %v3139
    %v3744 = vrcp.pop %v3142
    %v3745 = vrcp.pop %v3145
    %v3746 = vrcp.pop %v3148
    %v3747 = vrcp.pop %v3151
    %v3748 = vrcp.pop %v3154
    %v3749 = vrcp.pop %v3157
    %v3750 = vrcp.pop %v3160
    %v3751 = vrcp.pop %v3163
    %v3752 = vrcp.pop %v3166
    %v3753 = vrcp.pop %v3169
    %v3754 = vrcp.pop %v3172
    %v3755 = vrcp.pop %v3175
    %v3756 = vrcp.pop %v3178
    %v3757 = vrcp.pop %v3181
    %v3758 = vrcp.pop %v3184
    %v3759 = vrcp.pop %v3187
    %v3760 = vrcp.pop %v3190
    %v3761 = vrcp.pop %v3193
    %v3762 = vrcp.pop %v3196
    %v3763 = vrcp.pop %v3199
    %v3764 = vrcp.pop %v3202
    %v3765 = vrcp.pop %v3205
    %v3766 = vrcp.pop %v3208
    %v3767 = vrcp.pop %v3211
    %v3768 = vrcp.pop %v3214
    %v3769 = vrcp.pop %v3217
    %v3770 = vrcp.pop %v3220
    %v3771 = vrcp.pop %v3223
    %v3772 = vrcp.pop %v3226
    %v3773 = vrcp.pop %v3229
    %v3774 = vrcp.pop %v3232
    %v3775 = vrcp.pop %v3235
    %v3776 = vrcp.pop %v3238
    %v3777 = vrcp.pop %v3241
    %v3778 = vrcp.pop %v3244
    %v3779 = vrcp.pop %v3247
    %v3780 = vrcp.pop %v3250
    %v3781 = vrcp.pop %v3253
    %v3782 = vrcp.pop %v3256
    %v3783 = vrcp.pop %v3259
    %v3784 = vrcp.pop %v3262
    %v3785 = vrcp.pop %v3265
    %v3786 = vrcp.pop %v3268
    %v3787 = vrcp.pop %v3271
    %v3788 = vrcp.pop %v3274
    %v3789 = vrcp.pop %v3277
    %v3790 = vrcp.pop %v3280
    %v3791 = vrcp.pop %v3283
    %v3792 = vrcp.pop %v3286
    %v3793 = vrcp.pop %v3289
    %v3794 = vrcp.pop %v3292
    %v3795 = vrcp.pop %v3295
    %v3796 = vrcp.pop %v3298
    %v3797 = vrcp.pop %v3301
    %v3798 = vrcp.pop %v3304
    %v3799 = vrcp.pop %v3307
    %v3800 = vrcp.pop %v3310
    %v3801 = vrcp.pop %v3313
    %v3802 = vrcp.pop %v3316
    %v3803 = vrcp.pop %v3319
    %v3804 = vrcp.pop %v3322
    %v3805 = vmul.f32 %v3454, %v3741
    %v3806 = vmul.f32 %v3457, %v3742
    %v3807 = vmul.f32 %v3462, %v3743
    %v3808 = vmul.f32 %v3465, %v3744
    %v3809 = vmul.f32 %v3470, %v3745
    %v3810 = vmul.f32 %v3473, %v3746
    %v3811 = vmul.f32 %v3478, %v3747
    %v3812 = vmul.f32 %v3481, %v3748
    %v3813 = vmul.f32 %v3486, %v3749
    %v3814 = vmul.f32 %v3489, %v3750
    %v3815 = vmul.f32 %v3494, %v3751
    %v3816 = vmul.f32 %v3497, %v3752
    %v3817 = vmul.f32 %v3502, %v3753
    %v3818 = vmul.f32 %v3505, %v3754
    %v3819 = vmul.f32 %v3510, %v3755
    %v3820 = vmul.f32 %v3513, %v3756
    %v3821 = vmul.f32 %v3518, %v3757
    %v3822 = vmul.f32 %v3521, %v3758
    %v3823 = vmul.f32 %v3526, %v3759
    %v3824 = vmul.f32 %v3529, %v3760
    %v3825 = vmul.f32 %v3534, %v3761
    %v3826 = vmul.f32 %v3537, %v3762
    %v3827 = vmul.f32 %v3542, %v3763
    %v3828 = vmul.f32 %v3545, %v3764
    %v3829 = vmul.f32 %v3550, %v3765
    %v3830 = vmul.f32 %v3553, %v3766
    %v3831 = vmul.f32 %v3558, %v3767
    %v3832 = vmul.f32 %v3561, %v3768
    %v3833 = vmul.f32 %v3566, %v3769
    %v3834 = vmul.f32 %v3569, %v3770
    %v3835 = vmul.f32 %v3574, %v3771
    %v3836 = vmul.f32 %v3577, %v3772
    %v3837 = vmul.f32 %v3615, %v3773
    %v3838 = vmul.f32 %v3618, %v3774
    %v3839 = vmul.f32 %v3623, %v3775
    %v3840 = vmul.f32 %v3626, %v3776
    %v3841 = vmul.f32 %v3631, %v3777
    %v3842 = vmul.f32 %v3634, %v3778
    %v3843 = vmul.f32 %v3639, %v3779
    %v3844 = vmul.f32 %v3642, %v3780
    %v3845 = vmul.f32 %v3647, %v3781
    %v3846 = vmul.f32 %v3650, %v3782
    %v3847 = vmul.f32 %v3655, %v3783
    %v3848 = vmul.f32 %v3658, %v3784
    %v3849 = vmul.f32 %v3663, %v3785
    %v3850 = vmul.f32 %v3666, %v3786
    %v3851 = vmul.f32 %v3671, %v3787
    %v3852 = vmul.f32 %v3674, %v3788
    %v3853 = vmul.f32 %v3679, %v3789
    %v3854 = vmul.f32 %v3682, %v3790
    %v3855 = vmul.f32 %v3687, %v3791
    %v3856 = vmul.f32 %v3690, %v3792
    %v3857 = vmul.f32 %v3695, %v3793
    %v3858 = vmul.f32 %v3698, %v3794
    %v3859 = vmul.f32 %v3703, %v3795
    %v3860 = vmul.f32 %v3706, %v3796
    %v3861 = vmul.f32 %v3711, %v3797
    %v3862 = vmul.f32 %v3714, %v3798
    %v3863 = vmul.f32 %v3719, %v3799
    %v3864 = vmul.f32 %v3722, %v3800
    %v3865 = vmul.f32 %v3727, %v3801
    %v3866 = vmul.f32 %v3730, %v3802
    %v3867 = vmul.f32 %v3735, %v3803
    %v3868 = vmul.f32 %v3738, %v3804
    %v3869 = vpack.c.bf16 %v3806, %v3805
    %v3870 = vpack.c.bf16 %v3808, %v3807
    %v3871 = vpack.c.bf16 %v3810, %v3809
    %v3872 = vpack.c.bf16 %v3812, %v3811
    %v3873 = vpack.c.bf16 %v3814, %v3813
    %v3874 = vpack.c.bf16 %v3816, %v3815
    %v3875 = vpack.c.bf16 %v3818, %v3817
    %v3876 = vpack.c.bf16 %v3820, %v3819
    %v3877 = vpack.c.bf16 %v3822, %v3821
    %v3878 = vpack.c.bf16 %v3824, %v3823
    %v3879 = vpack.c.bf16 %v3826, %v3825
    %v3880 = vpack.c.bf16 %v3828, %v3827
    %v3881 = vpack.c.bf16 %v3830, %v3829
    %v3882 = vpack.c.bf16 %v3832, %v3831
    %v3883 = vpack.c.bf16 %v3834, %v3833
    %v3884 = vpack.c.bf16 %v3836, %v3835
    %v3885 = vpack.c.bf16 %v3838, %v3837
    %v3886 = vpack.c.bf16 %v3840, %v3839
    %v3887 = vpack.c.bf16 %v3842, %v3841
    %v3888 = vpack.c.bf16 %v3844, %v3843
    %v3889 = vpack.c.bf16 %v3846, %v3845
    %v3890 = vpack.c.bf16 %v3848, %v3847
    %v3891 = vpack.c.bf16 %v3850, %v3849
    %v3892 = vpack.c.bf16 %v3852, %v3851
    %v3893 = vpack.c.bf16 %v3854, %v3853
    %v3894 = vpack.c.bf16 %v3856, %v3855
    %v3895 = vpack.c.bf16 %v3858, %v3857
    %v3896 = vpack.c.bf16 %v3860, %v3859
    %v3897 = vpack.c.bf16 %v3862, %v3861
    %v3898 = vpack.c.bf16 %v3864, %v3863
    %v3899 = vpack.c.bf16 %v3866, %v3865
    %v3900 = vpack.c.bf16 %v3868, %v3867
    %v3901 = vld [vmem:[#allocation14] sm:$0xf]
    %v3902 = vld [vmem:[#allocation14 + $0x4] sm:$0xf]
    %v3903 = vld [vmem:[#allocation14 + $0x8] sm:$0xf]
    %v3904 = vld [vmem:[#allocation14 + $0xc] sm:$0xf]
    %v3905 = vld [vmem:[#allocation14 + $0x10] sm:$0xf]
    %v3906 = vld [vmem:[#allocation14 + $0x14] sm:$0xf]
    %v3907 = vld [vmem:[#allocation14 + $0x18] sm:$0xf]
    %v3908 = vld [vmem:[#allocation14 + $0x1c] sm:$0xf]
    %v3909 = vld [vmem:[#allocation14 + $0x20] sm:$0xf]
    %v3910 = vld [vmem:[#allocation14 + $0x24] sm:$0xf]
    %v3911 = vld [vmem:[#allocation14 + $0x28] sm:$0xf]
    %v3912 = vld [vmem:[#allocation14 + $0x2c] sm:$0xf]
    %v3913 = vld [vmem:[#allocation14 + $0x30] sm:$0xf]
    %v3914 = vld [vmem:[#allocation14 + $0x34] sm:$0xf]
    %v3915 = vld [vmem:[#allocation14 + $0x38] sm:$0xf]
    %v3916 = vld [vmem:[#allocation14 + $0x3c] sm:$0xf]
    %v3917 = vld [vmem:[%s11] sm:$0x1]
    %v3919 = vlaneseq
    %v3920 = vshrl.u32 %v3919, 7
    %v3921 = vsub.s32 0, %v3920
    %v3922 = vrot.slane %v3917, %v3921
    %v3940 = vunpack.c.l.b16 %v3901
    %v3941 = vunpack.c.l.b16 %v3902
    %v3942 = vunpack.c.l.b16 %v3903
    %v3943 = vunpack.c.l.b16 %v3904
    %v3944 = vunpack.c.l.b16 %v3905
    %v3945 = vunpack.c.l.b16 %v3906
    %v3946 = vunpack.c.l.b16 %v3907
    %v3947 = vunpack.c.l.b16 %v3908
    %v3948 = vunpack.c.l.b16 %v3909
    %v3949 = vunpack.c.l.b16 %v3910
    %v3950 = vunpack.c.l.b16 %v3911
    %v3951 = vunpack.c.l.b16 %v3912
    %v3952 = vunpack.c.l.b16 %v3913
    %v3953 = vunpack.c.l.b16 %v3914
    %v3954 = vunpack.c.l.b16 %v3915
    %v3955 = vunpack.c.l.b16 %v3916
    %v3956 = vpack.c.b16 %v3941, %v3940
    %v3957 = vpack.c.b16 %v3943, %v3942
    %v3958 = vpack.c.b16 %v3945, %v3944
    %v3959 = vpack.c.b16 %v3947, %v3946
    %v3960 = vpack.c.b16 %v3949, %v3948
    %v3961 = vpack.c.b16 %v3951, %v3950
    %v3962 = vpack.c.b16 %v3953, %v3952
    %v3963 = vpack.c.b16 %v3955, %v3954
    %3972 = vmatprep.subr.bf16.mxu0 0
    %3973 = vmatpush1.bf16.msra.mxu0 %v3956
    %3974 = vmatprep.subr.bf16.mxu0 0
    %3975 = vmatpush1.bf16.msra.mxu0 %v3957
    %3976 = vmatprep.subr.bf16.mxu0 0
    %3977 = vmatpush1.bf16.msra.mxu0 %v3958
    %3978 = vmatprep.subr.bf16.mxu0 0
    %3979 = vmatpush1.bf16.msra.mxu0 %v3959
    %3980 = vmatprep.subr.bf16.mxu0 0
    %3981 = vmatpush1.bf16.msra.mxu0 %v3960
    %3982 = vmatprep.subr.bf16.mxu0 0
    %3983 = vmatpush1.bf16.msra.mxu0 %v3961
    %3984 = vmatprep.subr.bf16.mxu0 0
    %3985 = vmatpush1.bf16.msra.mxu0 %v3962
    %3986 = vmatprep.subr.bf16.mxu0 0
    %3987 = vmatpush1.bf16.msra.mxu0 %v3963
    %3988 = vmatprep.subr.bf16.mxu0 0
    %3989 = vmatpush1.bf16.msra.mxu0 0
    %3990 = vmatprep.subr.bf16.mxu0 0
    %3991 = vmatpush1.bf16.msra.mxu0 0
    %3992 = vmatprep.subr.bf16.mxu0 0
    %3993 = vmatpush1.bf16.msra.mxu0 0
    %3994 = vmatprep.subr.bf16.mxu0 0
    %3995 = vmatpush1.bf16.msra.mxu0 0
    %3996 = vmatprep.subr.bf16.mxu0 0
    %3997 = vmatpush1.bf16.msra.mxu0 0
    %3998 = vmatprep.subr.bf16.mxu0 0
    %3999 = vmatpush1.bf16.msra.mxu0 0
    %4000 = vmatprep.subr.bf16.mxu0 0
    %4001 = vmatpush1.bf16.msra.mxu0 0
    %4002 = vmatprep.subr.bf16.mxu0 0
    %4003 = vmatpush1.bf16.msra.mxu0 0
    %4004 = vmatprep.mubr.bf16.mxu0 0
    %4005 = vmatmul.mubr.bf16.gmra.mrb[0].mxu0 %v3869
    %v4006 = vpop.f32.mrb[0].mxu0
    %v4007 = vadd.f32 %v3922, %v4006
    %v4008 = vpop.f32.mrb[0].mxu0
    %v4009 = vpop.f32.mrb[0].mxu0
    %v4010 = vadd.f32 %v3922, %v4009
    %v4011 = vpop.f32.mrb[0].mxu0
    %4012 = vmatprep.mubr.bf16.mxu0 0
    %4013 = vmatmul.mubr.bf16.gmra.mrb[0].mxu0 %v3870
    %v4014 = vpop.f32.mrb[0].mxu0
    %v4015 = vadd.f32 %v3922, %v4014
    %v4016 = vpop.f32.mrb[0].mxu0
    %v4017 = vpop.f32.mrb[0].mxu0
    %v4018 = vadd.f32 %v3922, %v4017
    %v4019 = vpop.f32.mrb[0].mxu0
    %4020 = vmatprep.mubr.bf16.mxu0 0
    %4021 = vmatmul.mubr.bf16.gmra.mrb[0].mxu0 %v3871
    %v4022 = vpop.f32.mrb[0].mxu0
    %v4023 = vadd.f32 %v3922, %v4022
    %v4024 = vpop.f32.mrb[0].mxu0
    %v4025 = vpop.f32.mrb[0].mxu0
    %v4026 = vadd.f32 %v3922, %v4025
    %v4027 = vpop.f32.mrb[0].mxu0
    %4028 = vmatprep.mubr.bf16.mxu0 0
    %4029 = vmatmul.mubr.bf16.gmra.mrb[0].mxu0 %v3872
    %v4030 = vpop.f32.mrb[0].mxu0
    %v4031 = vadd.f32 %v3922, %v4030
    %v4032 = vpop.f32.mrb[0].mxu0
    %v4033 = vpop.f32.mrb[0].mxu0
    %v4034 = vadd.f32 %v3922, %v4033
    %v4035 = vpop.f32.mrb[0].mxu0
    %4036 = vmatprep.mubr.bf16.mxu0 0
    %4037 = vmatmul.mubr.bf16.gmra.mrb[0].mxu0 %v3873
    %v4038 = vpop.f32.mrb[0].mxu0
    %v4039 = vadd.f32 %v3922, %v4038
    %v4040 = vpop.f32.mrb[0].mxu0
    %v4041 = vpop.f32.mrb[0].mxu0
    %v4042 = vadd.f32 %v3922, %v4041
    %v4043 = vpop.f32.mrb[0].mxu0
    %4044 = vmatprep.mubr.bf16.mxu0 0
    %4045 = vmatmul.mubr.bf16.gmra.mrb[0].mxu0 %v3874
    %v4046 = vpop.f32.mrb[0].mxu0
    %v4047 = vadd.f32 %v3922, %v4046
    %v4048 = vpop.f32.mrb[0].mxu0
    %v4049 = vpop.f32.mrb[0].mxu0
    %v4050 = vadd.f32 %v3922, %v4049
    %v4051 = vpop.f32.mrb[0].mxu0
    %4052 = vmatprep.mubr.bf16.mxu0 0
    %4053 = vmatmul.mubr.bf16.gmra.mrb[0].mxu0 %v3875
    %v4054 = vpop.f32.mrb[0].mxu0
    %v4055 = vadd.f32 %v3922, %v4054
    %v4056 = vpop.f32.mrb[0].mxu0
    %v4057 = vpop.f32.mrb[0].mxu0
    %v4058 = vadd.f32 %v3922, %v4057
    %v4059 = vpop.f32.mrb[0].mxu0
    %4060 = vmatprep.mubr.bf16.mxu0 0
    %4061 = vmatmul.mubr.bf16.gmra.mrb[0].mxu0 %v3876
    %v4062 = vpop.f32.mrb[0].mxu0
    %v4063 = vadd.f32 %v3922, %v4062
    %v4064 = vpop.f32.mrb[0].mxu0
    %v4065 = vpop.f32.mrb[0].mxu0
    %v4066 = vadd.f32 %v3922, %v4065
    %v4067 = vpop.f32.mrb[0].mxu0
    %4068 = vmatprep.mubr.bf16.mxu0 0
    %4069 = vmatmul.mubr.bf16.gmra.mrb[0].mxu0 %v3877
    %v4070 = vpop.f32.mrb[0].mxu0
    %v4071 = vadd.f32 %v3922, %v4070
    %v4072 = vpop.f32.mrb[0].mxu0
    %v4073 = vpop.f32.mrb[0].mxu0
    %v4074 = vadd.f32 %v3922, %v4073
    %v4075 = vpop.f32.mrb[0].mxu0
    %4076 = vmatprep.mubr.bf16.mxu0 0
    %4077 = vmatmul.mubr.bf16.gmra.mrb[0].mxu0 %v3878
    %v4078 = vpop.f32.mrb[0].mxu0
    %v4079 = vadd.f32 %v3922, %v4078
    %v4080 = vpop.f32.mrb[0].mxu0
    %v4081 = vpop.f32.mrb[0].mxu0
    %v4082 = vadd.f32 %v3922, %v4081
    %v4083 = vpop.f32.mrb[0].mxu0
    %4084 = vmatprep.mubr.bf16.mxu0 0
    %4085 = vmatmul.mubr.bf16.gmra.mrb[0].mxu0 %v3879
    %v4086 = vpop.f32.mrb[0].mxu0
    %v4087 = vadd.f32 %v3922, %v4086
    %v4088 = vpop.f32.mrb[0].mxu0
    %v4089 = vpop.f32.mrb[0].mxu0
    %v4090 = vadd.f32 %v3922, %v4089
    %v4091 = vpop.f32.mrb[0].mxu0
    %4092 = vmatprep.mubr.bf16.mxu0 0
    %4093 = vmatmul.mubr.bf16.gmra.mrb[0].mxu0 %v3880
    %v4094 = vpop.f32.mrb[0].mxu0
    %v4095 = vadd.f32 %v3922, %v4094
    %v4096 = vpop.f32.mrb[0].mxu0
    %v4097 = vpop.f32.mrb[0].mxu0
    %v4098 = vadd.f32 %v3922, %v4097
    %v4099 = vpop.f32.mrb[0].mxu0
    %4100 = vmatprep.mubr.bf16.mxu0 0
    %4101 = vmatmul.mubr.bf16.gmra.mrb[0].mxu0 %v3881
    %v4102 = vpop.f32.mrb[0].mxu0
    %v4103 = vadd.f32 %v3922, %v4102
    %v4104 = vpop.f32.mrb[0].mxu0
    %v4105 = vpop.f32.mrb[0].mxu0
    %v4106 = vadd.f32 %v3922, %v4105
    %v4107 = vpop.f32.mrb[0].mxu0
    %4108 = vmatprep.mubr.bf16.mxu0 0
    %4109 = vmatmul.mubr.bf16.gmra.mrb[0].mxu0 %v3882
    %v4110 = vpop.f32.mrb[0].mxu0
    %v4111 = vadd.f32 %v3922, %v4110
    %v4112 = vpop.f32.mrb[0].mxu0
    %v4113 = vpop.f32.mrb[0].mxu0
    %v4114 = vadd.f32 %v3922, %v4113
    %v4115 = vpop.f32.mrb[0].mxu0
    %4116 = vmatprep.mubr.bf16.mxu0 0
    %4117 = vmatmul.mubr.bf16.gmra.mrb[0].mxu0 %v3883
    %v4118 = vpop.f32.mrb[0].mxu0
    %v4119 = vadd.f32 %v3922, %v4118
    %v4120 = vpop.f32.mrb[0].mxu0
    %v4121 = vpop.f32.mrb[0].mxu0
    %v4122 = vadd.f32 %v3922, %v4121
    %v4123 = vpop.f32.mrb[0].mxu0
    %4124 = vmatprep.mubr.bf16.mxu0 0
    %4125 = vmatmul.mubr.bf16.gmra.mrb[0].mxu0 %v3884
    %v4126 = vpop.f32.mrb[0].mxu0
    %v4127 = vadd.f32 %v3922, %v4126
    %v4128 = vpop.f32.mrb[0].mxu0
    %v4129 = vpop.f32.mrb[0].mxu0
    %v4130 = vadd.f32 %v3922, %v4129
    %v4131 = vpop.f32.mrb[0].mxu0
    %4132 = vmatprep.mubr.bf16.mxu0 0
    %4133 = vmatmul.mubr.bf16.gmra.mrb[0].mxu0 %v3885
    %v4134 = vpop.f32.mrb[0].mxu0
    %v4135 = vadd.f32 %v3922, %v4134
    %v4136 = vpop.f32.mrb[0].mxu0
    %v4137 = vpop.f32.mrb[0].mxu0
    %v4138 = vadd.f32 %v3922, %v4137
    %v4139 = vpop.f32.mrb[0].mxu0
    %4140 = vmatprep.mubr.bf16.mxu0 0
    %4141 = vmatmul.mubr.bf16.gmra.mrb[0].mxu0 %v3886
    %v4142 = vpop.f32.mrb[0].mxu0
    %v4143 = vadd.f32 %v3922, %v4142
    %v4144 = vpop.f32.mrb[0].mxu0
    %v4145 = vpop.f32.mrb[0].mxu0
    %v4146 = vadd.f32 %v3922, %v4145
    %v4147 = vpop.f32.mrb[0].mxu0
    %4148 = vmatprep.mubr.bf16.mxu0 0
    %4149 = vmatmul.mubr.bf16.gmra.mrb[0].mxu0 %v3887
    %v4150 = vpop.f32.mrb[0].mxu0
    %v4151 = vadd.f32 %v3922, %v4150
    %v4152 = vpop.f32.mrb[0].mxu0
    %v4153 = vpop.f32.mrb[0].mxu0
    %v4154 = vadd.f32 %v3922, %v4153
    %v4155 = vpop.f32.mrb[0].mxu0
    %4156 = vmatprep.mubr.bf16.mxu0 0
    %4157 = vmatmul.mubr.bf16.gmra.mrb[0].mxu0 %v3888
    %v4158 = vpop.f32.mrb[0].mxu0
    %v4159 = vadd.f32 %v3922, %v4158
    %v4160 = vpop.f32.mrb[0].mxu0
    %v4161 = vpop.f32.mrb[0].mxu0
    %v4162 = vadd.f32 %v3922, %v4161
    %v4163 = vpop.f32.mrb[0].mxu0
    %4164 = vmatprep.mubr.bf16.mxu0 0
    %4165 = vmatmul.mubr.bf16.gmra.mrb[0].mxu0 %v3889
    %v4166 = vpop.f32.mrb[0].mxu0
    %v4167 = vadd.f32 %v3922, %v4166
    %v4168 = vpop.f32.mrb[0].mxu0
    %v4169 = vpop.f32.mrb[0].mxu0
    %v4170 = vadd.f32 %v3922, %v4169
    %v4171 = vpop.f32.mrb[0].mxu0
    %4172 = vmatprep.mubr.bf16.mxu0 0
    %4173 = vmatmul.mubr.bf16.gmra.mrb[0].mxu0 %v3890
    %v4174 = vpop.f32.mrb[0].mxu0
    %v4175 = vadd.f32 %v3922, %v4174
    %v4176 = vpop.f32.mrb[0].mxu0
    %v4177 = vpop.f32.mrb[0].mxu0
    %v4178 = vadd.f32 %v3922, %v4177
    %v4179 = vpop.f32.mrb[0].mxu0
    %4180 = vmatprep.mubr.bf16.mxu0 0
    %4181 = vmatmul.mubr.bf16.gmra.mrb[0].mxu0 %v3891
    %v4182 = vpop.f32.mrb[0].mxu0
    %v4183 = vadd.f32 %v3922, %v4182
    %v4184 = vpop.f32.mrb[0].mxu0
    %v4185 = vpop.f32.mrb[0].mxu0
    %v4186 = vadd.f32 %v3922, %v4185
    %v4187 = vpop.f32.mrb[0].mxu0
    %4188 = vmatprep.mubr.bf16.mxu0 0
    %4189 = vmatmul.mubr.bf16.gmra.mrb[0].mxu0 %v3892
    %v4190 = vpop.f32.mrb[0].mxu0
    %v4191 = vadd.f32 %v3922, %v4190
    %v4192 = vpop.f32.mrb[0].mxu0
    %v4193 = vpop.f32.mrb[0].mxu0
    %v4194 = vadd.f32 %v3922, %v4193
    %v4195 = vpop.f32.mrb[0].mxu0
    %4196 = vmatprep.mubr.bf16.mxu0 0
    %4197 = vmatmul.mubr.bf16.gmra.mrb[0].mxu0 %v3893
    %v4198 = vpop.f32.mrb[0].mxu0
    %v4199 = vadd.f32 %v3922, %v4198
    %v4200 = vpop.f32.mrb[0].mxu0
    %v4201 = vpop.f32.mrb[0].mxu0
    %v4202 = vadd.f32 %v3922, %v4201
    %v4203 = vpop.f32.mrb[0].mxu0
    %4204 = vmatprep.mubr.bf16.mxu0 0
    %4205 = vmatmul.mubr.bf16.gmra.mrb[0].mxu0 %v3894
    %v4206 = vpop.f32.mrb[0].mxu0
    %v4207 = vadd.f32 %v3922, %v4206
    %v4208 = vpop.f32.mrb[0].mxu0
    %v4209 = vpop.f32.mrb[0].mxu0
    %v4210 = vadd.f32 %v3922, %v4209
    %v4211 = vpop.f32.mrb[0].mxu0
    %4212 = vmatprep.mubr.bf16.mxu0 0
    %4213 = vmatmul.mubr.bf16.gmra.mrb[0].mxu0 %v3895
    %v4214 = vpop.f32.mrb[0].mxu0
    %v4215 = vadd.f32 %v3922, %v4214
    %v4216 = vpop.f32.mrb[0].mxu0
    %v4217 = vpop.f32.mrb[0].mxu0
    %v4218 = vadd.f32 %v3922, %v4217
    %v4219 = vpop.f32.mrb[0].mxu0
    %4220 = vmatprep.mubr.bf16.mxu0 0
    %4221 = vmatmul.mubr.bf16.gmra.mrb[0].mxu0 %v3896
    %v4222 = vpop.f32.mrb[0].mxu0
    %v4223 = vadd.f32 %v3922, %v4222
    %v4224 = vpop.f32.mrb[0].mxu0
    %v4225 = vpop.f32.mrb[0].mxu0
    %v4226 = vadd.f32 %v3922, %v4225
    %v4227 = vpop.f32.mrb[0].mxu0
    %4228 = vmatprep.mubr.bf16.mxu0 0
    %4229 = vmatmul.mubr.bf16.gmra.mrb[0].mxu0 %v3897
    %v4230 = vpop.f32.mrb[0].mxu0
    %v4231 = vadd.f32 %v3922, %v4230
    %v4232 = vpop.f32.mrb[0].mxu0
    %v4233 = vpop.f32.mrb[0].mxu0
    %v4234 = vadd.f32 %v3922, %v4233
    %v4235 = vpop.f32.mrb[0].mxu0
    %4236 = vmatprep.mubr.bf16.mxu0 0
    %4237 = vmatmul.mubr.bf16.gmra.mrb[0].mxu0 %v3898
    %v4238 = vpop.f32.mrb[0].mxu0
    %v4239 = vadd.f32 %v3922, %v4238
    %v4240 = vpop.f32.mrb[0].mxu0
    %v4241 = vpop.f32.mrb[0].mxu0
    %v4242 = vadd.f32 %v3922, %v4241
    %v4243 = vpop.f32.mrb[0].mxu0
    %4244 = vmatprep.mubr.bf16.mxu0 0
    %4245 = vmatmul.mubr.bf16.gmra.mrb[0].mxu0 %v3899
    %v4246 = vpop.f32.mrb[0].mxu0
    %v4247 = vadd.f32 %v3922, %v4246
    %v4248 = vpop.f32.mrb[0].mxu0
    %v4249 = vpop.f32.mrb[0].mxu0
    %v4250 = vadd.f32 %v3922, %v4249
    %v4251 = vpop.f32.mrb[0].mxu0
    %4252 = vmatprep.mubr.bf16.mxu0 0
    %4253 = vmatmul.mubr.bf16.gmra.mrb[0].mxu0 %v3900
    %v4254 = vpop.f32.mrb[0].mxu0
    %v4255 = vadd.f32 %v3922, %v4254
    %v4256 = vpop.f32.mrb[0].mxu0
    %v4257 = vpop.f32.mrb[0].mxu0
    %v4258 = vadd.f32 %v3922, %v4257
    %v4259 = vpop.f32.mrb[0].mxu0
    %4260 = vdwg.mxu0
    %s4261 = scalar_lea.vmem [#allocation5], %s2100
    %v4262 = vld [vmem:[%s4261] sm:$0xff]
    %v4263 = vld [vmem:[%s4261 + $0x8] sm:$0xff]
    %v4264 = vld [vmem:[%s4261 + $0x10] sm:$0xff]
    %v4265 = vld [vmem:[%s4261 + $0x18] sm:$0xff]
    %v4266 = vld [vmem:[%s4261 + $0x20] sm:$0xff]
    %v4267 = vld [vmem:[%s4261 + $0x28] sm:$0xff]
    %v4268 = vld [vmem:[%s4261 + $0x30] sm:$0xff]
    %v4269 = vld [vmem:[%s4261 + $0x38] sm:$0xff]
    %v4270 = vld [vmem:[%s4261 + $0x40] sm:$0xff]
    %v4271 = vld [vmem:[%s4261 + $0x48] sm:$0xff]
    %v4272 = vld [vmem:[%s4261 + $0x50] sm:$0xff]
    %v4273 = vld [vmem:[%s4261 + $0x58] sm:$0xff]
    %v4274 = vld [vmem:[%s4261 + $0x60] sm:$0xff]
    %v4275 = vld [vmem:[%s4261 + $0x68] sm:$0xff]
    %v4276 = vld [vmem:[%s4261 + $0x70] sm:$0xff]
    %v4277 = vld [vmem:[%s4261 + $0x78] sm:$0xff]
    %v4278 = vld [vmem:[%s4261 + $0x80] sm:$0xff]
    %v4279 = vld [vmem:[%s4261 + $0x88] sm:$0xff]
    %v4280 = vld [vmem:[%s4261 + $0x90] sm:$0xff]
    %v4281 = vld [vmem:[%s4261 + $0x98] sm:$0xff]
    %v4282 = vld [vmem:[%s4261 + $0xa0] sm:$0xff]
    %v4283 = vld [vmem:[%s4261 + $0xa8] sm:$0xff]
    %v4284 = vld [vmem:[%s4261 + $0xb0] sm:$0xff]
    %v4285 = vld [vmem:[%s4261 + $0xb8] sm:$0xff]
    %v4286 = vld [vmem:[%s4261 + $0xc0] sm:$0xff]
    %v4287 = vld [vmem:[%s4261 + $0xc8] sm:$0xff]
    %v4288 = vld [vmem:[%s4261 + $0xd0] sm:$0xff]
    %v4289 = vld [vmem:[%s4261 + $0xd8] sm:$0xff]
    %v4290 = vld [vmem:[%s4261 + $0xe0] sm:$0xff]
    %v4291 = vld [vmem:[%s4261 + $0xe8] sm:$0xff]
    %v4292 = vld [vmem:[%s4261 + $0xf0] sm:$0xff]
    %v4293 = vld [vmem:[%s4261 + $0xf8] sm:$0xff]
    %v4294 = vld [vmem:[%s4261 + $0x100] sm:$0xff]
    %v4295 = vld [vmem:[%s4261 + $0x108] sm:$0xff]
    %v4296 = vld [vmem:[%s4261 + $0x110] sm:$0xff]
    %v4297 = vld [vmem:[%s4261 + $0x118] sm:$0xff]
    %v4298 = vld [vmem:[%s4261 + $0x120] sm:$0xff]
    %v4299 = vld [vmem:[%s4261 + $0x128] sm:$0xff]
    %v4300 = vld [vmem:[%s4261 + $0x130] sm:$0xff]
    %v4301 = vld [vmem:[%s4261 + $0x138] sm:$0xff]
    %v4302 = vld [vmem:[%s4261 + $0x140] sm:$0xff]
    %v4303 = vld [vmem:[%s4261 + $0x148] sm:$0xff]
    %v4304 = vld [vmem:[%s4261 + $0x150] sm:$0xff]
    %v4305 = vld [vmem:[%s4261 + $0x158] sm:$0xff]
    %v4306 = vld [vmem:[%s4261 + $0x160] sm:$0xff]
    %v4307 = vld [vmem:[%s4261 + $0x168] sm:$0xff]
    %v4308 = vld [vmem:[%s4261 + $0x170] sm:$0xff]
    %v4309 = vld [vmem:[%s4261 + $0x178] sm:$0xff]
    %v4310 = vld [vmem:[%s4261 + $0x180] sm:$0xff]
    %v4311 = vld [vmem:[%s4261 + $0x188] sm:$0xff]
    %v4312 = vld [vmem:[%s4261 + $0x190] sm:$0xff]
    %v4313 = vld [vmem:[%s4261 + $0x198] sm:$0xff]
    %v4314 = vld [vmem:[%s4261 + $0x1a0] sm:$0xff]
    %v4315 = vld [vmem:[%s4261 + $0x1a8] sm:$0xff]
    %v4316 = vld [vmem:[%s4261 + $0x1b0] sm:$0xff]
    %v4317 = vld [vmem:[%s4261 + $0x1b8] sm:$0xff]
    %v4318 = vld [vmem:[%s4261 + $0x1c0] sm:$0xff]
    %v4319 = vld [vmem:[%s4261 + $0x1c8] sm:$0xff]
    %v4320 = vld [vmem:[%s4261 + $0x1d0] sm:$0xff]
    %v4321 = vld [vmem:[%s4261 + $0x1d8] sm:$0xff]
    %v4322 = vld [vmem:[%s4261 + $0x1e0] sm:$0xff]
    %v4323 = vld [vmem:[%s4261 + $0x1e8] sm:$0xff]
    %v4324 = vld [vmem:[%s4261 + $0x1f0] sm:$0xff]
    %v4325 = vld [vmem:[%s4261 + $0x1f8] sm:$0xff]
    %v4326 = vadd.f32 %v4262, %v4007
    %v4327 = vadd.f32 %v4263, %v4010
    %v4328 = vadd.f32 %v4264, %v4015
    %v4329 = vadd.f32 %v4265, %v4018
    %v4330 = vadd.f32 %v4266, %v4023
    %v4331 = vadd.f32 %v4267, %v4026
    %v4332 = vadd.f32 %v4268, %v4031
    %v4333 = vadd.f32 %v4269, %v4034
    %v4334 = vadd.f32 %v4270, %v4039
    %v4335 = vadd.f32 %v4271, %v4042
    %v4336 = vadd.f32 %v4272, %v4047
    %v4337 = vadd.f32 %v4273, %v4050
    %v4338 = vadd.f32 %v4274, %v4055
    %v4339 = vadd.f32 %v4275, %v4058
    %v4340 = vadd.f32 %v4276, %v4063
    %v4341 = vadd.f32 %v4277, %v4066
    %v4342 = vadd.f32 %v4278, %v4071
    %v4343 = vadd.f32 %v4279, %v4074
    %v4344 = vadd.f32 %v4280, %v4079
    %v4345 = vadd.f32 %v4281, %v4082
    %v4346 = vadd.f32 %v4282, %v4087
    %v4347 = vadd.f32 %v4283, %v4090
    %v4348 = vadd.f32 %v4284, %v4095
    %v4349 = vadd.f32 %v4285, %v4098
    %v4350 = vadd.f32 %v4286, %v4103
    %v4351 = vadd.f32 %v4287, %v4106
    %v4352 = vadd.f32 %v4288, %v4111
    %v4353 = vadd.f32 %v4289, %v4114
    %v4354 = vadd.f32 %v4290, %v4119
    %v4355 = vadd.f32 %v4291, %v4122
    %v4356 = vadd.f32 %v4292, %v4127
    %v4357 = vadd.f32 %v4293, %v4130
    %v4358 = vadd.f32 %v4294, %v4135
    %v4359 = vadd.f32 %v4295, %v4138
    %v4360 = vadd.f32 %v4296, %v4143
    %v4361 = vadd.f32 %v4297, %v4146
    %v4362 = vadd.f32 %v4298, %v4151
    %v4363 = vadd.f32 %v4299, %v4154
    %v4364 = vadd.f32 %v4300, %v4159
    %v4365 = vadd.f32 %v4301, %v4162
    %v4366 = vadd.f32 %v4302, %v4167
    %v4367 = vadd.f32 %v4303, %v4170
    %v4368 = vadd.f32 %v4304, %v4175
    %v4369 = vadd.f32 %v4305, %v4178
    %v4370 = vadd.f32 %v4306, %v4183
    %v4371 = vadd.f32 %v4307, %v4186
    %v4372 = vadd.f32 %v4308, %v4191
    %v4373 = vadd.f32 %v4309, %v4194
    %v4374 = vadd.f32 %v4310, %v4199
    %v4375 = vadd.f32 %v4311, %v4202
    %v4376 = vadd.f32 %v4312, %v4207
    %v4377 = vadd.f32 %v4313, %v4210
    %v4378 = vadd.f32 %v4314, %v4215
    %v4379 = vadd.f32 %v4315, %v4218
    %v4380 = vadd.f32 %v4316, %v4223
    %v4381 = vadd.f32 %v4317, %v4226
    %v4382 = vadd.f32 %v4318, %v4231
    %v4383 = vadd.f32 %v4319, %v4234
    %v4384 = vadd.f32 %v4320, %v4239
    %v4385 = vadd.f32 %v4321, %v4242
    %v4386 = vadd.f32 %v4322, %v4247
    %v4387 = vadd.f32 %v4323, %v4250
    %v4388 = vadd.f32 %v4324, %v4255
    %v4389 = vadd.f32 %v4325, %v4258
    %4390 = vst [vmem:[#allocation16] sm:$0xff] %v4326
    %4391 = vst [vmem:[#allocation16 + $0x8] sm:$0xff] %v4327
    %4392 = vst [vmem:[#allocation16 + $0x10] sm:$0xff] %v4328
    %4393 = vst [vmem:[#allocation16 + $0x18] sm:$0xff] %v4329
    %4394 = vst [vmem:[#allocation16 + $0x20] sm:$0xff] %v4330
    %4395 = vst [vmem:[#allocation16 + $0x28] sm:$0xff] %v4331
    %4396 = vst [vmem:[#allocation16 + $0x30] sm:$0xff] %v4332
    %4397 = vst [vmem:[#allocation16 + $0x38] sm:$0xff] %v4333
    %4398 = vst [vmem:[#allocation16 + $0x40] sm:$0xff] %v4334
    %4399 = vst [vmem:[#allocation16 + $0x48] sm:$0xff] %v4335
    %4400 = vst [vmem:[#allocation16 + $0x50] sm:$0xff] %v4336
    %4401 = vst [vmem:[#allocation16 + $0x58] sm:$0xff] %v4337
    %4402 = vst [vmem:[#allocation16 + $0x60] sm:$0xff] %v4338
    %4403 = vst [vmem:[#allocation16 + $0x68] sm:$0xff] %v4339
    %4404 = vst [vmem:[#allocation16 + $0x70] sm:$0xff] %v4340
    %4405 = vst [vmem:[#allocation16 + $0x78] sm:$0xff] %v4341
    %4406 = vst [vmem:[#allocation16 + $0x80] sm:$0xff] %v4342
    %4407 = vst [vmem:[#allocation16 + $0x88] sm:$0xff] %v4343
    %4408 = vst [vmem:[#allocation16 + $0x90] sm:$0xff] %v4344
    %4409 = vst [vmem:[#allocation16 + $0x98] sm:$0xff] %v4345
    %4410 = vst [vmem:[#allocation16 + $0xa0] sm:$0xff] %v4346
    %4411 = vst [vmem:[#allocation16 + $0xa8] sm:$0xff] %v4347
    %4412 = vst [vmem:[#allocation16 + $0xb0] sm:$0xff] %v4348
    %4413 = vst [vmem:[#allocation16 + $0xb8] sm:$0xff] %v4349
    %4414 = vst [vmem:[#allocation16 + $0xc0] sm:$0xff] %v4350
    %4415 = vst [vmem:[#allocation16 + $0xc8] sm:$0xff] %v4351
    %4416 = vst [vmem:[#allocation16 + $0xd0] sm:$0xff] %v4352
    %4417 = vst [vmem:[#allocation16 + $0xd8] sm:$0xff] %v4353
    %4418 = vst [vmem:[#allocation16 + $0xe0] sm:$0xff] %v4354
    %4419 = vst [vmem:[#allocation16 + $0xe8] sm:$0xff] %v4355
    %4420 = vst [vmem:[#allocation16 + $0xf0] sm:$0xff] %v4356
    %4421 = vst [vmem:[#allocation16 + $0xf8] sm:$0xff] %v4357
    %4422 = vst [vmem:[#allocation16 + $0x100] sm:$0xff] %v4358
    %4423 = vst [vmem:[#allocation16 + $0x108] sm:$0xff] %v4359
    %4424 = vst [vmem:[#allocation16 + $0x110] sm:$0xff] %v4360
    %4425 = vst [vmem:[#allocation16 + $0x118] sm:$0xff] %v4361
    %4426 = vst [vmem:[#allocation16 + $0x120] sm:$0xff] %v4362
    %4427 = vst [vmem:[#allocation16 + $0x128] sm:$0xff] %v4363
    %4428 = vst [vmem:[#allocation16 + $0x130] sm:$0xff] %v4364
    %4429 = vst [vmem:[#allocation16 + $0x138] sm:$0xff] %v4365
    %4430 = vst [vmem:[#allocation16 + $0x140] sm:$0xff] %v4366
    %4431 = vst [vmem:[#allocation16 + $0x148] sm:$0xff] %v4367
    %4432 = vst [vmem:[#allocation16 + $0x150] sm:$0xff] %v4368
    %4433 = vst [vmem:[#allocation16 + $0x158] sm:$0xff] %v4369
    %4434 = vst [vmem:[#allocation16 + $0x160] sm:$0xff] %v4370
    %4435 = vst [vmem:[#allocation16 + $0x168] sm:$0xff] %v4371
    %4436 = vst [vmem:[#allocation16 + $0x170] sm:$0xff] %v4372
    %4437 = vst [vmem:[#allocation16 + $0x178] sm:$0xff] %v4373
    %4438 = vst [vmem:[#allocation16 + $0x180] sm:$0xff] %v4374
    %4439 = vst [vmem:[#allocation16 + $0x188] sm:$0xff] %v4375
    %4440 = vst [vmem:[#allocation16 + $0x190] sm:$0xff] %v4376
    %4441 = vst [vmem:[#allocation16 + $0x198] sm:$0xff] %v4377
    %4442 = vst [vmem:[#allocation16 + $0x1a0] sm:$0xff] %v4378
    %4443 = vst [vmem:[#allocation16 + $0x1a8] sm:$0xff] %v4379
    %4444 = vst [vmem:[#allocation16 + $0x1b0] sm:$0xff] %v4380
    %4445 = vst [vmem:[#allocation16 + $0x1b8] sm:$0xff] %v4381
    %4446 = vst [vmem:[#allocation16 + $0x1c0] sm:$0xff] %v4382
    %4447 = vst [vmem:[#allocation16 + $0x1c8] sm:$0xff] %v4383
    %4448 = vst [vmem:[#allocation16 + $0x1d0] sm:$0xff] %v4384
    %4449 = vst [vmem:[#allocation16 + $0x1d8] sm:$0xff] %v4385
    %4450 = vst [vmem:[#allocation16 + $0x1e0] sm:$0xff] %v4386
    %4451 = vst [vmem:[#allocation16 + $0x1e8] sm:$0xff] %v4387
    %4452 = vst [vmem:[#allocation16 + $0x1f0] sm:$0xff] %v4388
    %4453 = vst [vmem:[#allocation16 + $0x1f8] sm:$0xff] %v4389
    // Predicated region
    $region78: #{tpu_custom_call.1} parent=1 // pred_check
      _
    $region79: #{tpu_custom_call.1} parent=1 // pred_check_branch
      %4455 = sbr.rel (0) target = $region81
    $region80: #{tpu_custom_call.1} parent=1 // pred_region
      %s4457 = ssub.s32 8192, 8192
      %4458 = vsyncadd [#allocation7], %s4457
      %s4459 = sshll.u32 [#allocation16], 4
      %s4460 = int_to_ptr.vmem [resolvable:$true] %s4459
      %4465 = dma.vmem_to_hbm [thread:$0]  %s4460, 8192, %s12, [#allocation7], 128, 128, 8
    $region81: #{tpu_custom_call.1} parent=1 // pred_fallthru
      _
    // Predicated region
    $region82: #{tpu_custom_call.1} parent=1 // pred_check
      _
    $region83: #{tpu_custom_call.1} parent=1 // pred_check_branch
      %4467 = sbr.rel (0) target = $region85
    $region84: #{tpu_custom_call.1} parent=1 // pred_region
      %4468 = dma.done [#allocation7], 8192
    $region85: #{tpu_custom_call.1} parent=1 // pred_fallthru
      _
    %4469 = vsyncpa [#allocation6], 1
    %4470 = vsyncpa [#allocation9], 1
    %4471 = vsyncpa [#allocation12], 1
    %4472 = vsyncpa [#allocation15], 1
    %4473 = vsyncpa [#allocation7], 1

</llo_original>
